<compile_context>
chip_gen: v6e
topology: v6e:2x2x1
jax: 0.10.0
libtpu: 0.0.40
codegen_flags: <defaults>
</compile_context>

<pallas_src>
import jax
import jax.numpy as jnp
from jax import lax
from jax.experimental import pallas as pl
from jax.experimental.pallas import tpu as pltpu


def _round_up(x, m):
    return (x + m - 1) // m * m


def _pick_tile(n, target, align):
    """Tile size (multiple of `align`, <= target) + padded extent + grid length for a
    1-D 'parallel' grid over `n` columns/rows. When >= 2 aligned units exist the tile
    is shrunk so the grid has >= 2 steps (keeps both v7x TensorCores busy)."""
    n_pad = _round_up(max(n, 1), align)
    units = n_pad // align
    max_units = max(target // align, 1)
    upt = min(units, max_units)
    if units >= 2:
        upt = min(upt, pl.cdiv(units, 2))
    tile = upt * align
    grid = pl.cdiv(n_pad, tile)
    return tile, grid * tile, grid


# ------------------------- Pallas kernels -------------------------

def _conv_pool_kernel(w_ref, b_ref, x00_ref, x01_ref, x10_ref, x11_ref, o_ref):
    # Fused conv-matmul + bias + ReLU + 2x2/2 max-pool.
    # w: (Co_pad, K) bf16 (VMEM resident); b: (Co_pad, 1) f32 (VMEM resident);
    # x_ij: (K, tn) bf16 patch columns for pool-window parity (i, j).
    # o = relu(max_ij(w @ x_ij) + b)  ==  maxpool2x2(relu(conv + b)),  written bf16.
    w = w_ref[...]
    m = jnp.dot(w, x00_ref[...], preferred_element_type=jnp.float32)
    m = jnp.maximum(m, jnp.dot(w, x01_ref[...], preferred_element_type=jnp.float32))
    m = jnp.maximum(m, jnp.dot(w, x10_ref[...], preferred_element_type=jnp.float32))
    m = jnp.maximum(m, jnp.dot(w, x11_ref[...], preferred_element_type=jnp.float32))
    o_ref[...] = jnp.maximum(m + b_ref[...], 0.0).astype(o_ref.dtype)


def _mlp3_kernel(x_ref, w1_ref, b1_ref, w2_ref, b2_ref, w3_ref, b3_ref, o_ref):
    # Fused 3-layer MLP: relu(x@w1+b1) -> relu(.@w2+b2) -> .@w3+b3
    # Weights bf16 (MXU, VMEM resident); accumulation/bias/ReLU in f32; hidden
    # activations are immediately re-cast to bf16 to halve vreg/VMEM pressure.
    h = jnp.dot(x_ref[...], w1_ref[...], preferred_element_type=jnp.float32)
    h = jnp.maximum(h + b1_ref[...], 0.0).astype(jnp.bfloat16)
    h = jnp.dot(h, w2_ref[...], preferred_element_type=jnp.float32)
    h = jnp.maximum(h + b2_ref[...], 0.0).astype(jnp.bfloat16)
    h = jnp.dot(h, w3_ref[...], preferred_element_type=jnp.float32)
    o_ref[...] = h + b3_ref[...]


# ------------------------- fused conv + bias + ReLU + pool stage -------------------------

def conv2d_relu_pool(x, lhs_spec, w_mat, b_col, cout, ksize=5):
    """VALID conv (stride 1, k=5) + bias + ReLU + 2x2/2 max-pool, fused in one kernel.

    x:        input tensor, bf16, layout `lhs_spec` ('NCHW' first stage, 'CNHW' second);
              spatial dims are the last two in both layouts.
    w_mat:    (Co_pad, Cin*k*k) bf16   (PyTorch Conv2d weight reshaped, Cout zero-padded).
    b_col:    (Co_pad, 1) f32.
    Returns channel-major pooled activation (cout, B, OH//2, OW//2), bf16.
    """
    H, W = x.shape[2], x.shape[3]
    B = x.shape[lhs_spec.index("N")]
    Cin = x.shape[lhs_spec.index("C")]
    K = Cin * ksize * ksize
    OH, OW = H - ksize + 1, W - ksize + 1
    assert OH % 2 == 0 and OW % 2 == 0, "2x2/2 pool needs even conv output dims"
    OHp, OWp = OH // 2, OW // 2
    Np = B * OHp * OWp
    Co_pad = w_mat.shape[0]

    # Four stride-2 patch extractions, one per pool-window parity (i, j). Patch-channel
    # order is (c, kh, kw) = PyTorch weight.reshape(Cout, Cin*KH*KW) order; out_spec
    # "CNHW" puts the patch-feature axis first so no transpose is needed afterwards.
    dn = (lhs_spec, "OIHW", "CNHW")
    xs = []
    for i in (0, 1):
        for j in (0, 1):
            p = lax.conv_general_dilated_patches(
                x[:, :, i:, j:], (ksize, ksize), (2, 2), "VALID",
                dimension_numbers=dn)                       # (K, B, OHp, OWp), bf16
            xs.append(p.reshape(K, Np))

    tn, Np_pad, grid = _pick_tile(Np, target=2048, align=128)
    if Np_pad != Np:
        xs = [jnp.pad(p, ((0, 0), (0, Np_pad - Np))) for p in xs]

    x_map = lambda n: (0, n)
    x_spec = pl.BlockSpec((K, tn), x_map)                     # streamed, double-buffered
    resident = pl.BlockSpec(memory_space=pltpu.MemorySpace.VMEM)  # single-buffered invariant

    y = pl.pallas_call(
        _conv_pool_kernel,
        out_shape=jax.ShapeDtypeStruct((Co_pad, Np_pad), jnp.bfloat16),
        grid=(grid,),
        in_specs=[resident, resident, x_spec, x_spec, x_spec, x_spec],
        out_specs=pl.BlockSpec((Co_pad, tn), x_map),
        compiler_params=pltpu.CompilerParams(
            dimension_semantics=("parallel",),
            vmem_limit_bytes=32 * 1024 * 1024),
    )(w_mat, b_col, *xs)

    # Padded columns hold relu(bias) garbage; sliced off here (pool windows never
    # straddle real/padded columns since each column is already one pooled position).
    return y[:cout, :Np].reshape(cout, B, OHp, OWp)


# ------------------------- fused 3-layer MLP -------------------------

def mlp3_fused(x, w1, b1, w2, b2, w3, b3):
    """One Pallas kernel for fc1+ReLU+fc2+ReLU+fc3 with all weights VMEM resident."""
    B, Din = x.shape
    Dout = w3.shape[1]

    tb, B_pad, grid = _pick_tile(B, target=512, align=16)   # 16 = bf16 sublane pack
    if B_pad != B:
        x = jnp.pad(x, ((0, B_pad - B), (0, 0)))
    x = x.astype(jnp.bfloat16)

    resident = pl.BlockSpec(memory_space=pltpu.MemorySpace.VMEM)

    out = pl.pallas_call(
        _mlp3_kernel,
        out_shape=jax.ShapeDtypeStruct((B_pad, Dout), jnp.float32),
        grid=(grid,),
        in_specs=[pl.BlockSpec((tb, Din), lambda i: (i, 0))] + [resident] * 6,
        out_specs=pl.BlockSpec((tb, Dout), lambda i: (i, 0)),
        compiler_params=pltpu.CompilerParams(
            dimension_semantics=("parallel",),
            vmem_limit_bytes=32 * 1024 * 1024),
    )(x, w1, b1, w2, b2, w3, b3)
    return out[:B]


# ------------------------- parameters -------------------------

def init_params(key):
    ks = jax.random.split(key, 10)

    def u(k, shape, fan_in):
        bound = 1.0 / jnp.sqrt(jnp.float32(fan_in))
        return jax.random.uniform(k, shape, jnp.float32, -bound, bound)

    return {
        "conv1_w": u(ks[0], (6, 3, 5, 5), 3 * 25),
        "conv1_b": u(ks[1], (6,), 3 * 25),
        "conv2_w": u(ks[2], (16, 6, 5, 5), 6 * 25),
        "conv2_b": u(ks[3], (16,), 6 * 25),
        "fc1_w": u(ks[4], (800, 400), 400),   # PyTorch Linear layout: (out, in)
        "fc1_b": u(ks[5], (800,), 400),
        "fc2_w": u(ks[6], (800, 800), 800),
        "fc2_b": u(ks[7], (800,), 800),
        "fc3_w": u(ks[8], (400, 800), 800),
        "fc3_b": u(ks[9], (400,), 800),
    }


def prepare_params(params):
    """One-time repack of PyTorch-layout params into kernel-friendly layouts:
    conv weights -> (Cout padded to 16, Cin*K*K) bf16 matmul form, (Cout_pad,1) f32 bias;
    FC weights pre-transposed to (in, out) bf16; FC biases -> (1, out) f32."""
    def conv_prep(w, b):
        cout, cin, kh, kw = w.shape
        k = cin * kh * kw
        co_p = _round_up(cout, 16)          # bf16 packs 16 rows per vreg
        wm = jnp.pad(w.reshape(cout, k), ((0, co_p - cout), (0, 0)))
        bc = jnp.pad(b, (0, co_p - cout)).reshape(co_p, 1)
        return wm.astype(jnp.bfloat16), bc.astype(jnp.float32)

    c1w, c1b = conv_prep(params["conv1_w"], params["conv1_b"])
    c2w, c2b = conv_prep(params["conv2_w"], params["conv2_b"])
    return {
        "conv1_w": c1w, "conv1_b": c1b,
        "conv2_w": c2w, "conv2_b": c2b,
        "fc1_w": params["fc1_w"].T.astype(jnp.bfloat16),
        "fc1_b": params["fc1_b"].reshape(1, -1).astype(jnp.float32),
        "fc2_w": params["fc2_w"].T.astype(jnp.bfloat16),
        "fc2_b": params["fc2_b"].reshape(1, -1).astype(jnp.float32),
        "fc3_w": params["fc3_w"].T.astype(jnp.bfloat16),
        "fc3_b": params["fc3_b"].reshape(1, -1).astype(jnp.float32),
    }


# ------------------------- forward -------------------------

def image_nn2_forward(prep, x_nchw):
    # bf16 before patch extraction so the (K, N) patch matrices are bf16 (half HBM).
    x = x_nchw.astype(jnp.bfloat16)                                          # (B,3,32,32)
    x = conv2d_relu_pool(x, "NCHW", prep["conv1_w"], prep["conv1_b"], 6)     # (6,B,14,14)
    x = conv2d_relu_pool(x, "CNHW", prep["conv2_w"], prep["conv2_b"], 16)    # (16,B,5,5)
    B = x.shape[1]
    # Tiny transpose to torch.flatten(x, 1) order (c, h, w); left to XLA.
    x = jnp.transpose(x, (1, 0, 2, 3)).reshape(B, 400)                       # (B,400)
    return mlp3_fused(x, prep["fc1_w"], prep["fc1_b"],
                      prep["fc2_w"], prep["fc2_b"],
                      prep["fc3_w"], prep["fc3_b"])                          # (B,400) f32


def reference_forward(params, x_nchw):
    # Pure-JAX f32 reference mirroring the PyTorch module.
    x = x_nchw.astype(jnp.float32)
    hp = lax.Precision.HIGHEST

    def conv(x, w, b):
        y = lax.conv_general_dilated(
            x, w, (1, 1), "VALID",
            dimension_numbers=("NCHW", "OIHW", "NCHW"), precision=hp)
        return jax.nn.relu(y + b[None, :, None, None])

    def pool(x):
        return lax.reduce_window(x, -jnp.inf, lax.max,
                                 (1, 1, 2, 2), (1, 1, 2, 2), "VALID")

    x = pool(conv(x, params["conv1_w"], params["conv1_b"]))
    x = pool(conv(x, params["conv2_w"], params["conv2_b"]))
    x = x.reshape(x.shape[0], -1)
    x = jax.nn.relu(jnp.dot(x, params["fc1_w"].T, precision=hp) + params["fc1_b"])
    x = jax.nn.relu(jnp.dot(x, params["fc2_w"].T, precision=hp) + params["fc2_b"])
    return jnp.dot(x, params["fc3_w"].T, precision=hp) + params["fc3_b"]


if __name__ == "__main__":
    key = jax.random.PRNGKey(0)
    pkey, xkey = jax.random.split(key)
    params = init_params(pkey)
    prep = prepare_params(params)

    # 400 = 16*5*5 flatten implies 32x32 spatial input.
    x = jax.random.normal(xkey, (2, 3, 32, 32), jnp.float32)

    fwd = jax.jit(image_nn2_forward)
    out = jax.block_until_ready(fwd(prep, x))
    assert out.shape == (2, 400), out.shape

    ref = reference_forward(params, x)
    err = float(jnp.max(jnp.abs(out - ref)))
    # bf16 activations/weights on the MXU with f32 accumulation: ~1e-3..1e-2 vs the
    # f32 reference (documented trade-off); a real layout/ordering bug would be >0.1.
    assert jnp.allclose(out, ref, rtol=5e-2, atol=5e-2), f"max abs err {err}"

    print("KERNEL_OK")
</pallas_src>

<mosaic_0001>
module attributes {stable_mosaic.version = 11 : i64} {
  func.func @_conv_pool_kernel(%arg0: i32, %arg1: memref<16x75xbf16, #tpu.memory_space<vmem>>, %arg2: memref<16x1xf32, #tpu.memory_space<vmem>>, %arg3: memref<75x256xbf16, #tpu.memory_space<vmem>>, %arg4: memref<75x256xbf16, #tpu.memory_space<vmem>>, %arg5: memref<75x256xbf16, #tpu.memory_space<vmem>>, %arg6: memref<75x256xbf16, #tpu.memory_space<vmem>>, %arg7: memref<16x256xbf16, #tpu.memory_space<vmem>>) attributes {dimension_semantics = [#tpu.dimension_semantics<parallel>], iteration_bounds = array<i64: 2>, scalar_prefetch = 0 : i64, scratch_operands = 0 : i64, tpu.core_type = #tpu.core_type<tc>, window_params = [{pipeline_mode = #tpu.pipeline_mode<synchronous>, transform_indices = @transform_0, window_bounds = array<i64: 16, 75>}, {pipeline_mode = #tpu.pipeline_mode<synchronous>, transform_indices = @transform_1, window_bounds = array<i64: 16, 1>}, {transform_indices = @transform_2, window_bounds = array<i64: 75, 256>}, {transform_indices = @transform_3, window_bounds = array<i64: 75, 256>}, {transform_indices = @transform_4, window_bounds = array<i64: 75, 256>}, {transform_indices = @transform_5, window_bounds = array<i64: 75, 256>}, {transform_indices = @transform_6, window_bounds = array<i64: 16, 256>}]} {
    %c0 = arith.constant 0 : index
    %c0_0 = arith.constant 0 : index
    %0 = vector.load %arg1[%c0, %c0_0] : memref<16x75xbf16, #tpu.memory_space<vmem>>, vector<16x75xbf16>
    %c0_1 = arith.constant 0 : index
    %c0_2 = arith.constant 0 : index
    %1 = vector.load %arg3[%c0_1, %c0_2] : memref<75x256xbf16, #tpu.memory_space<vmem>>, vector<75x256xbf16>
    %cst = arith.constant dense<0.000000e+00> : vector<16x256xf32>
    %2 = tpu.matmul %0, %1, %cst {dimension_numbers = #tpu.dot_dimension_numbers<[1], [0], [0], [1], [0, 0, 1, 1], [], []>} : vector<16x75xbf16>, vector<75x256xbf16>, vector<16x256xf32> -> vector<16x256xf32>
    %c0_3 = arith.constant 0 : index
    %c0_4 = arith.constant 0 : index
    %3 = vector.load %arg4[%c0_3, %c0_4] : memref<75x256xbf16, #tpu.memory_space<vmem>>, vector<75x256xbf16>
    %cst_5 = arith.constant dense<0.000000e+00> : vector<16x256xf32>
    %4 = tpu.matmul %0, %3, %cst_5 {dimension_numbers = #tpu.dot_dimension_numbers<[1], [0], [0], [1], [0, 0, 1, 1], [], []>} : vector<16x75xbf16>, vector<75x256xbf16>, vector<16x256xf32> -> vector<16x256xf32>
    %5 = arith.maximumf %2, %4 : vector<16x256xf32>
    %c0_6 = arith.constant 0 : index
    %c0_7 = arith.constant 0 : index
    %6 = vector.load %arg5[%c0_6, %c0_7] : memref<75x256xbf16, #tpu.memory_space<vmem>>, vector<75x256xbf16>
    %cst_8 = arith.constant dense<0.000000e+00> : vector<16x256xf32>
    %7 = tpu.matmul %0, %6, %cst_8 {dimension_numbers = #tpu.dot_dimension_numbers<[1], [0], [0], [1], [0, 0, 1, 1], [], []>} : vector<16x75xbf16>, vector<75x256xbf16>, vector<16x256xf32> -> vector<16x256xf32>
    %8 = arith.maximumf %5, %7 : vector<16x256xf32>
    %c0_9 = arith.constant 0 : index
    %c0_10 = arith.constant 0 : index
    %9 = vector.load %arg6[%c0_9, %c0_10] : memref<75x256xbf16, #tpu.memory_space<vmem>>, vector<75x256xbf16>
    %cst_11 = arith.constant dense<0.000000e+00> : vector<16x256xf32>
    %10 = tpu.matmul %0, %9, %cst_11 {dimension_numbers = #tpu.dot_dimension_numbers<[1], [0], [0], [1], [0, 0, 1, 1], [], []>} : vector<16x75xbf16>, vector<75x256xbf16>, vector<16x256xf32> -> vector<16x256xf32>
    %11 = arith.maximumf %8, %10 : vector<16x256xf32>
    %c0_12 = arith.constant 0 : index
    %c0_13 = arith.constant 0 : index
    %12 = vector.load %arg2[%c0_12, %c0_13] : memref<16x1xf32, #tpu.memory_space<vmem>>, vector<16x1xf32>
    %13 = vector.broadcast %12 : vector<16x1xf32> to vector<16x256xf32>
    %14 = arith.addf %11, %13 : vector<16x256xf32>
    %cst_14 = arith.constant 0.000000e+00 : f32
    %15 = vector.broadcast %cst_14 : f32 to vector<16x256xf32>
    %16 = arith.maximumf %14, %15 : vector<16x256xf32>
    %17 = arith.truncf %16 : vector<16x256xf32> to vector<16x256xbf16>
    %c0_15 = arith.constant 0 : index
    %c0_16 = arith.constant 0 : index
    %18 = vector.load %arg7[%c0_15, %c0_16] : memref<16x256xbf16, #tpu.memory_space<vmem>>, vector<16x256xbf16>
    tpu.vector_store %arg7[%c0_15, %c0_16], %17 {strides = array<i32>} : memref<16x256xbf16, #tpu.memory_space<vmem>>, vector<16x256xbf16>,
    return
  }
  func.func @transform_0(%arg0: i32) -> (i32, i32) {
    %c0_i32 = arith.constant 0 : i32
    %c0_i32_0 = arith.constant 0 : i32
    %c0_i32_1 = arith.constant 0 : i32
    return %c0_i32, %c0_i32_0 : i32, i32
  }
  func.func @transform_1(%arg0: i32) -> (i32, i32) {
    %c0_i32 = arith.constant 0 : i32
    %c0_i32_0 = arith.constant 0 : i32
    %c0_i32_1 = arith.constant 0 : i32
    return %c0_i32, %c0_i32_0 : i32, i32
  }
  func.func @transform_2(%arg0: i32) -> (i32, i32) {
    %c0_i32 = arith.constant 0 : i32
    %c0_i32_0 = arith.constant 0 : i32
    return %c0_i32, %arg0 : i32, i32
  }
  func.func @transform_3(%arg0: i32) -> (i32, i32) {
    %c0_i32 = arith.constant 0 : i32
    %c0_i32_0 = arith.constant 0 : i32
    return %c0_i32, %arg0 : i32, i32
  }
  func.func @transform_4(%arg0: i32) -> (i32, i32) {
    %c0_i32 = arith.constant 0 : i32
    %c0_i32_0 = arith.constant 0 : i32
    return %c0_i32, %arg0 : i32, i32
  }
  func.func @transform_5(%arg0: i32) -> (i32, i32) {
    %c0_i32 = arith.constant 0 : i32
    %c0_i32_0 = arith.constant 0 : i32
    return %c0_i32, %arg0 : i32, i32
  }
  func.func @transform_6(%arg0: i32) -> (i32, i32) {
    %c0_i32 = arith.constant 0 : i32
    %c0_i32_0 = arith.constant 0 : i32
    return %c0_i32, %arg0 : i32, i32
  }
}

module attributes {stable_mosaic.version = 11 : i64} {
  func.func @_conv_pool_kernel(%arg0: i32, %arg1: memref<16x150xbf16, #tpu.memory_space<vmem>>, %arg2: memref<16x1xf32, #tpu.memory_space<vmem>>, %arg3: memref<150x128xbf16, #tpu.memory_space<vmem>>, %arg4: memref<150x128xbf16, #tpu.memory_space<vmem>>, %arg5: memref<150x128xbf16, #tpu.memory_space<vmem>>, %arg6: memref<150x128xbf16, #tpu.memory_space<vmem>>, %arg7: memref<16x128xbf16, #tpu.memory_space<vmem>>) attributes {dimension_semantics = [#tpu.dimension_semantics<parallel>], iteration_bounds = array<i64: 1>, scalar_prefetch = 0 : i64, scratch_operands = 0 : i64, tpu.core_type = #tpu.core_type<tc>, window_params = [{pipeline_mode = #tpu.pipeline_mode<synchronous>, transform_indices = @transform_0, window_bounds = array<i64: 16, 150>}, {pipeline_mode = #tpu.pipeline_mode<synchronous>, transform_indices = @transform_1, window_bounds = array<i64: 16, 1>}, {transform_indices = @transform_2, window_bounds = array<i64: 150, 128>}, {transform_indices = @transform_3, window_bounds = array<i64: 150, 128>}, {transform_indices = @transform_4, window_bounds = array<i64: 150, 128>}, {transform_indices = @transform_5, window_bounds = array<i64: 150, 128>}, {transform_indices = @transform_6, window_bounds = array<i64: 16, 128>}]} {
    %c0 = arith.constant 0 : index
    %c0_0 = arith.constant 0 : index
    %0 = vector.load %arg1[%c0, %c0_0] : memref<16x150xbf16, #tpu.memory_space<vmem>>, vector<16x150xbf16>
    %c0_1 = arith.constant 0 : index
    %c0_2 = arith.constant 0 : index
    %1 = vector.load %arg3[%c0_1, %c0_2] : memref<150x128xbf16, #tpu.memory_space<vmem>>, vector<150x128xbf16>
    %cst = arith.constant dense<0.000000e+00> : vector<16x128xf32>
    %2 = tpu.matmul %0, %1, %cst {dimension_numbers = #tpu.dot_dimension_numbers<[1], [0], [0], [1], [0, 0, 1, 1], [], []>} : vector<16x150xbf16>, vector<150x128xbf16>, vector<16x128xf32> -> vector<16x128xf32>
    %c0_3 = arith.constant 0 : index
    %c0_4 = arith.constant 0 : index
    %3 = vector.load %arg4[%c0_3, %c0_4] : memref<150x128xbf16, #tpu.memory_space<vmem>>, vector<150x128xbf16>
    %cst_5 = arith.constant dense<0.000000e+00> : vector<16x128xf32>
    %4 = tpu.matmul %0, %3, %cst_5 {dimension_numbers = #tpu.dot_dimension_numbers<[1], [0], [0], [1], [0, 0, 1, 1], [], []>} : vector<16x150xbf16>, vector<150x128xbf16>, vector<16x128xf32> -> vector<16x128xf32>
    %5 = arith.maximumf %2, %4 : vector<16x128xf32>
    %c0_6 = arith.constant 0 : index
    %c0_7 = arith.constant 0 : index
    %6 = vector.load %arg5[%c0_6, %c0_7] : memref<150x128xbf16, #tpu.memory_space<vmem>>, vector<150x128xbf16>
    %cst_8 = arith.constant dense<0.000000e+00> : vector<16x128xf32>
    %7 = tpu.matmul %0, %6, %cst_8 {dimension_numbers = #tpu.dot_dimension_numbers<[1], [0], [0], [1], [0, 0, 1, 1], [], []>} : vector<16x150xbf16>, vector<150x128xbf16>, vector<16x128xf32> -> vector<16x128xf32>
    %8 = arith.maximumf %5, %7 : vector<16x128xf32>
    %c0_9 = arith.constant 0 : index
    %c0_10 = arith.constant 0 : index
    %9 = vector.load %arg6[%c0_9, %c0_10] : memref<150x128xbf16, #tpu.memory_space<vmem>>, vector<150x128xbf16>
    %cst_11 = arith.constant dense<0.000000e+00> : vector<16x128xf32>
    %10 = tpu.matmul %0, %9, %cst_11 {dimension_numbers = #tpu.dot_dimension_numbers<[1], [0], [0], [1], [0, 0, 1, 1], [], []>} : vector<16x150xbf16>, vector<150x128xbf16>, vector<16x128xf32> -> vector<16x128xf32>
    %11 = arith.maximumf %8, %10 : vector<16x128xf32>
    %c0_12 = arith.constant 0 : index
    %c0_13 = arith.constant 0 : index
    %12 = vector.load %arg2[%c0_12, %c0_13] : memref<16x1xf32, #tpu.memory_space<vmem>>, vector<16x1xf32>
    %13 = vector.broadcast %12 : vector<16x1xf32> to vector<16x128xf32>
    %14 = arith.addf %11, %13 : vector<16x128xf32>
    %cst_14 = arith.constant 0.000000e+00 : f32
    %15 = vector.broadcast %cst_14 : f32 to vector<16x128xf32>
    %16 = arith.maximumf %14, %15 : vector<16x128xf32>
    %17 = arith.truncf %16 : vector<16x128xf32> to vector<16x128xbf16>
    %c0_15 = arith.constant 0 : index
    %c0_16 = arith.constant 0 : index
    %18 = vector.load %arg7[%c0_15, %c0_16] : memref<16x128xbf16, #tpu.memory_space<vmem>>, vector<16x128xbf16>
    tpu.vector_store %arg7[%c0_15, %c0_16], %17 {strides = array<i32>} : memref<16x128xbf16, #tpu.memory_space<vmem>>, vector<16x128xbf16>,
    return
  }
  func.func @transform_0(%arg0: i32) -> (i32, i32) {
    %c0_i32 = arith.constant 0 : i32
    %c0_i32_0 = arith.constant 0 : i32
    %c0_i32_1 = arith.constant 0 : i32
    return %c0_i32, %c0_i32_0 : i32, i32
  }
  func.func @transform_1(%arg0: i32) -> (i32, i32) {
    %c0_i32 = arith.constant 0 : i32
    %c0_i32_0 = arith.constant 0 : i32
    %c0_i32_1 = arith.constant 0 : i32
    return %c0_i32, %c0_i32_0 : i32, i32
  }
  func.func @transform_2(%arg0: i32) -> (i32, i32) {
    %c0_i32 = arith.constant 0 : i32
    %c0_i32_0 = arith.constant 0 : i32
    return %c0_i32, %arg0 : i32, i32
  }
  func.func @transform_3(%arg0: i32) -> (i32, i32) {
    %c0_i32 = arith.constant 0 : i32
    %c0_i32_0 = arith.constant 0 : i32
    return %c0_i32, %arg0 : i32, i32
  }
  func.func @transform_4(%arg0: i32) -> (i32, i32) {
    %c0_i32 = arith.constant 0 : i32
    %c0_i32_0 = arith.constant 0 : i32
    return %c0_i32, %arg0 : i32, i32
  }
  func.func @transform_5(%arg0: i32) -> (i32, i32) {
    %c0_i32 = arith.constant 0 : i32
    %c0_i32_0 = arith.constant 0 : i32
    return %c0_i32, %arg0 : i32, i32
  }
  func.func @transform_6(%arg0: i32) -> (i32, i32) {
    %c0_i32 = arith.constant 0 : i32
    %c0_i32_0 = arith.constant 0 : i32
    return %c0_i32, %arg0 : i32, i32
  }
}

module attributes {stable_mosaic.version = 11 : i64} {
  func.func @_mlp3_kernel(%arg0: i32, %arg1: memref<16x400xbf16, #tpu.memory_space<vmem>>, %arg2: memref<400x800xbf16, #tpu.memory_space<vmem>>, %arg3: memref<1x800xf32, #tpu.memory_space<vmem>>, %arg4: memref<800x800xbf16, #tpu.memory_space<vmem>>, %arg5: memref<1x800xf32, #tpu.memory_space<vmem>>, %arg6: memref<800x400xbf16, #tpu.memory_space<vmem>>, %arg7: memref<1x400xf32, #tpu.memory_space<vmem>>, %arg8: memref<16x400xf32, #tpu.memory_space<vmem>>) attributes {dimension_semantics = [#tpu.dimension_semantics<parallel>], iteration_bounds = array<i64: 1>, scalar_prefetch = 0 : i64, scratch_operands = 0 : i64, tpu.core_type = #tpu.core_type<tc>, window_params = [{transform_indices = @transform_0, window_bounds = array<i64: 16, 400>}, {pipeline_mode = #tpu.pipeline_mode<synchronous>, transform_indices = @transform_1, window_bounds = array<i64: 400, 800>}, {pipeline_mode = #tpu.pipeline_mode<synchronous>, transform_indices = @transform_2, window_bounds = array<i64: 1, 800>}, {pipeline_mode = #tpu.pipeline_mode<synchronous>, transform_indices = @transform_3, window_bounds = array<i64: 800, 800>}, {pipeline_mode = #tpu.pipeline_mode<synchronous>, transform_indices = @transform_4, window_bounds = array<i64: 1, 800>}, {pipeline_mode = #tpu.pipeline_mode<synchronous>, transform_indices = @transform_5, window_bounds = array<i64: 800, 400>}, {pipeline_mode = #tpu.pipeline_mode<synchronous>, transform_indices = @transform_6, window_bounds = array<i64: 1, 400>}, {transform_indices = @transform_7, window_bounds = array<i64: 16, 400>}]} {
    %c0 = arith.constant 0 : index
    %c0_0 = arith.constant 0 : index
    %0 = vector.load %arg1[%c0, %c0_0] : memref<16x400xbf16, #tpu.memory_space<vmem>>, vector<16x400xbf16>
    %c0_1 = arith.constant 0 : index
    %c0_2 = arith.constant 0 : index
    %1 = vector.load %arg2[%c0_1, %c0_2] : memref<400x800xbf16, #tpu.memory_space<vmem>>, vector<400x800xbf16>
    %cst = arith.constant dense<0.000000e+00> : vector<16x800xf32>
    %2 = tpu.matmul %0, %1, %cst {dimension_numbers = #tpu.dot_dimension_numbers<[1], [0], [0], [1], [0, 0, 1, 1], [], []>} : vector<16x400xbf16>, vector<400x800xbf16>, vector<16x800xf32> -> vector<16x800xf32>
    %c0_3 = arith.constant 0 : index
    %c0_4 = arith.constant 0 : index
    %3 = vector.load %arg3[%c0_3, %c0_4] : memref<1x800xf32, #tpu.memory_space<vmem>>, vector<1x800xf32>
    %4 = vector.broadcast %3 : vector<1x800xf32> to vector<16x800xf32>
    %5 = arith.addf %2, %4 : vector<16x800xf32>
    %cst_5 = arith.constant 0.000000e+00 : f32
    %6 = vector.broadcast %cst_5 : f32 to vector<16x800xf32>
    %7 = arith.maximumf %5, %6 : vector<16x800xf32>
    %8 = arith.truncf %7 : vector<16x800xf32> to vector<16x800xbf16>
    %c0_6 = arith.constant 0 : index
    %c0_7 = arith.constant 0 : index
    %9 = vector.load %arg4[%c0_6, %c0_7] : memref<800x800xbf16, #tpu.memory_space<vmem>>, vector<800x800xbf16>
    %cst_8 = arith.constant dense<0.000000e+00> : vector<16x800xf32>
    %10 = tpu.matmul %8, %9, %cst_8 {dimension_numbers = #tpu.dot_dimension_numbers<[1], [0], [0], [1], [0, 0, 1, 1], [], []>} : vector<16x800xbf16>, vector<800x800xbf16>, vector<16x800xf32> -> vector<16x800xf32>
    %c0_9 = arith.constant 0 : index
    %c0_10 = arith.constant 0 : index
    %11 = vector.load %arg5[%c0_9, %c0_10] : memref<1x800xf32, #tpu.memory_space<vmem>>, vector<1x800xf32>
    %12 = vector.broadcast %11 : vector<1x800xf32> to vector<16x800xf32>
    %13 = arith.addf %10, %12 : vector<16x800xf32>
    %cst_11 = arith.constant 0.000000e+00 : f32
    %14 = vector.broadcast %cst_11 : f32 to vector<16x800xf32>
    %15 = arith.maximumf %13, %14 : vector<16x800xf32>
    %16 = arith.truncf %15 : vector<16x800xf32> to vector<16x800xbf16>
    %c0_12 = arith.constant 0 : index
    %c0_13 = arith.constant 0 : index
    %17 = vector.load %arg6[%c0_12, %c0_13] : memref<800x400xbf16, #tpu.memory_space<vmem>>, vector<800x400xbf16>
    %cst_14 = arith.constant dense<0.000000e+00> : vector<16x400xf32>
    %18 = tpu.matmul %16, %17, %cst_14 {dimension_numbers = #tpu.dot_dimension_numbers<[1], [0], [0], [1], [0, 0, 1, 1], [], []>} : vector<16x800xbf16>, vector<800x400xbf16>, vector<16x400xf32> -> vector<16x400xf32>
    %c0_15 = arith.constant 0 : index
    %c0_16 = arith.constant 0 : index
    %19 = vector.load %arg7[%c0_15, %c0_16] : memref<1x400xf32, #tpu.memory_space<vmem>>, vector<1x400xf32>
    %20 = vector.broadcast %19 : vector<1x400xf32> to vector<16x400xf32>
    %21 = arith.addf %18, %20 : vector<16x400xf32>
    %c0_17 = arith.constant 0 : index
    %c0_18 = arith.constant 0 : index
    %22 = vector.load %arg8[%c0_17, %c0_18] : memref<16x400xf32, #tpu.memory_space<vmem>>, vector<16x400xf32>
    tpu.vector_store %arg8[%c0_17, %c0_18], %21 {strides = array<i32>} : memref<16x400xf32, #tpu.memory_space<vmem>>, vector<16x400xf32>,
    return
  }
  func.func @transform_0(%arg0: i32) -> (i32, i32) {
    %c0_i32 = arith.constant 0 : i32
    %c0_i32_0 = arith.constant 0 : i32
    return %arg0, %c0_i32 : i32, i32
  }
  func.func @transform_1(%arg0: i32) -> (i32, i32) {
    %c0_i32 = arith.constant 0 : i32
    %c0_i32_0 = arith.constant 0 : i32
    %c0_i32_1 = arith.constant 0 : i32
    return %c0_i32, %c0_i32_0 : i32, i32
  }
  func.func @transform_2(%arg0: i32) -> (i32, i32) {
    %c0_i32 = arith.constant 0 : i32
    %c0_i32_0 = arith.constant 0 : i32
    %c0_i32_1 = arith.constant 0 : i32
    return %c0_i32, %c0_i32_0 : i32, i32
  }
  func.func @transform_3(%arg0: i32) -> (i32, i32) {
    %c0_i32 = arith.constant 0 : i32
    %c0_i32_0 = arith.constant 0 : i32
    %c0_i32_1 = arith.constant 0 : i32
    return %c0_i32, %c0_i32_0 : i32, i32
  }
  func.func @transform_4(%arg0: i32) -> (i32, i32) {
    %c0_i32 = arith.constant 0 : i32
    %c0_i32_0 = arith.constant 0 : i32
    %c0_i32_1 = arith.constant 0 : i32
    return %c0_i32, %c0_i32_0 : i32, i32
  }
  func.func @transform_5(%arg0: i32) -> (i32, i32) {
    %c0_i32 = arith.constant 0 : i32
    %c0_i32_0 = arith.constant 0 : i32
    %c0_i32_1 = arith.constant 0 : i32
    return %c0_i32, %c0_i32_0 : i32, i32
  }
  func.func @transform_6(%arg0: i32) -> (i32, i32) {
    %c0_i32 = arith.constant 0 : i32
    %c0_i32_0 = arith.constant 0 : i32
    %c0_i32_1 = arith.constant 0 : i32
    return %c0_i32, %c0_i32_0 : i32, i32
  }
  func.func @transform_7(%arg0: i32) -> (i32, i32) {
    %c0_i32 = arith.constant 0 : i32
    %c0_i32_0 = arith.constant 0 : i32
    return %arg0, %c0_i32 : i32, i32
  }
}

</mosaic_0001>

<llo_original>
// kernel: image_nn2_forward.3
$region0: #{image_nn2_forward.3}
  #allocation0 [shape = 'u32[]', space=smem, size = 0x4, offset = 0x4, fixed_abs, tag = 'smem constant byte address 0x4 - core index']
  #allocation1 [shape = 'u32[144,128]{1,0:T(1,128)}', space=vmem, size = 0x12000, scoped, tag = 'internal scratch']
  %s0 = inlined_call_operand.vmem [shape: bf16[16,75], index: 0, kind: input, shape index: {}]
  %s1 = inlined_call_operand.vmem [shape: f32[16,1], index: 1, kind: input, shape index: {}]
  %s2 = inlined_call_operand.vmem [shape: bf16[75,512], index: 2, kind: input, shape index: {}]
  %s3 = inlined_call_operand.vmem [shape: bf16[75,512], index: 3, kind: input, shape index: {}]
  %s4 = inlined_call_operand.vmem [shape: bf16[75,512], index: 4, kind: input, shape index: {}]
  %s5 = inlined_call_operand.vmem [shape: bf16[75,512], index: 5, kind: input, shape index: {}]
  %s6 = inlined_call_operand.vmem [shape: bf16[16,512], index: 6, kind: output, shape index: {}]
  %s7 = sld [smem:[#allocation0]]
  $region243: #{image_nn2_forward.3} parent=0
    _
  %s9 = ssub.s32 1, %s7
  %s10 = scalar_select 0, %s9, %s7
  $region1: #{image_nn2_forward.3} parent=0
    #allocation2 [shape = 'u8[81920]{0}', space=vmem, size = 0x14000, scoped, tag = 'input window, operand 2']
    #allocation3 [shape = 'u8[81920]{0}', space=vmem, size = 0x14000, scoped, tag = 'input window, operand 3']
    #allocation4 [shape = 'u8[81920]{0}', space=vmem, size = 0x14000, scoped, tag = 'input window, operand 4']
    #allocation5 [shape = 'u8[81920]{0}', space=vmem, size = 0x14000, scoped, tag = 'input window, operand 5']
    #allocation6 [shape = 'u8[16384]{0}', space=vmem, size = 0x4000, scoped, tag = 'output window, operand 0']
    loop: start=0, step=1, limit=4
    $region2: #{image_nn2_forward.3} parent=1 // loop_pre_header
      _
    $region3: #{image_nn2_forward.3} parent=1 // loop_header
      %s12 = sphi 0, %s16
      %p13 = scmp.ge.s32.totalorder %s12, 4
      %s20 = sphi 0, %s20
      %s22 = sphi 0, %s20
      %s23 = sphi 0, %s22
      %s37 = sphi 0, %s23
      %s41 = sphi 0, %s41
      %s43 = sphi 0, %s41
      %s44 = sphi 0, %s43
      %s58 = sphi 0, %s44
      %s64 = sphi 0, %s66
      %s67 = sphi 0, %s64
      %s68 = sphi 0, %s67
      %s84 = sphi 0, %s68
      %s90 = sphi 0, %s92
      %s93 = sphi 0, %s90
      %s94 = sphi 0, %s93
      %s110 = sphi 0, %s94
      %s116 = sphi 0, %s118
      %s119 = sphi 0, %s116
      %s120 = sphi 0, %s119
      %s136 = sphi 0, %s120
      %s142 = sphi 0, %s144
      %s145 = sphi 0, %s142
      %s146 = sphi 0, %s145
      %s162 = sphi 0, %s146
      %s168 = sphi 0, %s170
      %s171 = sphi 0, %s168
      %s172 = sphi 0, %s171
      %s188 = sphi 0, %s172
    $region4: #{image_nn2_forward.3} parent=1 // loop_header_branch
      %15 = sbr.rel (%p13) target = $region8
    $region5: #{image_nn2_forward.3} parent=1 // loop_body
      %s17 = ssub.s32 %s12, 1
      %s18 = ssub.s32 %s12, 2
      %s19 = sadd.s32 %s12, 1
      %s21 = sadd.s32 %s20, 1
      %p24 = scmp.eq.s32.totalorder %s12, 1
      %p25 = scmp.ne.s32.totalorder %s20, %s22
      %p26 = scmp.eq.s32.totalorder %s12, 0
      %p27 = por %p25, %p26
      %p28 = scmp.ne.s32.totalorder %s20, %s22
      %p29 = scmp.eq.s32.totalorder %s17, 1
      %p30 = por %p28, %p29
      %p31 = scmp.ne.s32.totalorder %s22, %s23
      %p32 = scmp.eq.s32.totalorder %s17, 0
      %p33 = por %p31, %p32
      %p34 = scmp.ne.s32.totalorder %s22, %s23
      %p35 = scmp.eq.s32.totalorder %s18, 1
      %p36 = por %p34, %p35
      %p38 = scmp.ne.s32.totalorder %s23, %s37
      %p39 = scmp.eq.s32.totalorder %s18, 0
      %p40 = por %p38, %p39
      %s42 = sadd.s32 %s41, 1
      %p45 = scmp.eq.s32.totalorder %s12, 1
      %p46 = scmp.ne.s32.totalorder %s41, %s43
      %p47 = scmp.eq.s32.totalorder %s12, 0
      %p48 = por %p46, %p47
      %p49 = scmp.ne.s32.totalorder %s41, %s43
      %p50 = scmp.eq.s32.totalorder %s17, 1
      %p51 = por %p49, %p50
      %p52 = scmp.ne.s32.totalorder %s43, %s44
      %p53 = scmp.eq.s32.totalorder %s17, 0
      %p54 = por %p52, %p53
      %p55 = scmp.ne.s32.totalorder %s43, %s44
      %p56 = scmp.eq.s32.totalorder %s18, 1
      %p57 = por %p55, %p56
      %p59 = scmp.ne.s32.totalorder %s44, %s58
      %p60 = scmp.eq.s32.totalorder %s18, 0
      %p61 = por %p59, %p60
      %s62 = ssub.s32 %s12, %s19
      %p63 = scmp.eq.s32.totalorder %s62, 0
      %s65 = sadd.s32 %s64, 1
      %s66 = scalar_select %p63, %s64, %s65
      %p69 = pneg %p63
      %p70 = scmp.eq.s32.totalorder %s12, 1
      %p71 = por %p69, %p70
      %p72 = scmp.ne.s32.totalorder %s64, %s67
      %p73 = scmp.eq.s32.totalorder %s12, 0
      %p74 = por %p72, %p73
      %p75 = scmp.ne.s32.totalorder %s64, %s67
      %p76 = scmp.eq.s32.totalorder %s17, 1
      %p77 = por %p75, %p76
      %p78 = scmp.ne.s32.totalorder %s67, %s68
      %p79 = scmp.eq.s32.totalorder %s17, 0
      %p80 = por %p78, %p79
      %p81 = scmp.ne.s32.totalorder %s67, %s68
      %p82 = scmp.eq.s32.totalorder %s18, 1
      %p83 = por %p81, %p82
      %p85 = scmp.ne.s32.totalorder %s68, %s84
      %p86 = scmp.eq.s32.totalorder %s18, 0
      %p87 = por %p85, %p86
      %s88 = ssub.s32 %s12, %s19
      %p89 = scmp.eq.s32.totalorder %s88, 0
      %s91 = sadd.s32 %s90, 1
      %s92 = scalar_select %p89, %s90, %s91
      %p95 = pneg %p89
      %p96 = scmp.eq.s32.totalorder %s12, 1
      %p97 = por %p95, %p96
      %p98 = scmp.ne.s32.totalorder %s90, %s93
      %p99 = scmp.eq.s32.totalorder %s12, 0
      %p100 = por %p98, %p99
      %p101 = scmp.ne.s32.totalorder %s90, %s93
      %p102 = scmp.eq.s32.totalorder %s17, 1
      %p103 = por %p101, %p102
      %p104 = scmp.ne.s32.totalorder %s93, %s94
      %p105 = scmp.eq.s32.totalorder %s17, 0
      %p106 = por %p104, %p105
      %p107 = scmp.ne.s32.totalorder %s93, %s94
      %p108 = scmp.eq.s32.totalorder %s18, 1
      %p109 = por %p107, %p108
      %p111 = scmp.ne.s32.totalorder %s94, %s110
      %p112 = scmp.eq.s32.totalorder %s18, 0
      %p113 = por %p111, %p112
      %s114 = ssub.s32 %s12, %s19
      %p115 = scmp.eq.s32.totalorder %s114, 0
      %s117 = sadd.s32 %s116, 1
      %s118 = scalar_select %p115, %s116, %s117
      %p121 = pneg %p115
      %p122 = scmp.eq.s32.totalorder %s12, 1
      %p123 = por %p121, %p122
      %p124 = scmp.ne.s32.totalorder %s116, %s119
      %p125 = scmp.eq.s32.totalorder %s12, 0
      %p126 = por %p124, %p125
      %p127 = scmp.ne.s32.totalorder %s116, %s119
      %p128 = scmp.eq.s32.totalorder %s17, 1
      %p129 = por %p127, %p128
      %p130 = scmp.ne.s32.totalorder %s119, %s120
      %p131 = scmp.eq.s32.totalorder %s17, 0
      %p132 = por %p130, %p131
      %p133 = scmp.ne.s32.totalorder %s119, %s120
      %p134 = scmp.eq.s32.totalorder %s18, 1
      %p135 = por %p133, %p134
      %p137 = scmp.ne.s32.totalorder %s120, %s136
      %p138 = scmp.eq.s32.totalorder %s18, 0
      %p139 = por %p137, %p138
      %s140 = ssub.s32 %s12, %s19
      %p141 = scmp.eq.s32.totalorder %s140, 0
      %s143 = sadd.s32 %s142, 1
      %s144 = scalar_select %p141, %s142, %s143
      %p147 = pneg %p141
      %p148 = scmp.eq.s32.totalorder %s12, 1
      %p149 = por %p147, %p148
      %p150 = scmp.ne.s32.totalorder %s142, %s145
      %p151 = scmp.eq.s32.totalorder %s12, 0
      %p152 = por %p150, %p151
      %p153 = scmp.ne.s32.totalorder %s142, %s145
      %p154 = scmp.eq.s32.totalorder %s17, 1
      %p155 = por %p153, %p154
      %p156 = scmp.ne.s32.totalorder %s145, %s146
      %p157 = scmp.eq.s32.totalorder %s17, 0
      %p158 = por %p156, %p157
      %p159 = scmp.ne.s32.totalorder %s145, %s146
      %p160 = scmp.eq.s32.totalorder %s18, 1
      %p161 = por %p159, %p160
      %p163 = scmp.ne.s32.totalorder %s146, %s162
      %p164 = scmp.eq.s32.totalorder %s18, 0
      %p165 = por %p163, %p164
      %s166 = ssub.s32 %s12, %s19
      %p167 = scmp.eq.s32.totalorder %s166, 0
      %s169 = sadd.s32 %s168, 1
      %s170 = scalar_select %p167, %s168, %s169
      %p173 = pneg %p167
      %p174 = scmp.eq.s32.totalorder %s12, 1
      %p175 = por %p173, %p174
      %p176 = scmp.ne.s32.totalorder %s168, %s171
      %p177 = scmp.eq.s32.totalorder %s12, 0
      %p178 = por %p176, %p177
      %p179 = scmp.ne.s32.totalorder %s168, %s171
      %p180 = scmp.eq.s32.totalorder %s17, 1
      %p181 = por %p179, %p180
      %p182 = scmp.ne.s32.totalorder %s171, %s172
      %p183 = scmp.eq.s32.totalorder %s17, 0
      %p184 = por %p182, %p183
      %p185 = scmp.ne.s32.totalorder %s171, %s172
      %p186 = scmp.eq.s32.totalorder %s18, 1
      %p187 = por %p185, %p186
      %p189 = scmp.ne.s32.totalorder %s172, %s188
      %p190 = scmp.eq.s32.totalorder %s18, 0
      %p191 = por %p189, %p190
      %p192 = scmp.le.s32.totalorder 1, %s12
      %p193 = scmp.lt.s32.totalorder %s12, 3
      %p194 = pnand %p192, %p193
      %p195 = pneg %p194
      // Predicated region
      $region9: #{image_nn2_forward.3} parent=5 // pred_check
        _
      $region10: #{image_nn2_forward.3} parent=5 // pred_check_branch
        %197 = sbr.rel (%p194) target = $region12
      $region11: #{image_nn2_forward.3} parent=5 // pred_region
        %s198 = ssub.s32 %s12, 1
        // Predicated region
        $region13: #{image_nn2_forward.3} parent=11 // pred_check
          %p199 = pneg %p33
        $region14: #{image_nn2_forward.3} parent=11 // pred_check_branch
          %201 = sbr.rel (%p199) target = $region16
        $region15: #{image_nn2_forward.3} parent=11 // pred_region
          _
        $region16: #{image_nn2_forward.3} parent=11 // pred_fallthru
          _
        // Predicated region
        $region17: #{image_nn2_forward.3} parent=11 // pred_check
          %p202 = pneg %p54
        $region18: #{image_nn2_forward.3} parent=11 // pred_check_branch
          %204 = sbr.rel (%p202) target = $region20
        $region19: #{image_nn2_forward.3} parent=11 // pred_region
          _
        $region20: #{image_nn2_forward.3} parent=11 // pred_fallthru
          _
      $region12: #{image_nn2_forward.3} parent=5 // pred_fallthru
        _
      %p205 = scmp.lt.s32.totalorder %s12, 2
      // Predicated region
      $region21: #{image_nn2_forward.3} parent=5 // pred_check
        %p206 = pneg %p205
      $region22: #{image_nn2_forward.3} parent=5 // pred_check_branch
        %208 = sbr.rel (%p206) target = $region24
      $region23: #{image_nn2_forward.3} parent=5 // pred_region
        // Predicated region
        $region25: #{image_nn2_forward.3} parent=23 // pred_check
          %p209 = pneg %p74
        $region26: #{image_nn2_forward.3} parent=23 // pred_check_branch
          %211 = sbr.rel (%p209) target = $region28
        $region27: #{image_nn2_forward.3} parent=23 // pred_region
          %s212 = sand.u32 %s64, 1
          %s213 = sand.u32 %s64, 1
          %s214 = smul.addr %s213, 80
          %s215 = scalar_lea.vmem [#allocation2], %s214
          %s216 = smul.u32 2, %s12
          %s217 = smul.addr %s216, 4
          %s218 = scalar_lea.vmem %s2, %s217
          // Predicated region
          $region29: #{image_nn2_forward.3} parent=27 // pred_check
            _
          $region30: #{image_nn2_forward.3} parent=27 // pred_check_branch
            %220 = sbr.rel (0) target = $region32
          $region31: #{image_nn2_forward.3} parent=27 // pred_region
            // Predicated region
            $region33: #{image_nn2_forward.3} parent=31 // pred_check
              _
            $region34: #{image_nn2_forward.3} parent=31 // pred_check_branch
              %222 = sbr.rel (0) target = $region36
            $region35: #{image_nn2_forward.3} parent=31 // pred_region
              // Predicated region
              $region48: #{image_nn2_forward.3} parent=35 // pred_check
                _
              $region49: #{image_nn2_forward.3} parent=35 // pred_check_branch
                %256 = sbr.rel (0) target = $region51
              $region50: #{image_nn2_forward.3} parent=35 // pred_region
                loop: start=0, step=1, limit=1
                $region52: #{image_nn2_forward.3} parent=50 // loop_pre_header
                  _
                $region53: #{image_nn2_forward.3} parent=50 // loop_header
                  %s258 = sphi 0, %s262
                  %p259 = scmp.ge.s32.totalorder %s258, 1
                  %s263 = sphi %s218, %s218
                  %s264 = sphi %s215, %s215
                $region54: #{image_nn2_forward.3} parent=50 // loop_header_branch
                  %261 = sbr.rel (%p259) target = $region58
                $region55: #{image_nn2_forward.3} parent=50 // loop_body
                  %v265 = vld [vmem:[%s263] sm:$0xff]
                  %266 = vst [vmem:[%s264] sm:$0xff] %v265
                  %v267 = vld [vmem:[%s263 + $0x10] sm:$0xff]
                  %268 = vst [vmem:[%s264 + $0x8] sm:$0xff] %v267
                  %v269 = vld [vmem:[%s263 + $0x20] sm:$0xff]
                  %270 = vst [vmem:[%s264 + $0x10] sm:$0xff] %v269
                  %v271 = vld [vmem:[%s263 + $0x30] sm:$0xff]
                  %272 = vst [vmem:[%s264 + $0x18] sm:$0xff] %v271
                  %v273 = vld [vmem:[%s263 + $0x40] sm:$0xff]
                  %274 = vst [vmem:[%s264 + $0x20] sm:$0xff] %v273
                  %v275 = vld [vmem:[%s263 + $0x50] sm:$0xff]
                  %276 = vst [vmem:[%s264 + $0x28] sm:$0xff] %v275
                  %v277 = vld [vmem:[%s263 + $0x60] sm:$0xff]
                  %278 = vst [vmem:[%s264 + $0x30] sm:$0xff] %v277
                  %v279 = vld [vmem:[%s263 + $0x70] sm:$0xff]
                  %280 = vst [vmem:[%s264 + $0x38] sm:$0xff] %v279
                  %v281 = vld [vmem:[%s263 + $0x80] sm:$0xff]
                  %282 = vst [vmem:[%s264 + $0x40] sm:$0xff] %v281
                  %v283 = vld [vmem:[%s263 + $0x90] sm:$0xff]
                  %284 = vst [vmem:[%s264 + $0x48] sm:$0xff] %v283
                $region56: #{image_nn2_forward.3} parent=50 // loop_footer
                  %s262 = sadd.s32 1, %s258
                $region57: #{image_nn2_forward.3} parent=50 // loop_footer_branch
                  %257 = sbr.rel target = $region53
                $region58: #{image_nn2_forward.3} parent=50 // loop_exit
                  _
              $region51: #{image_nn2_forward.3} parent=35 // pred_fallthru
                _
              // Predicated region
              $region59: #{image_nn2_forward.3} parent=35 // pred_check
                _
              $region60: #{image_nn2_forward.3} parent=35 // pred_check_branch
                %286 = sbr.rel target = $region62
              $region61: #{image_nn2_forward.3} parent=35 // pred_region
                _
              $region62: #{image_nn2_forward.3} parent=35 // pred_fallthru
                _
            $region36: #{image_nn2_forward.3} parent=31 // pred_fallthru
              _
            // Predicated region
            $region37: #{image_nn2_forward.3} parent=31 // pred_check
              _
            $region38: #{image_nn2_forward.3} parent=31 // pred_check_branch
              %224 = sbr.rel target = $region40
            $region39: #{image_nn2_forward.3} parent=31 // pred_region
              %s226 = ssub.s32 256, 1
              loop: start=0, step=1, limit=1
              $region41: #{image_nn2_forward.3} parent=39 // loop_pre_header
                _
              $region42: #{image_nn2_forward.3} parent=39 // loop_header
                %s228 = sphi 0, %s232
                %p229 = scmp.ge.s32.totalorder %s228, 1
                %s233 = sphi %s218, %s218
                %s234 = sphi %s215, %s215
              $region43: #{image_nn2_forward.3} parent=39 // loop_header_branch
                %231 = sbr.rel (%p229) target = $region47
              $region44: #{image_nn2_forward.3} parent=39 // loop_body
                %v235 = vld [vmem:[%s233] sm:%s226]
                %236 = vst [vmem:[%s234] sm:%s226] %v235
                %v237 = vld [vmem:[%s233 + $0x10] sm:%s226]
                %238 = vst [vmem:[%s234 + $0x8] sm:%s226] %v237
                %v239 = vld [vmem:[%s233 + $0x20] sm:%s226]
                %240 = vst [vmem:[%s234 + $0x10] sm:%s226] %v239
                %v241 = vld [vmem:[%s233 + $0x30] sm:%s226]
                %242 = vst [vmem:[%s234 + $0x18] sm:%s226] %v241
                %v243 = vld [vmem:[%s233 + $0x40] sm:%s226]
                %244 = vst [vmem:[%s234 + $0x20] sm:%s226] %v243
                %v245 = vld [vmem:[%s233 + $0x50] sm:%s226]
                %246 = vst [vmem:[%s234 + $0x28] sm:%s226] %v245
                %v247 = vld [vmem:[%s233 + $0x60] sm:%s226]
                %248 = vst [vmem:[%s234 + $0x30] sm:%s226] %v247
                %v249 = vld [vmem:[%s233 + $0x70] sm:%s226]
                %250 = vst [vmem:[%s234 + $0x38] sm:%s226] %v249
                %v251 = vld [vmem:[%s233 + $0x80] sm:%s226]
                %252 = vst [vmem:[%s234 + $0x40] sm:%s226] %v251
                %v253 = vld [vmem:[%s233 + $0x90] sm:%s226]
                %254 = vst [vmem:[%s234 + $0x48] sm:%s226] %v253
              $region45: #{image_nn2_forward.3} parent=39 // loop_footer
                %s232 = sadd.s32 1, %s228
              $region46: #{image_nn2_forward.3} parent=39 // loop_footer_branch
                %227 = sbr.rel target = $region42
              $region47: #{image_nn2_forward.3} parent=39 // loop_exit
                _
            $region40: #{image_nn2_forward.3} parent=31 // pred_fallthru
              _
          $region32: #{image_nn2_forward.3} parent=27 // pred_fallthru
            _
          %287 = vnop
        $region28: #{image_nn2_forward.3} parent=23 // pred_fallthru
          _
        // Predicated region
        $region63: #{image_nn2_forward.3} parent=23 // pred_check
          %p288 = pneg %p100
        $region64: #{image_nn2_forward.3} parent=23 // pred_check_branch
          %290 = sbr.rel (%p288) target = $region66
        $region65: #{image_nn2_forward.3} parent=23 // pred_region
          %s291 = sand.u32 %s90, 1
          %s292 = sand.u32 %s90, 1
          %s293 = smul.addr %s292, 80
          %s294 = scalar_lea.vmem [#allocation3], %s293
          %s295 = smul.u32 2, %s12
          %s296 = smul.addr %s295, 4
          %s297 = scalar_lea.vmem %s3, %s296
          // Predicated region
          $region67: #{image_nn2_forward.3} parent=65 // pred_check
            _
          $region68: #{image_nn2_forward.3} parent=65 // pred_check_branch
            %299 = sbr.rel (0) target = $region70
          $region69: #{image_nn2_forward.3} parent=65 // pred_region
            // Predicated region
            $region71: #{image_nn2_forward.3} parent=69 // pred_check
              _
            $region72: #{image_nn2_forward.3} parent=69 // pred_check_branch
              %301 = sbr.rel (0) target = $region74
            $region73: #{image_nn2_forward.3} parent=69 // pred_region
              // Predicated region
              $region86: #{image_nn2_forward.3} parent=73 // pred_check
                _
              $region87: #{image_nn2_forward.3} parent=73 // pred_check_branch
                %335 = sbr.rel (0) target = $region89
              $region88: #{image_nn2_forward.3} parent=73 // pred_region
                loop: start=0, step=1, limit=1
                $region90: #{image_nn2_forward.3} parent=88 // loop_pre_header
                  _
                $region91: #{image_nn2_forward.3} parent=88 // loop_header
                  %s337 = sphi 0, %s341
                  %p338 = scmp.ge.s32.totalorder %s337, 1
                  %s342 = sphi %s297, %s297
                  %s343 = sphi %s294, %s294
                $region92: #{image_nn2_forward.3} parent=88 // loop_header_branch
                  %340 = sbr.rel (%p338) target = $region96
                $region93: #{image_nn2_forward.3} parent=88 // loop_body
                  %v344 = vld [vmem:[%s342] sm:$0xff]
                  %345 = vst [vmem:[%s343] sm:$0xff] %v344
                  %v346 = vld [vmem:[%s342 + $0x10] sm:$0xff]
                  %347 = vst [vmem:[%s343 + $0x8] sm:$0xff] %v346
                  %v348 = vld [vmem:[%s342 + $0x20] sm:$0xff]
                  %349 = vst [vmem:[%s343 + $0x10] sm:$0xff] %v348
                  %v350 = vld [vmem:[%s342 + $0x30] sm:$0xff]
                  %351 = vst [vmem:[%s343 + $0x18] sm:$0xff] %v350
                  %v352 = vld [vmem:[%s342 + $0x40] sm:$0xff]
                  %353 = vst [vmem:[%s343 + $0x20] sm:$0xff] %v352
                  %v354 = vld [vmem:[%s342 + $0x50] sm:$0xff]
                  %355 = vst [vmem:[%s343 + $0x28] sm:$0xff] %v354
                  %v356 = vld [vmem:[%s342 + $0x60] sm:$0xff]
                  %357 = vst [vmem:[%s343 + $0x30] sm:$0xff] %v356
                  %v358 = vld [vmem:[%s342 + $0x70] sm:$0xff]
                  %359 = vst [vmem:[%s343 + $0x38] sm:$0xff] %v358
                  %v360 = vld [vmem:[%s342 + $0x80] sm:$0xff]
                  %361 = vst [vmem:[%s343 + $0x40] sm:$0xff] %v360
                  %v362 = vld [vmem:[%s342 + $0x90] sm:$0xff]
                  %363 = vst [vmem:[%s343 + $0x48] sm:$0xff] %v362
                $region94: #{image_nn2_forward.3} parent=88 // loop_footer
                  %s341 = sadd.s32 1, %s337
                $region95: #{image_nn2_forward.3} parent=88 // loop_footer_branch
                  %336 = sbr.rel target = $region91
                $region96: #{image_nn2_forward.3} parent=88 // loop_exit
                  _
              $region89: #{image_nn2_forward.3} parent=73 // pred_fallthru
                _
              // Predicated region
              $region97: #{image_nn2_forward.3} parent=73 // pred_check
                _
              $region98: #{image_nn2_forward.3} parent=73 // pred_check_branch
                %365 = sbr.rel target = $region100
              $region99: #{image_nn2_forward.3} parent=73 // pred_region
                _
              $region100: #{image_nn2_forward.3} parent=73 // pred_fallthru
                _
            $region74: #{image_nn2_forward.3} parent=69 // pred_fallthru
              _
            // Predicated region
            $region75: #{image_nn2_forward.3} parent=69 // pred_check
              _
            $region76: #{image_nn2_forward.3} parent=69 // pred_check_branch
              %303 = sbr.rel target = $region78
            $region77: #{image_nn2_forward.3} parent=69 // pred_region
              %s305 = ssub.s32 256, 1
              loop: start=0, step=1, limit=1
              $region79: #{image_nn2_forward.3} parent=77 // loop_pre_header
                _
              $region80: #{image_nn2_forward.3} parent=77 // loop_header
                %s307 = sphi 0, %s311
                %p308 = scmp.ge.s32.totalorder %s307, 1
                %s312 = sphi %s297, %s297
                %s313 = sphi %s294, %s294
              $region81: #{image_nn2_forward.3} parent=77 // loop_header_branch
                %310 = sbr.rel (%p308) target = $region85
              $region82: #{image_nn2_forward.3} parent=77 // loop_body
                %v314 = vld [vmem:[%s312] sm:%s305]
                %315 = vst [vmem:[%s313] sm:%s305] %v314
                %v316 = vld [vmem:[%s312 + $0x10] sm:%s305]
                %317 = vst [vmem:[%s313 + $0x8] sm:%s305] %v316
                %v318 = vld [vmem:[%s312 + $0x20] sm:%s305]
                %319 = vst [vmem:[%s313 + $0x10] sm:%s305] %v318
                %v320 = vld [vmem:[%s312 + $0x30] sm:%s305]
                %321 = vst [vmem:[%s313 + $0x18] sm:%s305] %v320
                %v322 = vld [vmem:[%s312 + $0x40] sm:%s305]
                %323 = vst [vmem:[%s313 + $0x20] sm:%s305] %v322
                %v324 = vld [vmem:[%s312 + $0x50] sm:%s305]
                %325 = vst [vmem:[%s313 + $0x28] sm:%s305] %v324
                %v326 = vld [vmem:[%s312 + $0x60] sm:%s305]
                %327 = vst [vmem:[%s313 + $0x30] sm:%s305] %v326
                %v328 = vld [vmem:[%s312 + $0x70] sm:%s305]
                %329 = vst [vmem:[%s313 + $0x38] sm:%s305] %v328
                %v330 = vld [vmem:[%s312 + $0x80] sm:%s305]
                %331 = vst [vmem:[%s313 + $0x40] sm:%s305] %v330
                %v332 = vld [vmem:[%s312 + $0x90] sm:%s305]
                %333 = vst [vmem:[%s313 + $0x48] sm:%s305] %v332
              $region83: #{image_nn2_forward.3} parent=77 // loop_footer
                %s311 = sadd.s32 1, %s307
              $region84: #{image_nn2_forward.3} parent=77 // loop_footer_branch
                %306 = sbr.rel target = $region80
              $region85: #{image_nn2_forward.3} parent=77 // loop_exit
                _
            $region78: #{image_nn2_forward.3} parent=69 // pred_fallthru
              _
          $region70: #{image_nn2_forward.3} parent=65 // pred_fallthru
            _
          %366 = vnop
        $region66: #{image_nn2_forward.3} parent=23 // pred_fallthru
          _
        // Predicated region
        $region101: #{image_nn2_forward.3} parent=23 // pred_check
          %p367 = pneg %p126
        $region102: #{image_nn2_forward.3} parent=23 // pred_check_branch
          %369 = sbr.rel (%p367) target = $region104
        $region103: #{image_nn2_forward.3} parent=23 // pred_region
          %s370 = sand.u32 %s116, 1
          %s371 = sand.u32 %s116, 1
          %s372 = smul.addr %s371, 80
          %s373 = scalar_lea.vmem [#allocation4], %s372
          %s374 = smul.u32 2, %s12
          %s375 = smul.addr %s374, 4
          %s376 = scalar_lea.vmem %s4, %s375
          // Predicated region
          $region105: #{image_nn2_forward.3} parent=103 // pred_check
            _
          $region106: #{image_nn2_forward.3} parent=103 // pred_check_branch
            %378 = sbr.rel (0) target = $region108
          $region107: #{image_nn2_forward.3} parent=103 // pred_region
            // Predicated region
            $region109: #{image_nn2_forward.3} parent=107 // pred_check
              _
            $region110: #{image_nn2_forward.3} parent=107 // pred_check_branch
              %380 = sbr.rel (0) target = $region112
            $region111: #{image_nn2_forward.3} parent=107 // pred_region
              // Predicated region
              $region124: #{image_nn2_forward.3} parent=111 // pred_check
                _
              $region125: #{image_nn2_forward.3} parent=111 // pred_check_branch
                %414 = sbr.rel (0) target = $region127
              $region126: #{image_nn2_forward.3} parent=111 // pred_region
                loop: start=0, step=1, limit=1
                $region128: #{image_nn2_forward.3} parent=126 // loop_pre_header
                  _
                $region129: #{image_nn2_forward.3} parent=126 // loop_header
                  %s416 = sphi 0, %s420
                  %p417 = scmp.ge.s32.totalorder %s416, 1
                  %s421 = sphi %s376, %s376
                  %s422 = sphi %s373, %s373
                $region130: #{image_nn2_forward.3} parent=126 // loop_header_branch
                  %419 = sbr.rel (%p417) target = $region134
                $region131: #{image_nn2_forward.3} parent=126 // loop_body
                  %v423 = vld [vmem:[%s421] sm:$0xff]
                  %424 = vst [vmem:[%s422] sm:$0xff] %v423
                  %v425 = vld [vmem:[%s421 + $0x10] sm:$0xff]
                  %426 = vst [vmem:[%s422 + $0x8] sm:$0xff] %v425
                  %v427 = vld [vmem:[%s421 + $0x20] sm:$0xff]
                  %428 = vst [vmem:[%s422 + $0x10] sm:$0xff] %v427
                  %v429 = vld [vmem:[%s421 + $0x30] sm:$0xff]
                  %430 = vst [vmem:[%s422 + $0x18] sm:$0xff] %v429
                  %v431 = vld [vmem:[%s421 + $0x40] sm:$0xff]
                  %432 = vst [vmem:[%s422 + $0x20] sm:$0xff] %v431
                  %v433 = vld [vmem:[%s421 + $0x50] sm:$0xff]
                  %434 = vst [vmem:[%s422 + $0x28] sm:$0xff] %v433
                  %v435 = vld [vmem:[%s421 + $0x60] sm:$0xff]
                  %436 = vst [vmem:[%s422 + $0x30] sm:$0xff] %v435
                  %v437 = vld [vmem:[%s421 + $0x70] sm:$0xff]
                  %438 = vst [vmem:[%s422 + $0x38] sm:$0xff] %v437
                  %v439 = vld [vmem:[%s421 + $0x80] sm:$0xff]
                  %440 = vst [vmem:[%s422 + $0x40] sm:$0xff] %v439
                  %v441 = vld [vmem:[%s421 + $0x90] sm:$0xff]
                  %442 = vst [vmem:[%s422 + $0x48] sm:$0xff] %v441
                $region132: #{image_nn2_forward.3} parent=126 // loop_footer
                  %s420 = sadd.s32 1, %s416
                $region133: #{image_nn2_forward.3} parent=126 // loop_footer_branch
                  %415 = sbr.rel target = $region129
                $region134: #{image_nn2_forward.3} parent=126 // loop_exit
                  _
              $region127: #{image_nn2_forward.3} parent=111 // pred_fallthru
                _
              // Predicated region
              $region135: #{image_nn2_forward.3} parent=111 // pred_check
                _
              $region136: #{image_nn2_forward.3} parent=111 // pred_check_branch
                %444 = sbr.rel target = $region138
              $region137: #{image_nn2_forward.3} parent=111 // pred_region
                _
              $region138: #{image_nn2_forward.3} parent=111 // pred_fallthru
                _
            $region112: #{image_nn2_forward.3} parent=107 // pred_fallthru
              _
            // Predicated region
            $region113: #{image_nn2_forward.3} parent=107 // pred_check
              _
            $region114: #{image_nn2_forward.3} parent=107 // pred_check_branch
              %382 = sbr.rel target = $region116
            $region115: #{image_nn2_forward.3} parent=107 // pred_region
              %s384 = ssub.s32 256, 1
              loop: start=0, step=1, limit=1
              $region117: #{image_nn2_forward.3} parent=115 // loop_pre_header
                _
              $region118: #{image_nn2_forward.3} parent=115 // loop_header
                %s386 = sphi 0, %s390
                %p387 = scmp.ge.s32.totalorder %s386, 1
                %s391 = sphi %s376, %s376
                %s392 = sphi %s373, %s373
              $region119: #{image_nn2_forward.3} parent=115 // loop_header_branch
                %389 = sbr.rel (%p387) target = $region123
              $region120: #{image_nn2_forward.3} parent=115 // loop_body
                %v393 = vld [vmem:[%s391] sm:%s384]
                %394 = vst [vmem:[%s392] sm:%s384] %v393
                %v395 = vld [vmem:[%s391 + $0x10] sm:%s384]
                %396 = vst [vmem:[%s392 + $0x8] sm:%s384] %v395
                %v397 = vld [vmem:[%s391 + $0x20] sm:%s384]
                %398 = vst [vmem:[%s392 + $0x10] sm:%s384] %v397
                %v399 = vld [vmem:[%s391 + $0x30] sm:%s384]
                %400 = vst [vmem:[%s392 + $0x18] sm:%s384] %v399
                %v401 = vld [vmem:[%s391 + $0x40] sm:%s384]
                %402 = vst [vmem:[%s392 + $0x20] sm:%s384] %v401
                %v403 = vld [vmem:[%s391 + $0x50] sm:%s384]
                %404 = vst [vmem:[%s392 + $0x28] sm:%s384] %v403
                %v405 = vld [vmem:[%s391 + $0x60] sm:%s384]
                %406 = vst [vmem:[%s392 + $0x30] sm:%s384] %v405
                %v407 = vld [vmem:[%s391 + $0x70] sm:%s384]
                %408 = vst [vmem:[%s392 + $0x38] sm:%s384] %v407
                %v409 = vld [vmem:[%s391 + $0x80] sm:%s384]
                %410 = vst [vmem:[%s392 + $0x40] sm:%s384] %v409
                %v411 = vld [vmem:[%s391 + $0x90] sm:%s384]
                %412 = vst [vmem:[%s392 + $0x48] sm:%s384] %v411
              $region121: #{image_nn2_forward.3} parent=115 // loop_footer
                %s390 = sadd.s32 1, %s386
              $region122: #{image_nn2_forward.3} parent=115 // loop_footer_branch
                %385 = sbr.rel target = $region118
              $region123: #{image_nn2_forward.3} parent=115 // loop_exit
                _
            $region116: #{image_nn2_forward.3} parent=107 // pred_fallthru
              _
          $region108: #{image_nn2_forward.3} parent=103 // pred_fallthru
            _
          %445 = vnop
        $region104: #{image_nn2_forward.3} parent=23 // pred_fallthru
          _
        // Predicated region
        $region139: #{image_nn2_forward.3} parent=23 // pred_check
          %p446 = pneg %p152
        $region140: #{image_nn2_forward.3} parent=23 // pred_check_branch
          %448 = sbr.rel (%p446) target = $region142
        $region141: #{image_nn2_forward.3} parent=23 // pred_region
          %s449 = sand.u32 %s142, 1
          %s450 = sand.u32 %s142, 1
          %s451 = smul.addr %s450, 80
          %s452 = scalar_lea.vmem [#allocation5], %s451
          %s453 = smul.u32 2, %s12
          %s454 = smul.addr %s453, 4
          %s455 = scalar_lea.vmem %s5, %s454
          // Predicated region
          $region143: #{image_nn2_forward.3} parent=141 // pred_check
            _
          $region144: #{image_nn2_forward.3} parent=141 // pred_check_branch
            %457 = sbr.rel (0) target = $region146
          $region145: #{image_nn2_forward.3} parent=141 // pred_region
            // Predicated region
            $region147: #{image_nn2_forward.3} parent=145 // pred_check
              _
            $region148: #{image_nn2_forward.3} parent=145 // pred_check_branch
              %459 = sbr.rel (0) target = $region150
            $region149: #{image_nn2_forward.3} parent=145 // pred_region
              // Predicated region
              $region162: #{image_nn2_forward.3} parent=149 // pred_check
                _
              $region163: #{image_nn2_forward.3} parent=149 // pred_check_branch
                %493 = sbr.rel (0) target = $region165
              $region164: #{image_nn2_forward.3} parent=149 // pred_region
                loop: start=0, step=1, limit=1
                $region166: #{image_nn2_forward.3} parent=164 // loop_pre_header
                  _
                $region167: #{image_nn2_forward.3} parent=164 // loop_header
                  %s495 = sphi 0, %s499
                  %p496 = scmp.ge.s32.totalorder %s495, 1
                  %s500 = sphi %s455, %s455
                  %s501 = sphi %s452, %s452
                $region168: #{image_nn2_forward.3} parent=164 // loop_header_branch
                  %498 = sbr.rel (%p496) target = $region172
                $region169: #{image_nn2_forward.3} parent=164 // loop_body
                  %v502 = vld [vmem:[%s500] sm:$0xff]
                  %503 = vst [vmem:[%s501] sm:$0xff] %v502
                  %v504 = vld [vmem:[%s500 + $0x10] sm:$0xff]
                  %505 = vst [vmem:[%s501 + $0x8] sm:$0xff] %v504
                  %v506 = vld [vmem:[%s500 + $0x20] sm:$0xff]
                  %507 = vst [vmem:[%s501 + $0x10] sm:$0xff] %v506
                  %v508 = vld [vmem:[%s500 + $0x30] sm:$0xff]
                  %509 = vst [vmem:[%s501 + $0x18] sm:$0xff] %v508
                  %v510 = vld [vmem:[%s500 + $0x40] sm:$0xff]
                  %511 = vst [vmem:[%s501 + $0x20] sm:$0xff] %v510
                  %v512 = vld [vmem:[%s500 + $0x50] sm:$0xff]
                  %513 = vst [vmem:[%s501 + $0x28] sm:$0xff] %v512
                  %v514 = vld [vmem:[%s500 + $0x60] sm:$0xff]
                  %515 = vst [vmem:[%s501 + $0x30] sm:$0xff] %v514
                  %v516 = vld [vmem:[%s500 + $0x70] sm:$0xff]
                  %517 = vst [vmem:[%s501 + $0x38] sm:$0xff] %v516
                  %v518 = vld [vmem:[%s500 + $0x80] sm:$0xff]
                  %519 = vst [vmem:[%s501 + $0x40] sm:$0xff] %v518
                  %v520 = vld [vmem:[%s500 + $0x90] sm:$0xff]
                  %521 = vst [vmem:[%s501 + $0x48] sm:$0xff] %v520
                $region170: #{image_nn2_forward.3} parent=164 // loop_footer
                  %s499 = sadd.s32 1, %s495
                $region171: #{image_nn2_forward.3} parent=164 // loop_footer_branch
                  %494 = sbr.rel target = $region167
                $region172: #{image_nn2_forward.3} parent=164 // loop_exit
                  _
              $region165: #{image_nn2_forward.3} parent=149 // pred_fallthru
                _
              // Predicated region
              $region173: #{image_nn2_forward.3} parent=149 // pred_check
                _
              $region174: #{image_nn2_forward.3} parent=149 // pred_check_branch
                %523 = sbr.rel target = $region176
              $region175: #{image_nn2_forward.3} parent=149 // pred_region
                _
              $region176: #{image_nn2_forward.3} parent=149 // pred_fallthru
                _
            $region150: #{image_nn2_forward.3} parent=145 // pred_fallthru
              _
            // Predicated region
            $region151: #{image_nn2_forward.3} parent=145 // pred_check
              _
            $region152: #{image_nn2_forward.3} parent=145 // pred_check_branch
              %461 = sbr.rel target = $region154
            $region153: #{image_nn2_forward.3} parent=145 // pred_region
              %s463 = ssub.s32 256, 1
              loop: start=0, step=1, limit=1
              $region155: #{image_nn2_forward.3} parent=153 // loop_pre_header
                _
              $region156: #{image_nn2_forward.3} parent=153 // loop_header
                %s465 = sphi 0, %s469
                %p466 = scmp.ge.s32.totalorder %s465, 1
                %s470 = sphi %s455, %s455
                %s471 = sphi %s452, %s452
              $region157: #{image_nn2_forward.3} parent=153 // loop_header_branch
                %468 = sbr.rel (%p466) target = $region161
              $region158: #{image_nn2_forward.3} parent=153 // loop_body
                %v472 = vld [vmem:[%s470] sm:%s463]
                %473 = vst [vmem:[%s471] sm:%s463] %v472
                %v474 = vld [vmem:[%s470 + $0x10] sm:%s463]
                %475 = vst [vmem:[%s471 + $0x8] sm:%s463] %v474
                %v476 = vld [vmem:[%s470 + $0x20] sm:%s463]
                %477 = vst [vmem:[%s471 + $0x10] sm:%s463] %v476
                %v478 = vld [vmem:[%s470 + $0x30] sm:%s463]
                %479 = vst [vmem:[%s471 + $0x18] sm:%s463] %v478
                %v480 = vld [vmem:[%s470 + $0x40] sm:%s463]
                %481 = vst [vmem:[%s471 + $0x20] sm:%s463] %v480
                %v482 = vld [vmem:[%s470 + $0x50] sm:%s463]
                %483 = vst [vmem:[%s471 + $0x28] sm:%s463] %v482
                %v484 = vld [vmem:[%s470 + $0x60] sm:%s463]
                %485 = vst [vmem:[%s471 + $0x30] sm:%s463] %v484
                %v486 = vld [vmem:[%s470 + $0x70] sm:%s463]
                %487 = vst [vmem:[%s471 + $0x38] sm:%s463] %v486
                %v488 = vld [vmem:[%s470 + $0x80] sm:%s463]
                %489 = vst [vmem:[%s471 + $0x40] sm:%s463] %v488
                %v490 = vld [vmem:[%s470 + $0x90] sm:%s463]
                %491 = vst [vmem:[%s471 + $0x48] sm:%s463] %v490
              $region159: #{image_nn2_forward.3} parent=153 // loop_footer
                %s469 = sadd.s32 1, %s465
              $region160: #{image_nn2_forward.3} parent=153 // loop_footer_branch
                %464 = sbr.rel target = $region156
              $region161: #{image_nn2_forward.3} parent=153 // loop_exit
                _
            $region154: #{image_nn2_forward.3} parent=145 // pred_fallthru
              _
          $region146: #{image_nn2_forward.3} parent=141 // pred_fallthru
            _
          %524 = vnop
        $region142: #{image_nn2_forward.3} parent=23 // pred_fallthru
          _
      $region24: #{image_nn2_forward.3} parent=5 // pred_fallthru
        _
      %p525 = scmp.le.s32.totalorder 1, %s12
      %p526 = scmp.lt.s32.totalorder %s12, 3
      %p527 = pnand %p525, %p526
      %p528 = pneg %p527
      // Predicated region
      $region177: #{image_nn2_forward.3} parent=5 // pred_check
        _
      $region178: #{image_nn2_forward.3} parent=5 // pred_check_branch
        %530 = sbr.rel (%p527) target = $region180
      $region179: #{image_nn2_forward.3} parent=5 // pred_region
        %s531 = ssub.s32 %s12, 1
        %s532 = sand.u32 %s67, 1
        %s533 = sand.u32 %s67, 1
        %s534 = smul.addr %s533, 80
        %s535 = scalar_lea.vmem [#allocation2], %s534
        // Predicated region
        $region181: #{image_nn2_forward.3} parent=179 // pred_check
          %p536 = pneg %p80
        $region182: #{image_nn2_forward.3} parent=179 // pred_check_branch
          %538 = sbr.rel (%p536) target = $region184
        $region183: #{image_nn2_forward.3} parent=179 // pred_region
          _
        $region184: #{image_nn2_forward.3} parent=179 // pred_fallthru
          _
        %s539 = sand.u32 %s93, 1
        %s540 = sand.u32 %s93, 1
        %s541 = smul.addr %s540, 80
        %s542 = scalar_lea.vmem [#allocation3], %s541
        // Predicated region
        $region185: #{image_nn2_forward.3} parent=179 // pred_check
          %p543 = pneg %p106
        $region186: #{image_nn2_forward.3} parent=179 // pred_check_branch
          %545 = sbr.rel (%p543) target = $region188
        $region187: #{image_nn2_forward.3} parent=179 // pred_region
          _
        $region188: #{image_nn2_forward.3} parent=179 // pred_fallthru
          _
        %s546 = sand.u32 %s119, 1
        %s547 = sand.u32 %s119, 1
        %s548 = smul.addr %s547, 80
        %s549 = scalar_lea.vmem [#allocation4], %s548
        // Predicated region
        $region189: #{image_nn2_forward.3} parent=179 // pred_check
          %p550 = pneg %p132
        $region190: #{image_nn2_forward.3} parent=179 // pred_check_branch
          %552 = sbr.rel (%p550) target = $region192
        $region191: #{image_nn2_forward.3} parent=179 // pred_region
          _
        $region192: #{image_nn2_forward.3} parent=179 // pred_fallthru
          _
        %s553 = sand.u32 %s145, 1
        %s554 = sand.u32 %s145, 1
        %s555 = smul.addr %s554, 80
        %s556 = scalar_lea.vmem [#allocation5], %s555
        // Predicated region
        $region193: #{image_nn2_forward.3} parent=179 // pred_check
          %p557 = pneg %p158
        $region194: #{image_nn2_forward.3} parent=179 // pred_check_branch
          %559 = sbr.rel (%p557) target = $region196
        $region195: #{image_nn2_forward.3} parent=179 // pred_region
          _
        $region196: #{image_nn2_forward.3} parent=179 // pred_fallthru
          _
        %p560 = pneg %p33
        %p561 = pneg %p30
        %p562 = pneg %p54
        %p563 = pneg %p51
        %s564 = sand.u32 %s67, 1
        %s565 = sand.u32 %s67, 1
        %s566 = smul.addr %s565, 80
        %s567 = scalar_lea.vmem [#allocation2], %s566
        %p568 = pneg %p80
        %p569 = pneg %p77
        %s570 = sand.u32 %s93, 1
        %s571 = sand.u32 %s93, 1
        %s572 = smul.addr %s571, 80
        %s573 = scalar_lea.vmem [#allocation3], %s572
        %p574 = pneg %p106
        %p575 = pneg %p103
        %s576 = sand.u32 %s119, 1
        %s577 = sand.u32 %s119, 1
        %s578 = smul.addr %s577, 80
        %s579 = scalar_lea.vmem [#allocation4], %s578
        %p580 = pneg %p132
        %p581 = pneg %p129
        %s582 = sand.u32 %s145, 1
        %s583 = sand.u32 %s145, 1
        %s584 = smul.addr %s583, 80
        %s585 = scalar_lea.vmem [#allocation5], %s584
        %p586 = pneg %p158
        %p587 = pneg %p155
        %p588 = pneg %p184
        %p589 = pneg %p181
        %s590 = sand.u32 %s171, 1
        %s591 = sand.u32 %s171, 1
        %s592 = smul.addr %s591, 16
        %s593 = scalar_lea.vmem [#allocation6], %s592
        %s594 = smul.u32 2, %s17
        %s595 = smul.u32 2, %s17
        %s596 = smul.u32 2, %s17
        %s597 = smul.u32 2, %s17
        %s598 = smul.u32 2, %s17
        %v600 = vld [vmem:[%s0] sm:$0xf]
        %v601 = vld [vmem:[%s0 + $0x4] sm:$0xf]
        %v602 = vld [vmem:[%s535] sm:$0xff]
        %v603 = vld [vmem:[%s535 + $0x8] sm:$0xff]
        %v604 = vld [vmem:[%s535 + $0x10] sm:$0xff]
        %v605 = vld [vmem:[%s535 + $0x18] sm:$0xff]
        %v606 = vld [vmem:[%s535 + $0x20] sm:$0xff]
        %v607 = vld [vmem:[%s535 + $0x28] sm:$0xff]
        %v608 = vld [vmem:[%s535 + $0x30] sm:$0xff]
        %v609 = vld [vmem:[%s535 + $0x38] sm:$0xff]
        %v610 = vld [vmem:[%s535 + $0x40] sm:$0xff]
        %v611 = vld [vmem:[%s535 + $0x48] sm:$0x33]
        %v614 = vunpack.c.l.b16 %v600
        %v615 = vunpack.c.l.b16 %v601
        %v616 = vpack.c.b16 %v615, %v614
        %v627 = vunpack.c.l.b16 %v602
        %v628 = vunpack.c.h.b16 %v602
        %v629 = vunpack.c.l.b16 %v603
        %v630 = vunpack.c.h.b16 %v603
        %v631 = vunpack.c.l.b16 %v604
        %v632 = vunpack.c.h.b16 %v604
        %v633 = vunpack.c.l.b16 %v605
        %v634 = vunpack.c.h.b16 %v605
        %v635 = vunpack.c.l.b16 %v606
        %v636 = vunpack.c.h.b16 %v606
        %v637 = vunpack.c.l.b16 %v607
        %v638 = vunpack.c.h.b16 %v607
        %v639 = vunpack.c.l.b16 %v608
        %v640 = vunpack.c.h.b16 %v608
        %v641 = vunpack.c.l.b16 %v609
        %v642 = vunpack.c.h.b16 %v609
        %v643 = vunpack.c.l.b16 %v610
        %v644 = vunpack.c.h.b16 %v610
        %v645 = vunpack.c.l.b16 %v611
        %v646 = vunpack.c.h.b16 %v611
        %v647 = vpack.c.b16 %v629, %v627
        %v648 = vpack.c.b16 %v630, %v628
        %v649 = vpack.c.b16 %v633, %v631
        %v650 = vpack.c.b16 %v634, %v632
        %v651 = vpack.c.b16 %v637, %v635
        %v652 = vpack.c.b16 %v638, %v636
        %v653 = vpack.c.b16 %v641, %v639
        %v654 = vpack.c.b16 %v642, %v640
        %v655 = vpack.c.b16 %v645, %v643
        %v656 = vpack.c.b16 %v646, %v644
        %vm665 = vcmask 613376
        %v667 = vsel %vm665, %v616, 0
        %vm669 = vcmask 1044480
        %vm670 = vcmask 1045504
        %v671 = vsel %vm669, 4294967295, 65535
        %v672 = vsel %vm670, %v671, 0
        %v674 = vand.u32 %v655, %v672
        %v677 = vand.u32 %v656, %v672
        %679 = vmatprep.subr.bf16.mxu0 0
        %680 = vmatpush1.bf16.msra.mxu0 0
        %681 = vmatprep.subr.bf16.mxu0 0
        %682 = vmatpush1.bf16.msra.mxu0 0
        %683 = vmatprep.subr.bf16.mxu0 0
        %684 = vmatpush1.bf16.msra.mxu0 0
        %685 = vmatprep.subr.bf16.mxu0 %v677
        %686 = vmatpush1.bf16.msra.mxu0 %v674
        %687 = vmatprep.subr.bf16.mxu0 %v654
        %688 = vmatpush1.bf16.msra.mxu0 %v653
        %689 = vmatprep.subr.bf16.mxu0 %v652
        %690 = vmatpush1.bf16.msra.mxu0 %v651
        %691 = vmatprep.subr.bf16.mxu0 %v650
        %692 = vmatpush1.bf16.msra.mxu0 %v649
        %693 = vmatprep.subr.bf16.mxu0 %v648
        %694 = vmatpush1.bf16.msra.mxu0 %v647
        %695 = vmatprep.subr.bf16.mxu0 0
        %696 = vmatpush2.bf16.msra.mxu0 0
        %697 = vmatprep.subr.bf16.mxu0 0
        %698 = vmatpush2.bf16.msra.mxu0 0
        %699 = vmatprep.subr.bf16.mxu0 0
        %700 = vmatpush2.bf16.msra.mxu0 0
        %701 = vmatprep.subr.bf16.mxu0 0
        %702 = vmatpush2.bf16.msra.mxu0 0
        %703 = vmatprep.subr.bf16.mxu0 0
        %704 = vmatpush2.bf16.msra.mxu0 0
        %705 = vmatprep.subr.bf16.mxu0 0
        %706 = vmatpush2.bf16.msra.mxu0 0
        %707 = vmatprep.subr.bf16.mxu0 0
        %708 = vmatpush2.bf16.msra.mxu0 0
        %709 = vmatprep.subr.bf16.mxu0 0
        %710 = vmatpush2.bf16.msra.mxu0 0
        %711 = vmatprep.mubr.bf16.mxu0 0
        %712 = vmatmul.mubr.bf16.gmra.mxu0 %v667
        %v713 = vpop.f32.mrf.mxu0
        %v714 = vadd.f32 0.0, %v713
        %v715 = vpop.f32.mrf.mxu0
        %v716 = vadd.f32 0.0, %v715
        %v717 = vpop.f32.mrf.mxu0
        %v718 = vadd.f32 0.0, %v717
        %v719 = vpop.f32.mrf.mxu0
        %v720 = vadd.f32 0.0, %v719
        %721 = vdwg.mxu0
        %v722 = vld [vmem:[%s542] sm:$0xff]
        %v723 = vld [vmem:[%s542 + $0x8] sm:$0xff]
        %v724 = vld [vmem:[%s542 + $0x10] sm:$0xff]
        %v725 = vld [vmem:[%s542 + $0x18] sm:$0xff]
        %v726 = vld [vmem:[%s542 + $0x20] sm:$0xff]
        %v727 = vld [vmem:[%s542 + $0x28] sm:$0xff]
        %v728 = vld [vmem:[%s542 + $0x30] sm:$0xff]
        %v729 = vld [vmem:[%s542 + $0x38] sm:$0xff]
        %v730 = vld [vmem:[%s542 + $0x40] sm:$0xff]
        %v731 = vld [vmem:[%s542 + $0x48] sm:$0x33]
        %v742 = vunpack.c.l.b16 %v722
        %v743 = vunpack.c.h.b16 %v722
        %v744 = vunpack.c.l.b16 %v723
        %v745 = vunpack.c.h.b16 %v723
        %v746 = vunpack.c.l.b16 %v724
        %v747 = vunpack.c.h.b16 %v724
        %v748 = vunpack.c.l.b16 %v725
        %v749 = vunpack.c.h.b16 %v725
        %v750 = vunpack.c.l.b16 %v726
        %v751 = vunpack.c.h.b16 %v726
        %v752 = vunpack.c.l.b16 %v727
        %v753 = vunpack.c.h.b16 %v727
        %v754 = vunpack.c.l.b16 %v728
        %v755 = vunpack.c.h.b16 %v728
        %v756 = vunpack.c.l.b16 %v729
        %v757 = vunpack.c.h.b16 %v729
        %v758 = vunpack.c.l.b16 %v730
        %v759 = vunpack.c.h.b16 %v730
        %v760 = vunpack.c.l.b16 %v731
        %v761 = vunpack.c.h.b16 %v731
        %v762 = vpack.c.b16 %v744, %v742
        %v763 = vpack.c.b16 %v745, %v743
        %v764 = vpack.c.b16 %v748, %v746
        %v765 = vpack.c.b16 %v749, %v747
        %v766 = vpack.c.b16 %v752, %v750
        %v767 = vpack.c.b16 %v753, %v751
        %v768 = vpack.c.b16 %v756, %v754
        %v769 = vpack.c.b16 %v757, %v755
        %v770 = vpack.c.b16 %v760, %v758
        %v771 = vpack.c.b16 %v761, %v759
        %v781 = vand.u32 %v770, %v672
        %v784 = vand.u32 %v771, %v672
        %786 = vmatprep.subr.bf16.mxu0 0
        %787 = vmatpush1.bf16.msra.mxu0 0
        %788 = vmatprep.subr.bf16.mxu0 0
        %789 = vmatpush1.bf16.msra.mxu0 0
        %790 = vmatprep.subr.bf16.mxu0 0
        %791 = vmatpush1.bf16.msra.mxu0 0
        %792 = vmatprep.subr.bf16.mxu0 %v784
        %793 = vmatpush1.bf16.msra.mxu0 %v781
        %794 = vmatprep.subr.bf16.mxu0 %v769
        %795 = vmatpush1.bf16.msra.mxu0 %v768
        %796 = vmatprep.subr.bf16.mxu0 %v767
        %797 = vmatpush1.bf16.msra.mxu0 %v766
        %798 = vmatprep.subr.bf16.mxu0 %v765
        %799 = vmatpush1.bf16.msra.mxu0 %v764
        %800 = vmatprep.subr.bf16.mxu0 %v763
        %801 = vmatpush1.bf16.msra.mxu0 %v762
        %802 = vmatprep.subr.bf16.mxu0 0
        %803 = vmatpush2.bf16.msra.mxu0 0
        %804 = vmatprep.subr.bf16.mxu0 0
        %805 = vmatpush2.bf16.msra.mxu0 0
        %806 = vmatprep.subr.bf16.mxu0 0
        %807 = vmatpush2.bf16.msra.mxu0 0
        %808 = vmatprep.subr.bf16.mxu0 0
        %809 = vmatpush2.bf16.msra.mxu0 0
        %810 = vmatprep.subr.bf16.mxu0 0
        %811 = vmatpush2.bf16.msra.mxu0 0
        %812 = vmatprep.subr.bf16.mxu0 0
        %813 = vmatpush2.bf16.msra.mxu0 0
        %814 = vmatprep.subr.bf16.mxu0 0
        %815 = vmatpush2.bf16.msra.mxu0 0
        %816 = vmatprep.subr.bf16.mxu0 0
        %817 = vmatpush2.bf16.msra.mxu0 0
        %818 = vmatprep.mubr.bf16.mxu0 0
        %819 = vmatmul.mubr.bf16.gmra.mxu0 %v667
        %v820 = vpop.f32.mrf.mxu0
        %v821 = vadd.f32 0.0, %v820
        %v822 = vpop.f32.mrf.mxu0
        %v823 = vadd.f32 0.0, %v822
        %v824 = vpop.f32.mrf.mxu0
        %v825 = vadd.f32 0.0, %v824
        %v826 = vpop.f32.mrf.mxu0
        %v827 = vadd.f32 0.0, %v826
        %828 = vdwg.mxu0
        %v829 = vmax.f32 %v714, %v821
        %v830 = vmax.f32 %v716, %v823
        %v831 = vmax.f32 %v718, %v825
        %v832 = vmax.f32 %v720, %v827
        %v833 = vld [vmem:[%s549] sm:$0xff]
        %v834 = vld [vmem:[%s549 + $0x8] sm:$0xff]
        %v835 = vld [vmem:[%s549 + $0x10] sm:$0xff]
        %v836 = vld [vmem:[%s549 + $0x18] sm:$0xff]
        %v837 = vld [vmem:[%s549 + $0x20] sm:$0xff]
        %v838 = vld [vmem:[%s549 + $0x28] sm:$0xff]
        %v839 = vld [vmem:[%s549 + $0x30] sm:$0xff]
        %v840 = vld [vmem:[%s549 + $0x38] sm:$0xff]
        %v841 = vld [vmem:[%s549 + $0x40] sm:$0xff]
        %v842 = vld [vmem:[%s549 + $0x48] sm:$0x33]
        %v853 = vunpack.c.l.b16 %v833
        %v854 = vunpack.c.h.b16 %v833
        %v855 = vunpack.c.l.b16 %v834
        %v856 = vunpack.c.h.b16 %v834
        %v857 = vunpack.c.l.b16 %v835
        %v858 = vunpack.c.h.b16 %v835
        %v859 = vunpack.c.l.b16 %v836
        %v860 = vunpack.c.h.b16 %v836
        %v861 = vunpack.c.l.b16 %v837
        %v862 = vunpack.c.h.b16 %v837
        %v863 = vunpack.c.l.b16 %v838
        %v864 = vunpack.c.h.b16 %v838
        %v865 = vunpack.c.l.b16 %v839
        %v866 = vunpack.c.h.b16 %v839
        %v867 = vunpack.c.l.b16 %v840
        %v868 = vunpack.c.h.b16 %v840
        %v869 = vunpack.c.l.b16 %v841
        %v870 = vunpack.c.h.b16 %v841
        %v871 = vunpack.c.l.b16 %v842
        %v872 = vunpack.c.h.b16 %v842
        %v873 = vpack.c.b16 %v855, %v853
        %v874 = vpack.c.b16 %v856, %v854
        %v875 = vpack.c.b16 %v859, %v857
        %v876 = vpack.c.b16 %v860, %v858
        %v877 = vpack.c.b16 %v863, %v861
        %v878 = vpack.c.b16 %v864, %v862
        %v879 = vpack.c.b16 %v867, %v865
        %v880 = vpack.c.b16 %v868, %v866
        %v881 = vpack.c.b16 %v871, %v869
        %v882 = vpack.c.b16 %v872, %v870
        %v892 = vand.u32 %v881, %v672
        %v895 = vand.u32 %v882, %v672
        %897 = vmatprep.subr.bf16.mxu0 0
        %898 = vmatpush1.bf16.msra.mxu0 0
        %899 = vmatprep.subr.bf16.mxu0 0
        %900 = vmatpush1.bf16.msra.mxu0 0
        %901 = vmatprep.subr.bf16.mxu0 0
        %902 = vmatpush1.bf16.msra.mxu0 0
        %903 = vmatprep.subr.bf16.mxu0 %v895
        %904 = vmatpush1.bf16.msra.mxu0 %v892
        %905 = vmatprep.subr.bf16.mxu0 %v880
        %906 = vmatpush1.bf16.msra.mxu0 %v879
        %907 = vmatprep.subr.bf16.mxu0 %v878
        %908 = vmatpush1.bf16.msra.mxu0 %v877
        %909 = vmatprep.subr.bf16.mxu0 %v876
        %910 = vmatpush1.bf16.msra.mxu0 %v875
        %911 = vmatprep.subr.bf16.mxu0 %v874
        %912 = vmatpush1.bf16.msra.mxu0 %v873
        %913 = vmatprep.subr.bf16.mxu0 0
        %914 = vmatpush2.bf16.msra.mxu0 0
        %915 = vmatprep.subr.bf16.mxu0 0
        %916 = vmatpush2.bf16.msra.mxu0 0
        %917 = vmatprep.subr.bf16.mxu0 0
        %918 = vmatpush2.bf16.msra.mxu0 0
        %919 = vmatprep.subr.bf16.mxu0 0
        %920 = vmatpush2.bf16.msra.mxu0 0
        %921 = vmatprep.subr.bf16.mxu0 0
        %922 = vmatpush2.bf16.msra.mxu0 0
        %923 = vmatprep.subr.bf16.mxu0 0
        %924 = vmatpush2.bf16.msra.mxu0 0
        %925 = vmatprep.subr.bf16.mxu0 0
        %926 = vmatpush2.bf16.msra.mxu0 0
        %927 = vmatprep.subr.bf16.mxu0 0
        %928 = vmatpush2.bf16.msra.mxu0 0
        %929 = vmatprep.mubr.bf16.mxu0 0
        %930 = vmatmul.mubr.bf16.gmra.mxu0 %v667
        %v931 = vpop.f32.mrf.mxu0
        %v932 = vadd.f32 0.0, %v931
        %v933 = vpop.f32.mrf.mxu0
        %v934 = vadd.f32 0.0, %v933
        %v935 = vpop.f32.mrf.mxu0
        %v936 = vadd.f32 0.0, %v935
        %v937 = vpop.f32.mrf.mxu0
        %v938 = vadd.f32 0.0, %v937
        %939 = vdwg.mxu0
        %v940 = vmax.f32 %v829, %v932
        %v941 = vmax.f32 %v830, %v934
        %v942 = vmax.f32 %v831, %v936
        %v943 = vmax.f32 %v832, %v938
        %v944 = vld [vmem:[%s556] sm:$0xff]
        %v945 = vld [vmem:[%s556 + $0x8] sm:$0xff]
        %v946 = vld [vmem:[%s556 + $0x10] sm:$0xff]
        %v947 = vld [vmem:[%s556 + $0x18] sm:$0xff]
        %v948 = vld [vmem:[%s556 + $0x20] sm:$0xff]
        %v949 = vld [vmem:[%s556 + $0x28] sm:$0xff]
        %v950 = vld [vmem:[%s556 + $0x30] sm:$0xff]
        %v951 = vld [vmem:[%s556 + $0x38] sm:$0xff]
        %v952 = vld [vmem:[%s556 + $0x40] sm:$0xff]
        %v953 = vld [vmem:[%s556 + $0x48] sm:$0x33]
        %v964 = vunpack.c.l.b16 %v944
        %v965 = vunpack.c.h.b16 %v944
        %v966 = vunpack.c.l.b16 %v945
        %v967 = vunpack.c.h.b16 %v945
        %v968 = vunpack.c.l.b16 %v946
        %v969 = vunpack.c.h.b16 %v946
        %v970 = vunpack.c.l.b16 %v947
        %v971 = vunpack.c.h.b16 %v947
        %v972 = vunpack.c.l.b16 %v948
        %v973 = vunpack.c.h.b16 %v948
        %v974 = vunpack.c.l.b16 %v949
        %v975 = vunpack.c.h.b16 %v949
        %v976 = vunpack.c.l.b16 %v950
        %v977 = vunpack.c.h.b16 %v950
        %v978 = vunpack.c.l.b16 %v951
        %v979 = vunpack.c.h.b16 %v951
        %v980 = vunpack.c.l.b16 %v952
        %v981 = vunpack.c.h.b16 %v952
        %v982 = vunpack.c.l.b16 %v953
        %v983 = vunpack.c.h.b16 %v953
        %v984 = vpack.c.b16 %v966, %v964
        %v985 = vpack.c.b16 %v967, %v965
        %v986 = vpack.c.b16 %v970, %v968
        %v987 = vpack.c.b16 %v971, %v969
        %v988 = vpack.c.b16 %v974, %v972
        %v989 = vpack.c.b16 %v975, %v973
        %v990 = vpack.c.b16 %v978, %v976
        %v991 = vpack.c.b16 %v979, %v977
        %v992 = vpack.c.b16 %v982, %v980
        %v993 = vpack.c.b16 %v983, %v981
        %v1003 = vand.u32 %v992, %v672
        %v1006 = vand.u32 %v993, %v672
        %1008 = vmatprep.subr.bf16.mxu0 0
        %1009 = vmatpush1.bf16.msra.mxu0 0
        %1010 = vmatprep.subr.bf16.mxu0 0
        %1011 = vmatpush1.bf16.msra.mxu0 0
        %1012 = vmatprep.subr.bf16.mxu0 0
        %1013 = vmatpush1.bf16.msra.mxu0 0
        %1014 = vmatprep.subr.bf16.mxu0 %v1006
        %1015 = vmatpush1.bf16.msra.mxu0 %v1003
        %1016 = vmatprep.subr.bf16.mxu0 %v991
        %1017 = vmatpush1.bf16.msra.mxu0 %v990
        %1018 = vmatprep.subr.bf16.mxu0 %v989
        %1019 = vmatpush1.bf16.msra.mxu0 %v988
        %1020 = vmatprep.subr.bf16.mxu0 %v987
        %1021 = vmatpush1.bf16.msra.mxu0 %v986
        %1022 = vmatprep.subr.bf16.mxu0 %v985
        %1023 = vmatpush1.bf16.msra.mxu0 %v984
        %1024 = vmatprep.subr.bf16.mxu0 0
        %1025 = vmatpush2.bf16.msra.mxu0 0
        %1026 = vmatprep.subr.bf16.mxu0 0
        %1027 = vmatpush2.bf16.msra.mxu0 0
        %1028 = vmatprep.subr.bf16.mxu0 0
        %1029 = vmatpush2.bf16.msra.mxu0 0
        %1030 = vmatprep.subr.bf16.mxu0 0
        %1031 = vmatpush2.bf16.msra.mxu0 0
        %1032 = vmatprep.subr.bf16.mxu0 0
        %1033 = vmatpush2.bf16.msra.mxu0 0
        %1034 = vmatprep.subr.bf16.mxu0 0
        %1035 = vmatpush2.bf16.msra.mxu0 0
        %1036 = vmatprep.subr.bf16.mxu0 0
        %1037 = vmatpush2.bf16.msra.mxu0 0
        %1038 = vmatprep.subr.bf16.mxu0 0
        %1039 = vmatpush2.bf16.msra.mxu0 0
        %1040 = vmatprep.mubr.bf16.mxu0 0
        %1041 = vmatmul.mubr.bf16.gmra.mxu0 %v667
        %v1042 = vpop.f32.mrf.mxu0
        %v1043 = vadd.f32 0.0, %v1042
        %v1044 = vpop.f32.mrf.mxu0
        %v1045 = vadd.f32 0.0, %v1044
        %v1046 = vpop.f32.mrf.mxu0
        %v1047 = vadd.f32 0.0, %v1046
        %v1048 = vpop.f32.mrf.mxu0
        %v1049 = vadd.f32 0.0, %v1048
        %1050 = vdwg.mxu0
        %v1051 = vmax.f32 %v940, %v1043
        %v1052 = vmax.f32 %v941, %v1045
        %v1053 = vmax.f32 %v942, %v1047
        %v1054 = vmax.f32 %v943, %v1049
        %v1055 = vld [vmem:[%s1] sm:$0xff]
        %v1056 = vld [vmem:[%s1 + $0x8] sm:$0xff]
        %1058 = vset.pattern.permute.xlu0 0
        %1059 = vperm.xlu0 %1058, %v1055
        %v1060 = vpop.permute.xlu0 %1059
        %1063 = vset.pattern.permute.xlu0 0
        %1064 = vperm.xlu0 %1063, %v1056
        %v1065 = vpop.permute.xlu0 %1064
        %v1067 = vadd.f32 %v1051, %v1060
        %v1068 = vadd.f32 %v1052, %v1060
        %v1069 = vadd.f32 %v1053, %v1065
        %v1070 = vadd.f32 %v1054, %v1065
        %v1071 = vmax.f32 %v1067, 0.0
        %v1072 = vmax.f32 %v1068, 0.0
        %v1073 = vmax.f32 %v1069, 0.0
        %v1074 = vmax.f32 %v1070, 0.0
        %v1075 = vpack.c.bf16 %v1073, %v1071
        %v1076 = vpack.c.bf16 %v1074, %v1072
        %v1079 = vunpack.c.l.b16 %v1075
        %v1080 = vunpack.c.l.b16 %v1076
        %v1081 = vunpack.c.h.b16 %v1075
        %v1082 = vunpack.c.h.b16 %v1076
        %v1083 = vpack.c.b16 %v1080, %v1079
        %v1084 = vpack.c.b16 %v1082, %v1081
        %1087 = vst [vmem:[%s593] sm:$0xff] %v1083
        %1088 = vst [vmem:[%s593 + $0x8] sm:$0xff] %v1084
        %s1089 = sand.u32 %s171, 1
        %s1090 = sand.u32 %s171, 1
        %s1091 = smul.addr %s1090, 16
        %s1092 = scalar_lea.vmem [#allocation6], %s1091
        // Predicated region
        $region197: #{image_nn2_forward.3} parent=179 // pred_check
          %p1093 = pneg %p181
        $region198: #{image_nn2_forward.3} parent=179 // pred_check_branch
          %1095 = sbr.rel (%p1093) target = $region200
        $region199: #{image_nn2_forward.3} parent=179 // pred_region
          %s1096 = smul.u32 2, %s17
          %s1097 = smul.addr %s1096, 4
          %s1098 = scalar_lea.vmem %s6, %s1097
          // Predicated region
          $region201: #{image_nn2_forward.3} parent=199 // pred_check
            _
          $region202: #{image_nn2_forward.3} parent=199 // pred_check_branch
            %1100 = sbr.rel (0) target = $region204
          $region203: #{image_nn2_forward.3} parent=199 // pred_region
            // Predicated region
            $region205: #{image_nn2_forward.3} parent=203 // pred_check
              _
            $region206: #{image_nn2_forward.3} parent=203 // pred_check_branch
              %1102 = sbr.rel (0) target = $region208
            $region207: #{image_nn2_forward.3} parent=203 // pred_region
              // Predicated region
              $region220: #{image_nn2_forward.3} parent=207 // pred_check
                _
              $region221: #{image_nn2_forward.3} parent=207 // pred_check_branch
                %1120 = sbr.rel (0) target = $region223
              $region222: #{image_nn2_forward.3} parent=207 // pred_region
                loop: start=0, step=1, limit=1
                $region224: #{image_nn2_forward.3} parent=222 // loop_pre_header
                  _
                $region225: #{image_nn2_forward.3} parent=222 // loop_header
                  %s1122 = sphi 0, %s1126
                  %p1123 = scmp.ge.s32.totalorder %s1122, 1
                  %s1127 = sphi %s1092, %s1092
                  %s1128 = sphi %s1098, %s1098
                $region226: #{image_nn2_forward.3} parent=222 // loop_header_branch
                  %1125 = sbr.rel (%p1123) target = $region230
                $region227: #{image_nn2_forward.3} parent=222 // loop_body
                  %v1129 = vld [vmem:[%s1127] sm:$0xff]
                  %1130 = vst [vmem:[%s1128] sm:$0xff] %v1129
                  %v1131 = vld [vmem:[%s1127 + $0x8] sm:$0xff]
                  %1132 = vst [vmem:[%s1128 + $0x10] sm:$0xff] %v1131
                $region228: #{image_nn2_forward.3} parent=222 // loop_footer
                  %s1126 = sadd.s32 1, %s1122
                $region229: #{image_nn2_forward.3} parent=222 // loop_footer_branch
                  %1121 = sbr.rel target = $region225
                $region230: #{image_nn2_forward.3} parent=222 // loop_exit
                  _
              $region223: #{image_nn2_forward.3} parent=207 // pred_fallthru
                _
              // Predicated region
              $region231: #{image_nn2_forward.3} parent=207 // pred_check
                _
              $region232: #{image_nn2_forward.3} parent=207 // pred_check_branch
                %1134 = sbr.rel target = $region234
              $region233: #{image_nn2_forward.3} parent=207 // pred_region
                _
              $region234: #{image_nn2_forward.3} parent=207 // pred_fallthru
                _
            $region208: #{image_nn2_forward.3} parent=203 // pred_fallthru
              _
            // Predicated region
            $region209: #{image_nn2_forward.3} parent=203 // pred_check
              _
            $region210: #{image_nn2_forward.3} parent=203 // pred_check_branch
              %1104 = sbr.rel target = $region212
            $region211: #{image_nn2_forward.3} parent=203 // pred_region
              %s1106 = ssub.s32 256, 1
              loop: start=0, step=1, limit=1
              $region213: #{image_nn2_forward.3} parent=211 // loop_pre_header
                _
              $region214: #{image_nn2_forward.3} parent=211 // loop_header
                %s1108 = sphi 0, %s1112
                %p1109 = scmp.ge.s32.totalorder %s1108, 1
                %s1113 = sphi %s1092, %s1092
                %s1114 = sphi %s1098, %s1098
              $region215: #{image_nn2_forward.3} parent=211 // loop_header_branch
                %1111 = sbr.rel (%p1109) target = $region219
              $region216: #{image_nn2_forward.3} parent=211 // loop_body
                %v1115 = vld [vmem:[%s1113] sm:%s1106]
                %1116 = vst [vmem:[%s1114] sm:%s1106] %v1115
                %v1117 = vld [vmem:[%s1113 + $0x8] sm:%s1106]
                %1118 = vst [vmem:[%s1114 + $0x10] sm:%s1106] %v1117
              $region217: #{image_nn2_forward.3} parent=211 // loop_footer
                %s1112 = sadd.s32 1, %s1108
              $region218: #{image_nn2_forward.3} parent=211 // loop_footer_branch
                %1107 = sbr.rel target = $region214
              $region219: #{image_nn2_forward.3} parent=211 // loop_exit
                _
            $region212: #{image_nn2_forward.3} parent=203 // pred_fallthru
              _
          $region204: #{image_nn2_forward.3} parent=199 // pred_fallthru
            _
          %1135 = vnop
        $region200: #{image_nn2_forward.3} parent=179 // pred_fallthru
          _
      $region180: #{image_nn2_forward.3} parent=5 // pred_fallthru
        _
      %p1136 = scmp.le.s32.totalorder 2, %s12
      // Predicated region
      $region235: #{image_nn2_forward.3} parent=5 // pred_check
        %p1137 = pneg %p1136
      $region236: #{image_nn2_forward.3} parent=5 // pred_check_branch
        %1139 = sbr.rel (%p1137) target = $region238
      $region237: #{image_nn2_forward.3} parent=5 // pred_region
        %s1140 = ssub.s32 %s12, 2
        // Predicated region
        $region239: #{image_nn2_forward.3} parent=237 // pred_check
          %p1141 = pneg %p187
        $region240: #{image_nn2_forward.3} parent=237 // pred_check_branch
          %1143 = sbr.rel (%p1141) target = $region242
        $region241: #{image_nn2_forward.3} parent=237 // pred_region
          %s1144 = sand.u32 %s172, 1
          %s1145 = sand.u32 %s172, 1
          %s1146 = smul.addr %s1145, 16
          %s1147 = scalar_lea.vmem [#allocation6], %s1146
        $region242: #{image_nn2_forward.3} parent=237 // pred_fallthru
          _
      $region238: #{image_nn2_forward.3} parent=5 // pred_fallthru
        _
    $region6: #{image_nn2_forward.3} parent=1 // loop_footer
      %s16 = sadd.s32 1, %s12
    $region7: #{image_nn2_forward.3} parent=1 // loop_footer_branch
      %11 = sbr.rel target = $region3
    $region8: #{image_nn2_forward.3} parent=1 // loop_exit
      _

// kernel: image_nn2_forward.4
$region0: #{image_nn2_forward.4}
  #allocation0 [shape = 'u32[]', space=smem, size = 0x4, offset = 0x4, fixed_abs, tag = 'smem constant byte address 0x4 - core index']
  #allocation1 [shape = 'u32[144,128]{1,0:T(1,128)}', space=vmem, size = 0x12000, scoped, tag = 'internal scratch']
  %s0 = inlined_call_operand.vmem [shape: bf16[16,150], index: 0, kind: input, shape index: {}]
  %s1 = inlined_call_operand.vmem [shape: f32[16,1], index: 1, kind: input, shape index: {}]
  %s2 = inlined_call_operand.vmem [shape: bf16[150,128], index: 2, kind: input, shape index: {}]
  %s3 = inlined_call_operand.vmem [shape: bf16[150,128], index: 3, kind: input, shape index: {}]
  %s4 = inlined_call_operand.vmem [shape: bf16[150,128], index: 4, kind: input, shape index: {}]
  %s5 = inlined_call_operand.vmem [shape: bf16[150,128], index: 5, kind: input, shape index: {}]
  %s6 = inlined_call_operand.vmem [shape: bf16[16,128], index: 6, kind: output, shape index: {}]
  %s7 = sld [smem:[#allocation0]]
  $region34: #{image_nn2_forward.4} parent=0
    _
  %s9 = ssub.s32 1, %s7
  %s10 = scalar_select 0, %s9, %s7
  // Predicated region
  $region2: #{image_nn2_forward.4} parent=0 // pred_check
    _
  $region3: #{image_nn2_forward.4} parent=0 // pred_check_branch
    %12 = sbr.rel (0) target = $region5
  $region4: #{image_nn2_forward.4} parent=0 // pred_region
    _
  $region5: #{image_nn2_forward.4} parent=0 // pred_fallthru
    _
  // Predicated region
  $region6: #{image_nn2_forward.4} parent=0 // pred_check
    _
  $region7: #{image_nn2_forward.4} parent=0 // pred_check_branch
    %14 = sbr.rel (0) target = $region9
  $region8: #{image_nn2_forward.4} parent=0 // pred_region
    _
  $region9: #{image_nn2_forward.4} parent=0 // pred_fallthru
    _
  // Predicated region
  $region10: #{image_nn2_forward.4} parent=0 // pred_check
    _
  $region11: #{image_nn2_forward.4} parent=0 // pred_check_branch
    %16 = sbr.rel (0) target = $region13
  $region12: #{image_nn2_forward.4} parent=0 // pred_region
    _
  $region13: #{image_nn2_forward.4} parent=0 // pred_fallthru
    _
  // Predicated region
  $region14: #{image_nn2_forward.4} parent=0 // pred_check
    _
  $region15: #{image_nn2_forward.4} parent=0 // pred_check_branch
    %18 = sbr.rel (0) target = $region17
  $region16: #{image_nn2_forward.4} parent=0 // pred_region
    _
  $region17: #{image_nn2_forward.4} parent=0 // pred_fallthru
    _
  // Predicated region
  $region18: #{image_nn2_forward.4} parent=0 // pred_check
    _
  $region19: #{image_nn2_forward.4} parent=0 // pred_check_branch
    %20 = sbr.rel (0) target = $region21
  $region20: #{image_nn2_forward.4} parent=0 // pred_region
    _
  $region21: #{image_nn2_forward.4} parent=0 // pred_fallthru
    _
  // Predicated region
  $region22: #{image_nn2_forward.4} parent=0 // pred_check
    _
  $region23: #{image_nn2_forward.4} parent=0 // pred_check_branch
    %22 = sbr.rel (0) target = $region25
  $region24: #{image_nn2_forward.4} parent=0 // pred_region
    _
  $region25: #{image_nn2_forward.4} parent=0 // pred_fallthru
    _
  %v24 = vld [vmem:[%s0] sm:$0xff]
  %v25 = vld [vmem:[%s0 + $0x8] sm:$0xff]
  %v26 = vld [vmem:[%s2] sm:$0xf]
  %v27 = vld [vmem:[%s2 + $0x4] sm:$0xf]
  %v28 = vld [vmem:[%s2 + $0x8] sm:$0xf]
  %v29 = vld [vmem:[%s2 + $0xc] sm:$0xf]
  %v30 = vld [vmem:[%s2 + $0x10] sm:$0xf]
  %v31 = vld [vmem:[%s2 + $0x14] sm:$0xf]
  %v32 = vld [vmem:[%s2 + $0x18] sm:$0xf]
  %v33 = vld [vmem:[%s2 + $0x1c] sm:$0xf]
  %v34 = vld [vmem:[%s2 + $0x20] sm:$0xf]
  %v35 = vld [vmem:[%s2 + $0x24] sm:$0xf]
  %v36 = vld [vmem:[%s2 + $0x28] sm:$0xf]
  %v37 = vld [vmem:[%s2 + $0x2c] sm:$0xf]
  %v38 = vld [vmem:[%s2 + $0x30] sm:$0xf]
  %v39 = vld [vmem:[%s2 + $0x34] sm:$0xf]
  %v40 = vld [vmem:[%s2 + $0x38] sm:$0xf]
  %v41 = vld [vmem:[%s2 + $0x3c] sm:$0xf]
  %v42 = vld [vmem:[%s2 + $0x40] sm:$0xf]
  %v43 = vld [vmem:[%s2 + $0x44] sm:$0xf]
  %v44 = vld [vmem:[%s2 + $0x48] sm:$0x7]
  %v47 = vunpack.c.l.b16 %v24
  %v48 = vunpack.c.h.b16 %v24
  %v49 = vunpack.c.l.b16 %v25
  %v50 = vunpack.c.h.b16 %v25
  %v51 = vpack.c.b16 %v49, %v47
  %v52 = vpack.c.b16 %v50, %v48
  %v73 = vunpack.c.l.b16 %v26
  %v74 = vunpack.c.l.b16 %v27
  %v75 = vunpack.c.l.b16 %v28
  %v76 = vunpack.c.l.b16 %v29
  %v77 = vunpack.c.l.b16 %v30
  %v78 = vunpack.c.l.b16 %v31
  %v79 = vunpack.c.l.b16 %v32
  %v80 = vunpack.c.l.b16 %v33
  %v81 = vunpack.c.l.b16 %v34
  %v82 = vunpack.c.l.b16 %v35
  %v83 = vunpack.c.l.b16 %v36
  %v84 = vunpack.c.l.b16 %v37
  %v85 = vunpack.c.l.b16 %v38
  %v86 = vunpack.c.l.b16 %v39
  %v87 = vunpack.c.l.b16 %v40
  %v88 = vunpack.c.l.b16 %v41
  %v89 = vunpack.c.l.b16 %v42
  %v90 = vunpack.c.l.b16 %v43
  %v91 = vunpack.c.l.b16 %v44
  %v92 = vpack.c.b16 %v74, %v73
  %v93 = vpack.c.b16 %v76, %v75
  %v94 = vpack.c.b16 %v78, %v77
  %v95 = vpack.c.b16 %v80, %v79
  %v96 = vpack.c.b16 %v82, %v81
  %v97 = vpack.c.b16 %v84, %v83
  %v98 = vpack.c.b16 %v86, %v85
  %v99 = vpack.c.b16 %v88, %v87
  %v100 = vpack.c.b16 %v90, %v89
  %v101 = vpack.c.b16 %v91, %v91
  %vm111 = vcmask 179200
  %v113 = vsel %vm111, %v52, 0
  %vm115 = vcmask 1042432
  %v117 = vsel %vm115, %v101, 0
  %119 = vmatprep.subr.bf16.mxu0 0
  %120 = vmatpush1.bf16.msra.mxu0 %v99
  %121 = vmatprep.subr.bf16.mxu0 0
  %122 = vmatpush1.bf16.msra.mxu0 %v98
  %123 = vmatprep.subr.bf16.mxu0 0
  %124 = vmatpush1.bf16.msra.mxu0 %v97
  %125 = vmatprep.subr.bf16.mxu0 0
  %126 = vmatpush1.bf16.msra.mxu0 %v96
  %127 = vmatprep.subr.bf16.mxu0 0
  %128 = vmatpush1.bf16.msra.mxu0 %v95
  %129 = vmatprep.subr.bf16.mxu0 0
  %130 = vmatpush1.bf16.msra.mxu0 %v94
  %131 = vmatprep.subr.bf16.mxu0 0
  %132 = vmatpush1.bf16.msra.mxu0 %v93
  %133 = vmatprep.subr.bf16.mxu0 0
  %134 = vmatpush1.bf16.msra.mxu0 %v92
  %135 = vmatprep.subr.bf16.mxu0 0
  %136 = vmatpush2.bf16.msra.mxu0 0
  %137 = vmatprep.subr.bf16.mxu0 0
  %138 = vmatpush2.bf16.msra.mxu0 0
  %139 = vmatprep.subr.bf16.mxu0 0
  %140 = vmatpush2.bf16.msra.mxu0 0
  %141 = vmatprep.subr.bf16.mxu0 0
  %142 = vmatpush2.bf16.msra.mxu0 0
  %143 = vmatprep.subr.bf16.mxu0 0
  %144 = vmatpush2.bf16.msra.mxu0 0
  %145 = vmatprep.subr.bf16.mxu0 0
  %146 = vmatpush2.bf16.msra.mxu0 0
  %147 = vmatprep.subr.bf16.mxu0 0
  %148 = vmatpush2.bf16.msra.mxu0 %v117
  %149 = vmatprep.subr.bf16.mxu0 0
  %150 = vmatpush2.bf16.msra.mxu0 %v100
  %151 = vmatprep.mubr.bf16.mxu0 %v113
  %152 = vmatmul.mubr.bf16.gmra.mxu0 %v51
  %v153 = vpop.f32.mrf.mxu0
  %v154 = vadd.f32 0.0, %v153
  %v155 = vpop.f32.mrf.mxu0
  %v156 = vpop.f32.mrf.mxu0
  %v157 = vadd.f32 0.0, %v156
  %v158 = vpop.f32.mrf.mxu0
  %159 = vdwg.mxu0
  %v160 = vld [vmem:[%s3] sm:$0xf]
  %v161 = vld [vmem:[%s3 + $0x4] sm:$0xf]
  %v162 = vld [vmem:[%s3 + $0x8] sm:$0xf]
  %v163 = vld [vmem:[%s3 + $0xc] sm:$0xf]
  %v164 = vld [vmem:[%s3 + $0x10] sm:$0xf]
  %v165 = vld [vmem:[%s3 + $0x14] sm:$0xf]
  %v166 = vld [vmem:[%s3 + $0x18] sm:$0xf]
  %v167 = vld [vmem:[%s3 + $0x1c] sm:$0xf]
  %v168 = vld [vmem:[%s3 + $0x20] sm:$0xf]
  %v169 = vld [vmem:[%s3 + $0x24] sm:$0xf]
  %v170 = vld [vmem:[%s3 + $0x28] sm:$0xf]
  %v171 = vld [vmem:[%s3 + $0x2c] sm:$0xf]
  %v172 = vld [vmem:[%s3 + $0x30] sm:$0xf]
  %v173 = vld [vmem:[%s3 + $0x34] sm:$0xf]
  %v174 = vld [vmem:[%s3 + $0x38] sm:$0xf]
  %v175 = vld [vmem:[%s3 + $0x3c] sm:$0xf]
  %v176 = vld [vmem:[%s3 + $0x40] sm:$0xf]
  %v177 = vld [vmem:[%s3 + $0x44] sm:$0xf]
  %v178 = vld [vmem:[%s3 + $0x48] sm:$0x7]
  %v198 = vunpack.c.l.b16 %v160
  %v199 = vunpack.c.l.b16 %v161
  %v200 = vunpack.c.l.b16 %v162
  %v201 = vunpack.c.l.b16 %v163
  %v202 = vunpack.c.l.b16 %v164
  %v203 = vunpack.c.l.b16 %v165
  %v204 = vunpack.c.l.b16 %v166
  %v205 = vunpack.c.l.b16 %v167
  %v206 = vunpack.c.l.b16 %v168
  %v207 = vunpack.c.l.b16 %v169
  %v208 = vunpack.c.l.b16 %v170
  %v209 = vunpack.c.l.b16 %v171
  %v210 = vunpack.c.l.b16 %v172
  %v211 = vunpack.c.l.b16 %v173
  %v212 = vunpack.c.l.b16 %v174
  %v213 = vunpack.c.l.b16 %v175
  %v214 = vunpack.c.l.b16 %v176
  %v215 = vunpack.c.l.b16 %v177
  %v216 = vunpack.c.l.b16 %v178
  %v217 = vpack.c.b16 %v199, %v198
  %v218 = vpack.c.b16 %v201, %v200
  %v219 = vpack.c.b16 %v203, %v202
  %v220 = vpack.c.b16 %v205, %v204
  %v221 = vpack.c.b16 %v207, %v206
  %v222 = vpack.c.b16 %v209, %v208
  %v223 = vpack.c.b16 %v211, %v210
  %v224 = vpack.c.b16 %v213, %v212
  %v225 = vpack.c.b16 %v215, %v214
  %v226 = vpack.c.b16 %v216, %v216
  %v237 = vsel %vm115, %v226, 0
  %239 = vmatprep.subr.bf16.mxu0 0
  %240 = vmatpush1.bf16.msra.mxu0 %v224
  %241 = vmatprep.subr.bf16.mxu0 0
  %242 = vmatpush1.bf16.msra.mxu0 %v223
  %243 = vmatprep.subr.bf16.mxu0 0
  %244 = vmatpush1.bf16.msra.mxu0 %v222
  %245 = vmatprep.subr.bf16.mxu0 0
  %246 = vmatpush1.bf16.msra.mxu0 %v221
  %247 = vmatprep.subr.bf16.mxu0 0
  %248 = vmatpush1.bf16.msra.mxu0 %v220
  %249 = vmatprep.subr.bf16.mxu0 0
  %250 = vmatpush1.bf16.msra.mxu0 %v219
  %251 = vmatprep.subr.bf16.mxu0 0
  %252 = vmatpush1.bf16.msra.mxu0 %v218
  %253 = vmatprep.subr.bf16.mxu0 0
  %254 = vmatpush1.bf16.msra.mxu0 %v217
  %255 = vmatprep.subr.bf16.mxu0 0
  %256 = vmatpush2.bf16.msra.mxu0 0
  %257 = vmatprep.subr.bf16.mxu0 0
  %258 = vmatpush2.bf16.msra.mxu0 0
  %259 = vmatprep.subr.bf16.mxu0 0
  %260 = vmatpush2.bf16.msra.mxu0 0
  %261 = vmatprep.subr.bf16.mxu0 0
  %262 = vmatpush2.bf16.msra.mxu0 0
  %263 = vmatprep.subr.bf16.mxu0 0
  %264 = vmatpush2.bf16.msra.mxu0 0
  %265 = vmatprep.subr.bf16.mxu0 0
  %266 = vmatpush2.bf16.msra.mxu0 0
  %267 = vmatprep.subr.bf16.mxu0 0
  %268 = vmatpush2.bf16.msra.mxu0 %v237
  %269 = vmatprep.subr.bf16.mxu0 0
  %270 = vmatpush2.bf16.msra.mxu0 %v225
  %271 = vmatprep.mubr.bf16.mxu0 %v113
  %272 = vmatmul.mubr.bf16.gmra.mxu0 %v51
  %v273 = vpop.f32.mrf.mxu0
  %v274 = vadd.f32 0.0, %v273
  %v275 = vpop.f32.mrf.mxu0
  %v276 = vpop.f32.mrf.mxu0
  %v277 = vadd.f32 0.0, %v276
  %v278 = vpop.f32.mrf.mxu0
  %279 = vdwg.mxu0
  %v280 = vmax.f32 %v154, %v274
  %v281 = vmax.f32 %v157, %v277
  %v282 = vld [vmem:[%s4] sm:$0xf]
  %v283 = vld [vmem:[%s4 + $0x4] sm:$0xf]
  %v284 = vld [vmem:[%s4 + $0x8] sm:$0xf]
  %v285 = vld [vmem:[%s4 + $0xc] sm:$0xf]
  %v286 = vld [vmem:[%s4 + $0x10] sm:$0xf]
  %v287 = vld [vmem:[%s4 + $0x14] sm:$0xf]
  %v288 = vld [vmem:[%s4 + $0x18] sm:$0xf]
  %v289 = vld [vmem:[%s4 + $0x1c] sm:$0xf]
  %v290 = vld [vmem:[%s4 + $0x20] sm:$0xf]
  %v291 = vld [vmem:[%s4 + $0x24] sm:$0xf]
  %v292 = vld [vmem:[%s4 + $0x28] sm:$0xf]
  %v293 = vld [vmem:[%s4 + $0x2c] sm:$0xf]
  %v294 = vld [vmem:[%s4 + $0x30] sm:$0xf]
  %v295 = vld [vmem:[%s4 + $0x34] sm:$0xf]
  %v296 = vld [vmem:[%s4 + $0x38] sm:$0xf]
  %v297 = vld [vmem:[%s4 + $0x3c] sm:$0xf]
  %v298 = vld [vmem:[%s4 + $0x40] sm:$0xf]
  %v299 = vld [vmem:[%s4 + $0x44] sm:$0xf]
  %v300 = vld [vmem:[%s4 + $0x48] sm:$0x7]
  %v320 = vunpack.c.l.b16 %v282
  %v321 = vunpack.c.l.b16 %v283
  %v322 = vunpack.c.l.b16 %v284
  %v323 = vunpack.c.l.b16 %v285
  %v324 = vunpack.c.l.b16 %v286
  %v325 = vunpack.c.l.b16 %v287
  %v326 = vunpack.c.l.b16 %v288
  %v327 = vunpack.c.l.b16 %v289
  %v328 = vunpack.c.l.b16 %v290
  %v329 = vunpack.c.l.b16 %v291
  %v330 = vunpack.c.l.b16 %v292
  %v331 = vunpack.c.l.b16 %v293
  %v332 = vunpack.c.l.b16 %v294
  %v333 = vunpack.c.l.b16 %v295
  %v334 = vunpack.c.l.b16 %v296
  %v335 = vunpack.c.l.b16 %v297
  %v336 = vunpack.c.l.b16 %v298
  %v337 = vunpack.c.l.b16 %v299
  %v338 = vunpack.c.l.b16 %v300
  %v339 = vpack.c.b16 %v321, %v320
  %v340 = vpack.c.b16 %v323, %v322
  %v341 = vpack.c.b16 %v325, %v324
  %v342 = vpack.c.b16 %v327, %v326
  %v343 = vpack.c.b16 %v329, %v328
  %v344 = vpack.c.b16 %v331, %v330
  %v345 = vpack.c.b16 %v333, %v332
  %v346 = vpack.c.b16 %v335, %v334
  %v347 = vpack.c.b16 %v337, %v336
  %v348 = vpack.c.b16 %v338, %v338
  %v359 = vsel %vm115, %v348, 0
  %361 = vmatprep.subr.bf16.mxu0 0
  %362 = vmatpush1.bf16.msra.mxu0 %v346
  %363 = vmatprep.subr.bf16.mxu0 0
  %364 = vmatpush1.bf16.msra.mxu0 %v345
  %365 = vmatprep.subr.bf16.mxu0 0
  %366 = vmatpush1.bf16.msra.mxu0 %v344
  %367 = vmatprep.subr.bf16.mxu0 0
  %368 = vmatpush1.bf16.msra.mxu0 %v343
  %369 = vmatprep.subr.bf16.mxu0 0
  %370 = vmatpush1.bf16.msra.mxu0 %v342
  %371 = vmatprep.subr.bf16.mxu0 0
  %372 = vmatpush1.bf16.msra.mxu0 %v341
  %373 = vmatprep.subr.bf16.mxu0 0
  %374 = vmatpush1.bf16.msra.mxu0 %v340
  %375 = vmatprep.subr.bf16.mxu0 0
  %376 = vmatpush1.bf16.msra.mxu0 %v339
  %377 = vmatprep.subr.bf16.mxu0 0
  %378 = vmatpush2.bf16.msra.mxu0 0
  %379 = vmatprep.subr.bf16.mxu0 0
  %380 = vmatpush2.bf16.msra.mxu0 0
  %381 = vmatprep.subr.bf16.mxu0 0
  %382 = vmatpush2.bf16.msra.mxu0 0
  %383 = vmatprep.subr.bf16.mxu0 0
  %384 = vmatpush2.bf16.msra.mxu0 0
  %385 = vmatprep.subr.bf16.mxu0 0
  %386 = vmatpush2.bf16.msra.mxu0 0
  %387 = vmatprep.subr.bf16.mxu0 0
  %388 = vmatpush2.bf16.msra.mxu0 0
  %389 = vmatprep.subr.bf16.mxu0 0
  %390 = vmatpush2.bf16.msra.mxu0 %v359
  %391 = vmatprep.subr.bf16.mxu0 0
  %392 = vmatpush2.bf16.msra.mxu0 %v347
  %393 = vmatprep.mubr.bf16.mxu0 %v113
  %394 = vmatmul.mubr.bf16.gmra.mxu0 %v51
  %v395 = vpop.f32.mrf.mxu0
  %v396 = vadd.f32 0.0, %v395
  %v397 = vpop.f32.mrf.mxu0
  %v398 = vpop.f32.mrf.mxu0
  %v399 = vadd.f32 0.0, %v398
  %v400 = vpop.f32.mrf.mxu0
  %401 = vdwg.mxu0
  %v402 = vmax.f32 %v280, %v396
  %v403 = vmax.f32 %v281, %v399
  %v404 = vld [vmem:[%s5] sm:$0xf]
  %v405 = vld [vmem:[%s5 + $0x4] sm:$0xf]
  %v406 = vld [vmem:[%s5 + $0x8] sm:$0xf]
  %v407 = vld [vmem:[%s5 + $0xc] sm:$0xf]
  %v408 = vld [vmem:[%s5 + $0x10] sm:$0xf]
  %v409 = vld [vmem:[%s5 + $0x14] sm:$0xf]
  %v410 = vld [vmem:[%s5 + $0x18] sm:$0xf]
  %v411 = vld [vmem:[%s5 + $0x1c] sm:$0xf]
  %v412 = vld [vmem:[%s5 + $0x20] sm:$0xf]
  %v413 = vld [vmem:[%s5 + $0x24] sm:$0xf]
  %v414 = vld [vmem:[%s5 + $0x28] sm:$0xf]
  %v415 = vld [vmem:[%s5 + $0x2c] sm:$0xf]
  %v416 = vld [vmem:[%s5 + $0x30] sm:$0xf]
  %v417 = vld [vmem:[%s5 + $0x34] sm:$0xf]
  %v418 = vld [vmem:[%s5 + $0x38] sm:$0xf]
  %v419 = vld [vmem:[%s5 + $0x3c] sm:$0xf]
  %v420 = vld [vmem:[%s5 + $0x40] sm:$0xf]
  %v421 = vld [vmem:[%s5 + $0x44] sm:$0xf]
  %v422 = vld [vmem:[%s5 + $0x48] sm:$0x7]
  %v442 = vunpack.c.l.b16 %v404
  %v443 = vunpack.c.l.b16 %v405
  %v444 = vunpack.c.l.b16 %v406
  %v445 = vunpack.c.l.b16 %v407
  %v446 = vunpack.c.l.b16 %v408
  %v447 = vunpack.c.l.b16 %v409
  %v448 = vunpack.c.l.b16 %v410
  %v449 = vunpack.c.l.b16 %v411
  %v450 = vunpack.c.l.b16 %v412
  %v451 = vunpack.c.l.b16 %v413
  %v452 = vunpack.c.l.b16 %v414
  %v453 = vunpack.c.l.b16 %v415
  %v454 = vunpack.c.l.b16 %v416
  %v455 = vunpack.c.l.b16 %v417
  %v456 = vunpack.c.l.b16 %v418
  %v457 = vunpack.c.l.b16 %v419
  %v458 = vunpack.c.l.b16 %v420
  %v459 = vunpack.c.l.b16 %v421
  %v460 = vunpack.c.l.b16 %v422
  %v461 = vpack.c.b16 %v443, %v442
  %v462 = vpack.c.b16 %v445, %v444
  %v463 = vpack.c.b16 %v447, %v446
  %v464 = vpack.c.b16 %v449, %v448
  %v465 = vpack.c.b16 %v451, %v450
  %v466 = vpack.c.b16 %v453, %v452
  %v467 = vpack.c.b16 %v455, %v454
  %v468 = vpack.c.b16 %v457, %v456
  %v469 = vpack.c.b16 %v459, %v458
  %v470 = vpack.c.b16 %v460, %v460
  %v481 = vsel %vm115, %v470, 0
  %483 = vmatprep.subr.bf16.mxu0 0
  %484 = vmatpush1.bf16.msra.mxu0 %v468
  %485 = vmatprep.subr.bf16.mxu0 0
  %486 = vmatpush1.bf16.msra.mxu0 %v467
  %487 = vmatprep.subr.bf16.mxu0 0
  %488 = vmatpush1.bf16.msra.mxu0 %v466
  %489 = vmatprep.subr.bf16.mxu0 0
  %490 = vmatpush1.bf16.msra.mxu0 %v465
  %491 = vmatprep.subr.bf16.mxu0 0
  %492 = vmatpush1.bf16.msra.mxu0 %v464
  %493 = vmatprep.subr.bf16.mxu0 0
  %494 = vmatpush1.bf16.msra.mxu0 %v463
  %495 = vmatprep.subr.bf16.mxu0 0
  %496 = vmatpush1.bf16.msra.mxu0 %v462
  %497 = vmatprep.subr.bf16.mxu0 0
  %498 = vmatpush1.bf16.msra.mxu0 %v461
  %499 = vmatprep.subr.bf16.mxu0 0
  %500 = vmatpush2.bf16.msra.mxu0 0
  %501 = vmatprep.subr.bf16.mxu0 0
  %502 = vmatpush2.bf16.msra.mxu0 0
  %503 = vmatprep.subr.bf16.mxu0 0
  %504 = vmatpush2.bf16.msra.mxu0 0
  %505 = vmatprep.subr.bf16.mxu0 0
  %506 = vmatpush2.bf16.msra.mxu0 0
  %507 = vmatprep.subr.bf16.mxu0 0
  %508 = vmatpush2.bf16.msra.mxu0 0
  %509 = vmatprep.subr.bf16.mxu0 0
  %510 = vmatpush2.bf16.msra.mxu0 0
  %511 = vmatprep.subr.bf16.mxu0 0
  %512 = vmatpush2.bf16.msra.mxu0 %v481
  %513 = vmatprep.subr.bf16.mxu0 0
  %514 = vmatpush2.bf16.msra.mxu0 %v469
  %515 = vmatprep.mubr.bf16.mxu0 %v113
  %516 = vmatmul.mubr.bf16.gmra.mxu0 %v51
  %v517 = vpop.f32.mrf.mxu0
  %v518 = vadd.f32 0.0, %v517
  %v519 = vpop.f32.mrf.mxu0
  %v520 = vpop.f32.mrf.mxu0
  %v521 = vadd.f32 0.0, %v520
  %v522 = vpop.f32.mrf.mxu0
  %523 = vdwg.mxu0
  %v524 = vmax.f32 %v402, %v518
  %v525 = vmax.f32 %v403, %v521
  %v526 = vld [vmem:[%s1] sm:$0xff]
  %v527 = vld [vmem:[%s1 + $0x8] sm:$0xff]
  %529 = vset.pattern.permute.xlu0 0
  %530 = vperm.xlu0 %529, %v526
  %v531 = vpop.permute.xlu0 %530
  %534 = vset.pattern.permute.xlu0 0
  %535 = vperm.xlu0 %534, %v527
  %v536 = vpop.permute.xlu0 %535
  %v538 = vadd.f32 %v524, %v531
  %v539 = vadd.f32 %v525, %v536
  %v540 = vmax.f32 %v538, 0.0
  %v541 = vmax.f32 %v539, 0.0
  %v542 = vpack.c.bf16 %v541, %v540
  %v544 = vunpack.c.l.b16 %v542
  %v545 = vunpack.c.h.b16 %v542
  %v546 = vpack.c.b16 %v544, %v544
  %v547 = vpack.c.b16 %v545, %v545
  %550 = vst [vmem:[%s6] sm:$0xf] %v546
  %551 = vst [vmem:[%s6 + $0x4] sm:$0xf] %v547
  // Predicated region
  $region26: #{image_nn2_forward.4} parent=0 // pred_check
    _
  $region27: #{image_nn2_forward.4} parent=0 // pred_check_branch
    %553 = sbr.rel (0) target = $region29
  $region28: #{image_nn2_forward.4} parent=0 // pred_region
    _
  $region29: #{image_nn2_forward.4} parent=0 // pred_fallthru
    _
  // Predicated region
  $region30: #{image_nn2_forward.4} parent=0 // pred_check
    _
  $region31: #{image_nn2_forward.4} parent=0 // pred_check_branch
    %555 = sbr.rel (0) target = $region33
  $region32: #{image_nn2_forward.4} parent=0 // pred_region
    _
  $region33: #{image_nn2_forward.4} parent=0 // pred_fallthru
    _

// kernel: image_nn2_forward.5
$region0: #{image_nn2_forward.5}
  #allocation0 [shape = 'u32[]', space=smem, size = 0x4, offset = 0x4, fixed_abs, tag = 'smem constant byte address 0x4 - core index']
  #allocation1 [shape = 'u32[144,128]{1,0:T(1,128)}', space=vmem, size = 0x12000, scoped, tag = 'internal scratch']
  %s0 = inlined_call_operand.vmem [shape: bf16[16,400], index: 0, kind: input, shape index: {}]
  %s1 = inlined_call_operand.vmem [shape: bf16[400,800], index: 1, kind: input, shape index: {}]
  %s2 = inlined_call_operand.vmem [shape: f32[1,800], index: 2, kind: input, shape index: {}]
  %s3 = inlined_call_operand.vmem [shape: bf16[800,800], index: 3, kind: input, shape index: {}]
  %s4 = inlined_call_operand.vmem [shape: f32[1,800], index: 4, kind: input, shape index: {}]
  %s5 = inlined_call_operand.vmem [shape: bf16[800,400], index: 5, kind: input, shape index: {}]
  %s6 = inlined_call_operand.vmem [shape: f32[1,400], index: 6, kind: input, shape index: {}]
  %s7 = inlined_call_operand.vmem [shape: f32[16,400], index: 7, kind: output, shape index: {}]
  %s8 = sld [smem:[#allocation0]]
  $region38: #{image_nn2_forward.5} parent=0
    _
  %s10 = ssub.s32 1, %s8
  %s11 = scalar_select 0, %s10, %s8
  // Predicated region
  $region2: #{image_nn2_forward.5} parent=0 // pred_check
    _
  $region3: #{image_nn2_forward.5} parent=0 // pred_check_branch
    %13 = sbr.rel (0) target = $region5
  $region4: #{image_nn2_forward.5} parent=0 // pred_region
    _
  $region5: #{image_nn2_forward.5} parent=0 // pred_fallthru
    _
  // Predicated region
  $region6: #{image_nn2_forward.5} parent=0 // pred_check
    _
  $region7: #{image_nn2_forward.5} parent=0 // pred_check_branch
    %15 = sbr.rel (0) target = $region9
  $region8: #{image_nn2_forward.5} parent=0 // pred_region
    _
  $region9: #{image_nn2_forward.5} parent=0 // pred_fallthru
    _
  // Predicated region
  $region10: #{image_nn2_forward.5} parent=0 // pred_check
    _
  $region11: #{image_nn2_forward.5} parent=0 // pred_check_branch
    %17 = sbr.rel (0) target = $region13
  $region12: #{image_nn2_forward.5} parent=0 // pred_region
    _
  $region13: #{image_nn2_forward.5} parent=0 // pred_fallthru
    _
  // Predicated region
  $region14: #{image_nn2_forward.5} parent=0 // pred_check
    _
  $region15: #{image_nn2_forward.5} parent=0 // pred_check_branch
    %19 = sbr.rel (0) target = $region17
  $region16: #{image_nn2_forward.5} parent=0 // pred_region
    _
  $region17: #{image_nn2_forward.5} parent=0 // pred_fallthru
    _
  // Predicated region
  $region18: #{image_nn2_forward.5} parent=0 // pred_check
    _
  $region19: #{image_nn2_forward.5} parent=0 // pred_check_branch
    %21 = sbr.rel (0) target = $region21
  $region20: #{image_nn2_forward.5} parent=0 // pred_region
    _
  $region21: #{image_nn2_forward.5} parent=0 // pred_fallthru
    _
  // Predicated region
  $region22: #{image_nn2_forward.5} parent=0 // pred_check
    _
  $region23: #{image_nn2_forward.5} parent=0 // pred_check_branch
    %23 = sbr.rel (0) target = $region25
  $region24: #{image_nn2_forward.5} parent=0 // pred_region
    _
  $region25: #{image_nn2_forward.5} parent=0 // pred_fallthru
    _
  // Predicated region
  $region26: #{image_nn2_forward.5} parent=0 // pred_check
    _
  $region27: #{image_nn2_forward.5} parent=0 // pred_check_branch
    %25 = sbr.rel (0) target = $region29
  $region28: #{image_nn2_forward.5} parent=0 // pred_region
    _
  $region29: #{image_nn2_forward.5} parent=0 // pred_fallthru
    _
  %v27 = vld [vmem:[%s0] sm:$0xff]
  %v28 = vld [vmem:[%s0 + $0x8] sm:$0xff]
  %v29 = vld [vmem:[%s0 + $0x10] sm:$0xff]
  %v30 = vld [vmem:[%s0 + $0x18] sm:$0xff]
  %v31 = vld [vmem:[%s1] sm:$0xff]
  %v32 = vld [vmem:[%s1 + $0x8] sm:$0xff]
  %v33 = vld [vmem:[%s1 + $0x10] sm:$0xff]
  %v34 = vld [vmem:[%s1 + $0x18] sm:$0xf]
  %v35 = vld [vmem:[%s1 + $0x1c] sm:$0xff]
  %v36 = vld [vmem:[%s1 + $0x24] sm:$0xff]
  %v37 = vld [vmem:[%s1 + $0x2c] sm:$0xff]
  %v38 = vld [vmem:[%s1 + $0x34] sm:$0xf]
  %v39 = vld [vmem:[%s1 + $0x38] sm:$0xff]
  %v40 = vld [vmem:[%s1 + $0x40] sm:$0xff]
  %v41 = vld [vmem:[%s1 + $0x48] sm:$0xff]
  %v42 = vld [vmem:[%s1 + $0x50] sm:$0xf]
  %v43 = vld [vmem:[%s1 + $0x54] sm:$0xff]
  %v44 = vld [vmem:[%s1 + $0x5c] sm:$0xff]
  %v45 = vld [vmem:[%s1 + $0x64] sm:$0xff]
  %v46 = vld [vmem:[%s1 + $0x6c] sm:$0xf]
  %v47 = vld [vmem:[%s1 + $0x70] sm:$0xff]
  %v48 = vld [vmem:[%s1 + $0x78] sm:$0xff]
  %v49 = vld [vmem:[%s1 + $0x80] sm:$0xff]
  %v50 = vld [vmem:[%s1 + $0x88] sm:$0xf]
  %v51 = vld [vmem:[%s1 + $0x8c] sm:$0xff]
  %v52 = vld [vmem:[%s1 + $0x94] sm:$0xff]
  %v53 = vld [vmem:[%s1 + $0x9c] sm:$0xff]
  %v54 = vld [vmem:[%s1 + $0xa4] sm:$0xf]
  %v55 = vld [vmem:[%s1 + $0xa8] sm:$0xff]
  %v56 = vld [vmem:[%s1 + $0xb0] sm:$0xff]
  %v57 = vld [vmem:[%s1 + $0xb8] sm:$0xff]
  %v58 = vld [vmem:[%s1 + $0xc0] sm:$0xf]
  %v59 = vld [vmem:[%s1 + $0xc4] sm:$0xff]
  %v60 = vld [vmem:[%s1 + $0xcc] sm:$0xff]
  %v61 = vld [vmem:[%s1 + $0xd4] sm:$0xff]
  %v62 = vld [vmem:[%s1 + $0xdc] sm:$0xf]
  %v63 = vld [vmem:[%s1 + $0xe0] sm:$0xff]
  %v64 = vld [vmem:[%s1 + $0xe8] sm:$0xff]
  %v65 = vld [vmem:[%s1 + $0xf0] sm:$0xff]
  %v66 = vld [vmem:[%s1 + $0xf8] sm:$0xf]
  %v67 = vld [vmem:[%s1 + $0xfc] sm:$0xff]
  %v68 = vld [vmem:[%s1 + $0x104] sm:$0xff]
  %v69 = vld [vmem:[%s1 + $0x10c] sm:$0xff]
  %v70 = vld [vmem:[%s1 + $0x114] sm:$0xf]
  %v71 = vld [vmem:[%s1 + $0x118] sm:$0xff]
  %v72 = vld [vmem:[%s1 + $0x120] sm:$0xff]
  %v73 = vld [vmem:[%s1 + $0x128] sm:$0xff]
  %v74 = vld [vmem:[%s1 + $0x130] sm:$0xf]
  %v75 = vld [vmem:[%s1 + $0x134] sm:$0xff]
  %v76 = vld [vmem:[%s1 + $0x13c] sm:$0xff]
  %v77 = vld [vmem:[%s1 + $0x144] sm:$0xff]
  %v78 = vld [vmem:[%s1 + $0x14c] sm:$0xf]
  %v79 = vld [vmem:[%s1 + $0x150] sm:$0xff]
  %v80 = vld [vmem:[%s1 + $0x158] sm:$0xff]
  %v81 = vld [vmem:[%s1 + $0x160] sm:$0xff]
  %v82 = vld [vmem:[%s1 + $0x168] sm:$0xf]
  %v83 = vld [vmem:[%s1 + $0x16c] sm:$0xff]
  %v84 = vld [vmem:[%s1 + $0x174] sm:$0xff]
  %v85 = vld [vmem:[%s1 + $0x17c] sm:$0xff]
  %v86 = vld [vmem:[%s1 + $0x184] sm:$0xf]
  %v87 = vld [vmem:[%s1 + $0x188] sm:$0xff]
  %v88 = vld [vmem:[%s1 + $0x190] sm:$0xff]
  %v89 = vld [vmem:[%s1 + $0x198] sm:$0xff]
  %v90 = vld [vmem:[%s1 + $0x1a0] sm:$0xf]
  %v91 = vld [vmem:[%s1 + $0x1a4] sm:$0xff]
  %v92 = vld [vmem:[%s1 + $0x1ac] sm:$0xff]
  %v93 = vld [vmem:[%s1 + $0x1b4] sm:$0xff]
  %v94 = vld [vmem:[%s1 + $0x1bc] sm:$0xf]
  %v95 = vld [vmem:[%s1 + $0x1c0] sm:$0xff]
  %v96 = vld [vmem:[%s1 + $0x1c8] sm:$0xff]
  %v97 = vld [vmem:[%s1 + $0x1d0] sm:$0xff]
  %v98 = vld [vmem:[%s1 + $0x1d8] sm:$0xf]
  %v99 = vld [vmem:[%s1 + $0x1dc] sm:$0xff]
  %v100 = vld [vmem:[%s1 + $0x1e4] sm:$0xff]
  %v101 = vld [vmem:[%s1 + $0x1ec] sm:$0xff]
  %v102 = vld [vmem:[%s1 + $0x1f4] sm:$0xf]
  %v103 = vld [vmem:[%s1 + $0x1f8] sm:$0xff]
  %v104 = vld [vmem:[%s1 + $0x200] sm:$0xff]
  %v105 = vld [vmem:[%s1 + $0x208] sm:$0xff]
  %v106 = vld [vmem:[%s1 + $0x210] sm:$0xf]
  %v107 = vld [vmem:[%s1 + $0x214] sm:$0xff]
  %v108 = vld [vmem:[%s1 + $0x21c] sm:$0xff]
  %v109 = vld [vmem:[%s1 + $0x224] sm:$0xff]
  %v110 = vld [vmem:[%s1 + $0x22c] sm:$0xf]
  %v111 = vld [vmem:[%s1 + $0x230] sm:$0xff]
  %v112 = vld [vmem:[%s1 + $0x238] sm:$0xff]
  %v113 = vld [vmem:[%s1 + $0x240] sm:$0xff]
  %v114 = vld [vmem:[%s1 + $0x248] sm:$0xf]
  %v115 = vld [vmem:[%s1 + $0x24c] sm:$0xff]
  %v116 = vld [vmem:[%s1 + $0x254] sm:$0xff]
  %v117 = vld [vmem:[%s1 + $0x25c] sm:$0xff]
  %v118 = vld [vmem:[%s1 + $0x264] sm:$0xf]
  %v119 = vld [vmem:[%s1 + $0x268] sm:$0xff]
  %v120 = vld [vmem:[%s1 + $0x270] sm:$0xff]
  %v121 = vld [vmem:[%s1 + $0x278] sm:$0xff]
  %v122 = vld [vmem:[%s1 + $0x280] sm:$0xf]
  %v123 = vld [vmem:[%s1 + $0x284] sm:$0xff]
  %v124 = vld [vmem:[%s1 + $0x28c] sm:$0xff]
  %v125 = vld [vmem:[%s1 + $0x294] sm:$0xff]
  %v126 = vld [vmem:[%s1 + $0x29c] sm:$0xf]
  %v127 = vld [vmem:[%s1 + $0x2a0] sm:$0xff]
  %v128 = vld [vmem:[%s1 + $0x2a8] sm:$0xff]
  %v129 = vld [vmem:[%s1 + $0x2b0] sm:$0xff]
  %v130 = vld [vmem:[%s1 + $0x2b8] sm:$0xf]
  %v131 = vld [vmem:[%s1 + $0x2bc] sm:$0xff]
  %v132 = vld [vmem:[%s1 + $0x2c4] sm:$0xff]
  %v133 = vld [vmem:[%s1 + $0x2cc] sm:$0xff]
  %v134 = vld [vmem:[%s1 + $0x2d4] sm:$0xf]
  %v135 = vld [vmem:[%s1 + $0x2d8] sm:$0xff]
  %v136 = vld [vmem:[%s1 + $0x2e0] sm:$0xff]
  %v137 = vld [vmem:[%s1 + $0x2e8] sm:$0xff]
  %v138 = vld [vmem:[%s1 + $0x2f0] sm:$0xf]
  %v139 = vld [vmem:[%s1 + $0x2f4] sm:$0xff]
  %v140 = vld [vmem:[%s1 + $0x2fc] sm:$0xff]
  %v141 = vld [vmem:[%s1 + $0x304] sm:$0xff]
  %v142 = vld [vmem:[%s1 + $0x30c] sm:$0xf]
  %v143 = vld [vmem:[%s1 + $0x310] sm:$0xff]
  %v144 = vld [vmem:[%s1 + $0x318] sm:$0xff]
  %v145 = vld [vmem:[%s1 + $0x320] sm:$0xff]
  %v146 = vld [vmem:[%s1 + $0x328] sm:$0xf]
  %v147 = vld [vmem:[%s1 + $0x32c] sm:$0xff]
  %v148 = vld [vmem:[%s1 + $0x334] sm:$0xff]
  %v149 = vld [vmem:[%s1 + $0x33c] sm:$0xff]
  %v150 = vld [vmem:[%s1 + $0x344] sm:$0xf]
  %v151 = vld [vmem:[%s1 + $0x348] sm:$0xff]
  %v152 = vld [vmem:[%s1 + $0x350] sm:$0xff]
  %v153 = vld [vmem:[%s1 + $0x358] sm:$0xff]
  %v154 = vld [vmem:[%s1 + $0x360] sm:$0xf]
  %v155 = vld [vmem:[%s1 + $0x364] sm:$0xff]
  %v156 = vld [vmem:[%s1 + $0x36c] sm:$0xff]
  %v157 = vld [vmem:[%s1 + $0x374] sm:$0xff]
  %v158 = vld [vmem:[%s1 + $0x37c] sm:$0xf]
  %v159 = vld [vmem:[%s1 + $0x380] sm:$0xff]
  %v160 = vld [vmem:[%s1 + $0x388] sm:$0xff]
  %v161 = vld [vmem:[%s1 + $0x390] sm:$0xff]
  %v162 = vld [vmem:[%s1 + $0x398] sm:$0xf]
  %v163 = vld [vmem:[%s1 + $0x39c] sm:$0xff]
  %v164 = vld [vmem:[%s1 + $0x3a4] sm:$0xff]
  %v165 = vld [vmem:[%s1 + $0x3ac] sm:$0xff]
  %v166 = vld [vmem:[%s1 + $0x3b4] sm:$0xf]
  %v167 = vld [vmem:[%s1 + $0x3b8] sm:$0xff]
  %v168 = vld [vmem:[%s1 + $0x3c0] sm:$0xff]
  %v169 = vld [vmem:[%s1 + $0x3c8] sm:$0xff]
  %v170 = vld [vmem:[%s1 + $0x3d0] sm:$0xf]
  %v171 = vld [vmem:[%s1 + $0x3d4] sm:$0xff]
  %v172 = vld [vmem:[%s1 + $0x3dc] sm:$0xff]
  %v173 = vld [vmem:[%s1 + $0x3e4] sm:$0xff]
  %v174 = vld [vmem:[%s1 + $0x3ec] sm:$0xf]
  %v175 = vld [vmem:[%s1 + $0x3f0] sm:$0xff]
  %v176 = vld [vmem:[%s1 + $0x3f8] sm:$0xff]
  %v177 = vld [vmem:[%s1 + $0x400] sm:$0xff]
  %v178 = vld [vmem:[%s1 + $0x408] sm:$0xf]
  %v179 = vld [vmem:[%s1 + $0x40c] sm:$0xff]
  %v180 = vld [vmem:[%s1 + $0x414] sm:$0xff]
  %v181 = vld [vmem:[%s1 + $0x41c] sm:$0xff]
  %v182 = vld [vmem:[%s1 + $0x424] sm:$0xf]
  %v183 = vld [vmem:[%s1 + $0x428] sm:$0xff]
  %v184 = vld [vmem:[%s1 + $0x430] sm:$0xff]
  %v185 = vld [vmem:[%s1 + $0x438] sm:$0xff]
  %v186 = vld [vmem:[%s1 + $0x440] sm:$0xf]
  %v187 = vld [vmem:[%s1 + $0x444] sm:$0xff]
  %v188 = vld [vmem:[%s1 + $0x44c] sm:$0xff]
  %v189 = vld [vmem:[%s1 + $0x454] sm:$0xff]
  %v190 = vld [vmem:[%s1 + $0x45c] sm:$0xf]
  %v191 = vld [vmem:[%s1 + $0x460] sm:$0xff]
  %v192 = vld [vmem:[%s1 + $0x468] sm:$0xff]
  %v193 = vld [vmem:[%s1 + $0x470] sm:$0xff]
  %v194 = vld [vmem:[%s1 + $0x478] sm:$0xf]
  %v195 = vld [vmem:[%s1 + $0x47c] sm:$0xff]
  %v196 = vld [vmem:[%s1 + $0x484] sm:$0xff]
  %v197 = vld [vmem:[%s1 + $0x48c] sm:$0xff]
  %v198 = vld [vmem:[%s1 + $0x494] sm:$0xf]
  %v199 = vld [vmem:[%s1 + $0x498] sm:$0xff]
  %v200 = vld [vmem:[%s1 + $0x4a0] sm:$0xff]
  %v201 = vld [vmem:[%s1 + $0x4a8] sm:$0xff]
  %v202 = vld [vmem:[%s1 + $0x4b0] sm:$0xf]
  %v203 = vld [vmem:[%s1 + $0x4b4] sm:$0xff]
  %v204 = vld [vmem:[%s1 + $0x4bc] sm:$0xff]
  %v205 = vld [vmem:[%s1 + $0x4c4] sm:$0xff]
  %v206 = vld [vmem:[%s1 + $0x4cc] sm:$0xf]
  %v207 = vld [vmem:[%s1 + $0x4d0] sm:$0xff]
  %v208 = vld [vmem:[%s1 + $0x4d8] sm:$0xff]
  %v209 = vld [vmem:[%s1 + $0x4e0] sm:$0xff]
  %v210 = vld [vmem:[%s1 + $0x4e8] sm:$0xf]
  %v211 = vld [vmem:[%s1 + $0x4ec] sm:$0xff]
  %v212 = vld [vmem:[%s1 + $0x4f4] sm:$0xff]
  %v213 = vld [vmem:[%s1 + $0x4fc] sm:$0xff]
  %v214 = vld [vmem:[%s1 + $0x504] sm:$0xf]
  %v215 = vld [vmem:[%s1 + $0x508] sm:$0xff]
  %v216 = vld [vmem:[%s1 + $0x510] sm:$0xff]
  %v217 = vld [vmem:[%s1 + $0x518] sm:$0xff]
  %v218 = vld [vmem:[%s1 + $0x520] sm:$0xf]
  %v219 = vld [vmem:[%s1 + $0x524] sm:$0xff]
  %v220 = vld [vmem:[%s1 + $0x52c] sm:$0xff]
  %v221 = vld [vmem:[%s1 + $0x534] sm:$0xff]
  %v222 = vld [vmem:[%s1 + $0x53c] sm:$0xf]
  %v223 = vld [vmem:[%s1 + $0x540] sm:$0xff]
  %v224 = vld [vmem:[%s1 + $0x548] sm:$0xff]
  %v225 = vld [vmem:[%s1 + $0x550] sm:$0xff]
  %v226 = vld [vmem:[%s1 + $0x558] sm:$0xf]
  %v227 = vld [vmem:[%s1 + $0x55c] sm:$0xff]
  %v228 = vld [vmem:[%s1 + $0x564] sm:$0xff]
  %v229 = vld [vmem:[%s1 + $0x56c] sm:$0xff]
  %v230 = vld [vmem:[%s1 + $0x574] sm:$0xf]
  %v231 = vld [vmem:[%s2] sm:$0x7f]
  %v233 = vlaneseq
  %v234 = vshrl.u32 %v233, 7
  %v235 = vsub.s32 0, %v234
  %v236 = vrot.slane %v231, %v235
  %v237 = vlaneseq
  %v238 = vshrl.u32 %v237, 7
  %v239 = vsub.s32 1, %v238
  %v240 = vrot.slane %v231, %v239
  %v241 = vlaneseq
  %v242 = vshrl.u32 %v241, 7
  %v243 = vsub.s32 2, %v242
  %v244 = vrot.slane %v231, %v243
  %v245 = vlaneseq
  %v246 = vshrl.u32 %v245, 7
  %v247 = vsub.s32 3, %v246
  %v248 = vrot.slane %v231, %v247
  %v249 = vlaneseq
  %v250 = vshrl.u32 %v249, 7
  %v251 = vsub.s32 4, %v250
  %v252 = vrot.slane %v231, %v251
  %v253 = vlaneseq
  %v254 = vshrl.u32 %v253, 7
  %v255 = vsub.s32 5, %v254
  %v256 = vrot.slane %v231, %v255
  %v257 = vlaneseq
  %v258 = vshrl.u32 %v257, 7
  %v259 = vsub.s32 6, %v258
  %v260 = vrot.slane %v231, %v259
  %v272 = vunpack.c.l.b16 %v27
  %v273 = vunpack.c.h.b16 %v27
  %v274 = vunpack.c.l.b16 %v28
  %v275 = vunpack.c.h.b16 %v28
  %v276 = vunpack.c.l.b16 %v29
  %v277 = vunpack.c.h.b16 %v29
  %v278 = vunpack.c.l.b16 %v30
  %v279 = vunpack.c.h.b16 %v30
  %v280 = vpack.c.b16 %v276, %v272
  %v281 = vpack.c.b16 %v277, %v273
  %v282 = vpack.c.b16 %v278, %v274
  %v283 = vpack.c.b16 %v279, %v275
  %v487 = vunpack.c.l.b16 %v31
  %v488 = vunpack.c.h.b16 %v31
  %v489 = vunpack.c.l.b16 %v32
  %v490 = vunpack.c.h.b16 %v32
  %v491 = vunpack.c.l.b16 %v33
  %v492 = vunpack.c.h.b16 %v33
  %v493 = vunpack.c.l.b16 %v34
  %v494 = vunpack.c.l.b16 %v35
  %v495 = vunpack.c.h.b16 %v35
  %v496 = vunpack.c.l.b16 %v36
  %v497 = vunpack.c.h.b16 %v36
  %v498 = vunpack.c.l.b16 %v37
  %v499 = vunpack.c.h.b16 %v37
  %v500 = vunpack.c.l.b16 %v38
  %v501 = vunpack.c.l.b16 %v39
  %v502 = vunpack.c.h.b16 %v39
  %v503 = vunpack.c.l.b16 %v40
  %v504 = vunpack.c.h.b16 %v40
  %v505 = vunpack.c.l.b16 %v41
  %v506 = vunpack.c.h.b16 %v41
  %v507 = vunpack.c.l.b16 %v42
  %v508 = vunpack.c.l.b16 %v43
  %v509 = vunpack.c.h.b16 %v43
  %v510 = vunpack.c.l.b16 %v44
  %v511 = vunpack.c.h.b16 %v44
  %v512 = vunpack.c.l.b16 %v45
  %v513 = vunpack.c.h.b16 %v45
  %v514 = vunpack.c.l.b16 %v46
  %v515 = vunpack.c.l.b16 %v47
  %v516 = vunpack.c.h.b16 %v47
  %v517 = vunpack.c.l.b16 %v48
  %v518 = vunpack.c.h.b16 %v48
  %v519 = vunpack.c.l.b16 %v49
  %v520 = vunpack.c.h.b16 %v49
  %v521 = vunpack.c.l.b16 %v50
  %v522 = vunpack.c.l.b16 %v51
  %v523 = vunpack.c.h.b16 %v51
  %v524 = vunpack.c.l.b16 %v52
  %v525 = vunpack.c.h.b16 %v52
  %v526 = vunpack.c.l.b16 %v53
  %v527 = vunpack.c.h.b16 %v53
  %v528 = vunpack.c.l.b16 %v54
  %v529 = vunpack.c.l.b16 %v55
  %v530 = vunpack.c.h.b16 %v55
  %v531 = vunpack.c.l.b16 %v56
  %v532 = vunpack.c.h.b16 %v56
  %v533 = vunpack.c.l.b16 %v57
  %v534 = vunpack.c.h.b16 %v57
  %v535 = vunpack.c.l.b16 %v58
  %v536 = vunpack.c.l.b16 %v59
  %v537 = vunpack.c.h.b16 %v59
  %v538 = vunpack.c.l.b16 %v60
  %v539 = vunpack.c.h.b16 %v60
  %v540 = vunpack.c.l.b16 %v61
  %v541 = vunpack.c.h.b16 %v61
  %v542 = vunpack.c.l.b16 %v62
  %v543 = vunpack.c.l.b16 %v63
  %v544 = vunpack.c.h.b16 %v63
  %v545 = vunpack.c.l.b16 %v64
  %v546 = vunpack.c.h.b16 %v64
  %v547 = vunpack.c.l.b16 %v65
  %v548 = vunpack.c.h.b16 %v65
  %v549 = vunpack.c.l.b16 %v66
  %v550 = vunpack.c.l.b16 %v67
  %v551 = vunpack.c.h.b16 %v67
  %v552 = vunpack.c.l.b16 %v68
  %v553 = vunpack.c.h.b16 %v68
  %v554 = vunpack.c.l.b16 %v69
  %v555 = vunpack.c.h.b16 %v69
  %v556 = vunpack.c.l.b16 %v70
  %v557 = vunpack.c.l.b16 %v71
  %v558 = vunpack.c.h.b16 %v71
  %v559 = vunpack.c.l.b16 %v72
  %v560 = vunpack.c.h.b16 %v72
  %v561 = vunpack.c.l.b16 %v73
  %v562 = vunpack.c.h.b16 %v73
  %v563 = vunpack.c.l.b16 %v74
  %v564 = vunpack.c.l.b16 %v75
  %v565 = vunpack.c.h.b16 %v75
  %v566 = vunpack.c.l.b16 %v76
  %v567 = vunpack.c.h.b16 %v76
  %v568 = vunpack.c.l.b16 %v77
  %v569 = vunpack.c.h.b16 %v77
  %v570 = vunpack.c.l.b16 %v78
  %v571 = vunpack.c.l.b16 %v79
  %v572 = vunpack.c.h.b16 %v79
  %v573 = vunpack.c.l.b16 %v80
  %v574 = vunpack.c.h.b16 %v80
  %v575 = vunpack.c.l.b16 %v81
  %v576 = vunpack.c.h.b16 %v81
  %v577 = vunpack.c.l.b16 %v82
  %v578 = vunpack.c.l.b16 %v83
  %v579 = vunpack.c.h.b16 %v83
  %v580 = vunpack.c.l.b16 %v84
  %v581 = vunpack.c.h.b16 %v84
  %v582 = vunpack.c.l.b16 %v85
  %v583 = vunpack.c.h.b16 %v85
  %v584 = vunpack.c.l.b16 %v86
  %v585 = vunpack.c.l.b16 %v87
  %v586 = vunpack.c.h.b16 %v87
  %v587 = vunpack.c.l.b16 %v88
  %v588 = vunpack.c.h.b16 %v88
  %v589 = vunpack.c.l.b16 %v89
  %v590 = vunpack.c.h.b16 %v89
  %v591 = vunpack.c.l.b16 %v90
  %v592 = vunpack.c.l.b16 %v91
  %v593 = vunpack.c.h.b16 %v91
  %v594 = vunpack.c.l.b16 %v92
  %v595 = vunpack.c.h.b16 %v92
  %v596 = vunpack.c.l.b16 %v93
  %v597 = vunpack.c.h.b16 %v93
  %v598 = vunpack.c.l.b16 %v94
  %v599 = vunpack.c.l.b16 %v95
  %v600 = vunpack.c.h.b16 %v95
  %v601 = vunpack.c.l.b16 %v96
  %v602 = vunpack.c.h.b16 %v96
  %v603 = vunpack.c.l.b16 %v97
  %v604 = vunpack.c.h.b16 %v97
  %v605 = vunpack.c.l.b16 %v98
  %v606 = vunpack.c.l.b16 %v99
  %v607 = vunpack.c.h.b16 %v99
  %v608 = vunpack.c.l.b16 %v100
  %v609 = vunpack.c.h.b16 %v100
  %v610 = vunpack.c.l.b16 %v101
  %v611 = vunpack.c.h.b16 %v101
  %v612 = vunpack.c.l.b16 %v102
  %v613 = vunpack.c.l.b16 %v103
  %v614 = vunpack.c.h.b16 %v103
  %v615 = vunpack.c.l.b16 %v104
  %v616 = vunpack.c.h.b16 %v104
  %v617 = vunpack.c.l.b16 %v105
  %v618 = vunpack.c.h.b16 %v105
  %v619 = vunpack.c.l.b16 %v106
  %v620 = vunpack.c.l.b16 %v107
  %v621 = vunpack.c.h.b16 %v107
  %v622 = vunpack.c.l.b16 %v108
  %v623 = vunpack.c.h.b16 %v108
  %v624 = vunpack.c.l.b16 %v109
  %v625 = vunpack.c.h.b16 %v109
  %v626 = vunpack.c.l.b16 %v110
  %v627 = vunpack.c.l.b16 %v111
  %v628 = vunpack.c.h.b16 %v111
  %v629 = vunpack.c.l.b16 %v112
  %v630 = vunpack.c.h.b16 %v112
  %v631 = vunpack.c.l.b16 %v113
  %v632 = vunpack.c.h.b16 %v113
  %v633 = vunpack.c.l.b16 %v114
  %v634 = vunpack.c.l.b16 %v115
  %v635 = vunpack.c.h.b16 %v115
  %v636 = vunpack.c.l.b16 %v116
  %v637 = vunpack.c.h.b16 %v116
  %v638 = vunpack.c.l.b16 %v117
  %v639 = vunpack.c.h.b16 %v117
  %v640 = vunpack.c.l.b16 %v118
  %v641 = vunpack.c.l.b16 %v119
  %v642 = vunpack.c.h.b16 %v119
  %v643 = vunpack.c.l.b16 %v120
  %v644 = vunpack.c.h.b16 %v120
  %v645 = vunpack.c.l.b16 %v121
  %v646 = vunpack.c.h.b16 %v121
  %v647 = vunpack.c.l.b16 %v122
  %v648 = vunpack.c.l.b16 %v123
  %v649 = vunpack.c.h.b16 %v123
  %v650 = vunpack.c.l.b16 %v124
  %v651 = vunpack.c.h.b16 %v124
  %v652 = vunpack.c.l.b16 %v125
  %v653 = vunpack.c.h.b16 %v125
  %v654 = vunpack.c.l.b16 %v126
  %v655 = vunpack.c.l.b16 %v127
  %v656 = vunpack.c.h.b16 %v127
  %v657 = vunpack.c.l.b16 %v128
  %v658 = vunpack.c.h.b16 %v128
  %v659 = vunpack.c.l.b16 %v129
  %v660 = vunpack.c.h.b16 %v129
  %v661 = vunpack.c.l.b16 %v130
  %v662 = vunpack.c.l.b16 %v131
  %v663 = vunpack.c.h.b16 %v131
  %v664 = vunpack.c.l.b16 %v132
  %v665 = vunpack.c.h.b16 %v132
  %v666 = vunpack.c.l.b16 %v133
  %v667 = vunpack.c.h.b16 %v133
  %v668 = vunpack.c.l.b16 %v134
  %v669 = vunpack.c.l.b16 %v135
  %v670 = vunpack.c.h.b16 %v135
  %v671 = vunpack.c.l.b16 %v136
  %v672 = vunpack.c.h.b16 %v136
  %v673 = vunpack.c.l.b16 %v137
  %v674 = vunpack.c.h.b16 %v137
  %v675 = vunpack.c.l.b16 %v138
  %v676 = vunpack.c.l.b16 %v139
  %v677 = vunpack.c.h.b16 %v139
  %v678 = vunpack.c.l.b16 %v140
  %v679 = vunpack.c.h.b16 %v140
  %v680 = vunpack.c.l.b16 %v141
  %v681 = vunpack.c.h.b16 %v141
  %v682 = vunpack.c.l.b16 %v142
  %v683 = vunpack.c.l.b16 %v143
  %v684 = vunpack.c.h.b16 %v143
  %v685 = vunpack.c.l.b16 %v144
  %v686 = vunpack.c.h.b16 %v144
  %v687 = vunpack.c.l.b16 %v145
  %v688 = vunpack.c.h.b16 %v145
  %v689 = vunpack.c.l.b16 %v146
  %v690 = vunpack.c.l.b16 %v147
  %v691 = vunpack.c.h.b16 %v147
  %v692 = vunpack.c.l.b16 %v148
  %v693 = vunpack.c.h.b16 %v148
  %v694 = vunpack.c.l.b16 %v149
  %v695 = vunpack.c.h.b16 %v149
  %v696 = vunpack.c.l.b16 %v150
  %v697 = vunpack.c.l.b16 %v151
  %v698 = vunpack.c.h.b16 %v151
  %v699 = vunpack.c.l.b16 %v152
  %v700 = vunpack.c.h.b16 %v152
  %v701 = vunpack.c.l.b16 %v153
  %v702 = vunpack.c.h.b16 %v153
  %v703 = vunpack.c.l.b16 %v154
  %v704 = vunpack.c.l.b16 %v155
  %v705 = vunpack.c.h.b16 %v155
  %v706 = vunpack.c.l.b16 %v156
  %v707 = vunpack.c.h.b16 %v156
  %v708 = vunpack.c.l.b16 %v157
  %v709 = vunpack.c.h.b16 %v157
  %v710 = vunpack.c.l.b16 %v158
  %v711 = vunpack.c.l.b16 %v159
  %v712 = vunpack.c.h.b16 %v159
  %v713 = vunpack.c.l.b16 %v160
  %v714 = vunpack.c.h.b16 %v160
  %v715 = vunpack.c.l.b16 %v161
  %v716 = vunpack.c.h.b16 %v161
  %v717 = vunpack.c.l.b16 %v162
  %v718 = vunpack.c.l.b16 %v163
  %v719 = vunpack.c.h.b16 %v163
  %v720 = vunpack.c.l.b16 %v164
  %v721 = vunpack.c.h.b16 %v164
  %v722 = vunpack.c.l.b16 %v165
  %v723 = vunpack.c.h.b16 %v165
  %v724 = vunpack.c.l.b16 %v166
  %v725 = vunpack.c.l.b16 %v167
  %v726 = vunpack.c.h.b16 %v167
  %v727 = vunpack.c.l.b16 %v168
  %v728 = vunpack.c.h.b16 %v168
  %v729 = vunpack.c.l.b16 %v169
  %v730 = vunpack.c.h.b16 %v169
  %v731 = vunpack.c.l.b16 %v170
  %v732 = vunpack.c.l.b16 %v171
  %v733 = vunpack.c.h.b16 %v171
  %v734 = vunpack.c.l.b16 %v172
  %v735 = vunpack.c.h.b16 %v172
  %v736 = vunpack.c.l.b16 %v173
  %v737 = vunpack.c.h.b16 %v173
  %v738 = vunpack.c.l.b16 %v174
  %v739 = vunpack.c.l.b16 %v175
  %v740 = vunpack.c.h.b16 %v175
  %v741 = vunpack.c.l.b16 %v176
  %v742 = vunpack.c.h.b16 %v176
  %v743 = vunpack.c.l.b16 %v177
  %v744 = vunpack.c.h.b16 %v177
  %v745 = vunpack.c.l.b16 %v178
  %v746 = vunpack.c.l.b16 %v179
  %v747 = vunpack.c.h.b16 %v179
  %v748 = vunpack.c.l.b16 %v180
  %v749 = vunpack.c.h.b16 %v180
  %v750 = vunpack.c.l.b16 %v181
  %v751 = vunpack.c.h.b16 %v181
  %v752 = vunpack.c.l.b16 %v182
  %v753 = vunpack.c.l.b16 %v183
  %v754 = vunpack.c.h.b16 %v183
  %v755 = vunpack.c.l.b16 %v184
  %v756 = vunpack.c.h.b16 %v184
  %v757 = vunpack.c.l.b16 %v185
  %v758 = vunpack.c.h.b16 %v185
  %v759 = vunpack.c.l.b16 %v186
  %v760 = vunpack.c.l.b16 %v187
  %v761 = vunpack.c.h.b16 %v187
  %v762 = vunpack.c.l.b16 %v188
  %v763 = vunpack.c.h.b16 %v188
  %v764 = vunpack.c.l.b16 %v189
  %v765 = vunpack.c.h.b16 %v189
  %v766 = vunpack.c.l.b16 %v190
  %v767 = vunpack.c.l.b16 %v191
  %v768 = vunpack.c.h.b16 %v191
  %v769 = vunpack.c.l.b16 %v192
  %v770 = vunpack.c.h.b16 %v192
  %v771 = vunpack.c.l.b16 %v193
  %v772 = vunpack.c.h.b16 %v193
  %v773 = vunpack.c.l.b16 %v194
  %v774 = vunpack.c.l.b16 %v195
  %v775 = vunpack.c.h.b16 %v195
  %v776 = vunpack.c.l.b16 %v196
  %v777 = vunpack.c.h.b16 %v196
  %v778 = vunpack.c.l.b16 %v197
  %v779 = vunpack.c.h.b16 %v197
  %v780 = vunpack.c.l.b16 %v198
  %v781 = vunpack.c.l.b16 %v199
  %v782 = vunpack.c.h.b16 %v199
  %v783 = vunpack.c.l.b16 %v200
  %v784 = vunpack.c.h.b16 %v200
  %v785 = vunpack.c.l.b16 %v201
  %v786 = vunpack.c.h.b16 %v201
  %v787 = vunpack.c.l.b16 %v202
  %v788 = vunpack.c.l.b16 %v203
  %v789 = vunpack.c.h.b16 %v203
  %v790 = vunpack.c.l.b16 %v204
  %v791 = vunpack.c.h.b16 %v204
  %v792 = vunpack.c.l.b16 %v205
  %v793 = vunpack.c.h.b16 %v205
  %v794 = vunpack.c.l.b16 %v206
  %v795 = vunpack.c.l.b16 %v207
  %v796 = vunpack.c.h.b16 %v207
  %v797 = vunpack.c.l.b16 %v208
  %v798 = vunpack.c.h.b16 %v208
  %v799 = vunpack.c.l.b16 %v209
  %v800 = vunpack.c.h.b16 %v209
  %v801 = vunpack.c.l.b16 %v210
  %v802 = vunpack.c.l.b16 %v211
  %v803 = vunpack.c.h.b16 %v211
  %v804 = vunpack.c.l.b16 %v212
  %v805 = vunpack.c.h.b16 %v212
  %v806 = vunpack.c.l.b16 %v213
  %v807 = vunpack.c.h.b16 %v213
  %v808 = vunpack.c.l.b16 %v214
  %v809 = vunpack.c.l.b16 %v215
  %v810 = vunpack.c.h.b16 %v215
  %v811 = vunpack.c.l.b16 %v216
  %v812 = vunpack.c.h.b16 %v216
  %v813 = vunpack.c.l.b16 %v217
  %v814 = vunpack.c.h.b16 %v217
  %v815 = vunpack.c.l.b16 %v218
  %v816 = vunpack.c.l.b16 %v219
  %v817 = vunpack.c.h.b16 %v219
  %v818 = vunpack.c.l.b16 %v220
  %v819 = vunpack.c.h.b16 %v220
  %v820 = vunpack.c.l.b16 %v221
  %v821 = vunpack.c.h.b16 %v221
  %v822 = vunpack.c.l.b16 %v222
  %v823 = vunpack.c.l.b16 %v223
  %v824 = vunpack.c.h.b16 %v223
  %v825 = vunpack.c.l.b16 %v224
  %v826 = vunpack.c.h.b16 %v224
  %v827 = vunpack.c.l.b16 %v225
  %v828 = vunpack.c.h.b16 %v225
  %v829 = vunpack.c.l.b16 %v226
  %v830 = vunpack.c.l.b16 %v227
  %v831 = vunpack.c.h.b16 %v227
  %v832 = vunpack.c.l.b16 %v228
  %v833 = vunpack.c.h.b16 %v228
  %v834 = vunpack.c.l.b16 %v229
  %v835 = vunpack.c.h.b16 %v229
  %v836 = vunpack.c.l.b16 %v230
  %v837 = vpack.c.b16 %v494, %v487
  %v838 = vpack.c.b16 %v495, %v488
  %v839 = vpack.c.b16 %v496, %v489
  %v840 = vpack.c.b16 %v497, %v490
  %v841 = vpack.c.b16 %v498, %v491
  %v842 = vpack.c.b16 %v499, %v492
  %v843 = vpack.c.b16 %v500, %v493
  %v844 = vpack.c.b16 %v508, %v501
  %v845 = vpack.c.b16 %v509, %v502
  %v846 = vpack.c.b16 %v510, %v503
  %v847 = vpack.c.b16 %v511, %v504
  %v848 = vpack.c.b16 %v512, %v505
  %v849 = vpack.c.b16 %v513, %v506
  %v850 = vpack.c.b16 %v514, %v507
  %v851 = vpack.c.b16 %v522, %v515
  %v852 = vpack.c.b16 %v523, %v516
  %v853 = vpack.c.b16 %v524, %v517
  %v854 = vpack.c.b16 %v525, %v518
  %v855 = vpack.c.b16 %v526, %v519
  %v856 = vpack.c.b16 %v527, %v520
  %v857 = vpack.c.b16 %v528, %v521
  %v858 = vpack.c.b16 %v536, %v529
  %v859 = vpack.c.b16 %v537, %v530
  %v860 = vpack.c.b16 %v538, %v531
  %v861 = vpack.c.b16 %v539, %v532
  %v862 = vpack.c.b16 %v540, %v533
  %v863 = vpack.c.b16 %v541, %v534
  %v864 = vpack.c.b16 %v542, %v535
  %v865 = vpack.c.b16 %v550, %v543
  %v866 = vpack.c.b16 %v551, %v544
  %v867 = vpack.c.b16 %v552, %v545
  %v868 = vpack.c.b16 %v553, %v546
  %v869 = vpack.c.b16 %v554, %v547
  %v870 = vpack.c.b16 %v555, %v548
  %v871 = vpack.c.b16 %v556, %v549
  %v872 = vpack.c.b16 %v564, %v557
  %v873 = vpack.c.b16 %v565, %v558
  %v874 = vpack.c.b16 %v566, %v559
  %v875 = vpack.c.b16 %v567, %v560
  %v876 = vpack.c.b16 %v568, %v561
  %v877 = vpack.c.b16 %v569, %v562
  %v878 = vpack.c.b16 %v570, %v563
  %v879 = vpack.c.b16 %v578, %v571
  %v880 = vpack.c.b16 %v579, %v572
  %v881 = vpack.c.b16 %v580, %v573
  %v882 = vpack.c.b16 %v581, %v574
  %v883 = vpack.c.b16 %v582, %v575
  %v884 = vpack.c.b16 %v583, %v576
  %v885 = vpack.c.b16 %v584, %v577
  %v886 = vpack.c.b16 %v592, %v585
  %v887 = vpack.c.b16 %v593, %v586
  %v888 = vpack.c.b16 %v594, %v587
  %v889 = vpack.c.b16 %v595, %v588
  %v890 = vpack.c.b16 %v596, %v589
  %v891 = vpack.c.b16 %v597, %v590
  %v892 = vpack.c.b16 %v598, %v591
  %v893 = vpack.c.b16 %v606, %v599
  %v894 = vpack.c.b16 %v607, %v600
  %v895 = vpack.c.b16 %v608, %v601
  %v896 = vpack.c.b16 %v609, %v602
  %v897 = vpack.c.b16 %v610, %v603
  %v898 = vpack.c.b16 %v611, %v604
  %v899 = vpack.c.b16 %v612, %v605
  %v900 = vpack.c.b16 %v620, %v613
  %v901 = vpack.c.b16 %v621, %v614
  %v902 = vpack.c.b16 %v622, %v615
  %v903 = vpack.c.b16 %v623, %v616
  %v904 = vpack.c.b16 %v624, %v617
  %v905 = vpack.c.b16 %v625, %v618
  %v906 = vpack.c.b16 %v626, %v619
  %v907 = vpack.c.b16 %v634, %v627
  %v908 = vpack.c.b16 %v635, %v628
  %v909 = vpack.c.b16 %v636, %v629
  %v910 = vpack.c.b16 %v637, %v630
  %v911 = vpack.c.b16 %v638, %v631
  %v912 = vpack.c.b16 %v639, %v632
  %v913 = vpack.c.b16 %v640, %v633
  %v914 = vpack.c.b16 %v648, %v641
  %v915 = vpack.c.b16 %v649, %v642
  %v916 = vpack.c.b16 %v650, %v643
  %v917 = vpack.c.b16 %v651, %v644
  %v918 = vpack.c.b16 %v652, %v645
  %v919 = vpack.c.b16 %v653, %v646
  %v920 = vpack.c.b16 %v654, %v647
  %v921 = vpack.c.b16 %v662, %v655
  %v922 = vpack.c.b16 %v663, %v656
  %v923 = vpack.c.b16 %v664, %v657
  %v924 = vpack.c.b16 %v665, %v658
  %v925 = vpack.c.b16 %v666, %v659
  %v926 = vpack.c.b16 %v667, %v660
  %v927 = vpack.c.b16 %v668, %v661
  %v928 = vpack.c.b16 %v676, %v669
  %v929 = vpack.c.b16 %v677, %v670
  %v930 = vpack.c.b16 %v678, %v671
  %v931 = vpack.c.b16 %v679, %v672
  %v932 = vpack.c.b16 %v680, %v673
  %v933 = vpack.c.b16 %v681, %v674
  %v934 = vpack.c.b16 %v682, %v675
  %v935 = vpack.c.b16 %v690, %v683
  %v936 = vpack.c.b16 %v691, %v684
  %v937 = vpack.c.b16 %v692, %v685
  %v938 = vpack.c.b16 %v693, %v686
  %v939 = vpack.c.b16 %v694, %v687
  %v940 = vpack.c.b16 %v695, %v688
  %v941 = vpack.c.b16 %v696, %v689
  %v942 = vpack.c.b16 %v704, %v697
  %v943 = vpack.c.b16 %v705, %v698
  %v944 = vpack.c.b16 %v706, %v699
  %v945 = vpack.c.b16 %v707, %v700
  %v946 = vpack.c.b16 %v708, %v701
  %v947 = vpack.c.b16 %v709, %v702
  %v948 = vpack.c.b16 %v710, %v703
  %v949 = vpack.c.b16 %v718, %v711
  %v950 = vpack.c.b16 %v719, %v712
  %v951 = vpack.c.b16 %v720, %v713
  %v952 = vpack.c.b16 %v721, %v714
  %v953 = vpack.c.b16 %v722, %v715
  %v954 = vpack.c.b16 %v723, %v716
  %v955 = vpack.c.b16 %v724, %v717
  %v956 = vpack.c.b16 %v732, %v725
  %v957 = vpack.c.b16 %v733, %v726
  %v958 = vpack.c.b16 %v734, %v727
  %v959 = vpack.c.b16 %v735, %v728
  %v960 = vpack.c.b16 %v736, %v729
  %v961 = vpack.c.b16 %v737, %v730
  %v962 = vpack.c.b16 %v738, %v731
  %v963 = vpack.c.b16 %v746, %v739
  %v964 = vpack.c.b16 %v747, %v740
  %v965 = vpack.c.b16 %v748, %v741
  %v966 = vpack.c.b16 %v749, %v742
  %v967 = vpack.c.b16 %v750, %v743
  %v968 = vpack.c.b16 %v751, %v744
  %v969 = vpack.c.b16 %v752, %v745
  %v970 = vpack.c.b16 %v760, %v753
  %v971 = vpack.c.b16 %v761, %v754
  %v972 = vpack.c.b16 %v762, %v755
  %v973 = vpack.c.b16 %v763, %v756
  %v974 = vpack.c.b16 %v764, %v757
  %v975 = vpack.c.b16 %v765, %v758
  %v976 = vpack.c.b16 %v766, %v759
  %v977 = vpack.c.b16 %v774, %v767
  %v978 = vpack.c.b16 %v775, %v768
  %v979 = vpack.c.b16 %v776, %v769
  %v980 = vpack.c.b16 %v777, %v770
  %v981 = vpack.c.b16 %v778, %v771
  %v982 = vpack.c.b16 %v779, %v772
  %v983 = vpack.c.b16 %v780, %v773
  %v984 = vpack.c.b16 %v788, %v781
  %v985 = vpack.c.b16 %v789, %v782
  %v986 = vpack.c.b16 %v790, %v783
  %v987 = vpack.c.b16 %v791, %v784
  %v988 = vpack.c.b16 %v792, %v785
  %v989 = vpack.c.b16 %v793, %v786
  %v990 = vpack.c.b16 %v794, %v787
  %v991 = vpack.c.b16 %v802, %v795
  %v992 = vpack.c.b16 %v803, %v796
  %v993 = vpack.c.b16 %v804, %v797
  %v994 = vpack.c.b16 %v805, %v798
  %v995 = vpack.c.b16 %v806, %v799
  %v996 = vpack.c.b16 %v807, %v800
  %v997 = vpack.c.b16 %v808, %v801
  %v998 = vpack.c.b16 %v816, %v809
  %v999 = vpack.c.b16 %v817, %v810
  %v1000 = vpack.c.b16 %v818, %v811
  %v1001 = vpack.c.b16 %v819, %v812
  %v1002 = vpack.c.b16 %v820, %v813
  %v1003 = vpack.c.b16 %v821, %v814
  %v1004 = vpack.c.b16 %v822, %v815
  %v1005 = vpack.c.b16 %v830, %v823
  %v1006 = vpack.c.b16 %v831, %v824
  %v1007 = vpack.c.b16 %v832, %v825
  %v1008 = vpack.c.b16 %v833, %v826
  %v1009 = vpack.c.b16 %v834, %v827
  %v1010 = vpack.c.b16 %v835, %v828
  %v1011 = vpack.c.b16 %v836, %v829
  %vm1187 = vcmask 130048
  %v1189 = vsel %vm1187, %v283, 0
  %1191 = vmatprep.subr.bf16.mxu0 %v887
  %1192 = vmatpush1.bf16.msra.mxu0 %v886
  %1193 = vmatprep.subr.bf16.mxu0 %v880
  %1194 = vmatpush1.bf16.msra.mxu0 %v879
  %1195 = vmatprep.subr.bf16.mxu0 %v873
  %1196 = vmatpush1.bf16.msra.mxu0 %v872
  %1197 = vmatprep.subr.bf16.mxu0 %v866
  %1198 = vmatpush1.bf16.msra.mxu0 %v865
  %1199 = vmatprep.subr.bf16.mxu0 %v859
  %1200 = vmatpush1.bf16.msra.mxu0 %v858
  %1201 = vmatprep.subr.bf16.mxu0 %v852
  %1202 = vmatpush1.bf16.msra.mxu0 %v851
  %1203 = vmatprep.subr.bf16.mxu0 %v845
  %1204 = vmatpush1.bf16.msra.mxu0 %v844
  %1205 = vmatprep.subr.bf16.mxu0 %v838
  %1206 = vmatpush1.bf16.msra.mxu0 %v837
  %1207 = vmatprep.subr.bf16.mxu0 %v943
  %1208 = vmatpush2.bf16.msra.mxu0 %v942
  %1209 = vmatprep.subr.bf16.mxu0 %v936
  %1210 = vmatpush2.bf16.msra.mxu0 %v935
  %1211 = vmatprep.subr.bf16.mxu0 %v929
  %1212 = vmatpush2.bf16.msra.mxu0 %v928
  %1213 = vmatprep.subr.bf16.mxu0 %v922
  %1214 = vmatpush2.bf16.msra.mxu0 %v921
  %1215 = vmatprep.subr.bf16.mxu0 %v915
  %1216 = vmatpush2.bf16.msra.mxu0 %v914
  %1217 = vmatprep.subr.bf16.mxu0 %v908
  %1218 = vmatpush2.bf16.msra.mxu0 %v907
  %1219 = vmatprep.subr.bf16.mxu0 %v901
  %1220 = vmatpush2.bf16.msra.mxu0 %v900
  %1221 = vmatprep.subr.bf16.mxu0 %v894
  %1222 = vmatpush2.bf16.msra.mxu0 %v893
  %1223 = vmatprep.mubr.bf16.mxu0 %v281
  %1224 = vmatmul.mubr.bf16.gmra.mxu0 %v280
  %v1225 = vpop.f32.mrf.mxu0
  %v1226 = vadd.f32 %v236, %v1225
  %v1227 = vpop.f32.mrf.mxu0
  %v1228 = vadd.f32 %v240, %v1227
  %v1229 = vpop.f32.mrf.mxu0
  %v1230 = vadd.f32 %v236, %v1229
  %v1231 = vpop.f32.mrf.mxu0
  %v1232 = vadd.f32 %v240, %v1231
  %1233 = vdwg.mxu0
  %1234 = vmatprep.subr.bf16.mxu0 %v999
  %1235 = vmatpush1.bf16.msra.mxu0 %v998
  %1236 = vmatprep.subr.bf16.mxu0 %v992
  %1237 = vmatpush1.bf16.msra.mxu0 %v991
  %1238 = vmatprep.subr.bf16.mxu0 %v985
  %1239 = vmatpush1.bf16.msra.mxu0 %v984
  %1240 = vmatprep.subr.bf16.mxu0 %v978
  %1241 = vmatpush1.bf16.msra.mxu0 %v977
  %1242 = vmatprep.subr.bf16.mxu0 %v971
  %1243 = vmatpush1.bf16.msra.mxu0 %v970
  %1244 = vmatprep.subr.bf16.mxu0 %v964
  %1245 = vmatpush1.bf16.msra.mxu0 %v963
  %1246 = vmatprep.subr.bf16.mxu0 %v957
  %1247 = vmatpush1.bf16.msra.mxu0 %v956
  %1248 = vmatprep.subr.bf16.mxu0 %v950
  %1249 = vmatpush1.bf16.msra.mxu0 %v949
  %1250 = vmatprep.subr.bf16.mxu0 0
  %1251 = vmatpush2.bf16.msra.mxu0 0
  %1252 = vmatprep.subr.bf16.mxu0 0
  %1253 = vmatpush2.bf16.msra.mxu0 0
  %1254 = vmatprep.subr.bf16.mxu0 0
  %1255 = vmatpush2.bf16.msra.mxu0 0
  %1256 = vmatprep.subr.bf16.mxu0 0
  %1257 = vmatpush2.bf16.msra.mxu0 0
  %1258 = vmatprep.subr.bf16.mxu0 0
  %1259 = vmatpush2.bf16.msra.mxu0 0
  %1260 = vmatprep.subr.bf16.mxu0 0
  %1261 = vmatpush2.bf16.msra.mxu0 0
  %1262 = vmatprep.subr.bf16.mxu0 0
  %1263 = vmatpush2.bf16.msra.mxu0 0
  %1264 = vmatprep.subr.bf16.mxu0 %v1006
  %1265 = vmatpush2.bf16.msra.mxu0 %v1005
  %1266 = vmatprep.mubr.bf16.mxu0 %v1189
  %1267 = vmatmul.mubr.bf16.gmra.mxu0 %v282
  %v1268 = vpop.f32.mrf.mxu0
  %v1269 = vadd.f32 %v1226, %v1268
  %v1270 = vpop.f32.mrf.mxu0
  %v1271 = vadd.f32 %v1228, %v1270
  %v1272 = vpop.f32.mrf.mxu0
  %v1273 = vadd.f32 %v1230, %v1272
  %v1274 = vpop.f32.mrf.mxu0
  %v1275 = vadd.f32 %v1232, %v1274
  %1276 = vdwg.mxu0
  %1277 = vmatprep.subr.bf16.mxu0 %v889
  %1278 = vmatpush1.bf16.msra.mxu0 %v888
  %1279 = vmatprep.subr.bf16.mxu0 %v882
  %1280 = vmatpush1.bf16.msra.mxu0 %v881
  %1281 = vmatprep.subr.bf16.mxu0 %v875
  %1282 = vmatpush1.bf16.msra.mxu0 %v874
  %1283 = vmatprep.subr.bf16.mxu0 %v868
  %1284 = vmatpush1.bf16.msra.mxu0 %v867
  %1285 = vmatprep.subr.bf16.mxu0 %v861
  %1286 = vmatpush1.bf16.msra.mxu0 %v860
  %1287 = vmatprep.subr.bf16.mxu0 %v854
  %1288 = vmatpush1.bf16.msra.mxu0 %v853
  %1289 = vmatprep.subr.bf16.mxu0 %v847
  %1290 = vmatpush1.bf16.msra.mxu0 %v846
  %1291 = vmatprep.subr.bf16.mxu0 %v840
  %1292 = vmatpush1.bf16.msra.mxu0 %v839
  %1293 = vmatprep.subr.bf16.mxu0 %v945
  %1294 = vmatpush2.bf16.msra.mxu0 %v944
  %1295 = vmatprep.subr.bf16.mxu0 %v938
  %1296 = vmatpush2.bf16.msra.mxu0 %v937
  %1297 = vmatprep.subr.bf16.mxu0 %v931
  %1298 = vmatpush2.bf16.msra.mxu0 %v930
  %1299 = vmatprep.subr.bf16.mxu0 %v924
  %1300 = vmatpush2.bf16.msra.mxu0 %v923
  %1301 = vmatprep.subr.bf16.mxu0 %v917
  %1302 = vmatpush2.bf16.msra.mxu0 %v916
  %1303 = vmatprep.subr.bf16.mxu0 %v910
  %1304 = vmatpush2.bf16.msra.mxu0 %v909
  %1305 = vmatprep.subr.bf16.mxu0 %v903
  %1306 = vmatpush2.bf16.msra.mxu0 %v902
  %1307 = vmatprep.subr.bf16.mxu0 %v896
  %1308 = vmatpush2.bf16.msra.mxu0 %v895
  %1309 = vmatprep.mubr.bf16.mxu0 %v281
  %1310 = vmatmul.mubr.bf16.gmra.mxu0 %v280
  %v1311 = vpop.f32.mrf.mxu0
  %v1312 = vadd.f32 %v244, %v1311
  %v1313 = vpop.f32.mrf.mxu0
  %v1314 = vadd.f32 %v248, %v1313
  %v1315 = vpop.f32.mrf.mxu0
  %v1316 = vadd.f32 %v244, %v1315
  %v1317 = vpop.f32.mrf.mxu0
  %v1318 = vadd.f32 %v248, %v1317
  %1319 = vdwg.mxu0
  %1320 = vmatprep.subr.bf16.mxu0 %v1001
  %1321 = vmatpush1.bf16.msra.mxu0 %v1000
  %1322 = vmatprep.subr.bf16.mxu0 %v994
  %1323 = vmatpush1.bf16.msra.mxu0 %v993
  %1324 = vmatprep.subr.bf16.mxu0 %v987
  %1325 = vmatpush1.bf16.msra.mxu0 %v986
  %1326 = vmatprep.subr.bf16.mxu0 %v980
  %1327 = vmatpush1.bf16.msra.mxu0 %v979
  %1328 = vmatprep.subr.bf16.mxu0 %v973
  %1329 = vmatpush1.bf16.msra.mxu0 %v972
  %1330 = vmatprep.subr.bf16.mxu0 %v966
  %1331 = vmatpush1.bf16.msra.mxu0 %v965
  %1332 = vmatprep.subr.bf16.mxu0 %v959
  %1333 = vmatpush1.bf16.msra.mxu0 %v958
  %1334 = vmatprep.subr.bf16.mxu0 %v952
  %1335 = vmatpush1.bf16.msra.mxu0 %v951
  %1336 = vmatprep.subr.bf16.mxu0 0
  %1337 = vmatpush2.bf16.msra.mxu0 0
  %1338 = vmatprep.subr.bf16.mxu0 0
  %1339 = vmatpush2.bf16.msra.mxu0 0
  %1340 = vmatprep.subr.bf16.mxu0 0
  %1341 = vmatpush2.bf16.msra.mxu0 0
  %1342 = vmatprep.subr.bf16.mxu0 0
  %1343 = vmatpush2.bf16.msra.mxu0 0
  %1344 = vmatprep.subr.bf16.mxu0 0
  %1345 = vmatpush2.bf16.msra.mxu0 0
  %1346 = vmatprep.subr.bf16.mxu0 0
  %1347 = vmatpush2.bf16.msra.mxu0 0
  %1348 = vmatprep.subr.bf16.mxu0 0
  %1349 = vmatpush2.bf16.msra.mxu0 0
  %1350 = vmatprep.subr.bf16.mxu0 %v1008
  %1351 = vmatpush2.bf16.msra.mxu0 %v1007
  %1352 = vmatprep.mubr.bf16.mxu0 %v1189
  %1353 = vmatmul.mubr.bf16.gmra.mxu0 %v282
  %v1354 = vpop.f32.mrf.mxu0
  %v1355 = vadd.f32 %v1312, %v1354
  %v1356 = vpop.f32.mrf.mxu0
  %v1357 = vadd.f32 %v1314, %v1356
  %v1358 = vpop.f32.mrf.mxu0
  %v1359 = vadd.f32 %v1316, %v1358
  %v1360 = vpop.f32.mrf.mxu0
  %v1361 = vadd.f32 %v1318, %v1360
  %1362 = vdwg.mxu0
  %1363 = vmatprep.subr.bf16.mxu0 %v891
  %1364 = vmatpush1.bf16.msra.mxu0 %v890
  %1365 = vmatprep.subr.bf16.mxu0 %v884
  %1366 = vmatpush1.bf16.msra.mxu0 %v883
  %1367 = vmatprep.subr.bf16.mxu0 %v877
  %1368 = vmatpush1.bf16.msra.mxu0 %v876
  %1369 = vmatprep.subr.bf16.mxu0 %v870
  %1370 = vmatpush1.bf16.msra.mxu0 %v869
  %1371 = vmatprep.subr.bf16.mxu0 %v863
  %1372 = vmatpush1.bf16.msra.mxu0 %v862
  %1373 = vmatprep.subr.bf16.mxu0 %v856
  %1374 = vmatpush1.bf16.msra.mxu0 %v855
  %1375 = vmatprep.subr.bf16.mxu0 %v849
  %1376 = vmatpush1.bf16.msra.mxu0 %v848
  %1377 = vmatprep.subr.bf16.mxu0 %v842
  %1378 = vmatpush1.bf16.msra.mxu0 %v841
  %1379 = vmatprep.subr.bf16.mxu0 %v947
  %1380 = vmatpush2.bf16.msra.mxu0 %v946
  %1381 = vmatprep.subr.bf16.mxu0 %v940
  %1382 = vmatpush2.bf16.msra.mxu0 %v939
  %1383 = vmatprep.subr.bf16.mxu0 %v933
  %1384 = vmatpush2.bf16.msra.mxu0 %v932
  %1385 = vmatprep.subr.bf16.mxu0 %v926
  %1386 = vmatpush2.bf16.msra.mxu0 %v925
  %1387 = vmatprep.subr.bf16.mxu0 %v919
  %1388 = vmatpush2.bf16.msra.mxu0 %v918
  %1389 = vmatprep.subr.bf16.mxu0 %v912
  %1390 = vmatpush2.bf16.msra.mxu0 %v911
  %1391 = vmatprep.subr.bf16.mxu0 %v905
  %1392 = vmatpush2.bf16.msra.mxu0 %v904
  %1393 = vmatprep.subr.bf16.mxu0 %v898
  %1394 = vmatpush2.bf16.msra.mxu0 %v897
  %1395 = vmatprep.mubr.bf16.mxu0 %v281
  %1396 = vmatmul.mubr.bf16.gmra.mxu0 %v280
  %v1397 = vpop.f32.mrf.mxu0
  %v1398 = vadd.f32 %v252, %v1397
  %v1399 = vpop.f32.mrf.mxu0
  %v1400 = vadd.f32 %v256, %v1399
  %v1401 = vpop.f32.mrf.mxu0
  %v1402 = vadd.f32 %v252, %v1401
  %v1403 = vpop.f32.mrf.mxu0
  %v1404 = vadd.f32 %v256, %v1403
  %1405 = vdwg.mxu0
  %1406 = vmatprep.subr.bf16.mxu0 %v1003
  %1407 = vmatpush1.bf16.msra.mxu0 %v1002
  %1408 = vmatprep.subr.bf16.mxu0 %v996
  %1409 = vmatpush1.bf16.msra.mxu0 %v995
  %1410 = vmatprep.subr.bf16.mxu0 %v989
  %1411 = vmatpush1.bf16.msra.mxu0 %v988
  %1412 = vmatprep.subr.bf16.mxu0 %v982
  %1413 = vmatpush1.bf16.msra.mxu0 %v981
  %1414 = vmatprep.subr.bf16.mxu0 %v975
  %1415 = vmatpush1.bf16.msra.mxu0 %v974
  %1416 = vmatprep.subr.bf16.mxu0 %v968
  %1417 = vmatpush1.bf16.msra.mxu0 %v967
  %1418 = vmatprep.subr.bf16.mxu0 %v961
  %1419 = vmatpush1.bf16.msra.mxu0 %v960
  %1420 = vmatprep.subr.bf16.mxu0 %v954
  %1421 = vmatpush1.bf16.msra.mxu0 %v953
  %1422 = vmatprep.subr.bf16.mxu0 0
  %1423 = vmatpush2.bf16.msra.mxu0 0
  %1424 = vmatprep.subr.bf16.mxu0 0
  %1425 = vmatpush2.bf16.msra.mxu0 0
  %1426 = vmatprep.subr.bf16.mxu0 0
  %1427 = vmatpush2.bf16.msra.mxu0 0
  %1428 = vmatprep.subr.bf16.mxu0 0
  %1429 = vmatpush2.bf16.msra.mxu0 0
  %1430 = vmatprep.subr.bf16.mxu0 0
  %1431 = vmatpush2.bf16.msra.mxu0 0
  %1432 = vmatprep.subr.bf16.mxu0 0
  %1433 = vmatpush2.bf16.msra.mxu0 0
  %1434 = vmatprep.subr.bf16.mxu0 0
  %1435 = vmatpush2.bf16.msra.mxu0 0
  %1436 = vmatprep.subr.bf16.mxu0 %v1010
  %1437 = vmatpush2.bf16.msra.mxu0 %v1009
  %1438 = vmatprep.mubr.bf16.mxu0 %v1189
  %1439 = vmatmul.mubr.bf16.gmra.mxu0 %v282
  %v1440 = vpop.f32.mrf.mxu0
  %v1441 = vadd.f32 %v1398, %v1440
  %v1442 = vpop.f32.mrf.mxu0
  %v1443 = vadd.f32 %v1400, %v1442
  %v1444 = vpop.f32.mrf.mxu0
  %v1445 = vadd.f32 %v1402, %v1444
  %v1446 = vpop.f32.mrf.mxu0
  %v1447 = vadd.f32 %v1404, %v1446
  %1448 = vdwg.mxu0
  %1449 = vmatprep.subr.bf16.mxu0 0
  %1450 = vmatpush1.bf16.msra.mxu0 %v892
  %1451 = vmatprep.subr.bf16.mxu0 0
  %1452 = vmatpush1.bf16.msra.mxu0 %v885
  %1453 = vmatprep.subr.bf16.mxu0 0
  %1454 = vmatpush1.bf16.msra.mxu0 %v878
  %1455 = vmatprep.subr.bf16.mxu0 0
  %1456 = vmatpush1.bf16.msra.mxu0 %v871
  %1457 = vmatprep.subr.bf16.mxu0 0
  %1458 = vmatpush1.bf16.msra.mxu0 %v864
  %1459 = vmatprep.subr.bf16.mxu0 0
  %1460 = vmatpush1.bf16.msra.mxu0 %v857
  %1461 = vmatprep.subr.bf16.mxu0 0
  %1462 = vmatpush1.bf16.msra.mxu0 %v850
  %1463 = vmatprep.subr.bf16.mxu0 0
  %1464 = vmatpush1.bf16.msra.mxu0 %v843
  %1465 = vmatprep.subr.bf16.mxu0 0
  %1466 = vmatpush2.bf16.msra.mxu0 %v948
  %1467 = vmatprep.subr.bf16.mxu0 0
  %1468 = vmatpush2.bf16.msra.mxu0 %v941
  %1469 = vmatprep.subr.bf16.mxu0 0
  %1470 = vmatpush2.bf16.msra.mxu0 %v934
  %1471 = vmatprep.subr.bf16.mxu0 0
  %1472 = vmatpush2.bf16.msra.mxu0 %v927
  %1473 = vmatprep.subr.bf16.mxu0 0
  %1474 = vmatpush2.bf16.msra.mxu0 %v920
  %1475 = vmatprep.subr.bf16.mxu0 0
  %1476 = vmatpush2.bf16.msra.mxu0 %v913
  %1477 = vmatprep.subr.bf16.mxu0 0
  %1478 = vmatpush2.bf16.msra.mxu0 %v906
  %1479 = vmatprep.subr.bf16.mxu0 0
  %1480 = vmatpush2.bf16.msra.mxu0 %v899
  %1481 = vmatprep.mubr.bf16.mxu0 %v281
  %1482 = vmatmul.mubr.bf16.gmra.mxu0 %v280
  %v1483 = vpop.f32.mrf.mxu0
  %v1484 = vadd.f32 %v260, %v1483
  %v1485 = vpop.f32.mrf.mxu0
  %v1486 = vpop.f32.mrf.mxu0
  %v1487 = vadd.f32 %v260, %v1486
  %v1488 = vpop.f32.mrf.mxu0
  %1489 = vdwg.mxu0
  %1490 = vmatprep.subr.bf16.mxu0 0
  %1491 = vmatpush1.bf16.msra.mxu0 %v1004
  %1492 = vmatprep.subr.bf16.mxu0 0
  %1493 = vmatpush1.bf16.msra.mxu0 %v997
  %1494 = vmatprep.subr.bf16.mxu0 0
  %1495 = vmatpush1.bf16.msra.mxu0 %v990
  %1496 = vmatprep.subr.bf16.mxu0 0
  %1497 = vmatpush1.bf16.msra.mxu0 %v983
  %1498 = vmatprep.subr.bf16.mxu0 0
  %1499 = vmatpush1.bf16.msra.mxu0 %v976
  %1500 = vmatprep.subr.bf16.mxu0 0
  %1501 = vmatpush1.bf16.msra.mxu0 %v969
  %1502 = vmatprep.subr.bf16.mxu0 0
  %1503 = vmatpush1.bf16.msra.mxu0 %v962
  %1504 = vmatprep.subr.bf16.mxu0 0
  %1505 = vmatpush1.bf16.msra.mxu0 %v955
  %1506 = vmatprep.subr.bf16.mxu0 0
  %1507 = vmatpush2.bf16.msra.mxu0 0
  %1508 = vmatprep.subr.bf16.mxu0 0
  %1509 = vmatpush2.bf16.msra.mxu0 0
  %1510 = vmatprep.subr.bf16.mxu0 0
  %1511 = vmatpush2.bf16.msra.mxu0 0
  %1512 = vmatprep.subr.bf16.mxu0 0
  %1513 = vmatpush2.bf16.msra.mxu0 0
  %1514 = vmatprep.subr.bf16.mxu0 0
  %1515 = vmatpush2.bf16.msra.mxu0 0
  %1516 = vmatprep.subr.bf16.mxu0 0
  %1517 = vmatpush2.bf16.msra.mxu0 0
  %1518 = vmatprep.subr.bf16.mxu0 0
  %1519 = vmatpush2.bf16.msra.mxu0 0
  %1520 = vmatprep.subr.bf16.mxu0 0
  %1521 = vmatpush2.bf16.msra.mxu0 %v1011
  %1522 = vmatprep.mubr.bf16.mxu0 %v1189
  %1523 = vmatmul.mubr.bf16.gmra.mxu0 %v282
  %v1524 = vpop.f32.mrf.mxu0
  %v1525 = vadd.f32 %v1484, %v1524
  %v1526 = vpop.f32.mrf.mxu0
  %v1527 = vpop.f32.mrf.mxu0
  %v1528 = vadd.f32 %v1487, %v1527
  %v1529 = vpop.f32.mrf.mxu0
  %1530 = vdwg.mxu0
  %v1531 = vmax.f32 %v1269, 0.0
  %v1532 = vmax.f32 %v1271, 0.0
  %v1533 = vmax.f32 %v1355, 0.0
  %v1534 = vmax.f32 %v1357, 0.0
  %v1535 = vmax.f32 %v1441, 0.0
  %v1536 = vmax.f32 %v1443, 0.0
  %v1537 = vmax.f32 %v1525, 0.0
  %v1538 = vmax.f32 %v1273, 0.0
  %v1539 = vmax.f32 %v1275, 0.0
  %v1540 = vmax.f32 %v1359, 0.0
  %v1541 = vmax.f32 %v1361, 0.0
  %v1542 = vmax.f32 %v1445, 0.0
  %v1543 = vmax.f32 %v1447, 0.0
  %v1544 = vmax.f32 %v1528, 0.0
  %v1545 = vpack.c.bf16 %v1538, %v1531
  %v1546 = vpack.c.bf16 %v1539, %v1532
  %v1547 = vpack.c.bf16 %v1540, %v1533
  %v1548 = vpack.c.bf16 %v1541, %v1534
  %v1549 = vpack.c.bf16 %v1542, %v1535
  %v1550 = vpack.c.bf16 %v1543, %v1536
  %v1551 = vpack.c.bf16 %v1544, %v1537
  %v1552 = vld [vmem:[%s3] sm:$0xff]
  %v1553 = vld [vmem:[%s3 + $0x8] sm:$0xff]
  %v1554 = vld [vmem:[%s3 + $0x10] sm:$0xff]
  %v1555 = vld [vmem:[%s3 + $0x18] sm:$0xf]
  %v1556 = vld [vmem:[%s3 + $0x1c] sm:$0xff]
  %v1557 = vld [vmem:[%s3 + $0x24] sm:$0xff]
  %v1558 = vld [vmem:[%s3 + $0x2c] sm:$0xff]
  %v1559 = vld [vmem:[%s3 + $0x34] sm:$0xf]
  %v1560 = vld [vmem:[%s3 + $0x38] sm:$0xff]
  %v1561 = vld [vmem:[%s3 + $0x40] sm:$0xff]
  %v1562 = vld [vmem:[%s3 + $0x48] sm:$0xff]
  %v1563 = vld [vmem:[%s3 + $0x50] sm:$0xf]
  %v1564 = vld [vmem:[%s3 + $0x54] sm:$0xff]
  %v1565 = vld [vmem:[%s3 + $0x5c] sm:$0xff]
  %v1566 = vld [vmem:[%s3 + $0x64] sm:$0xff]
  %v1567 = vld [vmem:[%s3 + $0x6c] sm:$0xf]
  %v1568 = vld [vmem:[%s3 + $0x70] sm:$0xff]
  %v1569 = vld [vmem:[%s3 + $0x78] sm:$0xff]
  %v1570 = vld [vmem:[%s3 + $0x80] sm:$0xff]
  %v1571 = vld [vmem:[%s3 + $0x88] sm:$0xf]
  %v1572 = vld [vmem:[%s3 + $0x8c] sm:$0xff]
  %v1573 = vld [vmem:[%s3 + $0x94] sm:$0xff]
  %v1574 = vld [vmem:[%s3 + $0x9c] sm:$0xff]
  %v1575 = vld [vmem:[%s3 + $0xa4] sm:$0xf]
  %v1576 = vld [vmem:[%s3 + $0xa8] sm:$0xff]
  %v1577 = vld [vmem:[%s3 + $0xb0] sm:$0xff]
  %v1578 = vld [vmem:[%s3 + $0xb8] sm:$0xff]
  %v1579 = vld [vmem:[%s3 + $0xc0] sm:$0xf]
  %v1580 = vld [vmem:[%s3 + $0xc4] sm:$0xff]
  %v1581 = vld [vmem:[%s3 + $0xcc] sm:$0xff]
  %v1582 = vld [vmem:[%s3 + $0xd4] sm:$0xff]
  %v1583 = vld [vmem:[%s3 + $0xdc] sm:$0xf]
  %v1584 = vld [vmem:[%s3 + $0xe0] sm:$0xff]
  %v1585 = vld [vmem:[%s3 + $0xe8] sm:$0xff]
  %v1586 = vld [vmem:[%s3 + $0xf0] sm:$0xff]
  %v1587 = vld [vmem:[%s3 + $0xf8] sm:$0xf]
  %v1588 = vld [vmem:[%s3 + $0xfc] sm:$0xff]
  %v1589 = vld [vmem:[%s3 + $0x104] sm:$0xff]
  %v1590 = vld [vmem:[%s3 + $0x10c] sm:$0xff]
  %v1591 = vld [vmem:[%s3 + $0x114] sm:$0xf]
  %v1592 = vld [vmem:[%s3 + $0x118] sm:$0xff]
  %v1593 = vld [vmem:[%s3 + $0x120] sm:$0xff]
  %v1594 = vld [vmem:[%s3 + $0x128] sm:$0xff]
  %v1595 = vld [vmem:[%s3 + $0x130] sm:$0xf]
  %v1596 = vld [vmem:[%s3 + $0x134] sm:$0xff]
  %v1597 = vld [vmem:[%s3 + $0x13c] sm:$0xff]
  %v1598 = vld [vmem:[%s3 + $0x144] sm:$0xff]
  %v1599 = vld [vmem:[%s3 + $0x14c] sm:$0xf]
  %v1600 = vld [vmem:[%s3 + $0x150] sm:$0xff]
  %v1601 = vld [vmem:[%s3 + $0x158] sm:$0xff]
  %v1602 = vld [vmem:[%s3 + $0x160] sm:$0xff]
  %v1603 = vld [vmem:[%s3 + $0x168] sm:$0xf]
  %v1604 = vld [vmem:[%s3 + $0x16c] sm:$0xff]
  %v1605 = vld [vmem:[%s3 + $0x174] sm:$0xff]
  %v1606 = vld [vmem:[%s3 + $0x17c] sm:$0xff]
  %v1607 = vld [vmem:[%s3 + $0x184] sm:$0xf]
  %v1608 = vld [vmem:[%s3 + $0x188] sm:$0xff]
  %v1609 = vld [vmem:[%s3 + $0x190] sm:$0xff]
  %v1610 = vld [vmem:[%s3 + $0x198] sm:$0xff]
  %v1611 = vld [vmem:[%s3 + $0x1a0] sm:$0xf]
  %v1612 = vld [vmem:[%s3 + $0x1a4] sm:$0xff]
  %v1613 = vld [vmem:[%s3 + $0x1ac] sm:$0xff]
  %v1614 = vld [vmem:[%s3 + $0x1b4] sm:$0xff]
  %v1615 = vld [vmem:[%s3 + $0x1bc] sm:$0xf]
  %v1616 = vld [vmem:[%s3 + $0x1c0] sm:$0xff]
  %v1617 = vld [vmem:[%s3 + $0x1c8] sm:$0xff]
  %v1618 = vld [vmem:[%s3 + $0x1d0] sm:$0xff]
  %v1619 = vld [vmem:[%s3 + $0x1d8] sm:$0xf]
  %v1620 = vld [vmem:[%s3 + $0x1dc] sm:$0xff]
  %v1621 = vld [vmem:[%s3 + $0x1e4] sm:$0xff]
  %v1622 = vld [vmem:[%s3 + $0x1ec] sm:$0xff]
  %v1623 = vld [vmem:[%s3 + $0x1f4] sm:$0xf]
  %v1624 = vld [vmem:[%s3 + $0x1f8] sm:$0xff]
  %v1625 = vld [vmem:[%s3 + $0x200] sm:$0xff]
  %v1626 = vld [vmem:[%s3 + $0x208] sm:$0xff]
  %v1627 = vld [vmem:[%s3 + $0x210] sm:$0xf]
  %v1628 = vld [vmem:[%s3 + $0x214] sm:$0xff]
  %v1629 = vld [vmem:[%s3 + $0x21c] sm:$0xff]
  %v1630 = vld [vmem:[%s3 + $0x224] sm:$0xff]
  %v1631 = vld [vmem:[%s3 + $0x22c] sm:$0xf]
  %v1632 = vld [vmem:[%s3 + $0x230] sm:$0xff]
  %v1633 = vld [vmem:[%s3 + $0x238] sm:$0xff]
  %v1634 = vld [vmem:[%s3 + $0x240] sm:$0xff]
  %v1635 = vld [vmem:[%s3 + $0x248] sm:$0xf]
  %v1636 = vld [vmem:[%s3 + $0x24c] sm:$0xff]
  %v1637 = vld [vmem:[%s3 + $0x254] sm:$0xff]
  %v1638 = vld [vmem:[%s3 + $0x25c] sm:$0xff]
  %v1639 = vld [vmem:[%s3 + $0x264] sm:$0xf]
  %v1640 = vld [vmem:[%s3 + $0x268] sm:$0xff]
  %v1641 = vld [vmem:[%s3 + $0x270] sm:$0xff]
  %v1642 = vld [vmem:[%s3 + $0x278] sm:$0xff]
  %v1643 = vld [vmem:[%s3 + $0x280] sm:$0xf]
  %v1644 = vld [vmem:[%s3 + $0x284] sm:$0xff]
  %v1645 = vld [vmem:[%s3 + $0x28c] sm:$0xff]
  %v1646 = vld [vmem:[%s3 + $0x294] sm:$0xff]
  %v1647 = vld [vmem:[%s3 + $0x29c] sm:$0xf]
  %v1648 = vld [vmem:[%s3 + $0x2a0] sm:$0xff]
  %v1649 = vld [vmem:[%s3 + $0x2a8] sm:$0xff]
  %v1650 = vld [vmem:[%s3 + $0x2b0] sm:$0xff]
  %v1651 = vld [vmem:[%s3 + $0x2b8] sm:$0xf]
  %v1652 = vld [vmem:[%s3 + $0x2bc] sm:$0xff]
  %v1653 = vld [vmem:[%s3 + $0x2c4] sm:$0xff]
  %v1654 = vld [vmem:[%s3 + $0x2cc] sm:$0xff]
  %v1655 = vld [vmem:[%s3 + $0x2d4] sm:$0xf]
  %v1656 = vld [vmem:[%s3 + $0x2d8] sm:$0xff]
  %v1657 = vld [vmem:[%s3 + $0x2e0] sm:$0xff]
  %v1658 = vld [vmem:[%s3 + $0x2e8] sm:$0xff]
  %v1659 = vld [vmem:[%s3 + $0x2f0] sm:$0xf]
  %v1660 = vld [vmem:[%s3 + $0x2f4] sm:$0xff]
  %v1661 = vld [vmem:[%s3 + $0x2fc] sm:$0xff]
  %v1662 = vld [vmem:[%s3 + $0x304] sm:$0xff]
  %v1663 = vld [vmem:[%s3 + $0x30c] sm:$0xf]
  %v1664 = vld [vmem:[%s3 + $0x310] sm:$0xff]
  %v1665 = vld [vmem:[%s3 + $0x318] sm:$0xff]
  %v1666 = vld [vmem:[%s3 + $0x320] sm:$0xff]
  %v1667 = vld [vmem:[%s3 + $0x328] sm:$0xf]
  %v1668 = vld [vmem:[%s3 + $0x32c] sm:$0xff]
  %v1669 = vld [vmem:[%s3 + $0x334] sm:$0xff]
  %v1670 = vld [vmem:[%s3 + $0x33c] sm:$0xff]
  %v1671 = vld [vmem:[%s3 + $0x344] sm:$0xf]
  %v1672 = vld [vmem:[%s3 + $0x348] sm:$0xff]
  %v1673 = vld [vmem:[%s3 + $0x350] sm:$0xff]
  %v1674 = vld [vmem:[%s3 + $0x358] sm:$0xff]
  %v1675 = vld [vmem:[%s3 + $0x360] sm:$0xf]
  %v1676 = vld [vmem:[%s3 + $0x364] sm:$0xff]
  %v1677 = vld [vmem:[%s3 + $0x36c] sm:$0xff]
  %v1678 = vld [vmem:[%s3 + $0x374] sm:$0xff]
  %v1679 = vld [vmem:[%s3 + $0x37c] sm:$0xf]
  %v1680 = vld [vmem:[%s3 + $0x380] sm:$0xff]
  %v1681 = vld [vmem:[%s3 + $0x388] sm:$0xff]
  %v1682 = vld [vmem:[%s3 + $0x390] sm:$0xff]
  %v1683 = vld [vmem:[%s3 + $0x398] sm:$0xf]
  %v1684 = vld [vmem:[%s3 + $0x39c] sm:$0xff]
  %v1685 = vld [vmem:[%s3 + $0x3a4] sm:$0xff]
  %v1686 = vld [vmem:[%s3 + $0x3ac] sm:$0xff]
  %v1687 = vld [vmem:[%s3 + $0x3b4] sm:$0xf]
  %v1688 = vld [vmem:[%s3 + $0x3b8] sm:$0xff]
  %v1689 = vld [vmem:[%s3 + $0x3c0] sm:$0xff]
  %v1690 = vld [vmem:[%s3 + $0x3c8] sm:$0xff]
  %v1691 = vld [vmem:[%s3 + $0x3d0] sm:$0xf]
  %v1692 = vld [vmem:[%s3 + $0x3d4] sm:$0xff]
  %v1693 = vld [vmem:[%s3 + $0x3dc] sm:$0xff]
  %v1694 = vld [vmem:[%s3 + $0x3e4] sm:$0xff]
  %v1695 = vld [vmem:[%s3 + $0x3ec] sm:$0xf]
  %v1696 = vld [vmem:[%s3 + $0x3f0] sm:$0xff]
  %v1697 = vld [vmem:[%s3 + $0x3f8] sm:$0xff]
  %v1698 = vld [vmem:[%s3 + $0x400] sm:$0xff]
  %v1699 = vld [vmem:[%s3 + $0x408] sm:$0xf]
  %v1700 = vld [vmem:[%s3 + $0x40c] sm:$0xff]
  %v1701 = vld [vmem:[%s3 + $0x414] sm:$0xff]
  %v1702 = vld [vmem:[%s3 + $0x41c] sm:$0xff]
  %v1703 = vld [vmem:[%s3 + $0x424] sm:$0xf]
  %v1704 = vld [vmem:[%s3 + $0x428] sm:$0xff]
  %v1705 = vld [vmem:[%s3 + $0x430] sm:$0xff]
  %v1706 = vld [vmem:[%s3 + $0x438] sm:$0xff]
  %v1707 = vld [vmem:[%s3 + $0x440] sm:$0xf]
  %v1708 = vld [vmem:[%s3 + $0x444] sm:$0xff]
  %v1709 = vld [vmem:[%s3 + $0x44c] sm:$0xff]
  %v1710 = vld [vmem:[%s3 + $0x454] sm:$0xff]
  %v1711 = vld [vmem:[%s3 + $0x45c] sm:$0xf]
  %v1712 = vld [vmem:[%s3 + $0x460] sm:$0xff]
  %v1713 = vld [vmem:[%s3 + $0x468] sm:$0xff]
  %v1714 = vld [vmem:[%s3 + $0x470] sm:$0xff]
  %v1715 = vld [vmem:[%s3 + $0x478] sm:$0xf]
  %v1716 = vld [vmem:[%s3 + $0x47c] sm:$0xff]
  %v1717 = vld [vmem:[%s3 + $0x484] sm:$0xff]
  %v1718 = vld [vmem:[%s3 + $0x48c] sm:$0xff]
  %v1719 = vld [vmem:[%s3 + $0x494] sm:$0xf]
  %v1720 = vld [vmem:[%s3 + $0x498] sm:$0xff]
  %v1721 = vld [vmem:[%s3 + $0x4a0] sm:$0xff]
  %v1722 = vld [vmem:[%s3 + $0x4a8] sm:$0xff]
  %v1723 = vld [vmem:[%s3 + $0x4b0] sm:$0xf]
  %v1724 = vld [vmem:[%s3 + $0x4b4] sm:$0xff]
  %v1725 = vld [vmem:[%s3 + $0x4bc] sm:$0xff]
  %v1726 = vld [vmem:[%s3 + $0x4c4] sm:$0xff]
  %v1727 = vld [vmem:[%s3 + $0x4cc] sm:$0xf]
  %v1728 = vld [vmem:[%s3 + $0x4d0] sm:$0xff]
  %v1729 = vld [vmem:[%s3 + $0x4d8] sm:$0xff]
  %v1730 = vld [vmem:[%s3 + $0x4e0] sm:$0xff]
  %v1731 = vld [vmem:[%s3 + $0x4e8] sm:$0xf]
  %v1732 = vld [vmem:[%s3 + $0x4ec] sm:$0xff]
  %v1733 = vld [vmem:[%s3 + $0x4f4] sm:$0xff]
  %v1734 = vld [vmem:[%s3 + $0x4fc] sm:$0xff]
  %v1735 = vld [vmem:[%s3 + $0x504] sm:$0xf]
  %v1736 = vld [vmem:[%s3 + $0x508] sm:$0xff]
  %v1737 = vld [vmem:[%s3 + $0x510] sm:$0xff]
  %v1738 = vld [vmem:[%s3 + $0x518] sm:$0xff]
  %v1739 = vld [vmem:[%s3 + $0x520] sm:$0xf]
  %v1740 = vld [vmem:[%s3 + $0x524] sm:$0xff]
  %v1741 = vld [vmem:[%s3 + $0x52c] sm:$0xff]
  %v1742 = vld [vmem:[%s3 + $0x534] sm:$0xff]
  %v1743 = vld [vmem:[%s3 + $0x53c] sm:$0xf]
  %v1744 = vld [vmem:[%s3 + $0x540] sm:$0xff]
  %v1745 = vld [vmem:[%s3 + $0x548] sm:$0xff]
  %v1746 = vld [vmem:[%s3 + $0x550] sm:$0xff]
  %v1747 = vld [vmem:[%s3 + $0x558] sm:$0xf]
  %v1748 = vld [vmem:[%s3 + $0x55c] sm:$0xff]
  %v1749 = vld [vmem:[%s3 + $0x564] sm:$0xff]
  %v1750 = vld [vmem:[%s3 + $0x56c] sm:$0xff]
  %v1751 = vld [vmem:[%s3 + $0x574] sm:$0xf]
  %v1752 = vld [vmem:[%s3 + $0x578] sm:$0xff]
  %v1753 = vld [vmem:[%s3 + $0x580] sm:$0xff]
  %v1754 = vld [vmem:[%s3 + $0x588] sm:$0xff]
  %v1755 = vld [vmem:[%s3 + $0x590] sm:$0xf]
  %v1756 = vld [vmem:[%s3 + $0x594] sm:$0xff]
  %v1757 = vld [vmem:[%s3 + $0x59c] sm:$0xff]
  %v1758 = vld [vmem:[%s3 + $0x5a4] sm:$0xff]
  %v1759 = vld [vmem:[%s3 + $0x5ac] sm:$0xf]
  %v1760 = vld [vmem:[%s3 + $0x5b0] sm:$0xff]
  %v1761 = vld [vmem:[%s3 + $0x5b8] sm:$0xff]
  %v1762 = vld [vmem:[%s3 + $0x5c0] sm:$0xff]
  %v1763 = vld [vmem:[%s3 + $0x5c8] sm:$0xf]
  %v1764 = vld [vmem:[%s3 + $0x5cc] sm:$0xff]
  %v1765 = vld [vmem:[%s3 + $0x5d4] sm:$0xff]
  %v1766 = vld [vmem:[%s3 + $0x5dc] sm:$0xff]
  %v1767 = vld [vmem:[%s3 + $0x5e4] sm:$0xf]
  %v1768 = vld [vmem:[%s3 + $0x5e8] sm:$0xff]
  %v1769 = vld [vmem:[%s3 + $0x5f0] sm:$0xff]
  %v1770 = vld [vmem:[%s3 + $0x5f8] sm:$0xff]
  %v1771 = vld [vmem:[%s3 + $0x600] sm:$0xf]
  %v1772 = vld [vmem:[%s3 + $0x604] sm:$0xff]
  %v1773 = vld [vmem:[%s3 + $0x60c] sm:$0xff]
  %v1774 = vld [vmem:[%s3 + $0x614] sm:$0xff]
  %v1775 = vld [vmem:[%s3 + $0x61c] sm:$0xf]
  %v1776 = vld [vmem:[%s3 + $0x620] sm:$0xff]
  %v1777 = vld [vmem:[%s3 + $0x628] sm:$0xff]
  %v1778 = vld [vmem:[%s3 + $0x630] sm:$0xff]
  %v1779 = vld [vmem:[%s3 + $0x638] sm:$0xf]
  %v1780 = vld [vmem:[%s3 + $0x63c] sm:$0xff]
  %v1781 = vld [vmem:[%s3 + $0x644] sm:$0xff]
  %v1782 = vld [vmem:[%s3 + $0x64c] sm:$0xff]
  %v1783 = vld [vmem:[%s3 + $0x654] sm:$0xf]
  %v1784 = vld [vmem:[%s3 + $0x658] sm:$0xff]
  %v1785 = vld [vmem:[%s3 + $0x660] sm:$0xff]
  %v1786 = vld [vmem:[%s3 + $0x668] sm:$0xff]
  %v1787 = vld [vmem:[%s3 + $0x670] sm:$0xf]
  %v1788 = vld [vmem:[%s3 + $0x674] sm:$0xff]
  %v1789 = vld [vmem:[%s3 + $0x67c] sm:$0xff]
  %v1790 = vld [vmem:[%s3 + $0x684] sm:$0xff]
  %v1791 = vld [vmem:[%s3 + $0x68c] sm:$0xf]
  %v1792 = vld [vmem:[%s3 + $0x690] sm:$0xff]
  %v1793 = vld [vmem:[%s3 + $0x698] sm:$0xff]
  %v1794 = vld [vmem:[%s3 + $0x6a0] sm:$0xff]
  %v1795 = vld [vmem:[%s3 + $0x6a8] sm:$0xf]
  %v1796 = vld [vmem:[%s3 + $0x6ac] sm:$0xff]
  %v1797 = vld [vmem:[%s3 + $0x6b4] sm:$0xff]
  %v1798 = vld [vmem:[%s3 + $0x6bc] sm:$0xff]
  %v1799 = vld [vmem:[%s3 + $0x6c4] sm:$0xf]
  %v1800 = vld [vmem:[%s3 + $0x6c8] sm:$0xff]
  %v1801 = vld [vmem:[%s3 + $0x6d0] sm:$0xff]
  %v1802 = vld [vmem:[%s3 + $0x6d8] sm:$0xff]
  %v1803 = vld [vmem:[%s3 + $0x6e0] sm:$0xf]
  %v1804 = vld [vmem:[%s3 + $0x6e4] sm:$0xff]
  %v1805 = vld [vmem:[%s3 + $0x6ec] sm:$0xff]
  %v1806 = vld [vmem:[%s3 + $0x6f4] sm:$0xff]
  %v1807 = vld [vmem:[%s3 + $0x6fc] sm:$0xf]
  %v1808 = vld [vmem:[%s3 + $0x700] sm:$0xff]
  %v1809 = vld [vmem:[%s3 + $0x708] sm:$0xff]
  %v1810 = vld [vmem:[%s3 + $0x710] sm:$0xff]
  %v1811 = vld [vmem:[%s3 + $0x718] sm:$0xf]
  %v1812 = vld [vmem:[%s3 + $0x71c] sm:$0xff]
  %v1813 = vld [vmem:[%s3 + $0x724] sm:$0xff]
  %v1814 = vld [vmem:[%s3 + $0x72c] sm:$0xff]
  %v1815 = vld [vmem:[%s3 + $0x734] sm:$0xf]
  %v1816 = vld [vmem:[%s3 + $0x738] sm:$0xff]
  %v1817 = vld [vmem:[%s3 + $0x740] sm:$0xff]
  %v1818 = vld [vmem:[%s3 + $0x748] sm:$0xff]
  %v1819 = vld [vmem:[%s3 + $0x750] sm:$0xf]
  %v1820 = vld [vmem:[%s3 + $0x754] sm:$0xff]
  %v1821 = vld [vmem:[%s3 + $0x75c] sm:$0xff]
  %v1822 = vld [vmem:[%s3 + $0x764] sm:$0xff]
  %v1823 = vld [vmem:[%s3 + $0x76c] sm:$0xf]
  %v1824 = vld [vmem:[%s3 + $0x770] sm:$0xff]
  %v1825 = vld [vmem:[%s3 + $0x778] sm:$0xff]
  %v1826 = vld [vmem:[%s3 + $0x780] sm:$0xff]
  %v1827 = vld [vmem:[%s3 + $0x788] sm:$0xf]
  %v1828 = vld [vmem:[%s3 + $0x78c] sm:$0xff]
  %v1829 = vld [vmem:[%s3 + $0x794] sm:$0xff]
  %v1830 = vld [vmem:[%s3 + $0x79c] sm:$0xff]
  %v1831 = vld [vmem:[%s3 + $0x7a4] sm:$0xf]
  %v1832 = vld [vmem:[%s3 + $0x7a8] sm:$0xff]
  %v1833 = vld [vmem:[%s3 + $0x7b0] sm:$0xff]
  %v1834 = vld [vmem:[%s3 + $0x7b8] sm:$0xff]
  %v1835 = vld [vmem:[%s3 + $0x7c0] sm:$0xf]
  %v1836 = vld [vmem:[%s3 + $0x7c4] sm:$0xff]
  %v1837 = vld [vmem:[%s3 + $0x7cc] sm:$0xff]
  %v1838 = vld [vmem:[%s3 + $0x7d4] sm:$0xff]
  %v1839 = vld [vmem:[%s3 + $0x7dc] sm:$0xf]
  %v1840 = vld [vmem:[%s3 + $0x7e0] sm:$0xff]
  %v1841 = vld [vmem:[%s3 + $0x7e8] sm:$0xff]
  %v1842 = vld [vmem:[%s3 + $0x7f0] sm:$0xff]
  %v1843 = vld [vmem:[%s3 + $0x7f8] sm:$0xf]
  %v1844 = vld [vmem:[%s3 + $0x7fc] sm:$0xff]
  %v1845 = vld [vmem:[%s3 + $0x804] sm:$0xff]
  %v1846 = vld [vmem:[%s3 + $0x80c] sm:$0xff]
  %v1847 = vld [vmem:[%s3 + $0x814] sm:$0xf]
  %v1848 = vld [vmem:[%s3 + $0x818] sm:$0xff]
  %v1849 = vld [vmem:[%s3 + $0x820] sm:$0xff]
  %v1850 = vld [vmem:[%s3 + $0x828] sm:$0xff]
  %v1851 = vld [vmem:[%s3 + $0x830] sm:$0xf]
  %v1852 = vld [vmem:[%s3 + $0x834] sm:$0xff]
  %v1853 = vld [vmem:[%s3 + $0x83c] sm:$0xff]
  %v1854 = vld [vmem:[%s3 + $0x844] sm:$0xff]
  %v1855 = vld [vmem:[%s3 + $0x84c] sm:$0xf]
  %v1856 = vld [vmem:[%s3 + $0x850] sm:$0xff]
  %v1857 = vld [vmem:[%s3 + $0x858] sm:$0xff]
  %v1858 = vld [vmem:[%s3 + $0x860] sm:$0xff]
  %v1859 = vld [vmem:[%s3 + $0x868] sm:$0xf]
  %v1860 = vld [vmem:[%s3 + $0x86c] sm:$0xff]
  %v1861 = vld [vmem:[%s3 + $0x874] sm:$0xff]
  %v1862 = vld [vmem:[%s3 + $0x87c] sm:$0xff]
  %v1863 = vld [vmem:[%s3 + $0x884] sm:$0xf]
  %v1864 = vld [vmem:[%s3 + $0x888] sm:$0xff]
  %v1865 = vld [vmem:[%s3 + $0x890] sm:$0xff]
  %v1866 = vld [vmem:[%s3 + $0x898] sm:$0xff]
  %v1867 = vld [vmem:[%s3 + $0x8a0] sm:$0xf]
  %v1868 = vld [vmem:[%s3 + $0x8a4] sm:$0xff]
  %v1869 = vld [vmem:[%s3 + $0x8ac] sm:$0xff]
  %v1870 = vld [vmem:[%s3 + $0x8b4] sm:$0xff]
  %v1871 = vld [vmem:[%s3 + $0x8bc] sm:$0xf]
  %v1872 = vld [vmem:[%s3 + $0x8c0] sm:$0xff]
  %v1873 = vld [vmem:[%s3 + $0x8c8] sm:$0xff]
  %v1874 = vld [vmem:[%s3 + $0x8d0] sm:$0xff]
  %v1875 = vld [vmem:[%s3 + $0x8d8] sm:$0xf]
  %v1876 = vld [vmem:[%s3 + $0x8dc] sm:$0xff]
  %v1877 = vld [vmem:[%s3 + $0x8e4] sm:$0xff]
  %v1878 = vld [vmem:[%s3 + $0x8ec] sm:$0xff]
  %v1879 = vld [vmem:[%s3 + $0x8f4] sm:$0xf]
  %v1880 = vld [vmem:[%s3 + $0x8f8] sm:$0xff]
  %v1881 = vld [vmem:[%s3 + $0x900] sm:$0xff]
  %v1882 = vld [vmem:[%s3 + $0x908] sm:$0xff]
  %v1883 = vld [vmem:[%s3 + $0x910] sm:$0xf]
  %v1884 = vld [vmem:[%s3 + $0x914] sm:$0xff]
  %v1885 = vld [vmem:[%s3 + $0x91c] sm:$0xff]
  %v1886 = vld [vmem:[%s3 + $0x924] sm:$0xff]
  %v1887 = vld [vmem:[%s3 + $0x92c] sm:$0xf]
  %v1888 = vld [vmem:[%s3 + $0x930] sm:$0xff]
  %v1889 = vld [vmem:[%s3 + $0x938] sm:$0xff]
  %v1890 = vld [vmem:[%s3 + $0x940] sm:$0xff]
  %v1891 = vld [vmem:[%s3 + $0x948] sm:$0xf]
  %v1892 = vld [vmem:[%s3 + $0x94c] sm:$0xff]
  %v1893 = vld [vmem:[%s3 + $0x954] sm:$0xff]
  %v1894 = vld [vmem:[%s3 + $0x95c] sm:$0xff]
  %v1895 = vld [vmem:[%s3 + $0x964] sm:$0xf]
  %v1896 = vld [vmem:[%s3 + $0x968] sm:$0xff]
  %v1897 = vld [vmem:[%s3 + $0x970] sm:$0xff]
  %v1898 = vld [vmem:[%s3 + $0x978] sm:$0xff]
  %v1899 = vld [vmem:[%s3 + $0x980] sm:$0xf]
  %v1900 = vld [vmem:[%s3 + $0x984] sm:$0xff]
  %v1901 = vld [vmem:[%s3 + $0x98c] sm:$0xff]
  %v1902 = vld [vmem:[%s3 + $0x994] sm:$0xff]
  %v1903 = vld [vmem:[%s3 + $0x99c] sm:$0xf]
  %v1904 = vld [vmem:[%s3 + $0x9a0] sm:$0xff]
  %v1905 = vld [vmem:[%s3 + $0x9a8] sm:$0xff]
  %v1906 = vld [vmem:[%s3 + $0x9b0] sm:$0xff]
  %v1907 = vld [vmem:[%s3 + $0x9b8] sm:$0xf]
  %v1908 = vld [vmem:[%s3 + $0x9bc] sm:$0xff]
  %v1909 = vld [vmem:[%s3 + $0x9c4] sm:$0xff]
  %v1910 = vld [vmem:[%s3 + $0x9cc] sm:$0xff]
  %v1911 = vld [vmem:[%s3 + $0x9d4] sm:$0xf]
  %v1912 = vld [vmem:[%s3 + $0x9d8] sm:$0xff]
  %v1913 = vld [vmem:[%s3 + $0x9e0] sm:$0xff]
  %v1914 = vld [vmem:[%s3 + $0x9e8] sm:$0xff]
  %v1915 = vld [vmem:[%s3 + $0x9f0] sm:$0xf]
  %v1916 = vld [vmem:[%s3 + $0x9f4] sm:$0xff]
  %v1917 = vld [vmem:[%s3 + $0x9fc] sm:$0xff]
  %v1918 = vld [vmem:[%s3 + $0xa04] sm:$0xff]
  %v1919 = vld [vmem:[%s3 + $0xa0c] sm:$0xf]
  %v1920 = vld [vmem:[%s3 + $0xa10] sm:$0xff]
  %v1921 = vld [vmem:[%s3 + $0xa18] sm:$0xff]
  %v1922 = vld [vmem:[%s3 + $0xa20] sm:$0xff]
  %v1923 = vld [vmem:[%s3 + $0xa28] sm:$0xf]
  %v1924 = vld [vmem:[%s3 + $0xa2c] sm:$0xff]
  %v1925 = vld [vmem:[%s3 + $0xa34] sm:$0xff]
  %v1926 = vld [vmem:[%s3 + $0xa3c] sm:$0xff]
  %v1927 = vld [vmem:[%s3 + $0xa44] sm:$0xf]
  %v1928 = vld [vmem:[%s3 + $0xa48] sm:$0xff]
  %v1929 = vld [vmem:[%s3 + $0xa50] sm:$0xff]
  %v1930 = vld [vmem:[%s3 + $0xa58] sm:$0xff]
  %v1931 = vld [vmem:[%s3 + $0xa60] sm:$0xf]
  %v1932 = vld [vmem:[%s3 + $0xa64] sm:$0xff]
  %v1933 = vld [vmem:[%s3 + $0xa6c] sm:$0xff]
  %v1934 = vld [vmem:[%s3 + $0xa74] sm:$0xff]
  %v1935 = vld [vmem:[%s3 + $0xa7c] sm:$0xf]
  %v1936 = vld [vmem:[%s3 + $0xa80] sm:$0xff]
  %v1937 = vld [vmem:[%s3 + $0xa88] sm:$0xff]
  %v1938 = vld [vmem:[%s3 + $0xa90] sm:$0xff]
  %v1939 = vld [vmem:[%s3 + $0xa98] sm:$0xf]
  %v1940 = vld [vmem:[%s3 + $0xa9c] sm:$0xff]
  %v1941 = vld [vmem:[%s3 + $0xaa4] sm:$0xff]
  %v1942 = vld [vmem:[%s3 + $0xaac] sm:$0xff]
  %v1943 = vld [vmem:[%s3 + $0xab4] sm:$0xf]
  %v1944 = vld [vmem:[%s3 + $0xab8] sm:$0xff]
  %v1945 = vld [vmem:[%s3 + $0xac0] sm:$0xff]
  %v1946 = vld [vmem:[%s3 + $0xac8] sm:$0xff]
  %v1947 = vld [vmem:[%s3 + $0xad0] sm:$0xf]
  %v1948 = vld [vmem:[%s3 + $0xad4] sm:$0xff]
  %v1949 = vld [vmem:[%s3 + $0xadc] sm:$0xff]
  %v1950 = vld [vmem:[%s3 + $0xae4] sm:$0xff]
  %v1951 = vld [vmem:[%s3 + $0xaec] sm:$0xf]
  %v1952 = vld [vmem:[%s4] sm:$0x7f]
  %v1954 = vlaneseq
  %v1955 = vshrl.u32 %v1954, 7
  %v1956 = vsub.s32 0, %v1955
  %v1957 = vrot.slane %v1952, %v1956
  %v1958 = vlaneseq
  %v1959 = vshrl.u32 %v1958, 7
  %v1960 = vsub.s32 1, %v1959
  %v1961 = vrot.slane %v1952, %v1960
  %v1962 = vlaneseq
  %v1963 = vshrl.u32 %v1962, 7
  %v1964 = vsub.s32 2, %v1963
  %v1965 = vrot.slane %v1952, %v1964
  %v1966 = vlaneseq
  %v1967 = vshrl.u32 %v1966, 7
  %v1968 = vsub.s32 3, %v1967
  %v1969 = vrot.slane %v1952, %v1968
  %v1970 = vlaneseq
  %v1971 = vshrl.u32 %v1970, 7
  %v1972 = vsub.s32 4, %v1971
  %v1973 = vrot.slane %v1952, %v1972
  %v1974 = vlaneseq
  %v1975 = vshrl.u32 %v1974, 7
  %v1976 = vsub.s32 5, %v1975
  %v1977 = vrot.slane %v1952, %v1976
  %v1978 = vlaneseq
  %v1979 = vshrl.u32 %v1978, 7
  %v1980 = vsub.s32 6, %v1979
  %v1981 = vrot.slane %v1952, %v1980
  %v2389 = vunpack.c.l.b16 %v1552
  %v2390 = vunpack.c.h.b16 %v1552
  %v2391 = vunpack.c.l.b16 %v1553
  %v2392 = vunpack.c.h.b16 %v1553
  %v2393 = vunpack.c.l.b16 %v1554
  %v2394 = vunpack.c.h.b16 %v1554
  %v2395 = vunpack.c.l.b16 %v1555
  %v2396 = vunpack.c.l.b16 %v1556
  %v2397 = vunpack.c.h.b16 %v1556
  %v2398 = vunpack.c.l.b16 %v1557
  %v2399 = vunpack.c.h.b16 %v1557
  %v2400 = vunpack.c.l.b16 %v1558
  %v2401 = vunpack.c.h.b16 %v1558
  %v2402 = vunpack.c.l.b16 %v1559
  %v2403 = vunpack.c.l.b16 %v1560
  %v2404 = vunpack.c.h.b16 %v1560
  %v2405 = vunpack.c.l.b16 %v1561
  %v2406 = vunpack.c.h.b16 %v1561
  %v2407 = vunpack.c.l.b16 %v1562
  %v2408 = vunpack.c.h.b16 %v1562
  %v2409 = vunpack.c.l.b16 %v1563
  %v2410 = vunpack.c.l.b16 %v1564
  %v2411 = vunpack.c.h.b16 %v1564
  %v2412 = vunpack.c.l.b16 %v1565
  %v2413 = vunpack.c.h.b16 %v1565
  %v2414 = vunpack.c.l.b16 %v1566
  %v2415 = vunpack.c.h.b16 %v1566
  %v2416 = vunpack.c.l.b16 %v1567
  %v2417 = vunpack.c.l.b16 %v1568
  %v2418 = vunpack.c.h.b16 %v1568
  %v2419 = vunpack.c.l.b16 %v1569
  %v2420 = vunpack.c.h.b16 %v1569
  %v2421 = vunpack.c.l.b16 %v1570
  %v2422 = vunpack.c.h.b16 %v1570
  %v2423 = vunpack.c.l.b16 %v1571
  %v2424 = vunpack.c.l.b16 %v1572
  %v2425 = vunpack.c.h.b16 %v1572
  %v2426 = vunpack.c.l.b16 %v1573
  %v2427 = vunpack.c.h.b16 %v1573
  %v2428 = vunpack.c.l.b16 %v1574
  %v2429 = vunpack.c.h.b16 %v1574
  %v2430 = vunpack.c.l.b16 %v1575
  %v2431 = vunpack.c.l.b16 %v1576
  %v2432 = vunpack.c.h.b16 %v1576
  %v2433 = vunpack.c.l.b16 %v1577
  %v2434 = vunpack.c.h.b16 %v1577
  %v2435 = vunpack.c.l.b16 %v1578
  %v2436 = vunpack.c.h.b16 %v1578
  %v2437 = vunpack.c.l.b16 %v1579
  %v2438 = vunpack.c.l.b16 %v1580
  %v2439 = vunpack.c.h.b16 %v1580
  %v2440 = vunpack.c.l.b16 %v1581
  %v2441 = vunpack.c.h.b16 %v1581
  %v2442 = vunpack.c.l.b16 %v1582
  %v2443 = vunpack.c.h.b16 %v1582
  %v2444 = vunpack.c.l.b16 %v1583
  %v2445 = vunpack.c.l.b16 %v1584
  %v2446 = vunpack.c.h.b16 %v1584
  %v2447 = vunpack.c.l.b16 %v1585
  %v2448 = vunpack.c.h.b16 %v1585
  %v2449 = vunpack.c.l.b16 %v1586
  %v2450 = vunpack.c.h.b16 %v1586
  %v2451 = vunpack.c.l.b16 %v1587
  %v2452 = vunpack.c.l.b16 %v1588
  %v2453 = vunpack.c.h.b16 %v1588
  %v2454 = vunpack.c.l.b16 %v1589
  %v2455 = vunpack.c.h.b16 %v1589
  %v2456 = vunpack.c.l.b16 %v1590
  %v2457 = vunpack.c.h.b16 %v1590
  %v2458 = vunpack.c.l.b16 %v1591
  %v2459 = vunpack.c.l.b16 %v1592
  %v2460 = vunpack.c.h.b16 %v1592
  %v2461 = vunpack.c.l.b16 %v1593
  %v2462 = vunpack.c.h.b16 %v1593
  %v2463 = vunpack.c.l.b16 %v1594
  %v2464 = vunpack.c.h.b16 %v1594
  %v2465 = vunpack.c.l.b16 %v1595
  %v2466 = vunpack.c.l.b16 %v1596
  %v2467 = vunpack.c.h.b16 %v1596
  %v2468 = vunpack.c.l.b16 %v1597
  %v2469 = vunpack.c.h.b16 %v1597
  %v2470 = vunpack.c.l.b16 %v1598
  %v2471 = vunpack.c.h.b16 %v1598
  %v2472 = vunpack.c.l.b16 %v1599
  %v2473 = vunpack.c.l.b16 %v1600
  %v2474 = vunpack.c.h.b16 %v1600
  %v2475 = vunpack.c.l.b16 %v1601
  %v2476 = vunpack.c.h.b16 %v1601
  %v2477 = vunpack.c.l.b16 %v1602
  %v2478 = vunpack.c.h.b16 %v1602
  %v2479 = vunpack.c.l.b16 %v1603
  %v2480 = vunpack.c.l.b16 %v1604
  %v2481 = vunpack.c.h.b16 %v1604
  %v2482 = vunpack.c.l.b16 %v1605
  %v2483 = vunpack.c.h.b16 %v1605
  %v2484 = vunpack.c.l.b16 %v1606
  %v2485 = vunpack.c.h.b16 %v1606
  %v2486 = vunpack.c.l.b16 %v1607
  %v2487 = vunpack.c.l.b16 %v1608
  %v2488 = vunpack.c.h.b16 %v1608
  %v2489 = vunpack.c.l.b16 %v1609
  %v2490 = vunpack.c.h.b16 %v1609
  %v2491 = vunpack.c.l.b16 %v1610
  %v2492 = vunpack.c.h.b16 %v1610
  %v2493 = vunpack.c.l.b16 %v1611
  %v2494 = vunpack.c.l.b16 %v1612
  %v2495 = vunpack.c.h.b16 %v1612
  %v2496 = vunpack.c.l.b16 %v1613
  %v2497 = vunpack.c.h.b16 %v1613
  %v2498 = vunpack.c.l.b16 %v1614
  %v2499 = vunpack.c.h.b16 %v1614
  %v2500 = vunpack.c.l.b16 %v1615
  %v2501 = vunpack.c.l.b16 %v1616
  %v2502 = vunpack.c.h.b16 %v1616
  %v2503 = vunpack.c.l.b16 %v1617
  %v2504 = vunpack.c.h.b16 %v1617
  %v2505 = vunpack.c.l.b16 %v1618
  %v2506 = vunpack.c.h.b16 %v1618
  %v2507 = vunpack.c.l.b16 %v1619
  %v2508 = vunpack.c.l.b16 %v1620
  %v2509 = vunpack.c.h.b16 %v1620
  %v2510 = vunpack.c.l.b16 %v1621
  %v2511 = vunpack.c.h.b16 %v1621
  %v2512 = vunpack.c.l.b16 %v1622
  %v2513 = vunpack.c.h.b16 %v1622
  %v2514 = vunpack.c.l.b16 %v1623
  %v2515 = vunpack.c.l.b16 %v1624
  %v2516 = vunpack.c.h.b16 %v1624
  %v2517 = vunpack.c.l.b16 %v1625
  %v2518 = vunpack.c.h.b16 %v1625
  %v2519 = vunpack.c.l.b16 %v1626
  %v2520 = vunpack.c.h.b16 %v1626
  %v2521 = vunpack.c.l.b16 %v1627
  %v2522 = vunpack.c.l.b16 %v1628
  %v2523 = vunpack.c.h.b16 %v1628
  %v2524 = vunpack.c.l.b16 %v1629
  %v2525 = vunpack.c.h.b16 %v1629
  %v2526 = vunpack.c.l.b16 %v1630
  %v2527 = vunpack.c.h.b16 %v1630
  %v2528 = vunpack.c.l.b16 %v1631
  %v2529 = vunpack.c.l.b16 %v1632
  %v2530 = vunpack.c.h.b16 %v1632
  %v2531 = vunpack.c.l.b16 %v1633
  %v2532 = vunpack.c.h.b16 %v1633
  %v2533 = vunpack.c.l.b16 %v1634
  %v2534 = vunpack.c.h.b16 %v1634
  %v2535 = vunpack.c.l.b16 %v1635
  %v2536 = vunpack.c.l.b16 %v1636
  %v2537 = vunpack.c.h.b16 %v1636
  %v2538 = vunpack.c.l.b16 %v1637
  %v2539 = vunpack.c.h.b16 %v1637
  %v2540 = vunpack.c.l.b16 %v1638
  %v2541 = vunpack.c.h.b16 %v1638
  %v2542 = vunpack.c.l.b16 %v1639
  %v2543 = vunpack.c.l.b16 %v1640
  %v2544 = vunpack.c.h.b16 %v1640
  %v2545 = vunpack.c.l.b16 %v1641
  %v2546 = vunpack.c.h.b16 %v1641
  %v2547 = vunpack.c.l.b16 %v1642
  %v2548 = vunpack.c.h.b16 %v1642
  %v2549 = vunpack.c.l.b16 %v1643
  %v2550 = vunpack.c.l.b16 %v1644
  %v2551 = vunpack.c.h.b16 %v1644
  %v2552 = vunpack.c.l.b16 %v1645
  %v2553 = vunpack.c.h.b16 %v1645
  %v2554 = vunpack.c.l.b16 %v1646
  %v2555 = vunpack.c.h.b16 %v1646
  %v2556 = vunpack.c.l.b16 %v1647
  %v2557 = vunpack.c.l.b16 %v1648
  %v2558 = vunpack.c.h.b16 %v1648
  %v2559 = vunpack.c.l.b16 %v1649
  %v2560 = vunpack.c.h.b16 %v1649
  %v2561 = vunpack.c.l.b16 %v1650
  %v2562 = vunpack.c.h.b16 %v1650
  %v2563 = vunpack.c.l.b16 %v1651
  %v2564 = vunpack.c.l.b16 %v1652
  %v2565 = vunpack.c.h.b16 %v1652
  %v2566 = vunpack.c.l.b16 %v1653
  %v2567 = vunpack.c.h.b16 %v1653
  %v2568 = vunpack.c.l.b16 %v1654
  %v2569 = vunpack.c.h.b16 %v1654
  %v2570 = vunpack.c.l.b16 %v1655
  %v2571 = vunpack.c.l.b16 %v1656
  %v2572 = vunpack.c.h.b16 %v1656
  %v2573 = vunpack.c.l.b16 %v1657
  %v2574 = vunpack.c.h.b16 %v1657
  %v2575 = vunpack.c.l.b16 %v1658
  %v2576 = vunpack.c.h.b16 %v1658
  %v2577 = vunpack.c.l.b16 %v1659
  %v2578 = vunpack.c.l.b16 %v1660
  %v2579 = vunpack.c.h.b16 %v1660
  %v2580 = vunpack.c.l.b16 %v1661
  %v2581 = vunpack.c.h.b16 %v1661
  %v2582 = vunpack.c.l.b16 %v1662
  %v2583 = vunpack.c.h.b16 %v1662
  %v2584 = vunpack.c.l.b16 %v1663
  %v2585 = vunpack.c.l.b16 %v1664
  %v2586 = vunpack.c.h.b16 %v1664
  %v2587 = vunpack.c.l.b16 %v1665
  %v2588 = vunpack.c.h.b16 %v1665
  %v2589 = vunpack.c.l.b16 %v1666
  %v2590 = vunpack.c.h.b16 %v1666
  %v2591 = vunpack.c.l.b16 %v1667
  %v2592 = vunpack.c.l.b16 %v1668
  %v2593 = vunpack.c.h.b16 %v1668
  %v2594 = vunpack.c.l.b16 %v1669
  %v2595 = vunpack.c.h.b16 %v1669
  %v2596 = vunpack.c.l.b16 %v1670
  %v2597 = vunpack.c.h.b16 %v1670
  %v2598 = vunpack.c.l.b16 %v1671
  %v2599 = vunpack.c.l.b16 %v1672
  %v2600 = vunpack.c.h.b16 %v1672
  %v2601 = vunpack.c.l.b16 %v1673
  %v2602 = vunpack.c.h.b16 %v1673
  %v2603 = vunpack.c.l.b16 %v1674
  %v2604 = vunpack.c.h.b16 %v1674
  %v2605 = vunpack.c.l.b16 %v1675
  %v2606 = vunpack.c.l.b16 %v1676
  %v2607 = vunpack.c.h.b16 %v1676
  %v2608 = vunpack.c.l.b16 %v1677
  %v2609 = vunpack.c.h.b16 %v1677
  %v2610 = vunpack.c.l.b16 %v1678
  %v2611 = vunpack.c.h.b16 %v1678
  %v2612 = vunpack.c.l.b16 %v1679
  %v2613 = vunpack.c.l.b16 %v1680
  %v2614 = vunpack.c.h.b16 %v1680
  %v2615 = vunpack.c.l.b16 %v1681
  %v2616 = vunpack.c.h.b16 %v1681
  %v2617 = vunpack.c.l.b16 %v1682
  %v2618 = vunpack.c.h.b16 %v1682
  %v2619 = vunpack.c.l.b16 %v1683
  %v2620 = vunpack.c.l.b16 %v1684
  %v2621 = vunpack.c.h.b16 %v1684
  %v2622 = vunpack.c.l.b16 %v1685
  %v2623 = vunpack.c.h.b16 %v1685
  %v2624 = vunpack.c.l.b16 %v1686
  %v2625 = vunpack.c.h.b16 %v1686
  %v2626 = vunpack.c.l.b16 %v1687
  %v2627 = vunpack.c.l.b16 %v1688
  %v2628 = vunpack.c.h.b16 %v1688
  %v2629 = vunpack.c.l.b16 %v1689
  %v2630 = vunpack.c.h.b16 %v1689
  %v2631 = vunpack.c.l.b16 %v1690
  %v2632 = vunpack.c.h.b16 %v1690
  %v2633 = vunpack.c.l.b16 %v1691
  %v2634 = vunpack.c.l.b16 %v1692
  %v2635 = vunpack.c.h.b16 %v1692
  %v2636 = vunpack.c.l.b16 %v1693
  %v2637 = vunpack.c.h.b16 %v1693
  %v2638 = vunpack.c.l.b16 %v1694
  %v2639 = vunpack.c.h.b16 %v1694
  %v2640 = vunpack.c.l.b16 %v1695
  %v2641 = vunpack.c.l.b16 %v1696
  %v2642 = vunpack.c.h.b16 %v1696
  %v2643 = vunpack.c.l.b16 %v1697
  %v2644 = vunpack.c.h.b16 %v1697
  %v2645 = vunpack.c.l.b16 %v1698
  %v2646 = vunpack.c.h.b16 %v1698
  %v2647 = vunpack.c.l.b16 %v1699
  %v2648 = vunpack.c.l.b16 %v1700
  %v2649 = vunpack.c.h.b16 %v1700
  %v2650 = vunpack.c.l.b16 %v1701
  %v2651 = vunpack.c.h.b16 %v1701
  %v2652 = vunpack.c.l.b16 %v1702
  %v2653 = vunpack.c.h.b16 %v1702
  %v2654 = vunpack.c.l.b16 %v1703
  %v2655 = vunpack.c.l.b16 %v1704
  %v2656 = vunpack.c.h.b16 %v1704
  %v2657 = vunpack.c.l.b16 %v1705
  %v2658 = vunpack.c.h.b16 %v1705
  %v2659 = vunpack.c.l.b16 %v1706
  %v2660 = vunpack.c.h.b16 %v1706
  %v2661 = vunpack.c.l.b16 %v1707
  %v2662 = vunpack.c.l.b16 %v1708
  %v2663 = vunpack.c.h.b16 %v1708
  %v2664 = vunpack.c.l.b16 %v1709
  %v2665 = vunpack.c.h.b16 %v1709
  %v2666 = vunpack.c.l.b16 %v1710
  %v2667 = vunpack.c.h.b16 %v1710
  %v2668 = vunpack.c.l.b16 %v1711
  %v2669 = vunpack.c.l.b16 %v1712
  %v2670 = vunpack.c.h.b16 %v1712
  %v2671 = vunpack.c.l.b16 %v1713
  %v2672 = vunpack.c.h.b16 %v1713
  %v2673 = vunpack.c.l.b16 %v1714
  %v2674 = vunpack.c.h.b16 %v1714
  %v2675 = vunpack.c.l.b16 %v1715
  %v2676 = vunpack.c.l.b16 %v1716
  %v2677 = vunpack.c.h.b16 %v1716
  %v2678 = vunpack.c.l.b16 %v1717
  %v2679 = vunpack.c.h.b16 %v1717
  %v2680 = vunpack.c.l.b16 %v1718
  %v2681 = vunpack.c.h.b16 %v1718
  %v2682 = vunpack.c.l.b16 %v1719
  %v2683 = vunpack.c.l.b16 %v1720
  %v2684 = vunpack.c.h.b16 %v1720
  %v2685 = vunpack.c.l.b16 %v1721
  %v2686 = vunpack.c.h.b16 %v1721
  %v2687 = vunpack.c.l.b16 %v1722
  %v2688 = vunpack.c.h.b16 %v1722
  %v2689 = vunpack.c.l.b16 %v1723
  %v2690 = vunpack.c.l.b16 %v1724
  %v2691 = vunpack.c.h.b16 %v1724
  %v2692 = vunpack.c.l.b16 %v1725
  %v2693 = vunpack.c.h.b16 %v1725
  %v2694 = vunpack.c.l.b16 %v1726
  %v2695 = vunpack.c.h.b16 %v1726
  %v2696 = vunpack.c.l.b16 %v1727
  %v2697 = vunpack.c.l.b16 %v1728
  %v2698 = vunpack.c.h.b16 %v1728
  %v2699 = vunpack.c.l.b16 %v1729
  %v2700 = vunpack.c.h.b16 %v1729
  %v2701 = vunpack.c.l.b16 %v1730
  %v2702 = vunpack.c.h.b16 %v1730
  %v2703 = vunpack.c.l.b16 %v1731
  %v2704 = vunpack.c.l.b16 %v1732
  %v2705 = vunpack.c.h.b16 %v1732
  %v2706 = vunpack.c.l.b16 %v1733
  %v2707 = vunpack.c.h.b16 %v1733
  %v2708 = vunpack.c.l.b16 %v1734
  %v2709 = vunpack.c.h.b16 %v1734
  %v2710 = vunpack.c.l.b16 %v1735
  %v2711 = vunpack.c.l.b16 %v1736
  %v2712 = vunpack.c.h.b16 %v1736
  %v2713 = vunpack.c.l.b16 %v1737
  %v2714 = vunpack.c.h.b16 %v1737
  %v2715 = vunpack.c.l.b16 %v1738
  %v2716 = vunpack.c.h.b16 %v1738
  %v2717 = vunpack.c.l.b16 %v1739
  %v2718 = vunpack.c.l.b16 %v1740
  %v2719 = vunpack.c.h.b16 %v1740
  %v2720 = vunpack.c.l.b16 %v1741
  %v2721 = vunpack.c.h.b16 %v1741
  %v2722 = vunpack.c.l.b16 %v1742
  %v2723 = vunpack.c.h.b16 %v1742
  %v2724 = vunpack.c.l.b16 %v1743
  %v2725 = vunpack.c.l.b16 %v1744
  %v2726 = vunpack.c.h.b16 %v1744
  %v2727 = vunpack.c.l.b16 %v1745
  %v2728 = vunpack.c.h.b16 %v1745
  %v2729 = vunpack.c.l.b16 %v1746
  %v2730 = vunpack.c.h.b16 %v1746
  %v2731 = vunpack.c.l.b16 %v1747
  %v2732 = vunpack.c.l.b16 %v1748
  %v2733 = vunpack.c.h.b16 %v1748
  %v2734 = vunpack.c.l.b16 %v1749
  %v2735 = vunpack.c.h.b16 %v1749
  %v2736 = vunpack.c.l.b16 %v1750
  %v2737 = vunpack.c.h.b16 %v1750
  %v2738 = vunpack.c.l.b16 %v1751
  %v2739 = vunpack.c.l.b16 %v1752
  %v2740 = vunpack.c.h.b16 %v1752
  %v2741 = vunpack.c.l.b16 %v1753
  %v2742 = vunpack.c.h.b16 %v1753
  %v2743 = vunpack.c.l.b16 %v1754
  %v2744 = vunpack.c.h.b16 %v1754
  %v2745 = vunpack.c.l.b16 %v1755
  %v2746 = vunpack.c.l.b16 %v1756
  %v2747 = vunpack.c.h.b16 %v1756
  %v2748 = vunpack.c.l.b16 %v1757
  %v2749 = vunpack.c.h.b16 %v1757
  %v2750 = vunpack.c.l.b16 %v1758
  %v2751 = vunpack.c.h.b16 %v1758
  %v2752 = vunpack.c.l.b16 %v1759
  %v2753 = vunpack.c.l.b16 %v1760
  %v2754 = vunpack.c.h.b16 %v1760
  %v2755 = vunpack.c.l.b16 %v1761
  %v2756 = vunpack.c.h.b16 %v1761
  %v2757 = vunpack.c.l.b16 %v1762
  %v2758 = vunpack.c.h.b16 %v1762
  %v2759 = vunpack.c.l.b16 %v1763
  %v2760 = vunpack.c.l.b16 %v1764
  %v2761 = vunpack.c.h.b16 %v1764
  %v2762 = vunpack.c.l.b16 %v1765
  %v2763 = vunpack.c.h.b16 %v1765
  %v2764 = vunpack.c.l.b16 %v1766
  %v2765 = vunpack.c.h.b16 %v1766
  %v2766 = vunpack.c.l.b16 %v1767
  %v2767 = vunpack.c.l.b16 %v1768
  %v2768 = vunpack.c.h.b16 %v1768
  %v2769 = vunpack.c.l.b16 %v1769
  %v2770 = vunpack.c.h.b16 %v1769
  %v2771 = vunpack.c.l.b16 %v1770
  %v2772 = vunpack.c.h.b16 %v1770
  %v2773 = vunpack.c.l.b16 %v1771
  %v2774 = vunpack.c.l.b16 %v1772
  %v2775 = vunpack.c.h.b16 %v1772
  %v2776 = vunpack.c.l.b16 %v1773
  %v2777 = vunpack.c.h.b16 %v1773
  %v2778 = vunpack.c.l.b16 %v1774
  %v2779 = vunpack.c.h.b16 %v1774
  %v2780 = vunpack.c.l.b16 %v1775
  %v2781 = vunpack.c.l.b16 %v1776
  %v2782 = vunpack.c.h.b16 %v1776
  %v2783 = vunpack.c.l.b16 %v1777
  %v2784 = vunpack.c.h.b16 %v1777
  %v2785 = vunpack.c.l.b16 %v1778
  %v2786 = vunpack.c.h.b16 %v1778
  %v2787 = vunpack.c.l.b16 %v1779
  %v2788 = vunpack.c.l.b16 %v1780
  %v2789 = vunpack.c.h.b16 %v1780
  %v2790 = vunpack.c.l.b16 %v1781
  %v2791 = vunpack.c.h.b16 %v1781
  %v2792 = vunpack.c.l.b16 %v1782
  %v2793 = vunpack.c.h.b16 %v1782
  %v2794 = vunpack.c.l.b16 %v1783
  %v2795 = vunpack.c.l.b16 %v1784
  %v2796 = vunpack.c.h.b16 %v1784
  %v2797 = vunpack.c.l.b16 %v1785
  %v2798 = vunpack.c.h.b16 %v1785
  %v2799 = vunpack.c.l.b16 %v1786
  %v2800 = vunpack.c.h.b16 %v1786
  %v2801 = vunpack.c.l.b16 %v1787
  %v2802 = vunpack.c.l.b16 %v1788
  %v2803 = vunpack.c.h.b16 %v1788
  %v2804 = vunpack.c.l.b16 %v1789
  %v2805 = vunpack.c.h.b16 %v1789
  %v2806 = vunpack.c.l.b16 %v1790
  %v2807 = vunpack.c.h.b16 %v1790
  %v2808 = vunpack.c.l.b16 %v1791
  %v2809 = vunpack.c.l.b16 %v1792
  %v2810 = vunpack.c.h.b16 %v1792
  %v2811 = vunpack.c.l.b16 %v1793
  %v2812 = vunpack.c.h.b16 %v1793
  %v2813 = vunpack.c.l.b16 %v1794
  %v2814 = vunpack.c.h.b16 %v1794
  %v2815 = vunpack.c.l.b16 %v1795
  %v2816 = vunpack.c.l.b16 %v1796
  %v2817 = vunpack.c.h.b16 %v1796
  %v2818 = vunpack.c.l.b16 %v1797
  %v2819 = vunpack.c.h.b16 %v1797
  %v2820 = vunpack.c.l.b16 %v1798
  %v2821 = vunpack.c.h.b16 %v1798
  %v2822 = vunpack.c.l.b16 %v1799
  %v2823 = vunpack.c.l.b16 %v1800
  %v2824 = vunpack.c.h.b16 %v1800
  %v2825 = vunpack.c.l.b16 %v1801
  %v2826 = vunpack.c.h.b16 %v1801
  %v2827 = vunpack.c.l.b16 %v1802
  %v2828 = vunpack.c.h.b16 %v1802
  %v2829 = vunpack.c.l.b16 %v1803
  %v2830 = vunpack.c.l.b16 %v1804
  %v2831 = vunpack.c.h.b16 %v1804
  %v2832 = vunpack.c.l.b16 %v1805
  %v2833 = vunpack.c.h.b16 %v1805
  %v2834 = vunpack.c.l.b16 %v1806
  %v2835 = vunpack.c.h.b16 %v1806
  %v2836 = vunpack.c.l.b16 %v1807
  %v2837 = vunpack.c.l.b16 %v1808
  %v2838 = vunpack.c.h.b16 %v1808
  %v2839 = vunpack.c.l.b16 %v1809
  %v2840 = vunpack.c.h.b16 %v1809
  %v2841 = vunpack.c.l.b16 %v1810
  %v2842 = vunpack.c.h.b16 %v1810
  %v2843 = vunpack.c.l.b16 %v1811
  %v2844 = vunpack.c.l.b16 %v1812
  %v2845 = vunpack.c.h.b16 %v1812
  %v2846 = vunpack.c.l.b16 %v1813
  %v2847 = vunpack.c.h.b16 %v1813
  %v2848 = vunpack.c.l.b16 %v1814
  %v2849 = vunpack.c.h.b16 %v1814
  %v2850 = vunpack.c.l.b16 %v1815
  %v2851 = vunpack.c.l.b16 %v1816
  %v2852 = vunpack.c.h.b16 %v1816
  %v2853 = vunpack.c.l.b16 %v1817
  %v2854 = vunpack.c.h.b16 %v1817
  %v2855 = vunpack.c.l.b16 %v1818
  %v2856 = vunpack.c.h.b16 %v1818
  %v2857 = vunpack.c.l.b16 %v1819
  %v2858 = vunpack.c.l.b16 %v1820
  %v2859 = vunpack.c.h.b16 %v1820
  %v2860 = vunpack.c.l.b16 %v1821
  %v2861 = vunpack.c.h.b16 %v1821
  %v2862 = vunpack.c.l.b16 %v1822
  %v2863 = vunpack.c.h.b16 %v1822
  %v2864 = vunpack.c.l.b16 %v1823
  %v2865 = vunpack.c.l.b16 %v1824
  %v2866 = vunpack.c.h.b16 %v1824
  %v2867 = vunpack.c.l.b16 %v1825
  %v2868 = vunpack.c.h.b16 %v1825
  %v2869 = vunpack.c.l.b16 %v1826
  %v2870 = vunpack.c.h.b16 %v1826
  %v2871 = vunpack.c.l.b16 %v1827
  %v2872 = vunpack.c.l.b16 %v1828
  %v2873 = vunpack.c.h.b16 %v1828
  %v2874 = vunpack.c.l.b16 %v1829
  %v2875 = vunpack.c.h.b16 %v1829
  %v2876 = vunpack.c.l.b16 %v1830
  %v2877 = vunpack.c.h.b16 %v1830
  %v2878 = vunpack.c.l.b16 %v1831
  %v2879 = vunpack.c.l.b16 %v1832
  %v2880 = vunpack.c.h.b16 %v1832
  %v2881 = vunpack.c.l.b16 %v1833
  %v2882 = vunpack.c.h.b16 %v1833
  %v2883 = vunpack.c.l.b16 %v1834
  %v2884 = vunpack.c.h.b16 %v1834
  %v2885 = vunpack.c.l.b16 %v1835
  %v2886 = vunpack.c.l.b16 %v1836
  %v2887 = vunpack.c.h.b16 %v1836
  %v2888 = vunpack.c.l.b16 %v1837
  %v2889 = vunpack.c.h.b16 %v1837
  %v2890 = vunpack.c.l.b16 %v1838
  %v2891 = vunpack.c.h.b16 %v1838
  %v2892 = vunpack.c.l.b16 %v1839
  %v2893 = vunpack.c.l.b16 %v1840
  %v2894 = vunpack.c.h.b16 %v1840
  %v2895 = vunpack.c.l.b16 %v1841
  %v2896 = vunpack.c.h.b16 %v1841
  %v2897 = vunpack.c.l.b16 %v1842
  %v2898 = vunpack.c.h.b16 %v1842
  %v2899 = vunpack.c.l.b16 %v1843
  %v2900 = vunpack.c.l.b16 %v1844
  %v2901 = vunpack.c.h.b16 %v1844
  %v2902 = vunpack.c.l.b16 %v1845
  %v2903 = vunpack.c.h.b16 %v1845
  %v2904 = vunpack.c.l.b16 %v1846
  %v2905 = vunpack.c.h.b16 %v1846
  %v2906 = vunpack.c.l.b16 %v1847
  %v2907 = vunpack.c.l.b16 %v1848
  %v2908 = vunpack.c.h.b16 %v1848
  %v2909 = vunpack.c.l.b16 %v1849
  %v2910 = vunpack.c.h.b16 %v1849
  %v2911 = vunpack.c.l.b16 %v1850
  %v2912 = vunpack.c.h.b16 %v1850
  %v2913 = vunpack.c.l.b16 %v1851
  %v2914 = vunpack.c.l.b16 %v1852
  %v2915 = vunpack.c.h.b16 %v1852
  %v2916 = vunpack.c.l.b16 %v1853
  %v2917 = vunpack.c.h.b16 %v1853
  %v2918 = vunpack.c.l.b16 %v1854
  %v2919 = vunpack.c.h.b16 %v1854
  %v2920 = vunpack.c.l.b16 %v1855
  %v2921 = vunpack.c.l.b16 %v1856
  %v2922 = vunpack.c.h.b16 %v1856
  %v2923 = vunpack.c.l.b16 %v1857
  %v2924 = vunpack.c.h.b16 %v1857
  %v2925 = vunpack.c.l.b16 %v1858
  %v2926 = vunpack.c.h.b16 %v1858
  %v2927 = vunpack.c.l.b16 %v1859
  %v2928 = vunpack.c.l.b16 %v1860
  %v2929 = vunpack.c.h.b16 %v1860
  %v2930 = vunpack.c.l.b16 %v1861
  %v2931 = vunpack.c.h.b16 %v1861
  %v2932 = vunpack.c.l.b16 %v1862
  %v2933 = vunpack.c.h.b16 %v1862
  %v2934 = vunpack.c.l.b16 %v1863
  %v2935 = vunpack.c.l.b16 %v1864
  %v2936 = vunpack.c.h.b16 %v1864
  %v2937 = vunpack.c.l.b16 %v1865
  %v2938 = vunpack.c.h.b16 %v1865
  %v2939 = vunpack.c.l.b16 %v1866
  %v2940 = vunpack.c.h.b16 %v1866
  %v2941 = vunpack.c.l.b16 %v1867
  %v2942 = vunpack.c.l.b16 %v1868
  %v2943 = vunpack.c.h.b16 %v1868
  %v2944 = vunpack.c.l.b16 %v1869
  %v2945 = vunpack.c.h.b16 %v1869
  %v2946 = vunpack.c.l.b16 %v1870
  %v2947 = vunpack.c.h.b16 %v1870
  %v2948 = vunpack.c.l.b16 %v1871
  %v2949 = vunpack.c.l.b16 %v1872
  %v2950 = vunpack.c.h.b16 %v1872
  %v2951 = vunpack.c.l.b16 %v1873
  %v2952 = vunpack.c.h.b16 %v1873
  %v2953 = vunpack.c.l.b16 %v1874
  %v2954 = vunpack.c.h.b16 %v1874
  %v2955 = vunpack.c.l.b16 %v1875
  %v2956 = vunpack.c.l.b16 %v1876
  %v2957 = vunpack.c.h.b16 %v1876
  %v2958 = vunpack.c.l.b16 %v1877
  %v2959 = vunpack.c.h.b16 %v1877
  %v2960 = vunpack.c.l.b16 %v1878
  %v2961 = vunpack.c.h.b16 %v1878
  %v2962 = vunpack.c.l.b16 %v1879
  %v2963 = vunpack.c.l.b16 %v1880
  %v2964 = vunpack.c.h.b16 %v1880
  %v2965 = vunpack.c.l.b16 %v1881
  %v2966 = vunpack.c.h.b16 %v1881
  %v2967 = vunpack.c.l.b16 %v1882
  %v2968 = vunpack.c.h.b16 %v1882
  %v2969 = vunpack.c.l.b16 %v1883
  %v2970 = vunpack.c.l.b16 %v1884
  %v2971 = vunpack.c.h.b16 %v1884
  %v2972 = vunpack.c.l.b16 %v1885
  %v2973 = vunpack.c.h.b16 %v1885
  %v2974 = vunpack.c.l.b16 %v1886
  %v2975 = vunpack.c.h.b16 %v1886
  %v2976 = vunpack.c.l.b16 %v1887
  %v2977 = vunpack.c.l.b16 %v1888
  %v2978 = vunpack.c.h.b16 %v1888
  %v2979 = vunpack.c.l.b16 %v1889
  %v2980 = vunpack.c.h.b16 %v1889
  %v2981 = vunpack.c.l.b16 %v1890
  %v2982 = vunpack.c.h.b16 %v1890
  %v2983 = vunpack.c.l.b16 %v1891
  %v2984 = vunpack.c.l.b16 %v1892
  %v2985 = vunpack.c.h.b16 %v1892
  %v2986 = vunpack.c.l.b16 %v1893
  %v2987 = vunpack.c.h.b16 %v1893
  %v2988 = vunpack.c.l.b16 %v1894
  %v2989 = vunpack.c.h.b16 %v1894
  %v2990 = vunpack.c.l.b16 %v1895
  %v2991 = vunpack.c.l.b16 %v1896
  %v2992 = vunpack.c.h.b16 %v1896
  %v2993 = vunpack.c.l.b16 %v1897
  %v2994 = vunpack.c.h.b16 %v1897
  %v2995 = vunpack.c.l.b16 %v1898
  %v2996 = vunpack.c.h.b16 %v1898
  %v2997 = vunpack.c.l.b16 %v1899
  %v2998 = vunpack.c.l.b16 %v1900
  %v2999 = vunpack.c.h.b16 %v1900
  %v3000 = vunpack.c.l.b16 %v1901
  %v3001 = vunpack.c.h.b16 %v1901
  %v3002 = vunpack.c.l.b16 %v1902
  %v3003 = vunpack.c.h.b16 %v1902
  %v3004 = vunpack.c.l.b16 %v1903
  %v3005 = vunpack.c.l.b16 %v1904
  %v3006 = vunpack.c.h.b16 %v1904
  %v3007 = vunpack.c.l.b16 %v1905
  %v3008 = vunpack.c.h.b16 %v1905
  %v3009 = vunpack.c.l.b16 %v1906
  %v3010 = vunpack.c.h.b16 %v1906
  %v3011 = vunpack.c.l.b16 %v1907
  %v3012 = vunpack.c.l.b16 %v1908
  %v3013 = vunpack.c.h.b16 %v1908
  %v3014 = vunpack.c.l.b16 %v1909
  %v3015 = vunpack.c.h.b16 %v1909
  %v3016 = vunpack.c.l.b16 %v1910
  %v3017 = vunpack.c.h.b16 %v1910
  %v3018 = vunpack.c.l.b16 %v1911
  %v3019 = vunpack.c.l.b16 %v1912
  %v3020 = vunpack.c.h.b16 %v1912
  %v3021 = vunpack.c.l.b16 %v1913
  %v3022 = vunpack.c.h.b16 %v1913
  %v3023 = vunpack.c.l.b16 %v1914
  %v3024 = vunpack.c.h.b16 %v1914
  %v3025 = vunpack.c.l.b16 %v1915
  %v3026 = vunpack.c.l.b16 %v1916
  %v3027 = vunpack.c.h.b16 %v1916
  %v3028 = vunpack.c.l.b16 %v1917
  %v3029 = vunpack.c.h.b16 %v1917
  %v3030 = vunpack.c.l.b16 %v1918
  %v3031 = vunpack.c.h.b16 %v1918
  %v3032 = vunpack.c.l.b16 %v1919
  %v3033 = vunpack.c.l.b16 %v1920
  %v3034 = vunpack.c.h.b16 %v1920
  %v3035 = vunpack.c.l.b16 %v1921
  %v3036 = vunpack.c.h.b16 %v1921
  %v3037 = vunpack.c.l.b16 %v1922
  %v3038 = vunpack.c.h.b16 %v1922
  %v3039 = vunpack.c.l.b16 %v1923
  %v3040 = vunpack.c.l.b16 %v1924
  %v3041 = vunpack.c.h.b16 %v1924
  %v3042 = vunpack.c.l.b16 %v1925
  %v3043 = vunpack.c.h.b16 %v1925
  %v3044 = vunpack.c.l.b16 %v1926
  %v3045 = vunpack.c.h.b16 %v1926
  %v3046 = vunpack.c.l.b16 %v1927
  %v3047 = vunpack.c.l.b16 %v1928
  %v3048 = vunpack.c.h.b16 %v1928
  %v3049 = vunpack.c.l.b16 %v1929
  %v3050 = vunpack.c.h.b16 %v1929
  %v3051 = vunpack.c.l.b16 %v1930
  %v3052 = vunpack.c.h.b16 %v1930
  %v3053 = vunpack.c.l.b16 %v1931
  %v3054 = vunpack.c.l.b16 %v1932
  %v3055 = vunpack.c.h.b16 %v1932
  %v3056 = vunpack.c.l.b16 %v1933
  %v3057 = vunpack.c.h.b16 %v1933
  %v3058 = vunpack.c.l.b16 %v1934
  %v3059 = vunpack.c.h.b16 %v1934
  %v3060 = vunpack.c.l.b16 %v1935
  %v3061 = vunpack.c.l.b16 %v1936
  %v3062 = vunpack.c.h.b16 %v1936
  %v3063 = vunpack.c.l.b16 %v1937
  %v3064 = vunpack.c.h.b16 %v1937
  %v3065 = vunpack.c.l.b16 %v1938
  %v3066 = vunpack.c.h.b16 %v1938
  %v3067 = vunpack.c.l.b16 %v1939
  %v3068 = vunpack.c.l.b16 %v1940
  %v3069 = vunpack.c.h.b16 %v1940
  %v3070 = vunpack.c.l.b16 %v1941
  %v3071 = vunpack.c.h.b16 %v1941
  %v3072 = vunpack.c.l.b16 %v1942
  %v3073 = vunpack.c.h.b16 %v1942
  %v3074 = vunpack.c.l.b16 %v1943
  %v3075 = vunpack.c.l.b16 %v1944
  %v3076 = vunpack.c.h.b16 %v1944
  %v3077 = vunpack.c.l.b16 %v1945
  %v3078 = vunpack.c.h.b16 %v1945
  %v3079 = vunpack.c.l.b16 %v1946
  %v3080 = vunpack.c.h.b16 %v1946
  %v3081 = vunpack.c.l.b16 %v1947
  %v3082 = vunpack.c.l.b16 %v1948
  %v3083 = vunpack.c.h.b16 %v1948
  %v3084 = vunpack.c.l.b16 %v1949
  %v3085 = vunpack.c.h.b16 %v1949
  %v3086 = vunpack.c.l.b16 %v1950
  %v3087 = vunpack.c.h.b16 %v1950
  %v3088 = vunpack.c.l.b16 %v1951
  %v3089 = vpack.c.b16 %v2396, %v2389
  %v3090 = vpack.c.b16 %v2397, %v2390
  %v3091 = vpack.c.b16 %v2398, %v2391
  %v3092 = vpack.c.b16 %v2399, %v2392
  %v3093 = vpack.c.b16 %v2400, %v2393
  %v3094 = vpack.c.b16 %v2401, %v2394
  %v3095 = vpack.c.b16 %v2402, %v2395
  %v3096 = vpack.c.b16 %v2410, %v2403
  %v3097 = vpack.c.b16 %v2411, %v2404
  %v3098 = vpack.c.b16 %v2412, %v2405
  %v3099 = vpack.c.b16 %v2413, %v2406
  %v3100 = vpack.c.b16 %v2414, %v2407
  %v3101 = vpack.c.b16 %v2415, %v2408
  %v3102 = vpack.c.b16 %v2416, %v2409
  %v3103 = vpack.c.b16 %v2424, %v2417
  %v3104 = vpack.c.b16 %v2425, %v2418
  %v3105 = vpack.c.b16 %v2426, %v2419
  %v3106 = vpack.c.b16 %v2427, %v2420
  %v3107 = vpack.c.b16 %v2428, %v2421
  %v3108 = vpack.c.b16 %v2429, %v2422
  %v3109 = vpack.c.b16 %v2430, %v2423
  %v3110 = vpack.c.b16 %v2438, %v2431
  %v3111 = vpack.c.b16 %v2439, %v2432
  %v3112 = vpack.c.b16 %v2440, %v2433
  %v3113 = vpack.c.b16 %v2441, %v2434
  %v3114 = vpack.c.b16 %v2442, %v2435
  %v3115 = vpack.c.b16 %v2443, %v2436
  %v3116 = vpack.c.b16 %v2444, %v2437
  %v3117 = vpack.c.b16 %v2452, %v2445
  %v3118 = vpack.c.b16 %v2453, %v2446
  %v3119 = vpack.c.b16 %v2454, %v2447
  %v3120 = vpack.c.b16 %v2455, %v2448
  %v3121 = vpack.c.b16 %v2456, %v2449
  %v3122 = vpack.c.b16 %v2457, %v2450
  %v3123 = vpack.c.b16 %v2458, %v2451
  %v3124 = vpack.c.b16 %v2466, %v2459
  %v3125 = vpack.c.b16 %v2467, %v2460
  %v3126 = vpack.c.b16 %v2468, %v2461
  %v3127 = vpack.c.b16 %v2469, %v2462
  %v3128 = vpack.c.b16 %v2470, %v2463
  %v3129 = vpack.c.b16 %v2471, %v2464
  %v3130 = vpack.c.b16 %v2472, %v2465
  %v3131 = vpack.c.b16 %v2480, %v2473
  %v3132 = vpack.c.b16 %v2481, %v2474
  %v3133 = vpack.c.b16 %v2482, %v2475
  %v3134 = vpack.c.b16 %v2483, %v2476
  %v3135 = vpack.c.b16 %v2484, %v2477
  %v3136 = vpack.c.b16 %v2485, %v2478
  %v3137 = vpack.c.b16 %v2486, %v2479
  %v3138 = vpack.c.b16 %v2494, %v2487
  %v3139 = vpack.c.b16 %v2495, %v2488
  %v3140 = vpack.c.b16 %v2496, %v2489
  %v3141 = vpack.c.b16 %v2497, %v2490
  %v3142 = vpack.c.b16 %v2498, %v2491
  %v3143 = vpack.c.b16 %v2499, %v2492
  %v3144 = vpack.c.b16 %v2500, %v2493
  %v3145 = vpack.c.b16 %v2508, %v2501
  %v3146 = vpack.c.b16 %v2509, %v2502
  %v3147 = vpack.c.b16 %v2510, %v2503
  %v3148 = vpack.c.b16 %v2511, %v2504
  %v3149 = vpack.c.b16 %v2512, %v2505
  %v3150 = vpack.c.b16 %v2513, %v2506
  %v3151 = vpack.c.b16 %v2514, %v2507
  %v3152 = vpack.c.b16 %v2522, %v2515
  %v3153 = vpack.c.b16 %v2523, %v2516
  %v3154 = vpack.c.b16 %v2524, %v2517
  %v3155 = vpack.c.b16 %v2525, %v2518
  %v3156 = vpack.c.b16 %v2526, %v2519
  %v3157 = vpack.c.b16 %v2527, %v2520
  %v3158 = vpack.c.b16 %v2528, %v2521
  %v3159 = vpack.c.b16 %v2536, %v2529
  %v3160 = vpack.c.b16 %v2537, %v2530
  %v3161 = vpack.c.b16 %v2538, %v2531
  %v3162 = vpack.c.b16 %v2539, %v2532
  %v3163 = vpack.c.b16 %v2540, %v2533
  %v3164 = vpack.c.b16 %v2541, %v2534
  %v3165 = vpack.c.b16 %v2542, %v2535
  %v3166 = vpack.c.b16 %v2550, %v2543
  %v3167 = vpack.c.b16 %v2551, %v2544
  %v3168 = vpack.c.b16 %v2552, %v2545
  %v3169 = vpack.c.b16 %v2553, %v2546
  %v3170 = vpack.c.b16 %v2554, %v2547
  %v3171 = vpack.c.b16 %v2555, %v2548
  %v3172 = vpack.c.b16 %v2556, %v2549
  %v3173 = vpack.c.b16 %v2564, %v2557
  %v3174 = vpack.c.b16 %v2565, %v2558
  %v3175 = vpack.c.b16 %v2566, %v2559
  %v3176 = vpack.c.b16 %v2567, %v2560
  %v3177 = vpack.c.b16 %v2568, %v2561
  %v3178 = vpack.c.b16 %v2569, %v2562
  %v3179 = vpack.c.b16 %v2570, %v2563
  %v3180 = vpack.c.b16 %v2578, %v2571
  %v3181 = vpack.c.b16 %v2579, %v2572
  %v3182 = vpack.c.b16 %v2580, %v2573
  %v3183 = vpack.c.b16 %v2581, %v2574
  %v3184 = vpack.c.b16 %v2582, %v2575
  %v3185 = vpack.c.b16 %v2583, %v2576
  %v3186 = vpack.c.b16 %v2584, %v2577
  %v3187 = vpack.c.b16 %v2592, %v2585
  %v3188 = vpack.c.b16 %v2593, %v2586
  %v3189 = vpack.c.b16 %v2594, %v2587
  %v3190 = vpack.c.b16 %v2595, %v2588
  %v3191 = vpack.c.b16 %v2596, %v2589
  %v3192 = vpack.c.b16 %v2597, %v2590
  %v3193 = vpack.c.b16 %v2598, %v2591
  %v3194 = vpack.c.b16 %v2606, %v2599
  %v3195 = vpack.c.b16 %v2607, %v2600
  %v3196 = vpack.c.b16 %v2608, %v2601
  %v3197 = vpack.c.b16 %v2609, %v2602
  %v3198 = vpack.c.b16 %v2610, %v2603
  %v3199 = vpack.c.b16 %v2611, %v2604
  %v3200 = vpack.c.b16 %v2612, %v2605
  %v3201 = vpack.c.b16 %v2620, %v2613
  %v3202 = vpack.c.b16 %v2621, %v2614
  %v3203 = vpack.c.b16 %v2622, %v2615
  %v3204 = vpack.c.b16 %v2623, %v2616
  %v3205 = vpack.c.b16 %v2624, %v2617
  %v3206 = vpack.c.b16 %v2625, %v2618
  %v3207 = vpack.c.b16 %v2626, %v2619
  %v3208 = vpack.c.b16 %v2634, %v2627
  %v3209 = vpack.c.b16 %v2635, %v2628
  %v3210 = vpack.c.b16 %v2636, %v2629
  %v3211 = vpack.c.b16 %v2637, %v2630
  %v3212 = vpack.c.b16 %v2638, %v2631
  %v3213 = vpack.c.b16 %v2639, %v2632
  %v3214 = vpack.c.b16 %v2640, %v2633
  %v3215 = vpack.c.b16 %v2648, %v2641
  %v3216 = vpack.c.b16 %v2649, %v2642
  %v3217 = vpack.c.b16 %v2650, %v2643
  %v3218 = vpack.c.b16 %v2651, %v2644
  %v3219 = vpack.c.b16 %v2652, %v2645
  %v3220 = vpack.c.b16 %v2653, %v2646
  %v3221 = vpack.c.b16 %v2654, %v2647
  %v3222 = vpack.c.b16 %v2662, %v2655
  %v3223 = vpack.c.b16 %v2663, %v2656
  %v3224 = vpack.c.b16 %v2664, %v2657
  %v3225 = vpack.c.b16 %v2665, %v2658
  %v3226 = vpack.c.b16 %v2666, %v2659
  %v3227 = vpack.c.b16 %v2667, %v2660
  %v3228 = vpack.c.b16 %v2668, %v2661
  %v3229 = vpack.c.b16 %v2676, %v2669
  %v3230 = vpack.c.b16 %v2677, %v2670
  %v3231 = vpack.c.b16 %v2678, %v2671
  %v3232 = vpack.c.b16 %v2679, %v2672
  %v3233 = vpack.c.b16 %v2680, %v2673
  %v3234 = vpack.c.b16 %v2681, %v2674
  %v3235 = vpack.c.b16 %v2682, %v2675
  %v3236 = vpack.c.b16 %v2690, %v2683
  %v3237 = vpack.c.b16 %v2691, %v2684
  %v3238 = vpack.c.b16 %v2692, %v2685
  %v3239 = vpack.c.b16 %v2693, %v2686
  %v3240 = vpack.c.b16 %v2694, %v2687
  %v3241 = vpack.c.b16 %v2695, %v2688
  %v3242 = vpack.c.b16 %v2696, %v2689
  %v3243 = vpack.c.b16 %v2704, %v2697
  %v3244 = vpack.c.b16 %v2705, %v2698
  %v3245 = vpack.c.b16 %v2706, %v2699
  %v3246 = vpack.c.b16 %v2707, %v2700
  %v3247 = vpack.c.b16 %v2708, %v2701
  %v3248 = vpack.c.b16 %v2709, %v2702
  %v3249 = vpack.c.b16 %v2710, %v2703
  %v3250 = vpack.c.b16 %v2718, %v2711
  %v3251 = vpack.c.b16 %v2719, %v2712
  %v3252 = vpack.c.b16 %v2720, %v2713
  %v3253 = vpack.c.b16 %v2721, %v2714
  %v3254 = vpack.c.b16 %v2722, %v2715
  %v3255 = vpack.c.b16 %v2723, %v2716
  %v3256 = vpack.c.b16 %v2724, %v2717
  %v3257 = vpack.c.b16 %v2732, %v2725
  %v3258 = vpack.c.b16 %v2733, %v2726
  %v3259 = vpack.c.b16 %v2734, %v2727
  %v3260 = vpack.c.b16 %v2735, %v2728
  %v3261 = vpack.c.b16 %v2736, %v2729
  %v3262 = vpack.c.b16 %v2737, %v2730
  %v3263 = vpack.c.b16 %v2738, %v2731
  %v3264 = vpack.c.b16 %v2746, %v2739
  %v3265 = vpack.c.b16 %v2747, %v2740
  %v3266 = vpack.c.b16 %v2748, %v2741
  %v3267 = vpack.c.b16 %v2749, %v2742
  %v3268 = vpack.c.b16 %v2750, %v2743
  %v3269 = vpack.c.b16 %v2751, %v2744
  %v3270 = vpack.c.b16 %v2752, %v2745
  %v3271 = vpack.c.b16 %v2760, %v2753
  %v3272 = vpack.c.b16 %v2761, %v2754
  %v3273 = vpack.c.b16 %v2762, %v2755
  %v3274 = vpack.c.b16 %v2763, %v2756
  %v3275 = vpack.c.b16 %v2764, %v2757
  %v3276 = vpack.c.b16 %v2765, %v2758
  %v3277 = vpack.c.b16 %v2766, %v2759
  %v3278 = vpack.c.b16 %v2774, %v2767
  %v3279 = vpack.c.b16 %v2775, %v2768
  %v3280 = vpack.c.b16 %v2776, %v2769
  %v3281 = vpack.c.b16 %v2777, %v2770
  %v3282 = vpack.c.b16 %v2778, %v2771
  %v3283 = vpack.c.b16 %v2779, %v2772
  %v3284 = vpack.c.b16 %v2780, %v2773
  %v3285 = vpack.c.b16 %v2788, %v2781
  %v3286 = vpack.c.b16 %v2789, %v2782
  %v3287 = vpack.c.b16 %v2790, %v2783
  %v3288 = vpack.c.b16 %v2791, %v2784
  %v3289 = vpack.c.b16 %v2792, %v2785
  %v3290 = vpack.c.b16 %v2793, %v2786
  %v3291 = vpack.c.b16 %v2794, %v2787
  %v3292 = vpack.c.b16 %v2802, %v2795
  %v3293 = vpack.c.b16 %v2803, %v2796
  %v3294 = vpack.c.b16 %v2804, %v2797
  %v3295 = vpack.c.b16 %v2805, %v2798
  %v3296 = vpack.c.b16 %v2806, %v2799
  %v3297 = vpack.c.b16 %v2807, %v2800
  %v3298 = vpack.c.b16 %v2808, %v2801
  %v3299 = vpack.c.b16 %v2816, %v2809
  %v3300 = vpack.c.b16 %v2817, %v2810
  %v3301 = vpack.c.b16 %v2818, %v2811
  %v3302 = vpack.c.b16 %v2819, %v2812
  %v3303 = vpack.c.b16 %v2820, %v2813
  %v3304 = vpack.c.b16 %v2821, %v2814
  %v3305 = vpack.c.b16 %v2822, %v2815
  %v3306 = vpack.c.b16 %v2830, %v2823
  %v3307 = vpack.c.b16 %v2831, %v2824
  %v3308 = vpack.c.b16 %v2832, %v2825
  %v3309 = vpack.c.b16 %v2833, %v2826
  %v3310 = vpack.c.b16 %v2834, %v2827
  %v3311 = vpack.c.b16 %v2835, %v2828
  %v3312 = vpack.c.b16 %v2836, %v2829
  %v3313 = vpack.c.b16 %v2844, %v2837
  %v3314 = vpack.c.b16 %v2845, %v2838
  %v3315 = vpack.c.b16 %v2846, %v2839
  %v3316 = vpack.c.b16 %v2847, %v2840
  %v3317 = vpack.c.b16 %v2848, %v2841
  %v3318 = vpack.c.b16 %v2849, %v2842
  %v3319 = vpack.c.b16 %v2850, %v2843
  %v3320 = vpack.c.b16 %v2858, %v2851
  %v3321 = vpack.c.b16 %v2859, %v2852
  %v3322 = vpack.c.b16 %v2860, %v2853
  %v3323 = vpack.c.b16 %v2861, %v2854
  %v3324 = vpack.c.b16 %v2862, %v2855
  %v3325 = vpack.c.b16 %v2863, %v2856
  %v3326 = vpack.c.b16 %v2864, %v2857
  %v3327 = vpack.c.b16 %v2872, %v2865
  %v3328 = vpack.c.b16 %v2873, %v2866
  %v3329 = vpack.c.b16 %v2874, %v2867
  %v3330 = vpack.c.b16 %v2875, %v2868
  %v3331 = vpack.c.b16 %v2876, %v2869
  %v3332 = vpack.c.b16 %v2877, %v2870
  %v3333 = vpack.c.b16 %v2878, %v2871
  %v3334 = vpack.c.b16 %v2886, %v2879
  %v3335 = vpack.c.b16 %v2887, %v2880
  %v3336 = vpack.c.b16 %v2888, %v2881
  %v3337 = vpack.c.b16 %v2889, %v2882
  %v3338 = vpack.c.b16 %v2890, %v2883
  %v3339 = vpack.c.b16 %v2891, %v2884
  %v3340 = vpack.c.b16 %v2892, %v2885
  %v3341 = vpack.c.b16 %v2900, %v2893
  %v3342 = vpack.c.b16 %v2901, %v2894
  %v3343 = vpack.c.b16 %v2902, %v2895
  %v3344 = vpack.c.b16 %v2903, %v2896
  %v3345 = vpack.c.b16 %v2904, %v2897
  %v3346 = vpack.c.b16 %v2905, %v2898
  %v3347 = vpack.c.b16 %v2906, %v2899
  %v3348 = vpack.c.b16 %v2914, %v2907
  %v3349 = vpack.c.b16 %v2915, %v2908
  %v3350 = vpack.c.b16 %v2916, %v2909
  %v3351 = vpack.c.b16 %v2917, %v2910
  %v3352 = vpack.c.b16 %v2918, %v2911
  %v3353 = vpack.c.b16 %v2919, %v2912
  %v3354 = vpack.c.b16 %v2920, %v2913
  %v3355 = vpack.c.b16 %v2928, %v2921
  %v3356 = vpack.c.b16 %v2929, %v2922
  %v3357 = vpack.c.b16 %v2930, %v2923
  %v3358 = vpack.c.b16 %v2931, %v2924
  %v3359 = vpack.c.b16 %v2932, %v2925
  %v3360 = vpack.c.b16 %v2933, %v2926
  %v3361 = vpack.c.b16 %v2934, %v2927
  %v3362 = vpack.c.b16 %v2942, %v2935
  %v3363 = vpack.c.b16 %v2943, %v2936
  %v3364 = vpack.c.b16 %v2944, %v2937
  %v3365 = vpack.c.b16 %v2945, %v2938
  %v3366 = vpack.c.b16 %v2946, %v2939
  %v3367 = vpack.c.b16 %v2947, %v2940
  %v3368 = vpack.c.b16 %v2948, %v2941
  %v3369 = vpack.c.b16 %v2956, %v2949
  %v3370 = vpack.c.b16 %v2957, %v2950
  %v3371 = vpack.c.b16 %v2958, %v2951
  %v3372 = vpack.c.b16 %v2959, %v2952
  %v3373 = vpack.c.b16 %v2960, %v2953
  %v3374 = vpack.c.b16 %v2961, %v2954
  %v3375 = vpack.c.b16 %v2962, %v2955
  %v3376 = vpack.c.b16 %v2970, %v2963
  %v3377 = vpack.c.b16 %v2971, %v2964
  %v3378 = vpack.c.b16 %v2972, %v2965
  %v3379 = vpack.c.b16 %v2973, %v2966
  %v3380 = vpack.c.b16 %v2974, %v2967
  %v3381 = vpack.c.b16 %v2975, %v2968
  %v3382 = vpack.c.b16 %v2976, %v2969
  %v3383 = vpack.c.b16 %v2984, %v2977
  %v3384 = vpack.c.b16 %v2985, %v2978
  %v3385 = vpack.c.b16 %v2986, %v2979
  %v3386 = vpack.c.b16 %v2987, %v2980
  %v3387 = vpack.c.b16 %v2988, %v2981
  %v3388 = vpack.c.b16 %v2989, %v2982
  %v3389 = vpack.c.b16 %v2990, %v2983
  %v3390 = vpack.c.b16 %v2998, %v2991
  %v3391 = vpack.c.b16 %v2999, %v2992
  %v3392 = vpack.c.b16 %v3000, %v2993
  %v3393 = vpack.c.b16 %v3001, %v2994
  %v3394 = vpack.c.b16 %v3002, %v2995
  %v3395 = vpack.c.b16 %v3003, %v2996
  %v3396 = vpack.c.b16 %v3004, %v2997
  %v3397 = vpack.c.b16 %v3012, %v3005
  %v3398 = vpack.c.b16 %v3013, %v3006
  %v3399 = vpack.c.b16 %v3014, %v3007
  %v3400 = vpack.c.b16 %v3015, %v3008
  %v3401 = vpack.c.b16 %v3016, %v3009
  %v3402 = vpack.c.b16 %v3017, %v3010
  %v3403 = vpack.c.b16 %v3018, %v3011
  %v3404 = vpack.c.b16 %v3026, %v3019
  %v3405 = vpack.c.b16 %v3027, %v3020
  %v3406 = vpack.c.b16 %v3028, %v3021
  %v3407 = vpack.c.b16 %v3029, %v3022
  %v3408 = vpack.c.b16 %v3030, %v3023
  %v3409 = vpack.c.b16 %v3031, %v3024
  %v3410 = vpack.c.b16 %v3032, %v3025
  %v3411 = vpack.c.b16 %v3040, %v3033
  %v3412 = vpack.c.b16 %v3041, %v3034
  %v3413 = vpack.c.b16 %v3042, %v3035
  %v3414 = vpack.c.b16 %v3043, %v3036
  %v3415 = vpack.c.b16 %v3044, %v3037
  %v3416 = vpack.c.b16 %v3045, %v3038
  %v3417 = vpack.c.b16 %v3046, %v3039
  %v3418 = vpack.c.b16 %v3054, %v3047
  %v3419 = vpack.c.b16 %v3055, %v3048
  %v3420 = vpack.c.b16 %v3056, %v3049
  %v3421 = vpack.c.b16 %v3057, %v3050
  %v3422 = vpack.c.b16 %v3058, %v3051
  %v3423 = vpack.c.b16 %v3059, %v3052
  %v3424 = vpack.c.b16 %v3060, %v3053
  %v3425 = vpack.c.b16 %v3068, %v3061
  %v3426 = vpack.c.b16 %v3069, %v3062
  %v3427 = vpack.c.b16 %v3070, %v3063
  %v3428 = vpack.c.b16 %v3071, %v3064
  %v3429 = vpack.c.b16 %v3072, %v3065
  %v3430 = vpack.c.b16 %v3073, %v3066
  %v3431 = vpack.c.b16 %v3074, %v3067
  %v3432 = vpack.c.b16 %v3082, %v3075
  %v3433 = vpack.c.b16 %v3083, %v3076
  %v3434 = vpack.c.b16 %v3084, %v3077
  %v3435 = vpack.c.b16 %v3085, %v3078
  %v3436 = vpack.c.b16 %v3086, %v3079
  %v3437 = vpack.c.b16 %v3087, %v3080
  %v3438 = vpack.c.b16 %v3088, %v3081
  %vm3789 = vcmask 261120
  %v3791 = vsel %vm3789, %v1551, 0
  %3793 = vmatprep.subr.bf16.mxu0 %v3139
  %3794 = vmatpush1.bf16.msra.mxu0 %v3138
  %3795 = vmatprep.subr.bf16.mxu0 %v3132
  %3796 = vmatpush1.bf16.msra.mxu0 %v3131
  %3797 = vmatprep.subr.bf16.mxu0 %v3125
  %3798 = vmatpush1.bf16.msra.mxu0 %v3124
  %3799 = vmatprep.subr.bf16.mxu0 %v3118
  %3800 = vmatpush1.bf16.msra.mxu0 %v3117
  %3801 = vmatprep.subr.bf16.mxu0 %v3111
  %3802 = vmatpush1.bf16.msra.mxu0 %v3110
  %3803 = vmatprep.subr.bf16.mxu0 %v3104
  %3804 = vmatpush1.bf16.msra.mxu0 %v3103
  %3805 = vmatprep.subr.bf16.mxu0 %v3097
  %3806 = vmatpush1.bf16.msra.mxu0 %v3096
  %3807 = vmatprep.subr.bf16.mxu0 %v3090
  %3808 = vmatpush1.bf16.msra.mxu0 %v3089
  %3809 = vmatprep.subr.bf16.mxu0 %v3195
  %3810 = vmatpush2.bf16.msra.mxu0 %v3194
  %3811 = vmatprep.subr.bf16.mxu0 %v3188
  %3812 = vmatpush2.bf16.msra.mxu0 %v3187
  %3813 = vmatprep.subr.bf16.mxu0 %v3181
  %3814 = vmatpush2.bf16.msra.mxu0 %v3180
  %3815 = vmatprep.subr.bf16.mxu0 %v3174
  %3816 = vmatpush2.bf16.msra.mxu0 %v3173
  %3817 = vmatprep.subr.bf16.mxu0 %v3167
  %3818 = vmatpush2.bf16.msra.mxu0 %v3166
  %3819 = vmatprep.subr.bf16.mxu0 %v3160
  %3820 = vmatpush2.bf16.msra.mxu0 %v3159
  %3821 = vmatprep.subr.bf16.mxu0 %v3153
  %3822 = vmatpush2.bf16.msra.mxu0 %v3152
  %3823 = vmatprep.subr.bf16.mxu0 %v3146
  %3824 = vmatpush2.bf16.msra.mxu0 %v3145
  %3825 = vmatprep.mubr.bf16.mxu0 %v1546
  %3826 = vmatmul.mubr.bf16.gmra.mxu0 %v1545
  %v3827 = vpop.f32.mrf.mxu0
  %v3828 = vadd.f32 %v1957, %v3827
  %v3829 = vpop.f32.mrf.mxu0
  %v3830 = vadd.f32 %v1961, %v3829
  %v3831 = vpop.f32.mrf.mxu0
  %v3832 = vadd.f32 %v1957, %v3831
  %v3833 = vpop.f32.mrf.mxu0
  %v3834 = vadd.f32 %v1961, %v3833
  %3835 = vdwg.mxu0
  %3836 = vmatprep.subr.bf16.mxu0 %v3251
  %3837 = vmatpush1.bf16.msra.mxu0 %v3250
  %3838 = vmatprep.subr.bf16.mxu0 %v3244
  %3839 = vmatpush1.bf16.msra.mxu0 %v3243
  %3840 = vmatprep.subr.bf16.mxu0 %v3237
  %3841 = vmatpush1.bf16.msra.mxu0 %v3236
  %3842 = vmatprep.subr.bf16.mxu0 %v3230
  %3843 = vmatpush1.bf16.msra.mxu0 %v3229
  %3844 = vmatprep.subr.bf16.mxu0 %v3223
  %3845 = vmatpush1.bf16.msra.mxu0 %v3222
  %3846 = vmatprep.subr.bf16.mxu0 %v3216
  %3847 = vmatpush1.bf16.msra.mxu0 %v3215
  %3848 = vmatprep.subr.bf16.mxu0 %v3209
  %3849 = vmatpush1.bf16.msra.mxu0 %v3208
  %3850 = vmatprep.subr.bf16.mxu0 %v3202
  %3851 = vmatpush1.bf16.msra.mxu0 %v3201
  %3852 = vmatprep.subr.bf16.mxu0 %v3307
  %3853 = vmatpush2.bf16.msra.mxu0 %v3306
  %3854 = vmatprep.subr.bf16.mxu0 %v3300
  %3855 = vmatpush2.bf16.msra.mxu0 %v3299
  %3856 = vmatprep.subr.bf16.mxu0 %v3293
  %3857 = vmatpush2.bf16.msra.mxu0 %v3292
  %3858 = vmatprep.subr.bf16.mxu0 %v3286
  %3859 = vmatpush2.bf16.msra.mxu0 %v3285
  %3860 = vmatprep.subr.bf16.mxu0 %v3279
  %3861 = vmatpush2.bf16.msra.mxu0 %v3278
  %3862 = vmatprep.subr.bf16.mxu0 %v3272
  %3863 = vmatpush2.bf16.msra.mxu0 %v3271
  %3864 = vmatprep.subr.bf16.mxu0 %v3265
  %3865 = vmatpush2.bf16.msra.mxu0 %v3264
  %3866 = vmatprep.subr.bf16.mxu0 %v3258
  %3867 = vmatpush2.bf16.msra.mxu0 %v3257
  %3868 = vmatprep.mubr.bf16.mxu0 %v1548
  %3869 = vmatmul.mubr.bf16.gmra.mxu0 %v1547
  %v3870 = vpop.f32.mrf.mxu0
  %v3871 = vadd.f32 %v3828, %v3870
  %v3872 = vpop.f32.mrf.mxu0
  %v3873 = vadd.f32 %v3830, %v3872
  %v3874 = vpop.f32.mrf.mxu0
  %v3875 = vadd.f32 %v3832, %v3874
  %v3876 = vpop.f32.mrf.mxu0
  %v3877 = vadd.f32 %v3834, %v3876
  %3878 = vdwg.mxu0
  %3879 = vmatprep.subr.bf16.mxu0 %v3363
  %3880 = vmatpush1.bf16.msra.mxu0 %v3362
  %3881 = vmatprep.subr.bf16.mxu0 %v3356
  %3882 = vmatpush1.bf16.msra.mxu0 %v3355
  %3883 = vmatprep.subr.bf16.mxu0 %v3349
  %3884 = vmatpush1.bf16.msra.mxu0 %v3348
  %3885 = vmatprep.subr.bf16.mxu0 %v3342
  %3886 = vmatpush1.bf16.msra.mxu0 %v3341
  %3887 = vmatprep.subr.bf16.mxu0 %v3335
  %3888 = vmatpush1.bf16.msra.mxu0 %v3334
  %3889 = vmatprep.subr.bf16.mxu0 %v3328
  %3890 = vmatpush1.bf16.msra.mxu0 %v3327
  %3891 = vmatprep.subr.bf16.mxu0 %v3321
  %3892 = vmatpush1.bf16.msra.mxu0 %v3320
  %3893 = vmatprep.subr.bf16.mxu0 %v3314
  %3894 = vmatpush1.bf16.msra.mxu0 %v3313
  %3895 = vmatprep.subr.bf16.mxu0 %v3419
  %3896 = vmatpush2.bf16.msra.mxu0 %v3418
  %3897 = vmatprep.subr.bf16.mxu0 %v3412
  %3898 = vmatpush2.bf16.msra.mxu0 %v3411
  %3899 = vmatprep.subr.bf16.mxu0 %v3405
  %3900 = vmatpush2.bf16.msra.mxu0 %v3404
  %3901 = vmatprep.subr.bf16.mxu0 %v3398
  %3902 = vmatpush2.bf16.msra.mxu0 %v3397
  %3903 = vmatprep.subr.bf16.mxu0 %v3391
  %3904 = vmatpush2.bf16.msra.mxu0 %v3390
  %3905 = vmatprep.subr.bf16.mxu0 %v3384
  %3906 = vmatpush2.bf16.msra.mxu0 %v3383
  %3907 = vmatprep.subr.bf16.mxu0 %v3377
  %3908 = vmatpush2.bf16.msra.mxu0 %v3376
  %3909 = vmatprep.subr.bf16.mxu0 %v3370
  %3910 = vmatpush2.bf16.msra.mxu0 %v3369
  %3911 = vmatprep.mubr.bf16.mxu0 %v1550
  %3912 = vmatmul.mubr.bf16.gmra.mxu0 %v1549
  %v3913 = vpop.f32.mrf.mxu0
  %v3914 = vadd.f32 %v3871, %v3913
  %v3915 = vpop.f32.mrf.mxu0
  %v3916 = vadd.f32 %v3873, %v3915
  %v3917 = vpop.f32.mrf.mxu0
  %v3918 = vadd.f32 %v3875, %v3917
  %v3919 = vpop.f32.mrf.mxu0
  %v3920 = vadd.f32 %v3877, %v3919
  %3921 = vdwg.mxu0
  %3922 = vmatprep.subr.bf16.mxu0 0
  %3923 = vmatpush1.bf16.msra.mxu0 0
  %3924 = vmatprep.subr.bf16.mxu0 0
  %3925 = vmatpush1.bf16.msra.mxu0 0
  %3926 = vmatprep.subr.bf16.mxu0 0
  %3927 = vmatpush1.bf16.msra.mxu0 0
  %3928 = vmatprep.subr.bf16.mxu0 0
  %3929 = vmatpush1.bf16.msra.mxu0 0
  %3930 = vmatprep.subr.bf16.mxu0 0
  %3931 = vmatpush1.bf16.msra.mxu0 0
  %3932 = vmatprep.subr.bf16.mxu0 0
  %3933 = vmatpush1.bf16.msra.mxu0 0
  %3934 = vmatprep.subr.bf16.mxu0 %v3433
  %3935 = vmatpush1.bf16.msra.mxu0 %v3432
  %3936 = vmatprep.subr.bf16.mxu0 %v3426
  %3937 = vmatpush1.bf16.msra.mxu0 %v3425
  %3938 = vmatprep.subr.bf16.mxu0 0
  %3939 = vmatpush2.bf16.msra.mxu0 0
  %3940 = vmatprep.subr.bf16.mxu0 0
  %3941 = vmatpush2.bf16.msra.mxu0 0
  %3942 = vmatprep.subr.bf16.mxu0 0
  %3943 = vmatpush2.bf16.msra.mxu0 0
  %3944 = vmatprep.subr.bf16.mxu0 0
  %3945 = vmatpush2.bf16.msra.mxu0 0
  %3946 = vmatprep.subr.bf16.mxu0 0
  %3947 = vmatpush2.bf16.msra.mxu0 0
  %3948 = vmatprep.subr.bf16.mxu0 0
  %3949 = vmatpush2.bf16.msra.mxu0 0
  %3950 = vmatprep.subr.bf16.mxu0 0
  %3951 = vmatpush2.bf16.msra.mxu0 0
  %3952 = vmatprep.subr.bf16.mxu0 0
  %3953 = vmatpush2.bf16.msra.mxu0 0
  %3954 = vmatprep.mubr.bf16.mxu0 0
  %3955 = vmatmul.mubr.bf16.gmra.mxu0 %v3791
  %v3956 = vpop.f32.mrf.mxu0
  %v3957 = vadd.f32 %v3914, %v3956
  %v3958 = vpop.f32.mrf.mxu0
  %v3959 = vadd.f32 %v3916, %v3958
  %v3960 = vpop.f32.mrf.mxu0
  %v3961 = vadd.f32 %v3918, %v3960
  %v3962 = vpop.f32.mrf.mxu0
  %v3963 = vadd.f32 %v3920, %v3962
  %3964 = vdwg.mxu0
  %3965 = vmatprep.subr.bf16.mxu0 %v3141
  %3966 = vmatpush1.bf16.msra.mxu0 %v3140
  %3967 = vmatprep.subr.bf16.mxu0 %v3134
  %3968 = vmatpush1.bf16.msra.mxu0 %v3133
  %3969 = vmatprep.subr.bf16.mxu0 %v3127
  %3970 = vmatpush1.bf16.msra.mxu0 %v3126
  %3971 = vmatprep.subr.bf16.mxu0 %v3120
  %3972 = vmatpush1.bf16.msra.mxu0 %v3119
  %3973 = vmatprep.subr.bf16.mxu0 %v3113
  %3974 = vmatpush1.bf16.msra.mxu0 %v3112
  %3975 = vmatprep.subr.bf16.mxu0 %v3106
  %3976 = vmatpush1.bf16.msra.mxu0 %v3105
  %3977 = vmatprep.subr.bf16.mxu0 %v3099
  %3978 = vmatpush1.bf16.msra.mxu0 %v3098
  %3979 = vmatprep.subr.bf16.mxu0 %v3092
  %3980 = vmatpush1.bf16.msra.mxu0 %v3091
  %3981 = vmatprep.subr.bf16.mxu0 %v3197
  %3982 = vmatpush2.bf16.msra.mxu0 %v3196
  %3983 = vmatprep.subr.bf16.mxu0 %v3190
  %3984 = vmatpush2.bf16.msra.mxu0 %v3189
  %3985 = vmatprep.subr.bf16.mxu0 %v3183
  %3986 = vmatpush2.bf16.msra.mxu0 %v3182
  %3987 = vmatprep.subr.bf16.mxu0 %v3176
  %3988 = vmatpush2.bf16.msra.mxu0 %v3175
  %3989 = vmatprep.subr.bf16.mxu0 %v3169
  %3990 = vmatpush2.bf16.msra.mxu0 %v3168
  %3991 = vmatprep.subr.bf16.mxu0 %v3162
  %3992 = vmatpush2.bf16.msra.mxu0 %v3161
  %3993 = vmatprep.subr.bf16.mxu0 %v3155
  %3994 = vmatpush2.bf16.msra.mxu0 %v3154
  %3995 = vmatprep.subr.bf16.mxu0 %v3148
  %3996 = vmatpush2.bf16.msra.mxu0 %v3147
  %3997 = vmatprep.mubr.bf16.mxu0 %v1546
  %3998 = vmatmul.mubr.bf16.gmra.mxu0 %v1545
  %v3999 = vpop.f32.mrf.mxu0
  %v4000 = vadd.f32 %v1965, %v3999
  %v4001 = vpop.f32.mrf.mxu0
  %v4002 = vadd.f32 %v1969, %v4001
  %v4003 = vpop.f32.mrf.mxu0
  %v4004 = vadd.f32 %v1965, %v4003
  %v4005 = vpop.f32.mrf.mxu0
  %v4006 = vadd.f32 %v1969, %v4005
  %4007 = vdwg.mxu0
  %4008 = vmatprep.subr.bf16.mxu0 %v3253
  %4009 = vmatpush1.bf16.msra.mxu0 %v3252
  %4010 = vmatprep.subr.bf16.mxu0 %v3246
  %4011 = vmatpush1.bf16.msra.mxu0 %v3245
  %4012 = vmatprep.subr.bf16.mxu0 %v3239
  %4013 = vmatpush1.bf16.msra.mxu0 %v3238
  %4014 = vmatprep.subr.bf16.mxu0 %v3232
  %4015 = vmatpush1.bf16.msra.mxu0 %v3231
  %4016 = vmatprep.subr.bf16.mxu0 %v3225
  %4017 = vmatpush1.bf16.msra.mxu0 %v3224
  %4018 = vmatprep.subr.bf16.mxu0 %v3218
  %4019 = vmatpush1.bf16.msra.mxu0 %v3217
  %4020 = vmatprep.subr.bf16.mxu0 %v3211
  %4021 = vmatpush1.bf16.msra.mxu0 %v3210
  %4022 = vmatprep.subr.bf16.mxu0 %v3204
  %4023 = vmatpush1.bf16.msra.mxu0 %v3203
  %4024 = vmatprep.subr.bf16.mxu0 %v3309
  %4025 = vmatpush2.bf16.msra.mxu0 %v3308
  %4026 = vmatprep.subr.bf16.mxu0 %v3302
  %4027 = vmatpush2.bf16.msra.mxu0 %v3301
  %4028 = vmatprep.subr.bf16.mxu0 %v3295
  %4029 = vmatpush2.bf16.msra.mxu0 %v3294
  %4030 = vmatprep.subr.bf16.mxu0 %v3288
  %4031 = vmatpush2.bf16.msra.mxu0 %v3287
  %4032 = vmatprep.subr.bf16.mxu0 %v3281
  %4033 = vmatpush2.bf16.msra.mxu0 %v3280
  %4034 = vmatprep.subr.bf16.mxu0 %v3274
  %4035 = vmatpush2.bf16.msra.mxu0 %v3273
  %4036 = vmatprep.subr.bf16.mxu0 %v3267
  %4037 = vmatpush2.bf16.msra.mxu0 %v3266
  %4038 = vmatprep.subr.bf16.mxu0 %v3260
  %4039 = vmatpush2.bf16.msra.mxu0 %v3259
  %4040 = vmatprep.mubr.bf16.mxu0 %v1548
  %4041 = vmatmul.mubr.bf16.gmra.mxu0 %v1547
  %v4042 = vpop.f32.mrf.mxu0
  %v4043 = vadd.f32 %v4000, %v4042
  %v4044 = vpop.f32.mrf.mxu0
  %v4045 = vadd.f32 %v4002, %v4044
  %v4046 = vpop.f32.mrf.mxu0
  %v4047 = vadd.f32 %v4004, %v4046
  %v4048 = vpop.f32.mrf.mxu0
  %v4049 = vadd.f32 %v4006, %v4048
  %4050 = vdwg.mxu0
  %4051 = vmatprep.subr.bf16.mxu0 %v3365
  %4052 = vmatpush1.bf16.msra.mxu0 %v3364
  %4053 = vmatprep.subr.bf16.mxu0 %v3358
  %4054 = vmatpush1.bf16.msra.mxu0 %v3357
  %4055 = vmatprep.subr.bf16.mxu0 %v3351
  %4056 = vmatpush1.bf16.msra.mxu0 %v3350
  %4057 = vmatprep.subr.bf16.mxu0 %v3344
  %4058 = vmatpush1.bf16.msra.mxu0 %v3343
  %4059 = vmatprep.subr.bf16.mxu0 %v3337
  %4060 = vmatpush1.bf16.msra.mxu0 %v3336
  %4061 = vmatprep.subr.bf16.mxu0 %v3330
  %4062 = vmatpush1.bf16.msra.mxu0 %v3329
  %4063 = vmatprep.subr.bf16.mxu0 %v3323
  %4064 = vmatpush1.bf16.msra.mxu0 %v3322
  %4065 = vmatprep.subr.bf16.mxu0 %v3316
  %4066 = vmatpush1.bf16.msra.mxu0 %v3315
  %4067 = vmatprep.subr.bf16.mxu0 %v3421
  %4068 = vmatpush2.bf16.msra.mxu0 %v3420
  %4069 = vmatprep.subr.bf16.mxu0 %v3414
  %4070 = vmatpush2.bf16.msra.mxu0 %v3413
  %4071 = vmatprep.subr.bf16.mxu0 %v3407
  %4072 = vmatpush2.bf16.msra.mxu0 %v3406
  %4073 = vmatprep.subr.bf16.mxu0 %v3400
  %4074 = vmatpush2.bf16.msra.mxu0 %v3399
  %4075 = vmatprep.subr.bf16.mxu0 %v3393
  %4076 = vmatpush2.bf16.msra.mxu0 %v3392
  %4077 = vmatprep.subr.bf16.mxu0 %v3386
  %4078 = vmatpush2.bf16.msra.mxu0 %v3385
  %4079 = vmatprep.subr.bf16.mxu0 %v3379
  %4080 = vmatpush2.bf16.msra.mxu0 %v3378
  %4081 = vmatprep.subr.bf16.mxu0 %v3372
  %4082 = vmatpush2.bf16.msra.mxu0 %v3371
  %4083 = vmatprep.mubr.bf16.mxu0 %v1550
  %4084 = vmatmul.mubr.bf16.gmra.mxu0 %v1549
  %v4085 = vpop.f32.mrf.mxu0
  %v4086 = vadd.f32 %v4043, %v4085
  %v4087 = vpop.f32.mrf.mxu0
  %v4088 = vadd.f32 %v4045, %v4087
  %v4089 = vpop.f32.mrf.mxu0
  %v4090 = vadd.f32 %v4047, %v4089
  %v4091 = vpop.f32.mrf.mxu0
  %v4092 = vadd.f32 %v4049, %v4091
  %4093 = vdwg.mxu0
  %4094 = vmatprep.subr.bf16.mxu0 0
  %4095 = vmatpush1.bf16.msra.mxu0 0
  %4096 = vmatprep.subr.bf16.mxu0 0
  %4097 = vmatpush1.bf16.msra.mxu0 0
  %4098 = vmatprep.subr.bf16.mxu0 0
  %4099 = vmatpush1.bf16.msra.mxu0 0
  %4100 = vmatprep.subr.bf16.mxu0 0
  %4101 = vmatpush1.bf16.msra.mxu0 0
  %4102 = vmatprep.subr.bf16.mxu0 0
  %4103 = vmatpush1.bf16.msra.mxu0 0
  %4104 = vmatprep.subr.bf16.mxu0 0
  %4105 = vmatpush1.bf16.msra.mxu0 0
  %4106 = vmatprep.subr.bf16.mxu0 %v3435
  %4107 = vmatpush1.bf16.msra.mxu0 %v3434
  %4108 = vmatprep.subr.bf16.mxu0 %v3428
  %4109 = vmatpush1.bf16.msra.mxu0 %v3427
  %4110 = vmatprep.subr.bf16.mxu0 0
  %4111 = vmatpush2.bf16.msra.mxu0 0
  %4112 = vmatprep.subr.bf16.mxu0 0
  %4113 = vmatpush2.bf16.msra.mxu0 0
  %4114 = vmatprep.subr.bf16.mxu0 0
  %4115 = vmatpush2.bf16.msra.mxu0 0
  %4116 = vmatprep.subr.bf16.mxu0 0
  %4117 = vmatpush2.bf16.msra.mxu0 0
  %4118 = vmatprep.subr.bf16.mxu0 0
  %4119 = vmatpush2.bf16.msra.mxu0 0
  %4120 = vmatprep.subr.bf16.mxu0 0
  %4121 = vmatpush2.bf16.msra.mxu0 0
  %4122 = vmatprep.subr.bf16.mxu0 0
  %4123 = vmatpush2.bf16.msra.mxu0 0
  %4124 = vmatprep.subr.bf16.mxu0 0
  %4125 = vmatpush2.bf16.msra.mxu0 0
  %4126 = vmatprep.mubr.bf16.mxu0 0
  %4127 = vmatmul.mubr.bf16.gmra.mxu0 %v3791
  %v4128 = vpop.f32.mrf.mxu0
  %v4129 = vadd.f32 %v4086, %v4128
  %v4130 = vpop.f32.mrf.mxu0
  %v4131 = vadd.f32 %v4088, %v4130
  %v4132 = vpop.f32.mrf.mxu0
  %v4133 = vadd.f32 %v4090, %v4132
  %v4134 = vpop.f32.mrf.mxu0
  %v4135 = vadd.f32 %v4092, %v4134
  %4136 = vdwg.mxu0
  %4137 = vmatprep.subr.bf16.mxu0 %v3143
  %4138 = vmatpush1.bf16.msra.mxu0 %v3142
  %4139 = vmatprep.subr.bf16.mxu0 %v3136
  %4140 = vmatpush1.bf16.msra.mxu0 %v3135
  %4141 = vmatprep.subr.bf16.mxu0 %v3129
  %4142 = vmatpush1.bf16.msra.mxu0 %v3128
  %4143 = vmatprep.subr.bf16.mxu0 %v3122
  %4144 = vmatpush1.bf16.msra.mxu0 %v3121
  %4145 = vmatprep.subr.bf16.mxu0 %v3115
  %4146 = vmatpush1.bf16.msra.mxu0 %v3114
  %4147 = vmatprep.subr.bf16.mxu0 %v3108
  %4148 = vmatpush1.bf16.msra.mxu0 %v3107
  %4149 = vmatprep.subr.bf16.mxu0 %v3101
  %4150 = vmatpush1.bf16.msra.mxu0 %v3100
  %4151 = vmatprep.subr.bf16.mxu0 %v3094
  %4152 = vmatpush1.bf16.msra.mxu0 %v3093
  %4153 = vmatprep.subr.bf16.mxu0 %v3199
  %4154 = vmatpush2.bf16.msra.mxu0 %v3198
  %4155 = vmatprep.subr.bf16.mxu0 %v3192
  %4156 = vmatpush2.bf16.msra.mxu0 %v3191
  %4157 = vmatprep.subr.bf16.mxu0 %v3185
  %4158 = vmatpush2.bf16.msra.mxu0 %v3184
  %4159 = vmatprep.subr.bf16.mxu0 %v3178
  %4160 = vmatpush2.bf16.msra.mxu0 %v3177
  %4161 = vmatprep.subr.bf16.mxu0 %v3171
  %4162 = vmatpush2.bf16.msra.mxu0 %v3170
  %4163 = vmatprep.subr.bf16.mxu0 %v3164
  %4164 = vmatpush2.bf16.msra.mxu0 %v3163
  %4165 = vmatprep.subr.bf16.mxu0 %v3157
  %4166 = vmatpush2.bf16.msra.mxu0 %v3156
  %4167 = vmatprep.subr.bf16.mxu0 %v3150
  %4168 = vmatpush2.bf16.msra.mxu0 %v3149
  %4169 = vmatprep.mubr.bf16.mxu0 %v1546
  %4170 = vmatmul.mubr.bf16.gmra.mxu0 %v1545
  %v4171 = vpop.f32.mrf.mxu0
  %v4172 = vadd.f32 %v1973, %v4171
  %v4173 = vpop.f32.mrf.mxu0
  %v4174 = vadd.f32 %v1977, %v4173
  %v4175 = vpop.f32.mrf.mxu0
  %v4176 = vadd.f32 %v1973, %v4175
  %v4177 = vpop.f32.mrf.mxu0
  %v4178 = vadd.f32 %v1977, %v4177
  %4179 = vdwg.mxu0
  %4180 = vmatprep.subr.bf16.mxu0 %v3255
  %4181 = vmatpush1.bf16.msra.mxu0 %v3254
  %4182 = vmatprep.subr.bf16.mxu0 %v3248
  %4183 = vmatpush1.bf16.msra.mxu0 %v3247
  %4184 = vmatprep.subr.bf16.mxu0 %v3241
  %4185 = vmatpush1.bf16.msra.mxu0 %v3240
  %4186 = vmatprep.subr.bf16.mxu0 %v3234
  %4187 = vmatpush1.bf16.msra.mxu0 %v3233
  %4188 = vmatprep.subr.bf16.mxu0 %v3227
  %4189 = vmatpush1.bf16.msra.mxu0 %v3226
  %4190 = vmatprep.subr.bf16.mxu0 %v3220
  %4191 = vmatpush1.bf16.msra.mxu0 %v3219
  %4192 = vmatprep.subr.bf16.mxu0 %v3213
  %4193 = vmatpush1.bf16.msra.mxu0 %v3212
  %4194 = vmatprep.subr.bf16.mxu0 %v3206
  %4195 = vmatpush1.bf16.msra.mxu0 %v3205
  %4196 = vmatprep.subr.bf16.mxu0 %v3311
  %4197 = vmatpush2.bf16.msra.mxu0 %v3310
  %4198 = vmatprep.subr.bf16.mxu0 %v3304
  %4199 = vmatpush2.bf16.msra.mxu0 %v3303
  %4200 = vmatprep.subr.bf16.mxu0 %v3297
  %4201 = vmatpush2.bf16.msra.mxu0 %v3296
  %4202 = vmatprep.subr.bf16.mxu0 %v3290
  %4203 = vmatpush2.bf16.msra.mxu0 %v3289
  %4204 = vmatprep.subr.bf16.mxu0 %v3283
  %4205 = vmatpush2.bf16.msra.mxu0 %v3282
  %4206 = vmatprep.subr.bf16.mxu0 %v3276
  %4207 = vmatpush2.bf16.msra.mxu0 %v3275
  %4208 = vmatprep.subr.bf16.mxu0 %v3269
  %4209 = vmatpush2.bf16.msra.mxu0 %v3268
  %4210 = vmatprep.subr.bf16.mxu0 %v3262
  %4211 = vmatpush2.bf16.msra.mxu0 %v3261
  %4212 = vmatprep.mubr.bf16.mxu0 %v1548
  %4213 = vmatmul.mubr.bf16.gmra.mxu0 %v1547
  %v4214 = vpop.f32.mrf.mxu0
  %v4215 = vadd.f32 %v4172, %v4214
  %v4216 = vpop.f32.mrf.mxu0
  %v4217 = vadd.f32 %v4174, %v4216
  %v4218 = vpop.f32.mrf.mxu0
  %v4219 = vadd.f32 %v4176, %v4218
  %v4220 = vpop.f32.mrf.mxu0
  %v4221 = vadd.f32 %v4178, %v4220
  %4222 = vdwg.mxu0
  %4223 = vmatprep.subr.bf16.mxu0 %v3367
  %4224 = vmatpush1.bf16.msra.mxu0 %v3366
  %4225 = vmatprep.subr.bf16.mxu0 %v3360
  %4226 = vmatpush1.bf16.msra.mxu0 %v3359
  %4227 = vmatprep.subr.bf16.mxu0 %v3353
  %4228 = vmatpush1.bf16.msra.mxu0 %v3352
  %4229 = vmatprep.subr.bf16.mxu0 %v3346
  %4230 = vmatpush1.bf16.msra.mxu0 %v3345
  %4231 = vmatprep.subr.bf16.mxu0 %v3339
  %4232 = vmatpush1.bf16.msra.mxu0 %v3338
  %4233 = vmatprep.subr.bf16.mxu0 %v3332
  %4234 = vmatpush1.bf16.msra.mxu0 %v3331
  %4235 = vmatprep.subr.bf16.mxu0 %v3325
  %4236 = vmatpush1.bf16.msra.mxu0 %v3324
  %4237 = vmatprep.subr.bf16.mxu0 %v3318
  %4238 = vmatpush1.bf16.msra.mxu0 %v3317
  %4239 = vmatprep.subr.bf16.mxu0 %v3423
  %4240 = vmatpush2.bf16.msra.mxu0 %v3422
  %4241 = vmatprep.subr.bf16.mxu0 %v3416
  %4242 = vmatpush2.bf16.msra.mxu0 %v3415
  %4243 = vmatprep.subr.bf16.mxu0 %v3409
  %4244 = vmatpush2.bf16.msra.mxu0 %v3408
  %4245 = vmatprep.subr.bf16.mxu0 %v3402
  %4246 = vmatpush2.bf16.msra.mxu0 %v3401
  %4247 = vmatprep.subr.bf16.mxu0 %v3395
  %4248 = vmatpush2.bf16.msra.mxu0 %v3394
  %4249 = vmatprep.subr.bf16.mxu0 %v3388
  %4250 = vmatpush2.bf16.msra.mxu0 %v3387
  %4251 = vmatprep.subr.bf16.mxu0 %v3381
  %4252 = vmatpush2.bf16.msra.mxu0 %v3380
  %4253 = vmatprep.subr.bf16.mxu0 %v3374
  %4254 = vmatpush2.bf16.msra.mxu0 %v3373
  %4255 = vmatprep.mubr.bf16.mxu0 %v1550
  %4256 = vmatmul.mubr.bf16.gmra.mxu0 %v1549
  %v4257 = vpop.f32.mrf.mxu0
  %v4258 = vadd.f32 %v4215, %v4257
  %v4259 = vpop.f32.mrf.mxu0
  %v4260 = vadd.f32 %v4217, %v4259
  %v4261 = vpop.f32.mrf.mxu0
  %v4262 = vadd.f32 %v4219, %v4261
  %v4263 = vpop.f32.mrf.mxu0
  %v4264 = vadd.f32 %v4221, %v4263
  %4265 = vdwg.mxu0
  %4266 = vmatprep.subr.bf16.mxu0 0
  %4267 = vmatpush1.bf16.msra.mxu0 0
  %4268 = vmatprep.subr.bf16.mxu0 0
  %4269 = vmatpush1.bf16.msra.mxu0 0
  %4270 = vmatprep.subr.bf16.mxu0 0
  %4271 = vmatpush1.bf16.msra.mxu0 0
  %4272 = vmatprep.subr.bf16.mxu0 0
  %4273 = vmatpush1.bf16.msra.mxu0 0
  %4274 = vmatprep.subr.bf16.mxu0 0
  %4275 = vmatpush1.bf16.msra.mxu0 0
  %4276 = vmatprep.subr.bf16.mxu0 0
  %4277 = vmatpush1.bf16.msra.mxu0 0
  %4278 = vmatprep.subr.bf16.mxu0 %v3437
  %4279 = vmatpush1.bf16.msra.mxu0 %v3436
  %4280 = vmatprep.subr.bf16.mxu0 %v3430
  %4281 = vmatpush1.bf16.msra.mxu0 %v3429
  %4282 = vmatprep.subr.bf16.mxu0 0
  %4283 = vmatpush2.bf16.msra.mxu0 0
  %4284 = vmatprep.subr.bf16.mxu0 0
  %4285 = vmatpush2.bf16.msra.mxu0 0
  %4286 = vmatprep.subr.bf16.mxu0 0
  %4287 = vmatpush2.bf16.msra.mxu0 0
  %4288 = vmatprep.subr.bf16.mxu0 0
  %4289 = vmatpush2.bf16.msra.mxu0 0
  %4290 = vmatprep.subr.bf16.mxu0 0
  %4291 = vmatpush2.bf16.msra.mxu0 0
  %4292 = vmatprep.subr.bf16.mxu0 0
  %4293 = vmatpush2.bf16.msra.mxu0 0
  %4294 = vmatprep.subr.bf16.mxu0 0
  %4295 = vmatpush2.bf16.msra.mxu0 0
  %4296 = vmatprep.subr.bf16.mxu0 0
  %4297 = vmatpush2.bf16.msra.mxu0 0
  %4298 = vmatprep.mubr.bf16.mxu0 0
  %4299 = vmatmul.mubr.bf16.gmra.mxu0 %v3791
  %v4300 = vpop.f32.mrf.mxu0
  %v4301 = vadd.f32 %v4258, %v4300
  %v4302 = vpop.f32.mrf.mxu0
  %v4303 = vadd.f32 %v4260, %v4302
  %v4304 = vpop.f32.mrf.mxu0
  %v4305 = vadd.f32 %v4262, %v4304
  %v4306 = vpop.f32.mrf.mxu0
  %v4307 = vadd.f32 %v4264, %v4306
  %4308 = vdwg.mxu0
  %4309 = vmatprep.subr.bf16.mxu0 0
  %4310 = vmatpush1.bf16.msra.mxu0 %v3144
  %4311 = vmatprep.subr.bf16.mxu0 0
  %4312 = vmatpush1.bf16.msra.mxu0 %v3137
  %4313 = vmatprep.subr.bf16.mxu0 0
  %4314 = vmatpush1.bf16.msra.mxu0 %v3130
  %4315 = vmatprep.subr.bf16.mxu0 0
  %4316 = vmatpush1.bf16.msra.mxu0 %v3123
  %4317 = vmatprep.subr.bf16.mxu0 0
  %4318 = vmatpush1.bf16.msra.mxu0 %v3116
  %4319 = vmatprep.subr.bf16.mxu0 0
  %4320 = vmatpush1.bf16.msra.mxu0 %v3109
  %4321 = vmatprep.subr.bf16.mxu0 0
  %4322 = vmatpush1.bf16.msra.mxu0 %v3102
  %4323 = vmatprep.subr.bf16.mxu0 0
  %4324 = vmatpush1.bf16.msra.mxu0 %v3095
  %4325 = vmatprep.subr.bf16.mxu0 0
  %4326 = vmatpush2.bf16.msra.mxu0 %v3200
  %4327 = vmatprep.subr.bf16.mxu0 0
  %4328 = vmatpush2.bf16.msra.mxu0 %v3193
  %4329 = vmatprep.subr.bf16.mxu0 0
  %4330 = vmatpush2.bf16.msra.mxu0 %v3186
  %4331 = vmatprep.subr.bf16.mxu0 0
  %4332 = vmatpush2.bf16.msra.mxu0 %v3179
  %4333 = vmatprep.subr.bf16.mxu0 0
  %4334 = vmatpush2.bf16.msra.mxu0 %v3172
  %4335 = vmatprep.subr.bf16.mxu0 0
  %4336 = vmatpush2.bf16.msra.mxu0 %v3165
  %4337 = vmatprep.subr.bf16.mxu0 0
  %4338 = vmatpush2.bf16.msra.mxu0 %v3158
  %4339 = vmatprep.subr.bf16.mxu0 0
  %4340 = vmatpush2.bf16.msra.mxu0 %v3151
  %4341 = vmatprep.mubr.bf16.mxu0 %v1546
  %4342 = vmatmul.mubr.bf16.gmra.mxu0 %v1545
  %v4343 = vpop.f32.mrf.mxu0
  %v4344 = vadd.f32 %v1981, %v4343
  %v4345 = vpop.f32.mrf.mxu0
  %v4346 = vpop.f32.mrf.mxu0
  %v4347 = vadd.f32 %v1981, %v4346
  %v4348 = vpop.f32.mrf.mxu0
  %4349 = vdwg.mxu0
  %4350 = vmatprep.subr.bf16.mxu0 0
  %4351 = vmatpush1.bf16.msra.mxu0 %v3256
  %4352 = vmatprep.subr.bf16.mxu0 0
  %4353 = vmatpush1.bf16.msra.mxu0 %v3249
  %4354 = vmatprep.subr.bf16.mxu0 0
  %4355 = vmatpush1.bf16.msra.mxu0 %v3242
  %4356 = vmatprep.subr.bf16.mxu0 0
  %4357 = vmatpush1.bf16.msra.mxu0 %v3235
  %4358 = vmatprep.subr.bf16.mxu0 0
  %4359 = vmatpush1.bf16.msra.mxu0 %v3228
  %4360 = vmatprep.subr.bf16.mxu0 0
  %4361 = vmatpush1.bf16.msra.mxu0 %v3221
  %4362 = vmatprep.subr.bf16.mxu0 0
  %4363 = vmatpush1.bf16.msra.mxu0 %v3214
  %4364 = vmatprep.subr.bf16.mxu0 0
  %4365 = vmatpush1.bf16.msra.mxu0 %v3207
  %4366 = vmatprep.subr.bf16.mxu0 0
  %4367 = vmatpush2.bf16.msra.mxu0 %v3312
  %4368 = vmatprep.subr.bf16.mxu0 0
  %4369 = vmatpush2.bf16.msra.mxu0 %v3305
  %4370 = vmatprep.subr.bf16.mxu0 0
  %4371 = vmatpush2.bf16.msra.mxu0 %v3298
  %4372 = vmatprep.subr.bf16.mxu0 0
  %4373 = vmatpush2.bf16.msra.mxu0 %v3291
  %4374 = vmatprep.subr.bf16.mxu0 0
  %4375 = vmatpush2.bf16.msra.mxu0 %v3284
  %4376 = vmatprep.subr.bf16.mxu0 0
  %4377 = vmatpush2.bf16.msra.mxu0 %v3277
  %4378 = vmatprep.subr.bf16.mxu0 0
  %4379 = vmatpush2.bf16.msra.mxu0 %v3270
  %4380 = vmatprep.subr.bf16.mxu0 0
  %4381 = vmatpush2.bf16.msra.mxu0 %v3263
  %4382 = vmatprep.mubr.bf16.mxu0 %v1548
  %4383 = vmatmul.mubr.bf16.gmra.mxu0 %v1547
  %v4384 = vpop.f32.mrf.mxu0
  %v4385 = vadd.f32 %v4344, %v4384
  %v4386 = vpop.f32.mrf.mxu0
  %v4387 = vpop.f32.mrf.mxu0
  %v4388 = vadd.f32 %v4347, %v4387
  %v4389 = vpop.f32.mrf.mxu0
  %4390 = vdwg.mxu0
  %4391 = vmatprep.subr.bf16.mxu0 0
  %4392 = vmatpush1.bf16.msra.mxu0 %v3368
  %4393 = vmatprep.subr.bf16.mxu0 0
  %4394 = vmatpush1.bf16.msra.mxu0 %v3361
  %4395 = vmatprep.subr.bf16.mxu0 0
  %4396 = vmatpush1.bf16.msra.mxu0 %v3354
  %4397 = vmatprep.subr.bf16.mxu0 0
  %4398 = vmatpush1.bf16.msra.mxu0 %v3347
  %4399 = vmatprep.subr.bf16.mxu0 0
  %4400 = vmatpush1.bf16.msra.mxu0 %v3340
  %4401 = vmatprep.subr.bf16.mxu0 0
  %4402 = vmatpush1.bf16.msra.mxu0 %v3333
  %4403 = vmatprep.subr.bf16.mxu0 0
  %4404 = vmatpush1.bf16.msra.mxu0 %v3326
  %4405 = vmatprep.subr.bf16.mxu0 0
  %4406 = vmatpush1.bf16.msra.mxu0 %v3319
  %4407 = vmatprep.subr.bf16.mxu0 0
  %4408 = vmatpush2.bf16.msra.mxu0 %v3424
  %4409 = vmatprep.subr.bf16.mxu0 0
  %4410 = vmatpush2.bf16.msra.mxu0 %v3417
  %4411 = vmatprep.subr.bf16.mxu0 0
  %4412 = vmatpush2.bf16.msra.mxu0 %v3410
  %4413 = vmatprep.subr.bf16.mxu0 0
  %4414 = vmatpush2.bf16.msra.mxu0 %v3403
  %4415 = vmatprep.subr.bf16.mxu0 0
  %4416 = vmatpush2.bf16.msra.mxu0 %v3396
  %4417 = vmatprep.subr.bf16.mxu0 0
  %4418 = vmatpush2.bf16.msra.mxu0 %v3389
  %4419 = vmatprep.subr.bf16.mxu0 0
  %4420 = vmatpush2.bf16.msra.mxu0 %v3382
  %4421 = vmatprep.subr.bf16.mxu0 0
  %4422 = vmatpush2.bf16.msra.mxu0 %v3375
  %4423 = vmatprep.mubr.bf16.mxu0 %v1550
  %4424 = vmatmul.mubr.bf16.gmra.mxu0 %v1549
  %v4425 = vpop.f32.mrf.mxu0
  %v4426 = vadd.f32 %v4385, %v4425
  %v4427 = vpop.f32.mrf.mxu0
  %v4428 = vpop.f32.mrf.mxu0
  %v4429 = vadd.f32 %v4388, %v4428
  %v4430 = vpop.f32.mrf.mxu0
  %4431 = vdwg.mxu0
  %4432 = vmatprep.subr.bf16.mxu0 0
  %4433 = vmatpush1.bf16.msra.mxu0 0
  %4434 = vmatprep.subr.bf16.mxu0 0
  %4435 = vmatpush1.bf16.msra.mxu0 0
  %4436 = vmatprep.subr.bf16.mxu0 0
  %4437 = vmatpush1.bf16.msra.mxu0 0
  %4438 = vmatprep.subr.bf16.mxu0 0
  %4439 = vmatpush1.bf16.msra.mxu0 0
  %4440 = vmatprep.subr.bf16.mxu0 0
  %4441 = vmatpush1.bf16.msra.mxu0 0
  %4442 = vmatprep.subr.bf16.mxu0 0
  %4443 = vmatpush1.bf16.msra.mxu0 0
  %4444 = vmatprep.subr.bf16.mxu0 0
  %4445 = vmatpush1.bf16.msra.mxu0 %v3438
  %4446 = vmatprep.subr.bf16.mxu0 0
  %4447 = vmatpush1.bf16.msra.mxu0 %v3431
  %4448 = vmatprep.subr.bf16.mxu0 0
  %4449 = vmatpush2.bf16.msra.mxu0 0
  %4450 = vmatprep.subr.bf16.mxu0 0
  %4451 = vmatpush2.bf16.msra.mxu0 0
  %4452 = vmatprep.subr.bf16.mxu0 0
  %4453 = vmatpush2.bf16.msra.mxu0 0
  %4454 = vmatprep.subr.bf16.mxu0 0
  %4455 = vmatpush2.bf16.msra.mxu0 0
  %4456 = vmatprep.subr.bf16.mxu0 0
  %4457 = vmatpush2.bf16.msra.mxu0 0
  %4458 = vmatprep.subr.bf16.mxu0 0
  %4459 = vmatpush2.bf16.msra.mxu0 0
  %4460 = vmatprep.subr.bf16.mxu0 0
  %4461 = vmatpush2.bf16.msra.mxu0 0
  %4462 = vmatprep.subr.bf16.mxu0 0
  %4463 = vmatpush2.bf16.msra.mxu0 0
  %4464 = vmatprep.mubr.bf16.mxu0 0
  %4465 = vmatmul.mubr.bf16.gmra.mxu0 %v3791
  %v4466 = vpop.f32.mrf.mxu0
  %v4467 = vadd.f32 %v4426, %v4466
  %v4468 = vpop.f32.mrf.mxu0
  %v4469 = vpop.f32.mrf.mxu0
  %v4470 = vadd.f32 %v4429, %v4469
  %v4471 = vpop.f32.mrf.mxu0
  %4472 = vdwg.mxu0
  %v4473 = vmax.f32 %v3957, 0.0
  %v4474 = vmax.f32 %v3959, 0.0
  %v4475 = vmax.f32 %v4129, 0.0
  %v4476 = vmax.f32 %v4131, 0.0
  %v4477 = vmax.f32 %v4301, 0.0
  %v4478 = vmax.f32 %v4303, 0.0
  %v4479 = vmax.f32 %v4467, 0.0
  %v4480 = vmax.f32 %v3961, 0.0
  %v4481 = vmax.f32 %v3963, 0.0
  %v4482 = vmax.f32 %v4133, 0.0
  %v4483 = vmax.f32 %v4135, 0.0
  %v4484 = vmax.f32 %v4305, 0.0
  %v4485 = vmax.f32 %v4307, 0.0
  %v4486 = vmax.f32 %v4470, 0.0
  %v4487 = vpack.c.bf16 %v4480, %v4473
  %v4488 = vpack.c.bf16 %v4481, %v4474
  %v4489 = vpack.c.bf16 %v4482, %v4475
  %v4490 = vpack.c.bf16 %v4483, %v4476
  %v4491 = vpack.c.bf16 %v4484, %v4477
  %v4492 = vpack.c.bf16 %v4485, %v4478
  %v4493 = vpack.c.bf16 %v4486, %v4479
  %v4494 = vld [vmem:[%s5] sm:$0xff]
  %v4495 = vld [vmem:[%s5 + $0x8] sm:$0xff]
  %v4496 = vld [vmem:[%s5 + $0x10] sm:$0xff]
  %v4497 = vld [vmem:[%s5 + $0x18] sm:$0xff]
  %v4498 = vld [vmem:[%s5 + $0x20] sm:$0xff]
  %v4499 = vld [vmem:[%s5 + $0x28] sm:$0xff]
  %v4500 = vld [vmem:[%s5 + $0x30] sm:$0xff]
  %v4501 = vld [vmem:[%s5 + $0x38] sm:$0xff]
  %v4502 = vld [vmem:[%s5 + $0x40] sm:$0xff]
  %v4503 = vld [vmem:[%s5 + $0x48] sm:$0xff]
  %v4504 = vld [vmem:[%s5 + $0x50] sm:$0xff]
  %v4505 = vld [vmem:[%s5 + $0x58] sm:$0xff]
  %v4506 = vld [vmem:[%s5 + $0x60] sm:$0xff]
  %v4507 = vld [vmem:[%s5 + $0x68] sm:$0xff]
  %v4508 = vld [vmem:[%s5 + $0x70] sm:$0xff]
  %v4509 = vld [vmem:[%s5 + $0x78] sm:$0xff]
  %v4510 = vld [vmem:[%s5 + $0x80] sm:$0xff]
  %v4511 = vld [vmem:[%s5 + $0x88] sm:$0xff]
  %v4512 = vld [vmem:[%s5 + $0x90] sm:$0xff]
  %v4513 = vld [vmem:[%s5 + $0x98] sm:$0xff]
  %v4514 = vld [vmem:[%s5 + $0xa0] sm:$0xff]
  %v4515 = vld [vmem:[%s5 + $0xa8] sm:$0xff]
  %v4516 = vld [vmem:[%s5 + $0xb0] sm:$0xff]
  %v4517 = vld [vmem:[%s5 + $0xb8] sm:$0xff]
  %v4518 = vld [vmem:[%s5 + $0xc0] sm:$0xff]
  %v4519 = vld [vmem:[%s5 + $0xc8] sm:$0xff]
  %v4520 = vld [vmem:[%s5 + $0xd0] sm:$0xff]
  %v4521 = vld [vmem:[%s5 + $0xd8] sm:$0xff]
  %v4522 = vld [vmem:[%s5 + $0xe0] sm:$0xff]
  %v4523 = vld [vmem:[%s5 + $0xe8] sm:$0xff]
  %v4524 = vld [vmem:[%s5 + $0xf0] sm:$0xff]
  %v4525 = vld [vmem:[%s5 + $0xf8] sm:$0xff]
  %v4526 = vld [vmem:[%s5 + $0x100] sm:$0xff]
  %v4527 = vld [vmem:[%s5 + $0x108] sm:$0xff]
  %v4528 = vld [vmem:[%s5 + $0x110] sm:$0xff]
  %v4529 = vld [vmem:[%s5 + $0x118] sm:$0xff]
  %v4530 = vld [vmem:[%s5 + $0x120] sm:$0xff]
  %v4531 = vld [vmem:[%s5 + $0x128] sm:$0xff]
  %v4532 = vld [vmem:[%s5 + $0x130] sm:$0xff]
  %v4533 = vld [vmem:[%s5 + $0x138] sm:$0xff]
  %v4534 = vld [vmem:[%s5 + $0x140] sm:$0xff]
  %v4535 = vld [vmem:[%s5 + $0x148] sm:$0xff]
  %v4536 = vld [vmem:[%s5 + $0x150] sm:$0xff]
  %v4537 = vld [vmem:[%s5 + $0x158] sm:$0xff]
  %v4538 = vld [vmem:[%s5 + $0x160] sm:$0xff]
  %v4539 = vld [vmem:[%s5 + $0x168] sm:$0xff]
  %v4540 = vld [vmem:[%s5 + $0x170] sm:$0xff]
  %v4541 = vld [vmem:[%s5 + $0x178] sm:$0xff]
  %v4542 = vld [vmem:[%s5 + $0x180] sm:$0xff]
  %v4543 = vld [vmem:[%s5 + $0x188] sm:$0xff]
  %v4544 = vld [vmem:[%s5 + $0x190] sm:$0xff]
  %v4545 = vld [vmem:[%s5 + $0x198] sm:$0xff]
  %v4546 = vld [vmem:[%s5 + $0x1a0] sm:$0xff]
  %v4547 = vld [vmem:[%s5 + $0x1a8] sm:$0xff]
  %v4548 = vld [vmem:[%s5 + $0x1b0] sm:$0xff]
  %v4549 = vld [vmem:[%s5 + $0x1b8] sm:$0xff]
  %v4550 = vld [vmem:[%s5 + $0x1c0] sm:$0xff]
  %v4551 = vld [vmem:[%s5 + $0x1c8] sm:$0xff]
  %v4552 = vld [vmem:[%s5 + $0x1d0] sm:$0xff]
  %v4553 = vld [vmem:[%s5 + $0x1d8] sm:$0xff]
  %v4554 = vld [vmem:[%s5 + $0x1e0] sm:$0xff]
  %v4555 = vld [vmem:[%s5 + $0x1e8] sm:$0xff]
  %v4556 = vld [vmem:[%s5 + $0x1f0] sm:$0xff]
  %v4557 = vld [vmem:[%s5 + $0x1f8] sm:$0xff]
  %v4558 = vld [vmem:[%s5 + $0x200] sm:$0xff]
  %v4559 = vld [vmem:[%s5 + $0x208] sm:$0xff]
  %v4560 = vld [vmem:[%s5 + $0x210] sm:$0xff]
  %v4561 = vld [vmem:[%s5 + $0x218] sm:$0xff]
  %v4562 = vld [vmem:[%s5 + $0x220] sm:$0xff]
  %v4563 = vld [vmem:[%s5 + $0x228] sm:$0xff]
  %v4564 = vld [vmem:[%s5 + $0x230] sm:$0xff]
  %v4565 = vld [vmem:[%s5 + $0x238] sm:$0xff]
  %v4566 = vld [vmem:[%s5 + $0x240] sm:$0xff]
  %v4567 = vld [vmem:[%s5 + $0x248] sm:$0xff]
  %v4568 = vld [vmem:[%s5 + $0x250] sm:$0xff]
  %v4569 = vld [vmem:[%s5 + $0x258] sm:$0xff]
  %v4570 = vld [vmem:[%s5 + $0x260] sm:$0xff]
  %v4571 = vld [vmem:[%s5 + $0x268] sm:$0xff]
  %v4572 = vld [vmem:[%s5 + $0x270] sm:$0xff]
  %v4573 = vld [vmem:[%s5 + $0x278] sm:$0xff]
  %v4574 = vld [vmem:[%s5 + $0x280] sm:$0xff]
  %v4575 = vld [vmem:[%s5 + $0x288] sm:$0xff]
  %v4576 = vld [vmem:[%s5 + $0x290] sm:$0xff]
  %v4577 = vld [vmem:[%s5 + $0x298] sm:$0xff]
  %v4578 = vld [vmem:[%s5 + $0x2a0] sm:$0xff]
  %v4579 = vld [vmem:[%s5 + $0x2a8] sm:$0xff]
  %v4580 = vld [vmem:[%s5 + $0x2b0] sm:$0xff]
  %v4581 = vld [vmem:[%s5 + $0x2b8] sm:$0xff]
  %v4582 = vld [vmem:[%s5 + $0x2c0] sm:$0xff]
  %v4583 = vld [vmem:[%s5 + $0x2c8] sm:$0xff]
  %v4584 = vld [vmem:[%s5 + $0x2d0] sm:$0xff]
  %v4585 = vld [vmem:[%s5 + $0x2d8] sm:$0xff]
  %v4586 = vld [vmem:[%s5 + $0x2e0] sm:$0xff]
  %v4587 = vld [vmem:[%s5 + $0x2e8] sm:$0xff]
  %v4588 = vld [vmem:[%s5 + $0x2f0] sm:$0xff]
  %v4589 = vld [vmem:[%s5 + $0x2f8] sm:$0xff]
  %v4590 = vld [vmem:[%s5 + $0x300] sm:$0xff]
  %v4591 = vld [vmem:[%s5 + $0x308] sm:$0xff]
  %v4592 = vld [vmem:[%s5 + $0x310] sm:$0xff]
  %v4593 = vld [vmem:[%s5 + $0x318] sm:$0xff]
  %v4594 = vld [vmem:[%s5 + $0x320] sm:$0xff]
  %v4595 = vld [vmem:[%s5 + $0x328] sm:$0xff]
  %v4596 = vld [vmem:[%s5 + $0x330] sm:$0xff]
  %v4597 = vld [vmem:[%s5 + $0x338] sm:$0xff]
  %v4598 = vld [vmem:[%s5 + $0x340] sm:$0xff]
  %v4599 = vld [vmem:[%s5 + $0x348] sm:$0xff]
  %v4600 = vld [vmem:[%s5 + $0x350] sm:$0xff]
  %v4601 = vld [vmem:[%s5 + $0x358] sm:$0xff]
  %v4602 = vld [vmem:[%s5 + $0x360] sm:$0xff]
  %v4603 = vld [vmem:[%s5 + $0x368] sm:$0xff]
  %v4604 = vld [vmem:[%s5 + $0x370] sm:$0xff]
  %v4605 = vld [vmem:[%s5 + $0x378] sm:$0xff]
  %v4606 = vld [vmem:[%s5 + $0x380] sm:$0xff]
  %v4607 = vld [vmem:[%s5 + $0x388] sm:$0xff]
  %v4608 = vld [vmem:[%s5 + $0x390] sm:$0xff]
  %v4609 = vld [vmem:[%s5 + $0x398] sm:$0xff]
  %v4610 = vld [vmem:[%s5 + $0x3a0] sm:$0xff]
  %v4611 = vld [vmem:[%s5 + $0x3a8] sm:$0xff]
  %v4612 = vld [vmem:[%s5 + $0x3b0] sm:$0xff]
  %v4613 = vld [vmem:[%s5 + $0x3b8] sm:$0xff]
  %v4614 = vld [vmem:[%s5 + $0x3c0] sm:$0xff]
  %v4615 = vld [vmem:[%s5 + $0x3c8] sm:$0xff]
  %v4616 = vld [vmem:[%s5 + $0x3d0] sm:$0xff]
  %v4617 = vld [vmem:[%s5 + $0x3d8] sm:$0xff]
  %v4618 = vld [vmem:[%s5 + $0x3e0] sm:$0xff]
  %v4619 = vld [vmem:[%s5 + $0x3e8] sm:$0xff]
  %v4620 = vld [vmem:[%s5 + $0x3f0] sm:$0xff]
  %v4621 = vld [vmem:[%s5 + $0x3f8] sm:$0xff]
  %v4622 = vld [vmem:[%s5 + $0x400] sm:$0xff]
  %v4623 = vld [vmem:[%s5 + $0x408] sm:$0xff]
  %v4624 = vld [vmem:[%s5 + $0x410] sm:$0xff]
  %v4625 = vld [vmem:[%s5 + $0x418] sm:$0xff]
  %v4626 = vld [vmem:[%s5 + $0x420] sm:$0xff]
  %v4627 = vld [vmem:[%s5 + $0x428] sm:$0xff]
  %v4628 = vld [vmem:[%s5 + $0x430] sm:$0xff]
  %v4629 = vld [vmem:[%s5 + $0x438] sm:$0xff]
  %v4630 = vld [vmem:[%s5 + $0x440] sm:$0xff]
  %v4631 = vld [vmem:[%s5 + $0x448] sm:$0xff]
  %v4632 = vld [vmem:[%s5 + $0x450] sm:$0xff]
  %v4633 = vld [vmem:[%s5 + $0x458] sm:$0xff]
  %v4634 = vld [vmem:[%s5 + $0x460] sm:$0xff]
  %v4635 = vld [vmem:[%s5 + $0x468] sm:$0xff]
  %v4636 = vld [vmem:[%s5 + $0x470] sm:$0xff]
  %v4637 = vld [vmem:[%s5 + $0x478] sm:$0xff]
  %v4638 = vld [vmem:[%s5 + $0x480] sm:$0xff]
  %v4639 = vld [vmem:[%s5 + $0x488] sm:$0xff]
  %v4640 = vld [vmem:[%s5 + $0x490] sm:$0xff]
  %v4641 = vld [vmem:[%s5 + $0x498] sm:$0xff]
  %v4642 = vld [vmem:[%s5 + $0x4a0] sm:$0xff]
  %v4643 = vld [vmem:[%s5 + $0x4a8] sm:$0xff]
  %v4644 = vld [vmem:[%s5 + $0x4b0] sm:$0xff]
  %v4645 = vld [vmem:[%s5 + $0x4b8] sm:$0xff]
  %v4646 = vld [vmem:[%s5 + $0x4c0] sm:$0xff]
  %v4647 = vld [vmem:[%s5 + $0x4c8] sm:$0xff]
  %v4648 = vld [vmem:[%s5 + $0x4d0] sm:$0xff]
  %v4649 = vld [vmem:[%s5 + $0x4d8] sm:$0xff]
  %v4650 = vld [vmem:[%s5 + $0x4e0] sm:$0xff]
  %v4651 = vld [vmem:[%s5 + $0x4e8] sm:$0xff]
  %v4652 = vld [vmem:[%s5 + $0x4f0] sm:$0xff]
  %v4653 = vld [vmem:[%s5 + $0x4f8] sm:$0xff]
  %v4654 = vld [vmem:[%s5 + $0x500] sm:$0xff]
  %v4655 = vld [vmem:[%s5 + $0x508] sm:$0xff]
  %v4656 = vld [vmem:[%s5 + $0x510] sm:$0xff]
  %v4657 = vld [vmem:[%s5 + $0x518] sm:$0xff]
  %v4658 = vld [vmem:[%s5 + $0x520] sm:$0xff]
  %v4659 = vld [vmem:[%s5 + $0x528] sm:$0xff]
  %v4660 = vld [vmem:[%s5 + $0x530] sm:$0xff]
  %v4661 = vld [vmem:[%s5 + $0x538] sm:$0xff]
  %v4662 = vld [vmem:[%s5 + $0x540] sm:$0xff]
  %v4663 = vld [vmem:[%s5 + $0x548] sm:$0xff]
  %v4664 = vld [vmem:[%s5 + $0x550] sm:$0xff]
  %v4665 = vld [vmem:[%s5 + $0x558] sm:$0xff]
  %v4666 = vld [vmem:[%s5 + $0x560] sm:$0xff]
  %v4667 = vld [vmem:[%s5 + $0x568] sm:$0xff]
  %v4668 = vld [vmem:[%s5 + $0x570] sm:$0xff]
  %v4669 = vld [vmem:[%s5 + $0x578] sm:$0xff]
  %v4670 = vld [vmem:[%s5 + $0x580] sm:$0xff]
  %v4671 = vld [vmem:[%s5 + $0x588] sm:$0xff]
  %v4672 = vld [vmem:[%s5 + $0x590] sm:$0xff]
  %v4673 = vld [vmem:[%s5 + $0x598] sm:$0xff]
  %v4674 = vld [vmem:[%s5 + $0x5a0] sm:$0xff]
  %v4675 = vld [vmem:[%s5 + $0x5a8] sm:$0xff]
  %v4676 = vld [vmem:[%s5 + $0x5b0] sm:$0xff]
  %v4677 = vld [vmem:[%s5 + $0x5b8] sm:$0xff]
  %v4678 = vld [vmem:[%s5 + $0x5c0] sm:$0xff]
  %v4679 = vld [vmem:[%s5 + $0x5c8] sm:$0xff]
  %v4680 = vld [vmem:[%s5 + $0x5d0] sm:$0xff]
  %v4681 = vld [vmem:[%s5 + $0x5d8] sm:$0xff]
  %v4682 = vld [vmem:[%s5 + $0x5e0] sm:$0xff]
  %v4683 = vld [vmem:[%s5 + $0x5e8] sm:$0xff]
  %v4684 = vld [vmem:[%s5 + $0x5f0] sm:$0xff]
  %v4685 = vld [vmem:[%s5 + $0x5f8] sm:$0xff]
  %v4686 = vld [vmem:[%s5 + $0x600] sm:$0xff]
  %v4687 = vld [vmem:[%s5 + $0x608] sm:$0xff]
  %v4688 = vld [vmem:[%s5 + $0x610] sm:$0xff]
  %v4689 = vld [vmem:[%s5 + $0x618] sm:$0xff]
  %v4690 = vld [vmem:[%s5 + $0x620] sm:$0xff]
  %v4691 = vld [vmem:[%s5 + $0x628] sm:$0xff]
  %v4692 = vld [vmem:[%s5 + $0x630] sm:$0xff]
  %v4693 = vld [vmem:[%s5 + $0x638] sm:$0xff]
  %v4694 = vld [vmem:[%s6] sm:$0xf]
  %v4696 = vlaneseq
  %v4697 = vshrl.u32 %v4696, 7
  %v4698 = vsub.s32 0, %v4697
  %v4699 = vrot.slane %v4694, %v4698
  %v4700 = vlaneseq
  %v4701 = vshrl.u32 %v4700, 7
  %v4702 = vsub.s32 1, %v4701
  %v4703 = vrot.slane %v4694, %v4702
  %v4704 = vlaneseq
  %v4705 = vshrl.u32 %v4704, 7
  %v4706 = vsub.s32 2, %v4705
  %v4707 = vrot.slane %v4694, %v4706
  %v4708 = vlaneseq
  %v4709 = vshrl.u32 %v4708, 7
  %v4710 = vsub.s32 3, %v4709
  %v4711 = vrot.slane %v4694, %v4710
  %v4916 = vunpack.c.l.b16 %v4494
  %v4917 = vunpack.c.h.b16 %v4494
  %v4918 = vunpack.c.l.b16 %v4495
  %v4919 = vunpack.c.h.b16 %v4495
  %v4920 = vunpack.c.l.b16 %v4496
  %v4921 = vunpack.c.h.b16 %v4496
  %v4922 = vunpack.c.l.b16 %v4497
  %v4923 = vunpack.c.h.b16 %v4497
  %v4924 = vunpack.c.l.b16 %v4498
  %v4925 = vunpack.c.h.b16 %v4498
  %v4926 = vunpack.c.l.b16 %v4499
  %v4927 = vunpack.c.h.b16 %v4499
  %v4928 = vunpack.c.l.b16 %v4500
  %v4929 = vunpack.c.h.b16 %v4500
  %v4930 = vunpack.c.l.b16 %v4501
  %v4931 = vunpack.c.h.b16 %v4501
  %v4932 = vunpack.c.l.b16 %v4502
  %v4933 = vunpack.c.h.b16 %v4502
  %v4934 = vunpack.c.l.b16 %v4503
  %v4935 = vunpack.c.h.b16 %v4503
  %v4936 = vunpack.c.l.b16 %v4504
  %v4937 = vunpack.c.h.b16 %v4504
  %v4938 = vunpack.c.l.b16 %v4505
  %v4939 = vunpack.c.h.b16 %v4505
  %v4940 = vunpack.c.l.b16 %v4506
  %v4941 = vunpack.c.h.b16 %v4506
  %v4942 = vunpack.c.l.b16 %v4507
  %v4943 = vunpack.c.h.b16 %v4507
  %v4944 = vunpack.c.l.b16 %v4508
  %v4945 = vunpack.c.h.b16 %v4508
  %v4946 = vunpack.c.l.b16 %v4509
  %v4947 = vunpack.c.h.b16 %v4509
  %v4948 = vunpack.c.l.b16 %v4510
  %v4949 = vunpack.c.h.b16 %v4510
  %v4950 = vunpack.c.l.b16 %v4511
  %v4951 = vunpack.c.h.b16 %v4511
  %v4952 = vunpack.c.l.b16 %v4512
  %v4953 = vunpack.c.h.b16 %v4512
  %v4954 = vunpack.c.l.b16 %v4513
  %v4955 = vunpack.c.h.b16 %v4513
  %v4956 = vunpack.c.l.b16 %v4514
  %v4957 = vunpack.c.h.b16 %v4514
  %v4958 = vunpack.c.l.b16 %v4515
  %v4959 = vunpack.c.h.b16 %v4515
  %v4960 = vunpack.c.l.b16 %v4516
  %v4961 = vunpack.c.h.b16 %v4516
  %v4962 = vunpack.c.l.b16 %v4517
  %v4963 = vunpack.c.h.b16 %v4517
  %v4964 = vunpack.c.l.b16 %v4518
  %v4965 = vunpack.c.h.b16 %v4518
  %v4966 = vunpack.c.l.b16 %v4519
  %v4967 = vunpack.c.h.b16 %v4519
  %v4968 = vunpack.c.l.b16 %v4520
  %v4969 = vunpack.c.h.b16 %v4520
  %v4970 = vunpack.c.l.b16 %v4521
  %v4971 = vunpack.c.h.b16 %v4521
  %v4972 = vunpack.c.l.b16 %v4522
  %v4973 = vunpack.c.h.b16 %v4522
  %v4974 = vunpack.c.l.b16 %v4523
  %v4975 = vunpack.c.h.b16 %v4523
  %v4976 = vunpack.c.l.b16 %v4524
  %v4977 = vunpack.c.h.b16 %v4524
  %v4978 = vunpack.c.l.b16 %v4525
  %v4979 = vunpack.c.h.b16 %v4525
  %v4980 = vunpack.c.l.b16 %v4526
  %v4981 = vunpack.c.h.b16 %v4526
  %v4982 = vunpack.c.l.b16 %v4527
  %v4983 = vunpack.c.h.b16 %v4527
  %v4984 = vunpack.c.l.b16 %v4528
  %v4985 = vunpack.c.h.b16 %v4528
  %v4986 = vunpack.c.l.b16 %v4529
  %v4987 = vunpack.c.h.b16 %v4529
  %v4988 = vunpack.c.l.b16 %v4530
  %v4989 = vunpack.c.h.b16 %v4530
  %v4990 = vunpack.c.l.b16 %v4531
  %v4991 = vunpack.c.h.b16 %v4531
  %v4992 = vunpack.c.l.b16 %v4532
  %v4993 = vunpack.c.h.b16 %v4532
  %v4994 = vunpack.c.l.b16 %v4533
  %v4995 = vunpack.c.h.b16 %v4533
  %v4996 = vunpack.c.l.b16 %v4534
  %v4997 = vunpack.c.h.b16 %v4534
  %v4998 = vunpack.c.l.b16 %v4535
  %v4999 = vunpack.c.h.b16 %v4535
  %v5000 = vunpack.c.l.b16 %v4536
  %v5001 = vunpack.c.h.b16 %v4536
  %v5002 = vunpack.c.l.b16 %v4537
  %v5003 = vunpack.c.h.b16 %v4537
  %v5004 = vunpack.c.l.b16 %v4538
  %v5005 = vunpack.c.h.b16 %v4538
  %v5006 = vunpack.c.l.b16 %v4539
  %v5007 = vunpack.c.h.b16 %v4539
  %v5008 = vunpack.c.l.b16 %v4540
  %v5009 = vunpack.c.h.b16 %v4540
  %v5010 = vunpack.c.l.b16 %v4541
  %v5011 = vunpack.c.h.b16 %v4541
  %v5012 = vunpack.c.l.b16 %v4542
  %v5013 = vunpack.c.h.b16 %v4542
  %v5014 = vunpack.c.l.b16 %v4543
  %v5015 = vunpack.c.h.b16 %v4543
  %v5016 = vunpack.c.l.b16 %v4544
  %v5017 = vunpack.c.h.b16 %v4544
  %v5018 = vunpack.c.l.b16 %v4545
  %v5019 = vunpack.c.h.b16 %v4545
  %v5020 = vunpack.c.l.b16 %v4546
  %v5021 = vunpack.c.h.b16 %v4546
  %v5022 = vunpack.c.l.b16 %v4547
  %v5023 = vunpack.c.h.b16 %v4547
  %v5024 = vunpack.c.l.b16 %v4548
  %v5025 = vunpack.c.h.b16 %v4548
  %v5026 = vunpack.c.l.b16 %v4549
  %v5027 = vunpack.c.h.b16 %v4549
  %v5028 = vunpack.c.l.b16 %v4550
  %v5029 = vunpack.c.h.b16 %v4550
  %v5030 = vunpack.c.l.b16 %v4551
  %v5031 = vunpack.c.h.b16 %v4551
  %v5032 = vunpack.c.l.b16 %v4552
  %v5033 = vunpack.c.h.b16 %v4552
  %v5034 = vunpack.c.l.b16 %v4553
  %v5035 = vunpack.c.h.b16 %v4553
  %v5036 = vunpack.c.l.b16 %v4554
  %v5037 = vunpack.c.h.b16 %v4554
  %v5038 = vunpack.c.l.b16 %v4555
  %v5039 = vunpack.c.h.b16 %v4555
  %v5040 = vunpack.c.l.b16 %v4556
  %v5041 = vunpack.c.h.b16 %v4556
  %v5042 = vunpack.c.l.b16 %v4557
  %v5043 = vunpack.c.h.b16 %v4557
  %v5044 = vunpack.c.l.b16 %v4558
  %v5045 = vunpack.c.h.b16 %v4558
  %v5046 = vunpack.c.l.b16 %v4559
  %v5047 = vunpack.c.h.b16 %v4559
  %v5048 = vunpack.c.l.b16 %v4560
  %v5049 = vunpack.c.h.b16 %v4560
  %v5050 = vunpack.c.l.b16 %v4561
  %v5051 = vunpack.c.h.b16 %v4561
  %v5052 = vunpack.c.l.b16 %v4562
  %v5053 = vunpack.c.h.b16 %v4562
  %v5054 = vunpack.c.l.b16 %v4563
  %v5055 = vunpack.c.h.b16 %v4563
  %v5056 = vunpack.c.l.b16 %v4564
  %v5057 = vunpack.c.h.b16 %v4564
  %v5058 = vunpack.c.l.b16 %v4565
  %v5059 = vunpack.c.h.b16 %v4565
  %v5060 = vunpack.c.l.b16 %v4566
  %v5061 = vunpack.c.h.b16 %v4566
  %v5062 = vunpack.c.l.b16 %v4567
  %v5063 = vunpack.c.h.b16 %v4567
  %v5064 = vunpack.c.l.b16 %v4568
  %v5065 = vunpack.c.h.b16 %v4568
  %v5066 = vunpack.c.l.b16 %v4569
  %v5067 = vunpack.c.h.b16 %v4569
  %v5068 = vunpack.c.l.b16 %v4570
  %v5069 = vunpack.c.h.b16 %v4570
  %v5070 = vunpack.c.l.b16 %v4571
  %v5071 = vunpack.c.h.b16 %v4571
  %v5072 = vunpack.c.l.b16 %v4572
  %v5073 = vunpack.c.h.b16 %v4572
  %v5074 = vunpack.c.l.b16 %v4573
  %v5075 = vunpack.c.h.b16 %v4573
  %v5076 = vunpack.c.l.b16 %v4574
  %v5077 = vunpack.c.h.b16 %v4574
  %v5078 = vunpack.c.l.b16 %v4575
  %v5079 = vunpack.c.h.b16 %v4575
  %v5080 = vunpack.c.l.b16 %v4576
  %v5081 = vunpack.c.h.b16 %v4576
  %v5082 = vunpack.c.l.b16 %v4577
  %v5083 = vunpack.c.h.b16 %v4577
  %v5084 = vunpack.c.l.b16 %v4578
  %v5085 = vunpack.c.h.b16 %v4578
  %v5086 = vunpack.c.l.b16 %v4579
  %v5087 = vunpack.c.h.b16 %v4579
  %v5088 = vunpack.c.l.b16 %v4580
  %v5089 = vunpack.c.h.b16 %v4580
  %v5090 = vunpack.c.l.b16 %v4581
  %v5091 = vunpack.c.h.b16 %v4581
  %v5092 = vunpack.c.l.b16 %v4582
  %v5093 = vunpack.c.h.b16 %v4582
  %v5094 = vunpack.c.l.b16 %v4583
  %v5095 = vunpack.c.h.b16 %v4583
  %v5096 = vunpack.c.l.b16 %v4584
  %v5097 = vunpack.c.h.b16 %v4584
  %v5098 = vunpack.c.l.b16 %v4585
  %v5099 = vunpack.c.h.b16 %v4585
  %v5100 = vunpack.c.l.b16 %v4586
  %v5101 = vunpack.c.h.b16 %v4586
  %v5102 = vunpack.c.l.b16 %v4587
  %v5103 = vunpack.c.h.b16 %v4587
  %v5104 = vunpack.c.l.b16 %v4588
  %v5105 = vunpack.c.h.b16 %v4588
  %v5106 = vunpack.c.l.b16 %v4589
  %v5107 = vunpack.c.h.b16 %v4589
  %v5108 = vunpack.c.l.b16 %v4590
  %v5109 = vunpack.c.h.b16 %v4590
  %v5110 = vunpack.c.l.b16 %v4591
  %v5111 = vunpack.c.h.b16 %v4591
  %v5112 = vunpack.c.l.b16 %v4592
  %v5113 = vunpack.c.h.b16 %v4592
  %v5114 = vunpack.c.l.b16 %v4593
  %v5115 = vunpack.c.h.b16 %v4593
  %v5116 = vunpack.c.l.b16 %v4594
  %v5117 = vunpack.c.h.b16 %v4594
  %v5118 = vunpack.c.l.b16 %v4595
  %v5119 = vunpack.c.h.b16 %v4595
  %v5120 = vunpack.c.l.b16 %v4596
  %v5121 = vunpack.c.h.b16 %v4596
  %v5122 = vunpack.c.l.b16 %v4597
  %v5123 = vunpack.c.h.b16 %v4597
  %v5124 = vunpack.c.l.b16 %v4598
  %v5125 = vunpack.c.h.b16 %v4598
  %v5126 = vunpack.c.l.b16 %v4599
  %v5127 = vunpack.c.h.b16 %v4599
  %v5128 = vunpack.c.l.b16 %v4600
  %v5129 = vunpack.c.h.b16 %v4600
  %v5130 = vunpack.c.l.b16 %v4601
  %v5131 = vunpack.c.h.b16 %v4601
  %v5132 = vunpack.c.l.b16 %v4602
  %v5133 = vunpack.c.h.b16 %v4602
  %v5134 = vunpack.c.l.b16 %v4603
  %v5135 = vunpack.c.h.b16 %v4603
  %v5136 = vunpack.c.l.b16 %v4604
  %v5137 = vunpack.c.h.b16 %v4604
  %v5138 = vunpack.c.l.b16 %v4605
  %v5139 = vunpack.c.h.b16 %v4605
  %v5140 = vunpack.c.l.b16 %v4606
  %v5141 = vunpack.c.h.b16 %v4606
  %v5142 = vunpack.c.l.b16 %v4607
  %v5143 = vunpack.c.h.b16 %v4607
  %v5144 = vunpack.c.l.b16 %v4608
  %v5145 = vunpack.c.h.b16 %v4608
  %v5146 = vunpack.c.l.b16 %v4609
  %v5147 = vunpack.c.h.b16 %v4609
  %v5148 = vunpack.c.l.b16 %v4610
  %v5149 = vunpack.c.h.b16 %v4610
  %v5150 = vunpack.c.l.b16 %v4611
  %v5151 = vunpack.c.h.b16 %v4611
  %v5152 = vunpack.c.l.b16 %v4612
  %v5153 = vunpack.c.h.b16 %v4612
  %v5154 = vunpack.c.l.b16 %v4613
  %v5155 = vunpack.c.h.b16 %v4613
  %v5156 = vunpack.c.l.b16 %v4614
  %v5157 = vunpack.c.h.b16 %v4614
  %v5158 = vunpack.c.l.b16 %v4615
  %v5159 = vunpack.c.h.b16 %v4615
  %v5160 = vunpack.c.l.b16 %v4616
  %v5161 = vunpack.c.h.b16 %v4616
  %v5162 = vunpack.c.l.b16 %v4617
  %v5163 = vunpack.c.h.b16 %v4617
  %v5164 = vunpack.c.l.b16 %v4618
  %v5165 = vunpack.c.h.b16 %v4618
  %v5166 = vunpack.c.l.b16 %v4619
  %v5167 = vunpack.c.h.b16 %v4619
  %v5168 = vunpack.c.l.b16 %v4620
  %v5169 = vunpack.c.h.b16 %v4620
  %v5170 = vunpack.c.l.b16 %v4621
  %v5171 = vunpack.c.h.b16 %v4621
  %v5172 = vunpack.c.l.b16 %v4622
  %v5173 = vunpack.c.h.b16 %v4622
  %v5174 = vunpack.c.l.b16 %v4623
  %v5175 = vunpack.c.h.b16 %v4623
  %v5176 = vunpack.c.l.b16 %v4624
  %v5177 = vunpack.c.h.b16 %v4624
  %v5178 = vunpack.c.l.b16 %v4625
  %v5179 = vunpack.c.h.b16 %v4625
  %v5180 = vunpack.c.l.b16 %v4626
  %v5181 = vunpack.c.h.b16 %v4626
  %v5182 = vunpack.c.l.b16 %v4627
  %v5183 = vunpack.c.h.b16 %v4627
  %v5184 = vunpack.c.l.b16 %v4628
  %v5185 = vunpack.c.h.b16 %v4628
  %v5186 = vunpack.c.l.b16 %v4629
  %v5187 = vunpack.c.h.b16 %v4629
  %v5188 = vunpack.c.l.b16 %v4630
  %v5189 = vunpack.c.h.b16 %v4630
  %v5190 = vunpack.c.l.b16 %v4631
  %v5191 = vunpack.c.h.b16 %v4631
  %v5192 = vunpack.c.l.b16 %v4632
  %v5193 = vunpack.c.h.b16 %v4632
  %v5194 = vunpack.c.l.b16 %v4633
  %v5195 = vunpack.c.h.b16 %v4633
  %v5196 = vunpack.c.l.b16 %v4634
  %v5197 = vunpack.c.h.b16 %v4634
  %v5198 = vunpack.c.l.b16 %v4635
  %v5199 = vunpack.c.h.b16 %v4635
  %v5200 = vunpack.c.l.b16 %v4636
  %v5201 = vunpack.c.h.b16 %v4636
  %v5202 = vunpack.c.l.b16 %v4637
  %v5203 = vunpack.c.h.b16 %v4637
  %v5204 = vunpack.c.l.b16 %v4638
  %v5205 = vunpack.c.h.b16 %v4638
  %v5206 = vunpack.c.l.b16 %v4639
  %v5207 = vunpack.c.h.b16 %v4639
  %v5208 = vunpack.c.l.b16 %v4640
  %v5209 = vunpack.c.h.b16 %v4640
  %v5210 = vunpack.c.l.b16 %v4641
  %v5211 = vunpack.c.h.b16 %v4641
  %v5212 = vunpack.c.l.b16 %v4642
  %v5213 = vunpack.c.h.b16 %v4642
  %v5214 = vunpack.c.l.b16 %v4643
  %v5215 = vunpack.c.h.b16 %v4643
  %v5216 = vunpack.c.l.b16 %v4644
  %v5217 = vunpack.c.h.b16 %v4644
  %v5218 = vunpack.c.l.b16 %v4645
  %v5219 = vunpack.c.h.b16 %v4645
  %v5220 = vunpack.c.l.b16 %v4646
  %v5221 = vunpack.c.h.b16 %v4646
  %v5222 = vunpack.c.l.b16 %v4647
  %v5223 = vunpack.c.h.b16 %v4647
  %v5224 = vunpack.c.l.b16 %v4648
  %v5225 = vunpack.c.h.b16 %v4648
  %v5226 = vunpack.c.l.b16 %v4649
  %v5227 = vunpack.c.h.b16 %v4649
  %v5228 = vunpack.c.l.b16 %v4650
  %v5229 = vunpack.c.h.b16 %v4650
  %v5230 = vunpack.c.l.b16 %v4651
  %v5231 = vunpack.c.h.b16 %v4651
  %v5232 = vunpack.c.l.b16 %v4652
  %v5233 = vunpack.c.h.b16 %v4652
  %v5234 = vunpack.c.l.b16 %v4653
  %v5235 = vunpack.c.h.b16 %v4653
  %v5236 = vunpack.c.l.b16 %v4654
  %v5237 = vunpack.c.h.b16 %v4654
  %v5238 = vunpack.c.l.b16 %v4655
  %v5239 = vunpack.c.h.b16 %v4655
  %v5240 = vunpack.c.l.b16 %v4656
  %v5241 = vunpack.c.h.b16 %v4656
  %v5242 = vunpack.c.l.b16 %v4657
  %v5243 = vunpack.c.h.b16 %v4657
  %v5244 = vunpack.c.l.b16 %v4658
  %v5245 = vunpack.c.h.b16 %v4658
  %v5246 = vunpack.c.l.b16 %v4659
  %v5247 = vunpack.c.h.b16 %v4659
  %v5248 = vunpack.c.l.b16 %v4660
  %v5249 = vunpack.c.h.b16 %v4660
  %v5250 = vunpack.c.l.b16 %v4661
  %v5251 = vunpack.c.h.b16 %v4661
  %v5252 = vunpack.c.l.b16 %v4662
  %v5253 = vunpack.c.h.b16 %v4662
  %v5254 = vunpack.c.l.b16 %v4663
  %v5255 = vunpack.c.h.b16 %v4663
  %v5256 = vunpack.c.l.b16 %v4664
  %v5257 = vunpack.c.h.b16 %v4664
  %v5258 = vunpack.c.l.b16 %v4665
  %v5259 = vunpack.c.h.b16 %v4665
  %v5260 = vunpack.c.l.b16 %v4666
  %v5261 = vunpack.c.h.b16 %v4666
  %v5262 = vunpack.c.l.b16 %v4667
  %v5263 = vunpack.c.h.b16 %v4667
  %v5264 = vunpack.c.l.b16 %v4668
  %v5265 = vunpack.c.h.b16 %v4668
  %v5266 = vunpack.c.l.b16 %v4669
  %v5267 = vunpack.c.h.b16 %v4669
  %v5268 = vunpack.c.l.b16 %v4670
  %v5269 = vunpack.c.h.b16 %v4670
  %v5270 = vunpack.c.l.b16 %v4671
  %v5271 = vunpack.c.h.b16 %v4671
  %v5272 = vunpack.c.l.b16 %v4672
  %v5273 = vunpack.c.h.b16 %v4672
  %v5274 = vunpack.c.l.b16 %v4673
  %v5275 = vunpack.c.h.b16 %v4673
  %v5276 = vunpack.c.l.b16 %v4674
  %v5277 = vunpack.c.h.b16 %v4674
  %v5278 = vunpack.c.l.b16 %v4675
  %v5279 = vunpack.c.h.b16 %v4675
  %v5280 = vunpack.c.l.b16 %v4676
  %v5281 = vunpack.c.h.b16 %v4676
  %v5282 = vunpack.c.l.b16 %v4677
  %v5283 = vunpack.c.h.b16 %v4677
  %v5284 = vunpack.c.l.b16 %v4678
  %v5285 = vunpack.c.h.b16 %v4678
  %v5286 = vunpack.c.l.b16 %v4679
  %v5287 = vunpack.c.h.b16 %v4679
  %v5288 = vunpack.c.l.b16 %v4680
  %v5289 = vunpack.c.h.b16 %v4680
  %v5290 = vunpack.c.l.b16 %v4681
  %v5291 = vunpack.c.h.b16 %v4681
  %v5292 = vunpack.c.l.b16 %v4682
  %v5293 = vunpack.c.h.b16 %v4682
  %v5294 = vunpack.c.l.b16 %v4683
  %v5295 = vunpack.c.h.b16 %v4683
  %v5296 = vunpack.c.l.b16 %v4684
  %v5297 = vunpack.c.h.b16 %v4684
  %v5298 = vunpack.c.l.b16 %v4685
  %v5299 = vunpack.c.h.b16 %v4685
  %v5300 = vunpack.c.l.b16 %v4686
  %v5301 = vunpack.c.h.b16 %v4686
  %v5302 = vunpack.c.l.b16 %v4687
  %v5303 = vunpack.c.h.b16 %v4687
  %v5304 = vunpack.c.l.b16 %v4688
  %v5305 = vunpack.c.h.b16 %v4688
  %v5306 = vunpack.c.l.b16 %v4689
  %v5307 = vunpack.c.h.b16 %v4689
  %v5308 = vunpack.c.l.b16 %v4690
  %v5309 = vunpack.c.h.b16 %v4690
  %v5310 = vunpack.c.l.b16 %v4691
  %v5311 = vunpack.c.h.b16 %v4691
  %v5312 = vunpack.c.l.b16 %v4692
  %v5313 = vunpack.c.h.b16 %v4692
  %v5314 = vunpack.c.l.b16 %v4693
  %v5315 = vunpack.c.h.b16 %v4693
  %v5316 = vpack.c.b16 %v4920, %v4916
  %v5317 = vpack.c.b16 %v4921, %v4917
  %v5318 = vpack.c.b16 %v4922, %v4918
  %v5319 = vpack.c.b16 %v4923, %v4919
  %v5320 = vpack.c.b16 %v4928, %v4924
  %v5321 = vpack.c.b16 %v4929, %v4925
  %v5322 = vpack.c.b16 %v4930, %v4926
  %v5323 = vpack.c.b16 %v4931, %v4927
  %v5324 = vpack.c.b16 %v4936, %v4932
  %v5325 = vpack.c.b16 %v4937, %v4933
  %v5326 = vpack.c.b16 %v4938, %v4934
  %v5327 = vpack.c.b16 %v4939, %v4935
  %v5328 = vpack.c.b16 %v4944, %v4940
  %v5329 = vpack.c.b16 %v4945, %v4941
  %v5330 = vpack.c.b16 %v4946, %v4942
  %v5331 = vpack.c.b16 %v4947, %v4943
  %v5332 = vpack.c.b16 %v4952, %v4948
  %v5333 = vpack.c.b16 %v4953, %v4949
  %v5334 = vpack.c.b16 %v4954, %v4950
  %v5335 = vpack.c.b16 %v4955, %v4951
  %v5336 = vpack.c.b16 %v4960, %v4956
  %v5337 = vpack.c.b16 %v4961, %v4957
  %v5338 = vpack.c.b16 %v4962, %v4958
  %v5339 = vpack.c.b16 %v4963, %v4959
  %v5340 = vpack.c.b16 %v4968, %v4964
  %v5341 = vpack.c.b16 %v4969, %v4965
  %v5342 = vpack.c.b16 %v4970, %v4966
  %v5343 = vpack.c.b16 %v4971, %v4967
  %v5344 = vpack.c.b16 %v4976, %v4972
  %v5345 = vpack.c.b16 %v4977, %v4973
  %v5346 = vpack.c.b16 %v4978, %v4974
  %v5347 = vpack.c.b16 %v4979, %v4975
  %v5348 = vpack.c.b16 %v4984, %v4980
  %v5349 = vpack.c.b16 %v4985, %v4981
  %v5350 = vpack.c.b16 %v4986, %v4982
  %v5351 = vpack.c.b16 %v4987, %v4983
  %v5352 = vpack.c.b16 %v4992, %v4988
  %v5353 = vpack.c.b16 %v4993, %v4989
  %v5354 = vpack.c.b16 %v4994, %v4990
  %v5355 = vpack.c.b16 %v4995, %v4991
  %v5356 = vpack.c.b16 %v5000, %v4996
  %v5357 = vpack.c.b16 %v5001, %v4997
  %v5358 = vpack.c.b16 %v5002, %v4998
  %v5359 = vpack.c.b16 %v5003, %v4999
  %v5360 = vpack.c.b16 %v5008, %v5004
  %v5361 = vpack.c.b16 %v5009, %v5005
  %v5362 = vpack.c.b16 %v5010, %v5006
  %v5363 = vpack.c.b16 %v5011, %v5007
  %v5364 = vpack.c.b16 %v5016, %v5012
  %v5365 = vpack.c.b16 %v5017, %v5013
  %v5366 = vpack.c.b16 %v5018, %v5014
  %v5367 = vpack.c.b16 %v5019, %v5015
  %v5368 = vpack.c.b16 %v5024, %v5020
  %v5369 = vpack.c.b16 %v5025, %v5021
  %v5370 = vpack.c.b16 %v5026, %v5022
  %v5371 = vpack.c.b16 %v5027, %v5023
  %v5372 = vpack.c.b16 %v5032, %v5028
  %v5373 = vpack.c.b16 %v5033, %v5029
  %v5374 = vpack.c.b16 %v5034, %v5030
  %v5375 = vpack.c.b16 %v5035, %v5031
  %v5376 = vpack.c.b16 %v5040, %v5036
  %v5377 = vpack.c.b16 %v5041, %v5037
  %v5378 = vpack.c.b16 %v5042, %v5038
  %v5379 = vpack.c.b16 %v5043, %v5039
  %v5380 = vpack.c.b16 %v5048, %v5044
  %v5381 = vpack.c.b16 %v5049, %v5045
  %v5382 = vpack.c.b16 %v5050, %v5046
  %v5383 = vpack.c.b16 %v5051, %v5047
  %v5384 = vpack.c.b16 %v5056, %v5052
  %v5385 = vpack.c.b16 %v5057, %v5053
  %v5386 = vpack.c.b16 %v5058, %v5054
  %v5387 = vpack.c.b16 %v5059, %v5055
  %v5388 = vpack.c.b16 %v5064, %v5060
  %v5389 = vpack.c.b16 %v5065, %v5061
  %v5390 = vpack.c.b16 %v5066, %v5062
  %v5391 = vpack.c.b16 %v5067, %v5063
  %v5392 = vpack.c.b16 %v5072, %v5068
  %v5393 = vpack.c.b16 %v5073, %v5069
  %v5394 = vpack.c.b16 %v5074, %v5070
  %v5395 = vpack.c.b16 %v5075, %v5071
  %v5396 = vpack.c.b16 %v5080, %v5076
  %v5397 = vpack.c.b16 %v5081, %v5077
  %v5398 = vpack.c.b16 %v5082, %v5078
  %v5399 = vpack.c.b16 %v5083, %v5079
  %v5400 = vpack.c.b16 %v5088, %v5084
  %v5401 = vpack.c.b16 %v5089, %v5085
  %v5402 = vpack.c.b16 %v5090, %v5086
  %v5403 = vpack.c.b16 %v5091, %v5087
  %v5404 = vpack.c.b16 %v5096, %v5092
  %v5405 = vpack.c.b16 %v5097, %v5093
  %v5406 = vpack.c.b16 %v5098, %v5094
  %v5407 = vpack.c.b16 %v5099, %v5095
  %v5408 = vpack.c.b16 %v5104, %v5100
  %v5409 = vpack.c.b16 %v5105, %v5101
  %v5410 = vpack.c.b16 %v5106, %v5102
  %v5411 = vpack.c.b16 %v5107, %v5103
  %v5412 = vpack.c.b16 %v5112, %v5108
  %v5413 = vpack.c.b16 %v5113, %v5109
  %v5414 = vpack.c.b16 %v5114, %v5110
  %v5415 = vpack.c.b16 %v5115, %v5111
  %v5416 = vpack.c.b16 %v5120, %v5116
  %v5417 = vpack.c.b16 %v5121, %v5117
  %v5418 = vpack.c.b16 %v5122, %v5118
  %v5419 = vpack.c.b16 %v5123, %v5119
  %v5420 = vpack.c.b16 %v5128, %v5124
  %v5421 = vpack.c.b16 %v5129, %v5125
  %v5422 = vpack.c.b16 %v5130, %v5126
  %v5423 = vpack.c.b16 %v5131, %v5127
  %v5424 = vpack.c.b16 %v5136, %v5132
  %v5425 = vpack.c.b16 %v5137, %v5133
  %v5426 = vpack.c.b16 %v5138, %v5134
  %v5427 = vpack.c.b16 %v5139, %v5135
  %v5428 = vpack.c.b16 %v5144, %v5140
  %v5429 = vpack.c.b16 %v5145, %v5141
  %v5430 = vpack.c.b16 %v5146, %v5142
  %v5431 = vpack.c.b16 %v5147, %v5143
  %v5432 = vpack.c.b16 %v5152, %v5148
  %v5433 = vpack.c.b16 %v5153, %v5149
  %v5434 = vpack.c.b16 %v5154, %v5150
  %v5435 = vpack.c.b16 %v5155, %v5151
  %v5436 = vpack.c.b16 %v5160, %v5156
  %v5437 = vpack.c.b16 %v5161, %v5157
  %v5438 = vpack.c.b16 %v5162, %v5158
  %v5439 = vpack.c.b16 %v5163, %v5159
  %v5440 = vpack.c.b16 %v5168, %v5164
  %v5441 = vpack.c.b16 %v5169, %v5165
  %v5442 = vpack.c.b16 %v5170, %v5166
  %v5443 = vpack.c.b16 %v5171, %v5167
  %v5444 = vpack.c.b16 %v5176, %v5172
  %v5445 = vpack.c.b16 %v5177, %v5173
  %v5446 = vpack.c.b16 %v5178, %v5174
  %v5447 = vpack.c.b16 %v5179, %v5175
  %v5448 = vpack.c.b16 %v5184, %v5180
  %v5449 = vpack.c.b16 %v5185, %v5181
  %v5450 = vpack.c.b16 %v5186, %v5182
  %v5451 = vpack.c.b16 %v5187, %v5183
  %v5452 = vpack.c.b16 %v5192, %v5188
  %v5453 = vpack.c.b16 %v5193, %v5189
  %v5454 = vpack.c.b16 %v5194, %v5190
  %v5455 = vpack.c.b16 %v5195, %v5191
  %v5456 = vpack.c.b16 %v5200, %v5196
  %v5457 = vpack.c.b16 %v5201, %v5197
  %v5458 = vpack.c.b16 %v5202, %v5198
  %v5459 = vpack.c.b16 %v5203, %v5199
  %v5460 = vpack.c.b16 %v5208, %v5204
  %v5461 = vpack.c.b16 %v5209, %v5205
  %v5462 = vpack.c.b16 %v5210, %v5206
  %v5463 = vpack.c.b16 %v5211, %v5207
  %v5464 = vpack.c.b16 %v5216, %v5212
  %v5465 = vpack.c.b16 %v5217, %v5213
  %v5466 = vpack.c.b16 %v5218, %v5214
  %v5467 = vpack.c.b16 %v5219, %v5215
  %v5468 = vpack.c.b16 %v5224, %v5220
  %v5469 = vpack.c.b16 %v5225, %v5221
  %v5470 = vpack.c.b16 %v5226, %v5222
  %v5471 = vpack.c.b16 %v5227, %v5223
  %v5472 = vpack.c.b16 %v5232, %v5228
  %v5473 = vpack.c.b16 %v5233, %v5229
  %v5474 = vpack.c.b16 %v5234, %v5230
  %v5475 = vpack.c.b16 %v5235, %v5231
  %v5476 = vpack.c.b16 %v5240, %v5236
  %v5477 = vpack.c.b16 %v5241, %v5237
  %v5478 = vpack.c.b16 %v5242, %v5238
  %v5479 = vpack.c.b16 %v5243, %v5239
  %v5480 = vpack.c.b16 %v5248, %v5244
  %v5481 = vpack.c.b16 %v5249, %v5245
  %v5482 = vpack.c.b16 %v5250, %v5246
  %v5483 = vpack.c.b16 %v5251, %v5247
  %v5484 = vpack.c.b16 %v5256, %v5252
  %v5485 = vpack.c.b16 %v5257, %v5253
  %v5486 = vpack.c.b16 %v5258, %v5254
  %v5487 = vpack.c.b16 %v5259, %v5255
  %v5488 = vpack.c.b16 %v5264, %v5260
  %v5489 = vpack.c.b16 %v5265, %v5261
  %v5490 = vpack.c.b16 %v5266, %v5262
  %v5491 = vpack.c.b16 %v5267, %v5263
  %v5492 = vpack.c.b16 %v5272, %v5268
  %v5493 = vpack.c.b16 %v5273, %v5269
  %v5494 = vpack.c.b16 %v5274, %v5270
  %v5495 = vpack.c.b16 %v5275, %v5271
  %v5496 = vpack.c.b16 %v5280, %v5276
  %v5497 = vpack.c.b16 %v5281, %v5277
  %v5498 = vpack.c.b16 %v5282, %v5278
  %v5499 = vpack.c.b16 %v5283, %v5279
  %v5500 = vpack.c.b16 %v5288, %v5284
  %v5501 = vpack.c.b16 %v5289, %v5285
  %v5502 = vpack.c.b16 %v5290, %v5286
  %v5503 = vpack.c.b16 %v5291, %v5287
  %v5504 = vpack.c.b16 %v5296, %v5292
  %v5505 = vpack.c.b16 %v5297, %v5293
  %v5506 = vpack.c.b16 %v5298, %v5294
  %v5507 = vpack.c.b16 %v5299, %v5295
  %v5508 = vpack.c.b16 %v5304, %v5300
  %v5509 = vpack.c.b16 %v5305, %v5301
  %v5510 = vpack.c.b16 %v5306, %v5302
  %v5511 = vpack.c.b16 %v5307, %v5303
  %v5512 = vpack.c.b16 %v5312, %v5308
  %v5513 = vpack.c.b16 %v5313, %v5309
  %v5514 = vpack.c.b16 %v5314, %v5310
  %v5515 = vpack.c.b16 %v5315, %v5311
  %v5717 = vsel %vm3789, %v4493, 0
  %5719 = vmatprep.subr.bf16.mxu0 %v5345
  %5720 = vmatpush1.bf16.msra.mxu0 %v5344
  %5721 = vmatprep.subr.bf16.mxu0 %v5341
  %5722 = vmatpush1.bf16.msra.mxu0 %v5340
  %5723 = vmatprep.subr.bf16.mxu0 %v5337
  %5724 = vmatpush1.bf16.msra.mxu0 %v5336
  %5725 = vmatprep.subr.bf16.mxu0 %v5333
  %5726 = vmatpush1.bf16.msra.mxu0 %v5332
  %5727 = vmatprep.subr.bf16.mxu0 %v5329
  %5728 = vmatpush1.bf16.msra.mxu0 %v5328
  %5729 = vmatprep.subr.bf16.mxu0 %v5325
  %5730 = vmatpush1.bf16.msra.mxu0 %v5324
  %5731 = vmatprep.subr.bf16.mxu0 %v5321
  %5732 = vmatpush1.bf16.msra.mxu0 %v5320
  %5733 = vmatprep.subr.bf16.mxu0 %v5317
  %5734 = vmatpush1.bf16.msra.mxu0 %v5316
  %5735 = vmatprep.subr.bf16.mxu0 %v5377
  %5736 = vmatpush2.bf16.msra.mxu0 %v5376
  %5737 = vmatprep.subr.bf16.mxu0 %v5373
  %5738 = vmatpush2.bf16.msra.mxu0 %v5372
  %5739 = vmatprep.subr.bf16.mxu0 %v5369
  %5740 = vmatpush2.bf16.msra.mxu0 %v5368
  %5741 = vmatprep.subr.bf16.mxu0 %v5365
  %5742 = vmatpush2.bf16.msra.mxu0 %v5364
  %5743 = vmatprep.subr.bf16.mxu0 %v5361
  %5744 = vmatpush2.bf16.msra.mxu0 %v5360
  %5745 = vmatprep.subr.bf16.mxu0 %v5357
  %5746 = vmatpush2.bf16.msra.mxu0 %v5356
  %5747 = vmatprep.subr.bf16.mxu0 %v5353
  %5748 = vmatpush2.bf16.msra.mxu0 %v5352
  %5749 = vmatprep.subr.bf16.mxu0 %v5349
  %5750 = vmatpush2.bf16.msra.mxu0 %v5348
  %5751 = vmatprep.mubr.bf16.mxu0 %v4488
  %5752 = vmatmul.mubr.bf16.gmra.mxu0 %v4487
  %v5753 = vpop.f32.mrf.mxu0
  %v5754 = vadd.f32 %v4699, %v5753
  %v5755 = vpop.f32.mrf.mxu0
  %v5756 = vadd.f32 %v4703, %v5755
  %v5757 = vpop.f32.mrf.mxu0
  %v5758 = vadd.f32 %v4699, %v5757
  %v5759 = vpop.f32.mrf.mxu0
  %v5760 = vadd.f32 %v4703, %v5759
  %5761 = vdwg.mxu0
  %5762 = vmatprep.subr.bf16.mxu0 %v5409
  %5763 = vmatpush1.bf16.msra.mxu0 %v5408
  %5764 = vmatprep.subr.bf16.mxu0 %v5405
  %5765 = vmatpush1.bf16.msra.mxu0 %v5404
  %5766 = vmatprep.subr.bf16.mxu0 %v5401
  %5767 = vmatpush1.bf16.msra.mxu0 %v5400
  %5768 = vmatprep.subr.bf16.mxu0 %v5397
  %5769 = vmatpush1.bf16.msra.mxu0 %v5396
  %5770 = vmatprep.subr.bf16.mxu0 %v5393
  %5771 = vmatpush1.bf16.msra.mxu0 %v5392
  %5772 = vmatprep.subr.bf16.mxu0 %v5389
  %5773 = vmatpush1.bf16.msra.mxu0 %v5388
  %5774 = vmatprep.subr.bf16.mxu0 %v5385
  %5775 = vmatpush1.bf16.msra.mxu0 %v5384
  %5776 = vmatprep.subr.bf16.mxu0 %v5381
  %5777 = vmatpush1.bf16.msra.mxu0 %v5380
  %5778 = vmatprep.subr.bf16.mxu0 %v5441
  %5779 = vmatpush2.bf16.msra.mxu0 %v5440
  %5780 = vmatprep.subr.bf16.mxu0 %v5437
  %5781 = vmatpush2.bf16.msra.mxu0 %v5436
  %5782 = vmatprep.subr.bf16.mxu0 %v5433
  %5783 = vmatpush2.bf16.msra.mxu0 %v5432
  %5784 = vmatprep.subr.bf16.mxu0 %v5429
  %5785 = vmatpush2.bf16.msra.mxu0 %v5428
  %5786 = vmatprep.subr.bf16.mxu0 %v5425
  %5787 = vmatpush2.bf16.msra.mxu0 %v5424
  %5788 = vmatprep.subr.bf16.mxu0 %v5421
  %5789 = vmatpush2.bf16.msra.mxu0 %v5420
  %5790 = vmatprep.subr.bf16.mxu0 %v5417
  %5791 = vmatpush2.bf16.msra.mxu0 %v5416
  %5792 = vmatprep.subr.bf16.mxu0 %v5413
  %5793 = vmatpush2.bf16.msra.mxu0 %v5412
  %5794 = vmatprep.mubr.bf16.mxu0 %v4490
  %5795 = vmatmul.mubr.bf16.gmra.mxu0 %v4489
  %v5796 = vpop.f32.mrf.mxu0
  %v5797 = vadd.f32 %v5754, %v5796
  %v5798 = vpop.f32.mrf.mxu0
  %v5799 = vadd.f32 %v5756, %v5798
  %v5800 = vpop.f32.mrf.mxu0
  %v5801 = vadd.f32 %v5758, %v5800
  %v5802 = vpop.f32.mrf.mxu0
  %v5803 = vadd.f32 %v5760, %v5802
  %5804 = vdwg.mxu0
  %5805 = vmatprep.subr.bf16.mxu0 %v5473
  %5806 = vmatpush1.bf16.msra.mxu0 %v5472
  %5807 = vmatprep.subr.bf16.mxu0 %v5469
  %5808 = vmatpush1.bf16.msra.mxu0 %v5468
  %5809 = vmatprep.subr.bf16.mxu0 %v5465
  %5810 = vmatpush1.bf16.msra.mxu0 %v5464
  %5811 = vmatprep.subr.bf16.mxu0 %v5461
  %5812 = vmatpush1.bf16.msra.mxu0 %v5460
  %5813 = vmatprep.subr.bf16.mxu0 %v5457
  %5814 = vmatpush1.bf16.msra.mxu0 %v5456
  %5815 = vmatprep.subr.bf16.mxu0 %v5453
  %5816 = vmatpush1.bf16.msra.mxu0 %v5452
  %5817 = vmatprep.subr.bf16.mxu0 %v5449
  %5818 = vmatpush1.bf16.msra.mxu0 %v5448
  %5819 = vmatprep.subr.bf16.mxu0 %v5445
  %5820 = vmatpush1.bf16.msra.mxu0 %v5444
  %5821 = vmatprep.subr.bf16.mxu0 %v5505
  %5822 = vmatpush2.bf16.msra.mxu0 %v5504
  %5823 = vmatprep.subr.bf16.mxu0 %v5501
  %5824 = vmatpush2.bf16.msra.mxu0 %v5500
  %5825 = vmatprep.subr.bf16.mxu0 %v5497
  %5826 = vmatpush2.bf16.msra.mxu0 %v5496
  %5827 = vmatprep.subr.bf16.mxu0 %v5493
  %5828 = vmatpush2.bf16.msra.mxu0 %v5492
  %5829 = vmatprep.subr.bf16.mxu0 %v5489
  %5830 = vmatpush2.bf16.msra.mxu0 %v5488
  %5831 = vmatprep.subr.bf16.mxu0 %v5485
  %5832 = vmatpush2.bf16.msra.mxu0 %v5484
  %5833 = vmatprep.subr.bf16.mxu0 %v5481
  %5834 = vmatpush2.bf16.msra.mxu0 %v5480
  %5835 = vmatprep.subr.bf16.mxu0 %v5477
  %5836 = vmatpush2.bf16.msra.mxu0 %v5476
  %5837 = vmatprep.mubr.bf16.mxu0 %v4492
  %5838 = vmatmul.mubr.bf16.gmra.mxu0 %v4491
  %v5839 = vpop.f32.mrf.mxu0
  %v5840 = vadd.f32 %v5797, %v5839
  %v5841 = vpop.f32.mrf.mxu0
  %v5842 = vadd.f32 %v5799, %v5841
  %v5843 = vpop.f32.mrf.mxu0
  %v5844 = vadd.f32 %v5801, %v5843
  %v5845 = vpop.f32.mrf.mxu0
  %v5846 = vadd.f32 %v5803, %v5845
  %5847 = vdwg.mxu0
  %5848 = vmatprep.subr.bf16.mxu0 0
  %5849 = vmatpush1.bf16.msra.mxu0 0
  %5850 = vmatprep.subr.bf16.mxu0 0
  %5851 = vmatpush1.bf16.msra.mxu0 0
  %5852 = vmatprep.subr.bf16.mxu0 0
  %5853 = vmatpush1.bf16.msra.mxu0 0
  %5854 = vmatprep.subr.bf16.mxu0 0
  %5855 = vmatpush1.bf16.msra.mxu0 0
  %5856 = vmatprep.subr.bf16.mxu0 0
  %5857 = vmatpush1.bf16.msra.mxu0 0
  %5858 = vmatprep.subr.bf16.mxu0 0
  %5859 = vmatpush1.bf16.msra.mxu0 0
  %5860 = vmatprep.subr.bf16.mxu0 %v5513
  %5861 = vmatpush1.bf16.msra.mxu0 %v5512
  %5862 = vmatprep.subr.bf16.mxu0 %v5509
  %5863 = vmatpush1.bf16.msra.mxu0 %v5508
  %5864 = vmatprep.subr.bf16.mxu0 0
  %5865 = vmatpush2.bf16.msra.mxu0 0
  %5866 = vmatprep.subr.bf16.mxu0 0
  %5867 = vmatpush2.bf16.msra.mxu0 0
  %5868 = vmatprep.subr.bf16.mxu0 0
  %5869 = vmatpush2.bf16.msra.mxu0 0
  %5870 = vmatprep.subr.bf16.mxu0 0
  %5871 = vmatpush2.bf16.msra.mxu0 0
  %5872 = vmatprep.subr.bf16.mxu0 0
  %5873 = vmatpush2.bf16.msra.mxu0 0
  %5874 = vmatprep.subr.bf16.mxu0 0
  %5875 = vmatpush2.bf16.msra.mxu0 0
  %5876 = vmatprep.subr.bf16.mxu0 0
  %5877 = vmatpush2.bf16.msra.mxu0 0
  %5878 = vmatprep.subr.bf16.mxu0 0
  %5879 = vmatpush2.bf16.msra.mxu0 0
  %5880 = vmatprep.mubr.bf16.mxu0 0
  %5881 = vmatmul.mubr.bf16.gmra.mxu0 %v5717
  %v5882 = vpop.f32.mrf.mxu0
  %v5883 = vadd.f32 %v5840, %v5882
  %v5884 = vpop.f32.mrf.mxu0
  %v5885 = vadd.f32 %v5842, %v5884
  %v5886 = vpop.f32.mrf.mxu0
  %v5887 = vadd.f32 %v5844, %v5886
  %v5888 = vpop.f32.mrf.mxu0
  %v5889 = vadd.f32 %v5846, %v5888
  %5890 = vdwg.mxu0
  %5891 = vmatprep.subr.bf16.mxu0 %v5347
  %5892 = vmatpush1.bf16.msra.mxu0 %v5346
  %5893 = vmatprep.subr.bf16.mxu0 %v5343
  %5894 = vmatpush1.bf16.msra.mxu0 %v5342
  %5895 = vmatprep.subr.bf16.mxu0 %v5339
  %5896 = vmatpush1.bf16.msra.mxu0 %v5338
  %5897 = vmatprep.subr.bf16.mxu0 %v5335
  %5898 = vmatpush1.bf16.msra.mxu0 %v5334
  %5899 = vmatprep.subr.bf16.mxu0 %v5331
  %5900 = vmatpush1.bf16.msra.mxu0 %v5330
  %5901 = vmatprep.subr.bf16.mxu0 %v5327
  %5902 = vmatpush1.bf16.msra.mxu0 %v5326
  %5903 = vmatprep.subr.bf16.mxu0 %v5323
  %5904 = vmatpush1.bf16.msra.mxu0 %v5322
  %5905 = vmatprep.subr.bf16.mxu0 %v5319
  %5906 = vmatpush1.bf16.msra.mxu0 %v5318
  %5907 = vmatprep.subr.bf16.mxu0 %v5379
  %5908 = vmatpush2.bf16.msra.mxu0 %v5378
  %5909 = vmatprep.subr.bf16.mxu0 %v5375
  %5910 = vmatpush2.bf16.msra.mxu0 %v5374
  %5911 = vmatprep.subr.bf16.mxu0 %v5371
  %5912 = vmatpush2.bf16.msra.mxu0 %v5370
  %5913 = vmatprep.subr.bf16.mxu0 %v5367
  %5914 = vmatpush2.bf16.msra.mxu0 %v5366
  %5915 = vmatprep.subr.bf16.mxu0 %v5363
  %5916 = vmatpush2.bf16.msra.mxu0 %v5362
  %5917 = vmatprep.subr.bf16.mxu0 %v5359
  %5918 = vmatpush2.bf16.msra.mxu0 %v5358
  %5919 = vmatprep.subr.bf16.mxu0 %v5355
  %5920 = vmatpush2.bf16.msra.mxu0 %v5354
  %5921 = vmatprep.subr.bf16.mxu0 %v5351
  %5922 = vmatpush2.bf16.msra.mxu0 %v5350
  %5923 = vmatprep.mubr.bf16.mxu0 %v4488
  %5924 = vmatmul.mubr.bf16.gmra.mxu0 %v4487
  %v5925 = vpop.f32.mrf.mxu0
  %v5926 = vadd.f32 %v4707, %v5925
  %v5927 = vpop.f32.mrf.mxu0
  %v5928 = vadd.f32 %v4711, %v5927
  %v5929 = vpop.f32.mrf.mxu0
  %v5930 = vadd.f32 %v4707, %v5929
  %v5931 = vpop.f32.mrf.mxu0
  %v5932 = vadd.f32 %v4711, %v5931
  %5933 = vdwg.mxu0
  %5934 = vmatprep.subr.bf16.mxu0 %v5411
  %5935 = vmatpush1.bf16.msra.mxu0 %v5410
  %5936 = vmatprep.subr.bf16.mxu0 %v5407
  %5937 = vmatpush1.bf16.msra.mxu0 %v5406
  %5938 = vmatprep.subr.bf16.mxu0 %v5403
  %5939 = vmatpush1.bf16.msra.mxu0 %v5402
  %5940 = vmatprep.subr.bf16.mxu0 %v5399
  %5941 = vmatpush1.bf16.msra.mxu0 %v5398
  %5942 = vmatprep.subr.bf16.mxu0 %v5395
  %5943 = vmatpush1.bf16.msra.mxu0 %v5394
  %5944 = vmatprep.subr.bf16.mxu0 %v5391
  %5945 = vmatpush1.bf16.msra.mxu0 %v5390
  %5946 = vmatprep.subr.bf16.mxu0 %v5387
  %5947 = vmatpush1.bf16.msra.mxu0 %v5386
  %5948 = vmatprep.subr.bf16.mxu0 %v5383
  %5949 = vmatpush1.bf16.msra.mxu0 %v5382
  %5950 = vmatprep.subr.bf16.mxu0 %v5443
  %5951 = vmatpush2.bf16.msra.mxu0 %v5442
  %5952 = vmatprep.subr.bf16.mxu0 %v5439
  %5953 = vmatpush2.bf16.msra.mxu0 %v5438
  %5954 = vmatprep.subr.bf16.mxu0 %v5435
  %5955 = vmatpush2.bf16.msra.mxu0 %v5434
  %5956 = vmatprep.subr.bf16.mxu0 %v5431
  %5957 = vmatpush2.bf16.msra.mxu0 %v5430
  %5958 = vmatprep.subr.bf16.mxu0 %v5427
  %5959 = vmatpush2.bf16.msra.mxu0 %v5426
  %5960 = vmatprep.subr.bf16.mxu0 %v5423
  %5961 = vmatpush2.bf16.msra.mxu0 %v5422
  %5962 = vmatprep.subr.bf16.mxu0 %v5419
  %5963 = vmatpush2.bf16.msra.mxu0 %v5418
  %5964 = vmatprep.subr.bf16.mxu0 %v5415
  %5965 = vmatpush2.bf16.msra.mxu0 %v5414
  %5966 = vmatprep.mubr.bf16.mxu0 %v4490
  %5967 = vmatmul.mubr.bf16.gmra.mxu0 %v4489
  %v5968 = vpop.f32.mrf.mxu0
  %v5969 = vadd.f32 %v5926, %v5968
  %v5970 = vpop.f32.mrf.mxu0
  %v5971 = vadd.f32 %v5928, %v5970
  %v5972 = vpop.f32.mrf.mxu0
  %v5973 = vadd.f32 %v5930, %v5972
  %v5974 = vpop.f32.mrf.mxu0
  %v5975 = vadd.f32 %v5932, %v5974
  %5976 = vdwg.mxu0
  %5977 = vmatprep.subr.bf16.mxu0 %v5475
  %5978 = vmatpush1.bf16.msra.mxu0 %v5474
  %5979 = vmatprep.subr.bf16.mxu0 %v5471
  %5980 = vmatpush1.bf16.msra.mxu0 %v5470
  %5981 = vmatprep.subr.bf16.mxu0 %v5467
  %5982 = vmatpush1.bf16.msra.mxu0 %v5466
  %5983 = vmatprep.subr.bf16.mxu0 %v5463
  %5984 = vmatpush1.bf16.msra.mxu0 %v5462
  %5985 = vmatprep.subr.bf16.mxu0 %v5459
  %5986 = vmatpush1.bf16.msra.mxu0 %v5458
  %5987 = vmatprep.subr.bf16.mxu0 %v5455
  %5988 = vmatpush1.bf16.msra.mxu0 %v5454
  %5989 = vmatprep.subr.bf16.mxu0 %v5451
  %5990 = vmatpush1.bf16.msra.mxu0 %v5450
  %5991 = vmatprep.subr.bf16.mxu0 %v5447
  %5992 = vmatpush1.bf16.msra.mxu0 %v5446
  %5993 = vmatprep.subr.bf16.mxu0 %v5507
  %5994 = vmatpush2.bf16.msra.mxu0 %v5506
  %5995 = vmatprep.subr.bf16.mxu0 %v5503
  %5996 = vmatpush2.bf16.msra.mxu0 %v5502
  %5997 = vmatprep.subr.bf16.mxu0 %v5499
  %5998 = vmatpush2.bf16.msra.mxu0 %v5498
  %5999 = vmatprep.subr.bf16.mxu0 %v5495
  %6000 = vmatpush2.bf16.msra.mxu0 %v5494
  %6001 = vmatprep.subr.bf16.mxu0 %v5491
  %6002 = vmatpush2.bf16.msra.mxu0 %v5490
  %6003 = vmatprep.subr.bf16.mxu0 %v5487
  %6004 = vmatpush2.bf16.msra.mxu0 %v5486
  %6005 = vmatprep.subr.bf16.mxu0 %v5483
  %6006 = vmatpush2.bf16.msra.mxu0 %v5482
  %6007 = vmatprep.subr.bf16.mxu0 %v5479
  %6008 = vmatpush2.bf16.msra.mxu0 %v5478
  %6009 = vmatprep.mubr.bf16.mxu0 %v4492
  %6010 = vmatmul.mubr.bf16.gmra.mxu0 %v4491
  %v6011 = vpop.f32.mrf.mxu0
  %v6012 = vadd.f32 %v5969, %v6011
  %v6013 = vpop.f32.mrf.mxu0
  %v6014 = vadd.f32 %v5971, %v6013
  %v6015 = vpop.f32.mrf.mxu0
  %v6016 = vadd.f32 %v5973, %v6015
  %v6017 = vpop.f32.mrf.mxu0
  %v6018 = vadd.f32 %v5975, %v6017
  %6019 = vdwg.mxu0
  %6020 = vmatprep.subr.bf16.mxu0 0
  %6021 = vmatpush1.bf16.msra.mxu0 0
  %6022 = vmatprep.subr.bf16.mxu0 0
  %6023 = vmatpush1.bf16.msra.mxu0 0
  %6024 = vmatprep.subr.bf16.mxu0 0
  %6025 = vmatpush1.bf16.msra.mxu0 0
  %6026 = vmatprep.subr.bf16.mxu0 0
  %6027 = vmatpush1.bf16.msra.mxu0 0
  %6028 = vmatprep.subr.bf16.mxu0 0
  %6029 = vmatpush1.bf16.msra.mxu0 0
  %6030 = vmatprep.subr.bf16.mxu0 0
  %6031 = vmatpush1.bf16.msra.mxu0 0
  %6032 = vmatprep.subr.bf16.mxu0 %v5515
  %6033 = vmatpush1.bf16.msra.mxu0 %v5514
  %6034 = vmatprep.subr.bf16.mxu0 %v5511
  %6035 = vmatpush1.bf16.msra.mxu0 %v5510
  %6036 = vmatprep.subr.bf16.mxu0 0
  %6037 = vmatpush2.bf16.msra.mxu0 0
  %6038 = vmatprep.subr.bf16.mxu0 0
  %6039 = vmatpush2.bf16.msra.mxu0 0
  %6040 = vmatprep.subr.bf16.mxu0 0
  %6041 = vmatpush2.bf16.msra.mxu0 0
  %6042 = vmatprep.subr.bf16.mxu0 0
  %6043 = vmatpush2.bf16.msra.mxu0 0
  %6044 = vmatprep.subr.bf16.mxu0 0
  %6045 = vmatpush2.bf16.msra.mxu0 0
  %6046 = vmatprep.subr.bf16.mxu0 0
  %6047 = vmatpush2.bf16.msra.mxu0 0
  %6048 = vmatprep.subr.bf16.mxu0 0
  %6049 = vmatpush2.bf16.msra.mxu0 0
  %6050 = vmatprep.subr.bf16.mxu0 0
  %6051 = vmatpush2.bf16.msra.mxu0 0
  %6052 = vmatprep.mubr.bf16.mxu0 0
  %6053 = vmatmul.mubr.bf16.gmra.mxu0 %v5717
  %v6054 = vpop.f32.mrf.mxu0
  %v6055 = vadd.f32 %v6012, %v6054
  %v6056 = vpop.f32.mrf.mxu0
  %v6057 = vadd.f32 %v6014, %v6056
  %v6058 = vpop.f32.mrf.mxu0
  %v6059 = vadd.f32 %v6016, %v6058
  %v6060 = vpop.f32.mrf.mxu0
  %v6061 = vadd.f32 %v6018, %v6060
  %6062 = vdwg.mxu0
  %6063 = vst [vmem:[%s7] sm:$0xff] %v5883
  %6064 = vst [vmem:[%s7 + $0x8] sm:$0xff] %v5885
  %6065 = vst [vmem:[%s7 + $0x10] sm:$0xff] %v6055
  %6066 = vst.msk [vmem:[%s7 + $0x18] sm:$0xff] %vm1187, %v6057
  %6067 = vst [vmem:[%s7 + $0x20] sm:$0xff] %v5887
  %6068 = vst [vmem:[%s7 + $0x28] sm:$0xff] %v5889
  %6069 = vst [vmem:[%s7 + $0x30] sm:$0xff] %v6059
  %6070 = vst.msk [vmem:[%s7 + $0x38] sm:$0xff] %vm1187, %v6061
  // Predicated region
  $region30: #{image_nn2_forward.5} parent=0 // pred_check
    _
  $region31: #{image_nn2_forward.5} parent=0 // pred_check_branch
    %6072 = sbr.rel (0) target = $region33
  $region32: #{image_nn2_forward.5} parent=0 // pred_region
    _
  $region33: #{image_nn2_forward.5} parent=0 // pred_fallthru
    _
  // Predicated region
  $region34: #{image_nn2_forward.5} parent=0 // pred_check
    _
  $region35: #{image_nn2_forward.5} parent=0 // pred_check_branch
    %6074 = sbr.rel (0) target = $region37
  $region36: #{image_nn2_forward.5} parent=0 // pred_region
    _
  $region37: #{image_nn2_forward.5} parent=0 // pred_fallthru
    _

</llo_original>
